<compile_context>
chip_gen: v7x
topology: tpu7x:2x2x1
jax: 0.10.0
libtpu: 0.0.40
codegen_flags: <defaults>
</compile_context>

<pallas_src>
import functools

import jax
import jax.numpy as jnp
from jax.experimental import pallas as pl
from jax.experimental.pallas import tpu as pltpu


def _boundary_loss_tile_kernel(preds_ref, image_ref, out_ref, *,
                               tile_h, W, pad, sigma_color, sigma_space):
    """Partial boundary loss for one H tile.

    preds_ref: (C, tile_h + 2*pad, W + 2*pad) reflect-padded preds rows (halo).
    image_ref: (3, tile_h + 2*pad, W + 2*pad) reflect-padded image rows (halo).
    out_ref:   (8, 128) lane-dense slab carrying this tile's partial sum
               (sum over pixels and offsets of weight * diff_p).
    """
    preds_pad = preds_ref[...].astype(jnp.float32)
    image_pad = image_ref[...].astype(jnp.float32)

    inv_2sc2 = 1.0 / (2.0 * sigma_color * sigma_color)
    inv_2ss2 = 1.0 / (2.0 * sigma_space * sigma_space)

    # Prologue: channel square-sums of the padded block, computed once.
    p2_pad = jnp.sum(preds_pad * preds_pad, axis=0)     # (TH+2p, W+2p)
    i2_pad = jnp.sum(image_pad * image_pad, axis=0)     # (TH+2p, W+2p)

    # Center (unshifted) views.
    p_c = preds_pad[:, pad:pad + tile_h, pad:pad + W]   # (C, TH, W)
    i_c = image_pad[:, pad:pad + tile_h, pad:pad + W]   # (3, TH, W)
    p2_c = p2_pad[pad:pad + tile_h, pad:pad + W]        # (TH, W)
    i2_c = i2_pad[pad:pad + tile_h, pad:pad + W]        # (TH, W)

    acc = jnp.zeros((tile_h, W), jnp.float32)

    # Outer loop over dx: lane-axis shift materialized once per dx.
    # Inner loop over dy: sublane (row) slices only -> cheap.
    for dx in range(-pad, pad + 1):
        p_dx = preds_pad[:, :, pad + dx:pad + dx + W]   # (C, TH+2p, W)
        i_dx = image_pad[:, :, pad + dx:pad + dx + W]   # (3, TH+2p, W)
        p2_dx = p2_pad[:, pad + dx:pad + dx + W]        # (TH+2p, W)
        i2_dx = i2_pad[:, pad + dx:pad + dx + W]        # (TH+2p, W)
        for dy in range(-pad, pad + 1):
            if dx == 0 and dy == 0:
                continue
            sp = p_dx[:, pad + dy:pad + dy + tile_h, :]
            si = i_dx[:, pad + dy:pad + dy + tile_h, :]
            sp2 = p2_dx[pad + dy:pad + dy + tile_h, :]
            si2 = i2_dx[pad + dy:pad + dy + tile_h, :]

            # sum_c (a - b)^2 == a2 + b2 - 2 * sum_c(a * b)
            cross_p = jnp.sum(p_c * sp, axis=0)
            cross_i = jnp.sum(i_c * si, axis=0)
            diff_p = p2_c + sp2 - 2.0 * cross_p
            diff_i = i2_c + si2 - 2.0 * cross_i

            spatial = float(dx * dx + dy * dy)
            weight = jnp.exp(-diff_i * inv_2sc2 - spatial * inv_2ss2)
            acc = acc + weight * diff_p

    partial = jnp.sum(acc)                      # single cross-lane reduction
    out_ref[...] = jnp.broadcast_to(partial, out_ref.shape).astype(jnp.float32)


def _pick_tile_h(H, max_tile_h=256):
    """Largest H-tile <= max_tile_h that divides H (re-derive per generation)."""
    if H <= max_tile_h:
        return H
    for th in range(max_tile_h, 0, -1):
        if H % th == 0:
            return th
    return H


def constrain_to_boundary_loss_single(preds, image, *, sigma_color=0.1,
                                      sigma_space=5, window_size=5,
                                      eps=1e-8, tile_h=None):
    """Pallas TPU implementation of ConstrainToBoundaryLossSingle.forward."""
    del eps  # unused in the reference forward
    C, H, W = preds.shape
    Ci = image.shape[0]
    pad = window_size // 2
    n_off = window_size * window_size - 1

    if tile_h is None:
        tile_h = _pick_tile_h(H)
    assert H % tile_h == 0, "tile_h must divide H"
    num_tiles = H // tile_h
    th_halo = tile_h + 2 * pad
    Wp = W + 2 * pad

    # Reflect padding (matches torch F.pad mode='reflect') — plain JAX glue.
    preds_pad = jnp.pad(preds, ((0, 0), (pad, pad), (pad, pad)), mode="reflect")
    image_pad = jnp.pad(image, ((0, 0), (pad, pad), (pad, pad)), mode="reflect")

    # Build non-overlapping, halo-duplicated H tiles so each grid step maps to
    # a simple leading-axis block (duplication is only 2*pad rows per tile).
    if num_tiles == 1:
        preds_tiles = preds_pad[None]                       # (1, C, TH+2p, Wp)
        image_tiles = image_pad[None]
    else:
        rows = (jnp.arange(num_tiles) * tile_h)[:, None] + \
               jnp.arange(th_halo)[None, :]
        preds_tiles = jnp.moveaxis(preds_pad[:, rows, :], 1, 0)  # (T,C,TH+2p,Wp)
        image_tiles = jnp.moveaxis(image_pad[:, rows, :], 1, 0)  # (T,3,TH+2p,Wp)

    kernel = functools.partial(
        _boundary_loss_tile_kernel,
        tile_h=tile_h, W=W, pad=pad,
        sigma_color=float(sigma_color), sigma_space=float(sigma_space))

    cost = pl.CostEstimate(
        flops=n_off * H * W * (2 * C + 16) + 2 * (C + Ci) * (H + 2 * pad) * Wp,
        transcendentals=n_off * H * W,
        bytes_accessed=4 * ((C + Ci) * num_tiles * th_halo * Wp
                            + num_tiles * 8 * 128),
    )

    partials = pl.pallas_call(
        kernel,
        out_shape=jax.ShapeDtypeStruct((num_tiles, 8, 128), jnp.float32),
        grid=(num_tiles,),
        in_specs=[
            pl.BlockSpec((None, C, th_halo, Wp), lambda t: (t, 0, 0, 0)),
            pl.BlockSpec((None, Ci, th_halo, Wp), lambda t: (t, 0, 0, 0)),
        ],
        out_specs=pl.BlockSpec((None, 8, 128), lambda t: (t, 0, 0)),
        compiler_params=pltpu.CompilerParams(
            dimension_semantics=("parallel",),
            vmem_limit_bytes=48 * 1024 * 1024),
        cost_estimate=cost,
    )(preds_tiles, image_tiles)

    # Per-tile raw sums -> global mean over pixels, then / num_offsets.
    return jnp.sum(partials[:, 0, 0]) / (H * W) / n_off


def _reference_loss(preds, image, sigma_color=0.1, sigma_space=5,
                    window_size=5):
    """Pure-JAX reference mirroring the PyTorch forward."""
    C, H, W = preds.shape
    pad = window_size // 2
    preds_pad = jnp.pad(preds, ((0, 0), (pad, pad), (pad, pad)), mode="reflect")
    image_pad = jnp.pad(image, ((0, 0), (pad, pad), (pad, pad)), mode="reflect")
    loss = 0.0
    idx = 0
    for dy in range(-pad, pad + 1):
        for dx in range(-pad, pad + 1):
            if dx == 0 and dy == 0:
                continue
            sp = preds_pad[:, pad + dy:pad + dy + H, pad + dx:pad + dx + W]
            si = image_pad[:, pad + dy:pad + dy + H, pad + dx:pad + dx + W]
            diff = jnp.sum((preds - sp) ** 2, axis=0)
            diff_i = jnp.sum((image - si) ** 2, axis=0)
            weight = jnp.exp(-diff_i / (2 * sigma_color ** 2)
                             - (dx * dx + dy * dy) / (2 * sigma_space ** 2))
            loss = loss + jnp.mean(weight * diff)
            idx += 1
    return loss / idx


if __name__ == "__main__":
    key = jax.random.PRNGKey(0)
    kp, ki = jax.random.split(key)

    # Small but lane-dense shapes: W maps onto the 128-lane axis.
    C, H, W = 4, 32, 128
    preds = jax.nn.softmax(jax.random.normal(kp, (C, H, W), jnp.float32), axis=0)
    # Low-contrast image so the bilateral affinity weights are non-negligible.
    image = 0.15 * jax.random.uniform(ki, (3, H, W), jnp.float32)

    # tile_h=16 -> 2 H-tiles, exercising the halo/grid/parallel path.
    loss = constrain_to_boundary_loss_single(preds, image, tile_h=16)
    loss = jax.block_until_ready(loss)

    ref = _reference_loss(preds, image)
    assert jnp.allclose(loss, ref, rtol=1e-4, atol=1e-7), (loss, ref)

    print("KERNEL_OK")
</pallas_src>

<mosaic_0001>
module attributes {stable_mosaic.version = 11 : i64} {
  func.func @_boundary_loss_tile_kernel(%arg0: i32, %arg1: memref<1x4x20x132xf32, #tpu.memory_space<vmem>>, %arg2: memref<1x3x20x132xf32, #tpu.memory_space<vmem>>, %arg3: memref<1x8x128xf32, #tpu.memory_space<vmem>>) attributes {dimension_semantics = [#tpu.dimension_semantics<parallel>], iteration_bounds = array<i64: 2>, scalar_prefetch = 0 : i64, scratch_operands = 0 : i64, tpu.core_type = #tpu.core_type<tc>, window_params = [{transform_indices = @transform_0, window_bounds = array<i64: 1, 4, 20, 132>}, {transform_indices = @transform_1, window_bounds = array<i64: 1, 3, 20, 132>}, {transform_indices = @transform_2, window_bounds = array<i64: 1, 8, 128>}]} {
    %c0 = arith.constant 0 : index
    %c0_0 = arith.constant 0 : index
    %c0_1 = arith.constant 0 : index
    %c0_2 = arith.constant 0 : index
    %0 = vector.load %arg1[%c0, %c0_0, %c0_1, %c0_2] : memref<1x4x20x132xf32, #tpu.memory_space<vmem>>, vector<1x4x20x132xf32>
    %1 = vector.shape_cast %0 : vector<1x4x20x132xf32> to vector<4x20x132xf32>
    %c0_3 = arith.constant 0 : index
    %c0_4 = arith.constant 0 : index
    %c0_5 = arith.constant 0 : index
    %c0_6 = arith.constant 0 : index
    %2 = vector.load %arg2[%c0_3, %c0_4, %c0_5, %c0_6] : memref<1x3x20x132xf32, #tpu.memory_space<vmem>>, vector<1x3x20x132xf32>
    %3 = vector.shape_cast %2 : vector<1x3x20x132xf32> to vector<3x20x132xf32>
    %4 = arith.mulf %1, %1 : vector<4x20x132xf32>
    %cst = arith.constant dense<0.000000e+00> : vector<20x132xf32>
    %5 = vector.multi_reduction <add>, %4, %cst [0] : vector<4x20x132xf32> to vector<20x132xf32>
    %6 = arith.mulf %3, %3 : vector<3x20x132xf32>
    %cst_7 = arith.constant dense<0.000000e+00> : vector<20x132xf32>
    %7 = vector.multi_reduction <add>, %6, %cst_7 [0] : vector<3x20x132xf32> to vector<20x132xf32>
    %8 = vector.extract_strided_slice %1 {offsets = [0, 2, 2], sizes = [4, 16, 128], strides = [1, 1, 1]} : vector<4x20x132xf32> to vector<4x16x128xf32>
    %9 = vector.extract_strided_slice %3 {offsets = [0, 2, 2], sizes = [3, 16, 128], strides = [1, 1, 1]} : vector<3x20x132xf32> to vector<3x16x128xf32>
    %10 = vector.extract_strided_slice %5 {offsets = [2, 2], sizes = [16, 128], strides = [1, 1]} : vector<20x132xf32> to vector<16x128xf32>
    %11 = vector.extract_strided_slice %7 {offsets = [2, 2], sizes = [16, 128], strides = [1, 1]} : vector<20x132xf32> to vector<16x128xf32>
    %cst_8 = arith.constant 0.000000e+00 : f32
    %12 = vector.broadcast %cst_8 : f32 to vector<16x128xf32>
    %13 = vector.extract_strided_slice %1 {offsets = [0, 0, 0], sizes = [4, 20, 128], strides = [1, 1, 1]} : vector<4x20x132xf32> to vector<4x20x128xf32>
    %14 = vector.extract_strided_slice %3 {offsets = [0, 0, 0], sizes = [3, 20, 128], strides = [1, 1, 1]} : vector<3x20x132xf32> to vector<3x20x128xf32>
    %15 = vector.extract_strided_slice %5 {offsets = [0, 0], sizes = [20, 128], strides = [1, 1]} : vector<20x132xf32> to vector<20x128xf32>
    %16 = vector.extract_strided_slice %7 {offsets = [0, 0], sizes = [20, 128], strides = [1, 1]} : vector<20x132xf32> to vector<20x128xf32>
    %17 = vector.extract_strided_slice %13 {offsets = [0, 0, 0], sizes = [4, 16, 128], strides = [1, 1, 1]} : vector<4x20x128xf32> to vector<4x16x128xf32>
    %18 = vector.extract_strided_slice %14 {offsets = [0, 0, 0], sizes = [3, 16, 128], strides = [1, 1, 1]} : vector<3x20x128xf32> to vector<3x16x128xf32>
    %19 = vector.extract_strided_slice %15 {offsets = [0, 0], sizes = [16, 128], strides = [1, 1]} : vector<20x128xf32> to vector<16x128xf32>
    %20 = vector.extract_strided_slice %16 {offsets = [0, 0], sizes = [16, 128], strides = [1, 1]} : vector<20x128xf32> to vector<16x128xf32>
    %21 = arith.mulf %8, %17 : vector<4x16x128xf32>
    %cst_9 = arith.constant dense<0.000000e+00> : vector<16x128xf32>
    %22 = vector.multi_reduction <add>, %21, %cst_9 [0] : vector<4x16x128xf32> to vector<16x128xf32>
    %23 = arith.mulf %9, %18 : vector<3x16x128xf32>
    %cst_10 = arith.constant dense<0.000000e+00> : vector<16x128xf32>
    %24 = vector.multi_reduction <add>, %23, %cst_10 [0] : vector<3x16x128xf32> to vector<16x128xf32>
    %25 = arith.addf %10, %19 : vector<16x128xf32>
    %cst_11 = arith.constant 2.000000e+00 : f32
    %26 = vector.broadcast %cst_11 : f32 to vector<16x128xf32>
    %27 = arith.mulf %26, %22 : vector<16x128xf32>
    %28 = arith.subf %25, %27 : vector<16x128xf32>
    %29 = arith.addf %11, %20 : vector<16x128xf32>
    %cst_12 = arith.constant 2.000000e+00 : f32
    %30 = vector.broadcast %cst_12 : f32 to vector<16x128xf32>
    %31 = arith.mulf %30, %24 : vector<16x128xf32>
    %32 = arith.subf %29, %31 : vector<16x128xf32>
    %cst_13 = arith.constant 0.000000e+00 : f32
    %33 = vector.broadcast %cst_13 : f32 to vector<16x128xf32>
    %34 = arith.subf %33, %32 : vector<16x128xf32>
    %cst_14 = arith.constant 5.000000e+01 : f32
    %35 = vector.broadcast %cst_14 : f32 to vector<16x128xf32>
    %36 = arith.mulf %34, %35 : vector<16x128xf32>
    %cst_15 = arith.constant 1.600000e-01 : f32
    %37 = vector.broadcast %cst_15 : f32 to vector<16x128xf32>
    %38 = arith.subf %36, %37 : vector<16x128xf32>
    %39 = math.exp %38 : vector<16x128xf32>
    %40 = arith.mulf %39, %28 : vector<16x128xf32>
    %41 = arith.addf %12, %40 : vector<16x128xf32>
    %42 = vector.extract_strided_slice %13 {offsets = [0, 1, 0], sizes = [4, 16, 128], strides = [1, 1, 1]} : vector<4x20x128xf32> to vector<4x16x128xf32>
    %43 = vector.extract_strided_slice %14 {offsets = [0, 1, 0], sizes = [3, 16, 128], strides = [1, 1, 1]} : vector<3x20x128xf32> to vector<3x16x128xf32>
    %44 = vector.extract_strided_slice %15 {offsets = [1, 0], sizes = [16, 128], strides = [1, 1]} : vector<20x128xf32> to vector<16x128xf32>
    %45 = vector.extract_strided_slice %16 {offsets = [1, 0], sizes = [16, 128], strides = [1, 1]} : vector<20x128xf32> to vector<16x128xf32>
    %46 = arith.mulf %8, %42 : vector<4x16x128xf32>
    %cst_16 = arith.constant dense<0.000000e+00> : vector<16x128xf32>
    %47 = vector.multi_reduction <add>, %46, %cst_16 [0] : vector<4x16x128xf32> to vector<16x128xf32>
    %48 = arith.mulf %9, %43 : vector<3x16x128xf32>
    %cst_17 = arith.constant dense<0.000000e+00> : vector<16x128xf32>
    %49 = vector.multi_reduction <add>, %48, %cst_17 [0] : vector<3x16x128xf32> to vector<16x128xf32>
    %50 = arith.addf %10, %44 : vector<16x128xf32>
    %cst_18 = arith.constant 2.000000e+00 : f32
    %51 = vector.broadcast %cst_18 : f32 to vector<16x128xf32>
    %52 = arith.mulf %51, %47 : vector<16x128xf32>
    %53 = arith.subf %50, %52 : vector<16x128xf32>
    %54 = arith.addf %11, %45 : vector<16x128xf32>
    %cst_19 = arith.constant 2.000000e+00 : f32
    %55 = vector.broadcast %cst_19 : f32 to vector<16x128xf32>
    %56 = arith.mulf %55, %49 : vector<16x128xf32>
    %57 = arith.subf %54, %56 : vector<16x128xf32>
    %cst_20 = arith.constant 0.000000e+00 : f32
    %58 = vector.broadcast %cst_20 : f32 to vector<16x128xf32>
    %59 = arith.subf %58, %57 : vector<16x128xf32>
    %cst_21 = arith.constant 5.000000e+01 : f32
    %60 = vector.broadcast %cst_21 : f32 to vector<16x128xf32>
    %61 = arith.mulf %59, %60 : vector<16x128xf32>
    %cst_22 = arith.constant 1.000000e-01 : f32
    %62 = vector.broadcast %cst_22 : f32 to vector<16x128xf32>
    %63 = arith.subf %61, %62 : vector<16x128xf32>
    %64 = math.exp %63 : vector<16x128xf32>
    %65 = arith.mulf %64, %53 : vector<16x128xf32>
    %66 = arith.addf %41, %65 : vector<16x128xf32>
    %67 = vector.extract_strided_slice %13 {offsets = [0, 2, 0], sizes = [4, 16, 128], strides = [1, 1, 1]} : vector<4x20x128xf32> to vector<4x16x128xf32>
    %68 = vector.extract_strided_slice %14 {offsets = [0, 2, 0], sizes = [3, 16, 128], strides = [1, 1, 1]} : vector<3x20x128xf32> to vector<3x16x128xf32>
    %69 = vector.extract_strided_slice %15 {offsets = [2, 0], sizes = [16, 128], strides = [1, 1]} : vector<20x128xf32> to vector<16x128xf32>
    %70 = vector.extract_strided_slice %16 {offsets = [2, 0], sizes = [16, 128], strides = [1, 1]} : vector<20x128xf32> to vector<16x128xf32>
    %71 = arith.mulf %8, %67 : vector<4x16x128xf32>
    %cst_23 = arith.constant dense<0.000000e+00> : vector<16x128xf32>
    %72 = vector.multi_reduction <add>, %71, %cst_23 [0] : vector<4x16x128xf32> to vector<16x128xf32>
    %73 = arith.mulf %9, %68 : vector<3x16x128xf32>
    %cst_24 = arith.constant dense<0.000000e+00> : vector<16x128xf32>
    %74 = vector.multi_reduction <add>, %73, %cst_24 [0] : vector<3x16x128xf32> to vector<16x128xf32>
    %75 = arith.addf %10, %69 : vector<16x128xf32>
    %cst_25 = arith.constant 2.000000e+00 : f32
    %76 = vector.broadcast %cst_25 : f32 to vector<16x128xf32>
    %77 = arith.mulf %76, %72 : vector<16x128xf32>
    %78 = arith.subf %75, %77 : vector<16x128xf32>
    %79 = arith.addf %11, %70 : vector<16x128xf32>
    %cst_26 = arith.constant 2.000000e+00 : f32
    %80 = vector.broadcast %cst_26 : f32 to vector<16x128xf32>
    %81 = arith.mulf %80, %74 : vector<16x128xf32>
    %82 = arith.subf %79, %81 : vector<16x128xf32>
    %cst_27 = arith.constant 0.000000e+00 : f32
    %83 = vector.broadcast %cst_27 : f32 to vector<16x128xf32>
    %84 = arith.subf %83, %82 : vector<16x128xf32>
    %cst_28 = arith.constant 5.000000e+01 : f32
    %85 = vector.broadcast %cst_28 : f32 to vector<16x128xf32>
    %86 = arith.mulf %84, %85 : vector<16x128xf32>
    %cst_29 = arith.constant 8.000000e-02 : f32
    %87 = vector.broadcast %cst_29 : f32 to vector<16x128xf32>
    %88 = arith.subf %86, %87 : vector<16x128xf32>
    %89 = math.exp %88 : vector<16x128xf32>
    %90 = arith.mulf %89, %78 : vector<16x128xf32>
    %91 = arith.addf %66, %90 : vector<16x128xf32>
    %92 = vector.extract_strided_slice %13 {offsets = [0, 3, 0], sizes = [4, 16, 128], strides = [1, 1, 1]} : vector<4x20x128xf32> to vector<4x16x128xf32>
    %93 = vector.extract_strided_slice %14 {offsets = [0, 3, 0], sizes = [3, 16, 128], strides = [1, 1, 1]} : vector<3x20x128xf32> to vector<3x16x128xf32>
    %94 = vector.extract_strided_slice %15 {offsets = [3, 0], sizes = [16, 128], strides = [1, 1]} : vector<20x128xf32> to vector<16x128xf32>
    %95 = vector.extract_strided_slice %16 {offsets = [3, 0], sizes = [16, 128], strides = [1, 1]} : vector<20x128xf32> to vector<16x128xf32>
    %96 = arith.mulf %8, %92 : vector<4x16x128xf32>
    %cst_30 = arith.constant dense<0.000000e+00> : vector<16x128xf32>
    %97 = vector.multi_reduction <add>, %96, %cst_30 [0] : vector<4x16x128xf32> to vector<16x128xf32>
    %98 = arith.mulf %9, %93 : vector<3x16x128xf32>
    %cst_31 = arith.constant dense<0.000000e+00> : vector<16x128xf32>
    %99 = vector.multi_reduction <add>, %98, %cst_31 [0] : vector<3x16x128xf32> to vector<16x128xf32>
    %100 = arith.addf %10, %94 : vector<16x128xf32>
    %cst_32 = arith.constant 2.000000e+00 : f32
    %101 = vector.broadcast %cst_32 : f32 to vector<16x128xf32>
    %102 = arith.mulf %101, %97 : vector<16x128xf32>
    %103 = arith.subf %100, %102 : vector<16x128xf32>
    %104 = arith.addf %11, %95 : vector<16x128xf32>
    %cst_33 = arith.constant 2.000000e+00 : f32
    %105 = vector.broadcast %cst_33 : f32 to vector<16x128xf32>
    %106 = arith.mulf %105, %99 : vector<16x128xf32>
    %107 = arith.subf %104, %106 : vector<16x128xf32>
    %cst_34 = arith.constant 0.000000e+00 : f32
    %108 = vector.broadcast %cst_34 : f32 to vector<16x128xf32>
    %109 = arith.subf %108, %107 : vector<16x128xf32>
    %cst_35 = arith.constant 5.000000e+01 : f32
    %110 = vector.broadcast %cst_35 : f32 to vector<16x128xf32>
    %111 = arith.mulf %109, %110 : vector<16x128xf32>
    %cst_36 = arith.constant 1.000000e-01 : f32
    %112 = vector.broadcast %cst_36 : f32 to vector<16x128xf32>
    %113 = arith.subf %111, %112 : vector<16x128xf32>
    %114 = math.exp %113 : vector<16x128xf32>
    %115 = arith.mulf %114, %103 : vector<16x128xf32>
    %116 = arith.addf %91, %115 : vector<16x128xf32>
    %117 = vector.extract_strided_slice %13 {offsets = [0, 4, 0], sizes = [4, 16, 128], strides = [1, 1, 1]} : vector<4x20x128xf32> to vector<4x16x128xf32>
    %118 = vector.extract_strided_slice %14 {offsets = [0, 4, 0], sizes = [3, 16, 128], strides = [1, 1, 1]} : vector<3x20x128xf32> to vector<3x16x128xf32>
    %119 = vector.extract_strided_slice %15 {offsets = [4, 0], sizes = [16, 128], strides = [1, 1]} : vector<20x128xf32> to vector<16x128xf32>
    %120 = vector.extract_strided_slice %16 {offsets = [4, 0], sizes = [16, 128], strides = [1, 1]} : vector<20x128xf32> to vector<16x128xf32>
    %121 = arith.mulf %8, %117 : vector<4x16x128xf32>
    %cst_37 = arith.constant dense<0.000000e+00> : vector<16x128xf32>
    %122 = vector.multi_reduction <add>, %121, %cst_37 [0] : vector<4x16x128xf32> to vector<16x128xf32>
    %123 = arith.mulf %9, %118 : vector<3x16x128xf32>
    %cst_38 = arith.constant dense<0.000000e+00> : vector<16x128xf32>
    %124 = vector.multi_reduction <add>, %123, %cst_38 [0] : vector<3x16x128xf32> to vector<16x128xf32>
    %125 = arith.addf %10, %119 : vector<16x128xf32>
    %cst_39 = arith.constant 2.000000e+00 : f32
    %126 = vector.broadcast %cst_39 : f32 to vector<16x128xf32>
    %127 = arith.mulf %126, %122 : vector<16x128xf32>
    %128 = arith.subf %125, %127 : vector<16x128xf32>
    %129 = arith.addf %11, %120 : vector<16x128xf32>
    %cst_40 = arith.constant 2.000000e+00 : f32
    %130 = vector.broadcast %cst_40 : f32 to vector<16x128xf32>
    %131 = arith.mulf %130, %124 : vector<16x128xf32>
    %132 = arith.subf %129, %131 : vector<16x128xf32>
    %cst_41 = arith.constant 0.000000e+00 : f32
    %133 = vector.broadcast %cst_41 : f32 to vector<16x128xf32>
    %134 = arith.subf %133, %132 : vector<16x128xf32>
    %cst_42 = arith.constant 5.000000e+01 : f32
    %135 = vector.broadcast %cst_42 : f32 to vector<16x128xf32>
    %136 = arith.mulf %134, %135 : vector<16x128xf32>
    %cst_43 = arith.constant 1.600000e-01 : f32
    %137 = vector.broadcast %cst_43 : f32 to vector<16x128xf32>
    %138 = arith.subf %136, %137 : vector<16x128xf32>
    %139 = math.exp %138 : vector<16x128xf32>
    %140 = arith.mulf %139, %128 : vector<16x128xf32>
    %141 = arith.addf %116, %140 : vector<16x128xf32>
    %142 = vector.extract_strided_slice %1 {offsets = [0, 0, 1], sizes = [4, 20, 128], strides = [1, 1, 1]} : vector<4x20x132xf32> to vector<4x20x128xf32>
    %143 = vector.extract_strided_slice %3 {offsets = [0, 0, 1], sizes = [3, 20, 128], strides = [1, 1, 1]} : vector<3x20x132xf32> to vector<3x20x128xf32>
    %144 = vector.extract_strided_slice %5 {offsets = [0, 1], sizes = [20, 128], strides = [1, 1]} : vector<20x132xf32> to vector<20x128xf32>
    %145 = vector.extract_strided_slice %7 {offsets = [0, 1], sizes = [20, 128], strides = [1, 1]} : vector<20x132xf32> to vector<20x128xf32>
    %146 = vector.extract_strided_slice %142 {offsets = [0, 0, 0], sizes = [4, 16, 128], strides = [1, 1, 1]} : vector<4x20x128xf32> to vector<4x16x128xf32>
    %147 = vector.extract_strided_slice %143 {offsets = [0, 0, 0], sizes = [3, 16, 128], strides = [1, 1, 1]} : vector<3x20x128xf32> to vector<3x16x128xf32>
    %148 = vector.extract_strided_slice %144 {offsets = [0, 0], sizes = [16, 128], strides = [1, 1]} : vector<20x128xf32> to vector<16x128xf32>
    %149 = vector.extract_strided_slice %145 {offsets = [0, 0], sizes = [16, 128], strides = [1, 1]} : vector<20x128xf32> to vector<16x128xf32>
    %150 = arith.mulf %8, %146 : vector<4x16x128xf32>
    %cst_44 = arith.constant dense<0.000000e+00> : vector<16x128xf32>
    %151 = vector.multi_reduction <add>, %150, %cst_44 [0] : vector<4x16x128xf32> to vector<16x128xf32>
    %152 = arith.mulf %9, %147 : vector<3x16x128xf32>
    %cst_45 = arith.constant dense<0.000000e+00> : vector<16x128xf32>
    %153 = vector.multi_reduction <add>, %152, %cst_45 [0] : vector<3x16x128xf32> to vector<16x128xf32>
    %154 = arith.addf %10, %148 : vector<16x128xf32>
    %cst_46 = arith.constant 2.000000e+00 : f32
    %155 = vector.broadcast %cst_46 : f32 to vector<16x128xf32>
    %156 = arith.mulf %155, %151 : vector<16x128xf32>
    %157 = arith.subf %154, %156 : vector<16x128xf32>
    %158 = arith.addf %11, %149 : vector<16x128xf32>
    %cst_47 = arith.constant 2.000000e+00 : f32
    %159 = vector.broadcast %cst_47 : f32 to vector<16x128xf32>
    %160 = arith.mulf %159, %153 : vector<16x128xf32>
    %161 = arith.subf %158, %160 : vector<16x128xf32>
    %cst_48 = arith.constant 0.000000e+00 : f32
    %162 = vector.broadcast %cst_48 : f32 to vector<16x128xf32>
    %163 = arith.subf %162, %161 : vector<16x128xf32>
    %cst_49 = arith.constant 5.000000e+01 : f32
    %164 = vector.broadcast %cst_49 : f32 to vector<16x128xf32>
    %165 = arith.mulf %163, %164 : vector<16x128xf32>
    %cst_50 = arith.constant 1.000000e-01 : f32
    %166 = vector.broadcast %cst_50 : f32 to vector<16x128xf32>
    %167 = arith.subf %165, %166 : vector<16x128xf32>
    %168 = math.exp %167 : vector<16x128xf32>
    %169 = arith.mulf %168, %157 : vector<16x128xf32>
    %170 = arith.addf %141, %169 : vector<16x128xf32>
    %171 = vector.extract_strided_slice %142 {offsets = [0, 1, 0], sizes = [4, 16, 128], strides = [1, 1, 1]} : vector<4x20x128xf32> to vector<4x16x128xf32>
    %172 = vector.extract_strided_slice %143 {offsets = [0, 1, 0], sizes = [3, 16, 128], strides = [1, 1, 1]} : vector<3x20x128xf32> to vector<3x16x128xf32>
    %173 = vector.extract_strided_slice %144 {offsets = [1, 0], sizes = [16, 128], strides = [1, 1]} : vector<20x128xf32> to vector<16x128xf32>
    %174 = vector.extract_strided_slice %145 {offsets = [1, 0], sizes = [16, 128], strides = [1, 1]} : vector<20x128xf32> to vector<16x128xf32>
    %175 = arith.mulf %8, %171 : vector<4x16x128xf32>
    %cst_51 = arith.constant dense<0.000000e+00> : vector<16x128xf32>
    %176 = vector.multi_reduction <add>, %175, %cst_51 [0] : vector<4x16x128xf32> to vector<16x128xf32>
    %177 = arith.mulf %9, %172 : vector<3x16x128xf32>
    %cst_52 = arith.constant dense<0.000000e+00> : vector<16x128xf32>
    %178 = vector.multi_reduction <add>, %177, %cst_52 [0] : vector<3x16x128xf32> to vector<16x128xf32>
    %179 = arith.addf %10, %173 : vector<16x128xf32>
    %cst_53 = arith.constant 2.000000e+00 : f32
    %180 = vector.broadcast %cst_53 : f32 to vector<16x128xf32>
    %181 = arith.mulf %180, %176 : vector<16x128xf32>
    %182 = arith.subf %179, %181 : vector<16x128xf32>
    %183 = arith.addf %11, %174 : vector<16x128xf32>
    %cst_54 = arith.constant 2.000000e+00 : f32
    %184 = vector.broadcast %cst_54 : f32 to vector<16x128xf32>
    %185 = arith.mulf %184, %178 : vector<16x128xf32>
    %186 = arith.subf %183, %185 : vector<16x128xf32>
    %cst_55 = arith.constant 0.000000e+00 : f32
    %187 = vector.broadcast %cst_55 : f32 to vector<16x128xf32>
    %188 = arith.subf %187, %186 : vector<16x128xf32>
    %cst_56 = arith.constant 5.000000e+01 : f32
    %189 = vector.broadcast %cst_56 : f32 to vector<16x128xf32>
    %190 = arith.mulf %188, %189 : vector<16x128xf32>
    %cst_57 = arith.constant 4.000000e-02 : f32
    %191 = vector.broadcast %cst_57 : f32 to vector<16x128xf32>
    %192 = arith.subf %190, %191 : vector<16x128xf32>
    %193 = math.exp %192 : vector<16x128xf32>
    %194 = arith.mulf %193, %182 : vector<16x128xf32>
    %195 = arith.addf %170, %194 : vector<16x128xf32>
    %196 = vector.extract_strided_slice %142 {offsets = [0, 2, 0], sizes = [4, 16, 128], strides = [1, 1, 1]} : vector<4x20x128xf32> to vector<4x16x128xf32>
    %197 = vector.extract_strided_slice %143 {offsets = [0, 2, 0], sizes = [3, 16, 128], strides = [1, 1, 1]} : vector<3x20x128xf32> to vector<3x16x128xf32>
    %198 = vector.extract_strided_slice %144 {offsets = [2, 0], sizes = [16, 128], strides = [1, 1]} : vector<20x128xf32> to vector<16x128xf32>
    %199 = vector.extract_strided_slice %145 {offsets = [2, 0], sizes = [16, 128], strides = [1, 1]} : vector<20x128xf32> to vector<16x128xf32>
    %200 = arith.mulf %8, %196 : vector<4x16x128xf32>
    %cst_58 = arith.constant dense<0.000000e+00> : vector<16x128xf32>
    %201 = vector.multi_reduction <add>, %200, %cst_58 [0] : vector<4x16x128xf32> to vector<16x128xf32>
    %202 = arith.mulf %9, %197 : vector<3x16x128xf32>
    %cst_59 = arith.constant dense<0.000000e+00> : vector<16x128xf32>
    %203 = vector.multi_reduction <add>, %202, %cst_59 [0] : vector<3x16x128xf32> to vector<16x128xf32>
    %204 = arith.addf %10, %198 : vector<16x128xf32>
    %cst_60 = arith.constant 2.000000e+00 : f32
    %205 = vector.broadcast %cst_60 : f32 to vector<16x128xf32>
    %206 = arith.mulf %205, %201 : vector<16x128xf32>
    %207 = arith.subf %204, %206 : vector<16x128xf32>
    %208 = arith.addf %11, %199 : vector<16x128xf32>
    %cst_61 = arith.constant 2.000000e+00 : f32
    %209 = vector.broadcast %cst_61 : f32 to vector<16x128xf32>
    %210 = arith.mulf %209, %203 : vector<16x128xf32>
    %211 = arith.subf %208, %210 : vector<16x128xf32>
    %cst_62 = arith.constant 0.000000e+00 : f32
    %212 = vector.broadcast %cst_62 : f32 to vector<16x128xf32>
    %213 = arith.subf %212, %211 : vector<16x128xf32>
    %cst_63 = arith.constant 5.000000e+01 : f32
    %214 = vector.broadcast %cst_63 : f32 to vector<16x128xf32>
    %215 = arith.mulf %213, %214 : vector<16x128xf32>
    %cst_64 = arith.constant 2.000000e-02 : f32
    %216 = vector.broadcast %cst_64 : f32 to vector<16x128xf32>
    %217 = arith.subf %215, %216 : vector<16x128xf32>
    %218 = math.exp %217 : vector<16x128xf32>
    %219 = arith.mulf %218, %207 : vector<16x128xf32>
    %220 = arith.addf %195, %219 : vector<16x128xf32>
    %221 = vector.extract_strided_slice %142 {offsets = [0, 3, 0], sizes = [4, 16, 128], strides = [1, 1, 1]} : vector<4x20x128xf32> to vector<4x16x128xf32>
    %222 = vector.extract_strided_slice %143 {offsets = [0, 3, 0], sizes = [3, 16, 128], strides = [1, 1, 1]} : vector<3x20x128xf32> to vector<3x16x128xf32>
    %223 = vector.extract_strided_slice %144 {offsets = [3, 0], sizes = [16, 128], strides = [1, 1]} : vector<20x128xf32> to vector<16x128xf32>
    %224 = vector.extract_strided_slice %145 {offsets = [3, 0], sizes = [16, 128], strides = [1, 1]} : vector<20x128xf32> to vector<16x128xf32>
    %225 = arith.mulf %8, %221 : vector<4x16x128xf32>
    %cst_65 = arith.constant dense<0.000000e+00> : vector<16x128xf32>
    %226 = vector.multi_reduction <add>, %225, %cst_65 [0] : vector<4x16x128xf32> to vector<16x128xf32>
    %227 = arith.mulf %9, %222 : vector<3x16x128xf32>
    %cst_66 = arith.constant dense<0.000000e+00> : vector<16x128xf32>
    %228 = vector.multi_reduction <add>, %227, %cst_66 [0] : vector<3x16x128xf32> to vector<16x128xf32>
    %229 = arith.addf %10, %223 : vector<16x128xf32>
    %cst_67 = arith.constant 2.000000e+00 : f32
    %230 = vector.broadcast %cst_67 : f32 to vector<16x128xf32>
    %231 = arith.mulf %230, %226 : vector<16x128xf32>
    %232 = arith.subf %229, %231 : vector<16x128xf32>
    %233 = arith.addf %11, %224 : vector<16x128xf32>
    %cst_68 = arith.constant 2.000000e+00 : f32
    %234 = vector.broadcast %cst_68 : f32 to vector<16x128xf32>
    %235 = arith.mulf %234, %228 : vector<16x128xf32>
    %236 = arith.subf %233, %235 : vector<16x128xf32>
    %cst_69 = arith.constant 0.000000e+00 : f32
    %237 = vector.broadcast %cst_69 : f32 to vector<16x128xf32>
    %238 = arith.subf %237, %236 : vector<16x128xf32>
    %cst_70 = arith.constant 5.000000e+01 : f32
    %239 = vector.broadcast %cst_70 : f32 to vector<16x128xf32>
    %240 = arith.mulf %238, %239 : vector<16x128xf32>
    %cst_71 = arith.constant 4.000000e-02 : f32
    %241 = vector.broadcast %cst_71 : f32 to vector<16x128xf32>
    %242 = arith.subf %240, %241 : vector<16x128xf32>
    %243 = math.exp %242 : vector<16x128xf32>
    %244 = arith.mulf %243, %232 : vector<16x128xf32>
    %245 = arith.addf %220, %244 : vector<16x128xf32>
    %246 = vector.extract_strided_slice %142 {offsets = [0, 4, 0], sizes = [4, 16, 128], strides = [1, 1, 1]} : vector<4x20x128xf32> to vector<4x16x128xf32>
    %247 = vector.extract_strided_slice %143 {offsets = [0, 4, 0], sizes = [3, 16, 128], strides = [1, 1, 1]} : vector<3x20x128xf32> to vector<3x16x128xf32>
    %248 = vector.extract_strided_slice %144 {offsets = [4, 0], sizes = [16, 128], strides = [1, 1]} : vector<20x128xf32> to vector<16x128xf32>
    %249 = vector.extract_strided_slice %145 {offsets = [4, 0], sizes = [16, 128], strides = [1, 1]} : vector<20x128xf32> to vector<16x128xf32>
    %250 = arith.mulf %8, %246 : vector<4x16x128xf32>
    %cst_72 = arith.constant dense<0.000000e+00> : vector<16x128xf32>
    %251 = vector.multi_reduction <add>, %250, %cst_72 [0] : vector<4x16x128xf32> to vector<16x128xf32>
    %252 = arith.mulf %9, %247 : vector<3x16x128xf32>
    %cst_73 = arith.constant dense<0.000000e+00> : vector<16x128xf32>
    %253 = vector.multi_reduction <add>, %252, %cst_73 [0] : vector<3x16x128xf32> to vector<16x128xf32>
    %254 = arith.addf %10, %248 : vector<16x128xf32>
    %cst_74 = arith.constant 2.000000e+00 : f32
    %255 = vector.broadcast %cst_74 : f32 to vector<16x128xf32>
    %256 = arith.mulf %255, %251 : vector<16x128xf32>
    %257 = arith.subf %254, %256 : vector<16x128xf32>
    %258 = arith.addf %11, %249 : vector<16x128xf32>
    %cst_75 = arith.constant 2.000000e+00 : f32
    %259 = vector.broadcast %cst_75 : f32 to vector<16x128xf32>
    %260 = arith.mulf %259, %253 : vector<16x128xf32>
    %261 = arith.subf %258, %260 : vector<16x128xf32>
    %cst_76 = arith.constant 0.000000e+00 : f32
    %262 = vector.broadcast %cst_76 : f32 to vector<16x128xf32>
    %263 = arith.subf %262, %261 : vector<16x128xf32>
    %cst_77 = arith.constant 5.000000e+01 : f32
    %264 = vector.broadcast %cst_77 : f32 to vector<16x128xf32>
    %265 = arith.mulf %263, %264 : vector<16x128xf32>
    %cst_78 = arith.constant 1.000000e-01 : f32
    %266 = vector.broadcast %cst_78 : f32 to vector<16x128xf32>
    %267 = arith.subf %265, %266 : vector<16x128xf32>
    %268 = math.exp %267 : vector<16x128xf32>
    %269 = arith.mulf %268, %257 : vector<16x128xf32>
    %270 = arith.addf %245, %269 : vector<16x128xf32>
    %271 = vector.extract_strided_slice %1 {offsets = [0, 0, 2], sizes = [4, 20, 128], strides = [1, 1, 1]} : vector<4x20x132xf32> to vector<4x20x128xf32>
    %272 = vector.extract_strided_slice %3 {offsets = [0, 0, 2], sizes = [3, 20, 128], strides = [1, 1, 1]} : vector<3x20x132xf32> to vector<3x20x128xf32>
    %273 = vector.extract_strided_slice %5 {offsets = [0, 2], sizes = [20, 128], strides = [1, 1]} : vector<20x132xf32> to vector<20x128xf32>
    %274 = vector.extract_strided_slice %7 {offsets = [0, 2], sizes = [20, 128], strides = [1, 1]} : vector<20x132xf32> to vector<20x128xf32>
    %275 = vector.extract_strided_slice %271 {offsets = [0, 0, 0], sizes = [4, 16, 128], strides = [1, 1, 1]} : vector<4x20x128xf32> to vector<4x16x128xf32>
    %276 = vector.extract_strided_slice %272 {offsets = [0, 0, 0], sizes = [3, 16, 128], strides = [1, 1, 1]} : vector<3x20x128xf32> to vector<3x16x128xf32>
    %277 = vector.extract_strided_slice %273 {offsets = [0, 0], sizes = [16, 128], strides = [1, 1]} : vector<20x128xf32> to vector<16x128xf32>
    %278 = vector.extract_strided_slice %274 {offsets = [0, 0], sizes = [16, 128], strides = [1, 1]} : vector<20x128xf32> to vector<16x128xf32>
    %279 = arith.mulf %8, %275 : vector<4x16x128xf32>
    %cst_79 = arith.constant dense<0.000000e+00> : vector<16x128xf32>
    %280 = vector.multi_reduction <add>, %279, %cst_79 [0] : vector<4x16x128xf32> to vector<16x128xf32>
    %281 = arith.mulf %9, %276 : vector<3x16x128xf32>
    %cst_80 = arith.constant dense<0.000000e+00> : vector<16x128xf32>
    %282 = vector.multi_reduction <add>, %281, %cst_80 [0] : vector<3x16x128xf32> to vector<16x128xf32>
    %283 = arith.addf %10, %277 : vector<16x128xf32>
    %cst_81 = arith.constant 2.000000e+00 : f32
    %284 = vector.broadcast %cst_81 : f32 to vector<16x128xf32>
    %285 = arith.mulf %284, %280 : vector<16x128xf32>
    %286 = arith.subf %283, %285 : vector<16x128xf32>
    %287 = arith.addf %11, %278 : vector<16x128xf32>
    %cst_82 = arith.constant 2.000000e+00 : f32
    %288 = vector.broadcast %cst_82 : f32 to vector<16x128xf32>
    %289 = arith.mulf %288, %282 : vector<16x128xf32>
    %290 = arith.subf %287, %289 : vector<16x128xf32>
    %cst_83 = arith.constant 0.000000e+00 : f32
    %291 = vector.broadcast %cst_83 : f32 to vector<16x128xf32>
    %292 = arith.subf %291, %290 : vector<16x128xf32>
    %cst_84 = arith.constant 5.000000e+01 : f32
    %293 = vector.broadcast %cst_84 : f32 to vector<16x128xf32>
    %294 = arith.mulf %292, %293 : vector<16x128xf32>
    %cst_85 = arith.constant 8.000000e-02 : f32
    %295 = vector.broadcast %cst_85 : f32 to vector<16x128xf32>
    %296 = arith.subf %294, %295 : vector<16x128xf32>
    %297 = math.exp %296 : vector<16x128xf32>
    %298 = arith.mulf %297, %286 : vector<16x128xf32>
    %299 = arith.addf %270, %298 : vector<16x128xf32>
    %300 = vector.extract_strided_slice %271 {offsets = [0, 1, 0], sizes = [4, 16, 128], strides = [1, 1, 1]} : vector<4x20x128xf32> to vector<4x16x128xf32>
    %301 = vector.extract_strided_slice %272 {offsets = [0, 1, 0], sizes = [3, 16, 128], strides = [1, 1, 1]} : vector<3x20x128xf32> to vector<3x16x128xf32>
    %302 = vector.extract_strided_slice %273 {offsets = [1, 0], sizes = [16, 128], strides = [1, 1]} : vector<20x128xf32> to vector<16x128xf32>
    %303 = vector.extract_strided_slice %274 {offsets = [1, 0], sizes = [16, 128], strides = [1, 1]} : vector<20x128xf32> to vector<16x128xf32>
    %304 = arith.mulf %8, %300 : vector<4x16x128xf32>
    %cst_86 = arith.constant dense<0.000000e+00> : vector<16x128xf32>
    %305 = vector.multi_reduction <add>, %304, %cst_86 [0] : vector<4x16x128xf32> to vector<16x128xf32>
    %306 = arith.mulf %9, %301 : vector<3x16x128xf32>
    %cst_87 = arith.constant dense<0.000000e+00> : vector<16x128xf32>
    %307 = vector.multi_reduction <add>, %306, %cst_87 [0] : vector<3x16x128xf32> to vector<16x128xf32>
    %308 = arith.addf %10, %302 : vector<16x128xf32>
    %cst_88 = arith.constant 2.000000e+00 : f32
    %309 = vector.broadcast %cst_88 : f32 to vector<16x128xf32>
    %310 = arith.mulf %309, %305 : vector<16x128xf32>
    %311 = arith.subf %308, %310 : vector<16x128xf32>
    %312 = arith.addf %11, %303 : vector<16x128xf32>
    %cst_89 = arith.constant 2.000000e+00 : f32
    %313 = vector.broadcast %cst_89 : f32 to vector<16x128xf32>
    %314 = arith.mulf %313, %307 : vector<16x128xf32>
    %315 = arith.subf %312, %314 : vector<16x128xf32>
    %cst_90 = arith.constant 0.000000e+00 : f32
    %316 = vector.broadcast %cst_90 : f32 to vector<16x128xf32>
    %317 = arith.subf %316, %315 : vector<16x128xf32>
    %cst_91 = arith.constant 5.000000e+01 : f32
    %318 = vector.broadcast %cst_91 : f32 to vector<16x128xf32>
    %319 = arith.mulf %317, %318 : vector<16x128xf32>
    %cst_92 = arith.constant 2.000000e-02 : f32
    %320 = vector.broadcast %cst_92 : f32 to vector<16x128xf32>
    %321 = arith.subf %319, %320 : vector<16x128xf32>
    %322 = math.exp %321 : vector<16x128xf32>
    %323 = arith.mulf %322, %311 : vector<16x128xf32>
    %324 = arith.addf %299, %323 : vector<16x128xf32>
    %325 = vector.extract_strided_slice %271 {offsets = [0, 3, 0], sizes = [4, 16, 128], strides = [1, 1, 1]} : vector<4x20x128xf32> to vector<4x16x128xf32>
    %326 = vector.extract_strided_slice %272 {offsets = [0, 3, 0], sizes = [3, 16, 128], strides = [1, 1, 1]} : vector<3x20x128xf32> to vector<3x16x128xf32>
    %327 = vector.extract_strided_slice %273 {offsets = [3, 0], sizes = [16, 128], strides = [1, 1]} : vector<20x128xf32> to vector<16x128xf32>
    %328 = vector.extract_strided_slice %274 {offsets = [3, 0], sizes = [16, 128], strides = [1, 1]} : vector<20x128xf32> to vector<16x128xf32>
    %329 = arith.mulf %8, %325 : vector<4x16x128xf32>
    %cst_93 = arith.constant dense<0.000000e+00> : vector<16x128xf32>
    %330 = vector.multi_reduction <add>, %329, %cst_93 [0] : vector<4x16x128xf32> to vector<16x128xf32>
    %331 = arith.mulf %9, %326 : vector<3x16x128xf32>
    %cst_94 = arith.constant dense<0.000000e+00> : vector<16x128xf32>
    %332 = vector.multi_reduction <add>, %331, %cst_94 [0] : vector<3x16x128xf32> to vector<16x128xf32>
    %333 = arith.addf %10, %327 : vector<16x128xf32>
    %cst_95 = arith.constant 2.000000e+00 : f32
    %334 = vector.broadcast %cst_95 : f32 to vector<16x128xf32>
    %335 = arith.mulf %334, %330 : vector<16x128xf32>
    %336 = arith.subf %333, %335 : vector<16x128xf32>
    %337 = arith.addf %11, %328 : vector<16x128xf32>
    %cst_96 = arith.constant 2.000000e+00 : f32
    %338 = vector.broadcast %cst_96 : f32 to vector<16x128xf32>
    %339 = arith.mulf %338, %332 : vector<16x128xf32>
    %340 = arith.subf %337, %339 : vector<16x128xf32>
    %cst_97 = arith.constant 0.000000e+00 : f32
    %341 = vector.broadcast %cst_97 : f32 to vector<16x128xf32>
    %342 = arith.subf %341, %340 : vector<16x128xf32>
    %cst_98 = arith.constant 5.000000e+01 : f32
    %343 = vector.broadcast %cst_98 : f32 to vector<16x128xf32>
    %344 = arith.mulf %342, %343 : vector<16x128xf32>
    %cst_99 = arith.constant 2.000000e-02 : f32
    %345 = vector.broadcast %cst_99 : f32 to vector<16x128xf32>
    %346 = arith.subf %344, %345 : vector<16x128xf32>
    %347 = math.exp %346 : vector<16x128xf32>
    %348 = arith.mulf %347, %336 : vector<16x128xf32>
    %349 = arith.addf %324, %348 : vector<16x128xf32>
    %350 = vector.extract_strided_slice %271 {offsets = [0, 4, 0], sizes = [4, 16, 128], strides = [1, 1, 1]} : vector<4x20x128xf32> to vector<4x16x128xf32>
    %351 = vector.extract_strided_slice %272 {offsets = [0, 4, 0], sizes = [3, 16, 128], strides = [1, 1, 1]} : vector<3x20x128xf32> to vector<3x16x128xf32>
    %352 = vector.extract_strided_slice %273 {offsets = [4, 0], sizes = [16, 128], strides = [1, 1]} : vector<20x128xf32> to vector<16x128xf32>
    %353 = vector.extract_strided_slice %274 {offsets = [4, 0], sizes = [16, 128], strides = [1, 1]} : vector<20x128xf32> to vector<16x128xf32>
    %354 = arith.mulf %8, %350 : vector<4x16x128xf32>
    %cst_100 = arith.constant dense<0.000000e+00> : vector<16x128xf32>
    %355 = vector.multi_reduction <add>, %354, %cst_100 [0] : vector<4x16x128xf32> to vector<16x128xf32>
    %356 = arith.mulf %9, %351 : vector<3x16x128xf32>
    %cst_101 = arith.constant dense<0.000000e+00> : vector<16x128xf32>
    %357 = vector.multi_reduction <add>, %356, %cst_101 [0] : vector<3x16x128xf32> to vector<16x128xf32>
    %358 = arith.addf %10, %352 : vector<16x128xf32>
    %cst_102 = arith.constant 2.000000e+00 : f32
    %359 = vector.broadcast %cst_102 : f32 to vector<16x128xf32>
    %360 = arith.mulf %359, %355 : vector<16x128xf32>
    %361 = arith.subf %358, %360 : vector<16x128xf32>
    %362 = arith.addf %11, %353 : vector<16x128xf32>
    %cst_103 = arith.constant 2.000000e+00 : f32
    %363 = vector.broadcast %cst_103 : f32 to vector<16x128xf32>
    %364 = arith.mulf %363, %357 : vector<16x128xf32>
    %365 = arith.subf %362, %364 : vector<16x128xf32>
    %cst_104 = arith.constant 0.000000e+00 : f32
    %366 = vector.broadcast %cst_104 : f32 to vector<16x128xf32>
    %367 = arith.subf %366, %365 : vector<16x128xf32>
    %cst_105 = arith.constant 5.000000e+01 : f32
    %368 = vector.broadcast %cst_105 : f32 to vector<16x128xf32>
    %369 = arith.mulf %367, %368 : vector<16x128xf32>
    %cst_106 = arith.constant 8.000000e-02 : f32
    %370 = vector.broadcast %cst_106 : f32 to vector<16x128xf32>
    %371 = arith.subf %369, %370 : vector<16x128xf32>
    %372 = math.exp %371 : vector<16x128xf32>
    %373 = arith.mulf %372, %361 : vector<16x128xf32>
    %374 = arith.addf %349, %373 : vector<16x128xf32>
    %375 = vector.extract_strided_slice %1 {offsets = [0, 0, 3], sizes = [4, 20, 128], strides = [1, 1, 1]} : vector<4x20x132xf32> to vector<4x20x128xf32>
    %376 = vector.extract_strided_slice %3 {offsets = [0, 0, 3], sizes = [3, 20, 128], strides = [1, 1, 1]} : vector<3x20x132xf32> to vector<3x20x128xf32>
    %377 = vector.extract_strided_slice %5 {offsets = [0, 3], sizes = [20, 128], strides = [1, 1]} : vector<20x132xf32> to vector<20x128xf32>
    %378 = vector.extract_strided_slice %7 {offsets = [0, 3], sizes = [20, 128], strides = [1, 1]} : vector<20x132xf32> to vector<20x128xf32>
    %379 = vector.extract_strided_slice %375 {offsets = [0, 0, 0], sizes = [4, 16, 128], strides = [1, 1, 1]} : vector<4x20x128xf32> to vector<4x16x128xf32>
    %380 = vector.extract_strided_slice %376 {offsets = [0, 0, 0], sizes = [3, 16, 128], strides = [1, 1, 1]} : vector<3x20x128xf32> to vector<3x16x128xf32>
    %381 = vector.extract_strided_slice %377 {offsets = [0, 0], sizes = [16, 128], strides = [1, 1]} : vector<20x128xf32> to vector<16x128xf32>
    %382 = vector.extract_strided_slice %378 {offsets = [0, 0], sizes = [16, 128], strides = [1, 1]} : vector<20x128xf32> to vector<16x128xf32>
    %383 = arith.mulf %8, %379 : vector<4x16x128xf32>
    %cst_107 = arith.constant dense<0.000000e+00> : vector<16x128xf32>
    %384 = vector.multi_reduction <add>, %383, %cst_107 [0] : vector<4x16x128xf32> to vector<16x128xf32>
    %385 = arith.mulf %9, %380 : vector<3x16x128xf32>
    %cst_108 = arith.constant dense<0.000000e+00> : vector<16x128xf32>
    %386 = vector.multi_reduction <add>, %385, %cst_108 [0] : vector<3x16x128xf32> to vector<16x128xf32>
    %387 = arith.addf %10, %381 : vector<16x128xf32>
    %cst_109 = arith.constant 2.000000e+00 : f32
    %388 = vector.broadcast %cst_109 : f32 to vector<16x128xf32>
    %389 = arith.mulf %388, %384 : vector<16x128xf32>
    %390 = arith.subf %387, %389 : vector<16x128xf32>
    %391 = arith.addf %11, %382 : vector<16x128xf32>
    %cst_110 = arith.constant 2.000000e+00 : f32
    %392 = vector.broadcast %cst_110 : f32 to vector<16x128xf32>
    %393 = arith.mulf %392, %386 : vector<16x128xf32>
    %394 = arith.subf %391, %393 : vector<16x128xf32>
    %cst_111 = arith.constant 0.000000e+00 : f32
    %395 = vector.broadcast %cst_111 : f32 to vector<16x128xf32>
    %396 = arith.subf %395, %394 : vector<16x128xf32>
    %cst_112 = arith.constant 5.000000e+01 : f32
    %397 = vector.broadcast %cst_112 : f32 to vector<16x128xf32>
    %398 = arith.mulf %396, %397 : vector<16x128xf32>
    %cst_113 = arith.constant 1.000000e-01 : f32
    %399 = vector.broadcast %cst_113 : f32 to vector<16x128xf32>
    %400 = arith.subf %398, %399 : vector<16x128xf32>
    %401 = math.exp %400 : vector<16x128xf32>
    %402 = arith.mulf %401, %390 : vector<16x128xf32>
    %403 = arith.addf %374, %402 : vector<16x128xf32>
    %404 = vector.extract_strided_slice %375 {offsets = [0, 1, 0], sizes = [4, 16, 128], strides = [1, 1, 1]} : vector<4x20x128xf32> to vector<4x16x128xf32>
    %405 = vector.extract_strided_slice %376 {offsets = [0, 1, 0], sizes = [3, 16, 128], strides = [1, 1, 1]} : vector<3x20x128xf32> to vector<3x16x128xf32>
    %406 = vector.extract_strided_slice %377 {offsets = [1, 0], sizes = [16, 128], strides = [1, 1]} : vector<20x128xf32> to vector<16x128xf32>
    %407 = vector.extract_strided_slice %378 {offsets = [1, 0], sizes = [16, 128], strides = [1, 1]} : vector<20x128xf32> to vector<16x128xf32>
    %408 = arith.mulf %8, %404 : vector<4x16x128xf32>
    %cst_114 = arith.constant dense<0.000000e+00> : vector<16x128xf32>
    %409 = vector.multi_reduction <add>, %408, %cst_114 [0] : vector<4x16x128xf32> to vector<16x128xf32>
    %410 = arith.mulf %9, %405 : vector<3x16x128xf32>
    %cst_115 = arith.constant dense<0.000000e+00> : vector<16x128xf32>
    %411 = vector.multi_reduction <add>, %410, %cst_115 [0] : vector<3x16x128xf32> to vector<16x128xf32>
    %412 = arith.addf %10, %406 : vector<16x128xf32>
    %cst_116 = arith.constant 2.000000e+00 : f32
    %413 = vector.broadcast %cst_116 : f32 to vector<16x128xf32>
    %414 = arith.mulf %413, %409 : vector<16x128xf32>
    %415 = arith.subf %412, %414 : vector<16x128xf32>
    %416 = arith.addf %11, %407 : vector<16x128xf32>
    %cst_117 = arith.constant 2.000000e+00 : f32
    %417 = vector.broadcast %cst_117 : f32 to vector<16x128xf32>
    %418 = arith.mulf %417, %411 : vector<16x128xf32>
    %419 = arith.subf %416, %418 : vector<16x128xf32>
    %cst_118 = arith.constant 0.000000e+00 : f32
    %420 = vector.broadcast %cst_118 : f32 to vector<16x128xf32>
    %421 = arith.subf %420, %419 : vector<16x128xf32>
    %cst_119 = arith.constant 5.000000e+01 : f32
    %422 = vector.broadcast %cst_119 : f32 to vector<16x128xf32>
    %423 = arith.mulf %421, %422 : vector<16x128xf32>
    %cst_120 = arith.constant 4.000000e-02 : f32
    %424 = vector.broadcast %cst_120 : f32 to vector<16x128xf32>
    %425 = arith.subf %423, %424 : vector<16x128xf32>
    %426 = math.exp %425 : vector<16x128xf32>
    %427 = arith.mulf %426, %415 : vector<16x128xf32>
    %428 = arith.addf %403, %427 : vector<16x128xf32>
    %429 = vector.extract_strided_slice %375 {offsets = [0, 2, 0], sizes = [4, 16, 128], strides = [1, 1, 1]} : vector<4x20x128xf32> to vector<4x16x128xf32>
    %430 = vector.extract_strided_slice %376 {offsets = [0, 2, 0], sizes = [3, 16, 128], strides = [1, 1, 1]} : vector<3x20x128xf32> to vector<3x16x128xf32>
    %431 = vector.extract_strided_slice %377 {offsets = [2, 0], sizes = [16, 128], strides = [1, 1]} : vector<20x128xf32> to vector<16x128xf32>
    %432 = vector.extract_strided_slice %378 {offsets = [2, 0], sizes = [16, 128], strides = [1, 1]} : vector<20x128xf32> to vector<16x128xf32>
    %433 = arith.mulf %8, %429 : vector<4x16x128xf32>
    %cst_121 = arith.constant dense<0.000000e+00> : vector<16x128xf32>
    %434 = vector.multi_reduction <add>, %433, %cst_121 [0] : vector<4x16x128xf32> to vector<16x128xf32>
    %435 = arith.mulf %9, %430 : vector<3x16x128xf32>
    %cst_122 = arith.constant dense<0.000000e+00> : vector<16x128xf32>
    %436 = vector.multi_reduction <add>, %435, %cst_122 [0] : vector<3x16x128xf32> to vector<16x128xf32>
    %437 = arith.addf %10, %431 : vector<16x128xf32>
    %cst_123 = arith.constant 2.000000e+00 : f32
    %438 = vector.broadcast %cst_123 : f32 to vector<16x128xf32>
    %439 = arith.mulf %438, %434 : vector<16x128xf32>
    %440 = arith.subf %437, %439 : vector<16x128xf32>
    %441 = arith.addf %11, %432 : vector<16x128xf32>
    %cst_124 = arith.constant 2.000000e+00 : f32
    %442 = vector.broadcast %cst_124 : f32 to vector<16x128xf32>
    %443 = arith.mulf %442, %436 : vector<16x128xf32>
    %444 = arith.subf %441, %443 : vector<16x128xf32>
    %cst_125 = arith.constant 0.000000e+00 : f32
    %445 = vector.broadcast %cst_125 : f32 to vector<16x128xf32>
    %446 = arith.subf %445, %444 : vector<16x128xf32>
    %cst_126 = arith.constant 5.000000e+01 : f32
    %447 = vector.broadcast %cst_126 : f32 to vector<16x128xf32>
    %448 = arith.mulf %446, %447 : vector<16x128xf32>
    %cst_127 = arith.constant 2.000000e-02 : f32
    %449 = vector.broadcast %cst_127 : f32 to vector<16x128xf32>
    %450 = arith.subf %448, %449 : vector<16x128xf32>
    %451 = math.exp %450 : vector<16x128xf32>
    %452 = arith.mulf %451, %440 : vector<16x128xf32>
    %453 = arith.addf %428, %452 : vector<16x128xf32>
    %454 = vector.extract_strided_slice %375 {offsets = [0, 3, 0], sizes = [4, 16, 128], strides = [1, 1, 1]} : vector<4x20x128xf32> to vector<4x16x128xf32>
    %455 = vector.extract_strided_slice %376 {offsets = [0, 3, 0], sizes = [3, 16, 128], strides = [1, 1, 1]} : vector<3x20x128xf32> to vector<3x16x128xf32>
    %456 = vector.extract_strided_slice %377 {offsets = [3, 0], sizes = [16, 128], strides = [1, 1]} : vector<20x128xf32> to vector<16x128xf32>
    %457 = vector.extract_strided_slice %378 {offsets = [3, 0], sizes = [16, 128], strides = [1, 1]} : vector<20x128xf32> to vector<16x128xf32>
    %458 = arith.mulf %8, %454 : vector<4x16x128xf32>
    %cst_128 = arith.constant dense<0.000000e+00> : vector<16x128xf32>
    %459 = vector.multi_reduction <add>, %458, %cst_128 [0] : vector<4x16x128xf32> to vector<16x128xf32>
    %460 = arith.mulf %9, %455 : vector<3x16x128xf32>
    %cst_129 = arith.constant dense<0.000000e+00> : vector<16x128xf32>
    %461 = vector.multi_reduction <add>, %460, %cst_129 [0] : vector<3x16x128xf32> to vector<16x128xf32>
    %462 = arith.addf %10, %456 : vector<16x128xf32>
    %cst_130 = arith.constant 2.000000e+00 : f32
    %463 = vector.broadcast %cst_130 : f32 to vector<16x128xf32>
    %464 = arith.mulf %463, %459 : vector<16x128xf32>
    %465 = arith.subf %462, %464 : vector<16x128xf32>
    %466 = arith.addf %11, %457 : vector<16x128xf32>
    %cst_131 = arith.constant 2.000000e+00 : f32
    %467 = vector.broadcast %cst_131 : f32 to vector<16x128xf32>
    %468 = arith.mulf %467, %461 : vector<16x128xf32>
    %469 = arith.subf %466, %468 : vector<16x128xf32>
    %cst_132 = arith.constant 0.000000e+00 : f32
    %470 = vector.broadcast %cst_132 : f32 to vector<16x128xf32>
    %471 = arith.subf %470, %469 : vector<16x128xf32>
    %cst_133 = arith.constant 5.000000e+01 : f32
    %472 = vector.broadcast %cst_133 : f32 to vector<16x128xf32>
    %473 = arith.mulf %471, %472 : vector<16x128xf32>
    %cst_134 = arith.constant 4.000000e-02 : f32
    %474 = vector.broadcast %cst_134 : f32 to vector<16x128xf32>
    %475 = arith.subf %473, %474 : vector<16x128xf32>
    %476 = math.exp %475 : vector<16x128xf32>
    %477 = arith.mulf %476, %465 : vector<16x128xf32>
    %478 = arith.addf %453, %477 : vector<16x128xf32>
    %479 = vector.extract_strided_slice %375 {offsets = [0, 4, 0], sizes = [4, 16, 128], strides = [1, 1, 1]} : vector<4x20x128xf32> to vector<4x16x128xf32>
    %480 = vector.extract_strided_slice %376 {offsets = [0, 4, 0], sizes = [3, 16, 128], strides = [1, 1, 1]} : vector<3x20x128xf32> to vector<3x16x128xf32>
    %481 = vector.extract_strided_slice %377 {offsets = [4, 0], sizes = [16, 128], strides = [1, 1]} : vector<20x128xf32> to vector<16x128xf32>
    %482 = vector.extract_strided_slice %378 {offsets = [4, 0], sizes = [16, 128], strides = [1, 1]} : vector<20x128xf32> to vector<16x128xf32>
    %483 = arith.mulf %8, %479 : vector<4x16x128xf32>
    %cst_135 = arith.constant dense<0.000000e+00> : vector<16x128xf32>
    %484 = vector.multi_reduction <add>, %483, %cst_135 [0] : vector<4x16x128xf32> to vector<16x128xf32>
    %485 = arith.mulf %9, %480 : vector<3x16x128xf32>
    %cst_136 = arith.constant dense<0.000000e+00> : vector<16x128xf32>
    %486 = vector.multi_reduction <add>, %485, %cst_136 [0] : vector<3x16x128xf32> to vector<16x128xf32>
    %487 = arith.addf %10, %481 : vector<16x128xf32>
    %cst_137 = arith.constant 2.000000e+00 : f32
    %488 = vector.broadcast %cst_137 : f32 to vector<16x128xf32>
    %489 = arith.mulf %488, %484 : vector<16x128xf32>
    %490 = arith.subf %487, %489 : vector<16x128xf32>
    %491 = arith.addf %11, %482 : vector<16x128xf32>
    %cst_138 = arith.constant 2.000000e+00 : f32
    %492 = vector.broadcast %cst_138 : f32 to vector<16x128xf32>
    %493 = arith.mulf %492, %486 : vector<16x128xf32>
    %494 = arith.subf %491, %493 : vector<16x128xf32>
    %cst_139 = arith.constant 0.000000e+00 : f32
    %495 = vector.broadcast %cst_139 : f32 to vector<16x128xf32>
    %496 = arith.subf %495, %494 : vector<16x128xf32>
    %cst_140 = arith.constant 5.000000e+01 : f32
    %497 = vector.broadcast %cst_140 : f32 to vector<16x128xf32>
    %498 = arith.mulf %496, %497 : vector<16x128xf32>
    %cst_141 = arith.constant 1.000000e-01 : f32
    %499 = vector.broadcast %cst_141 : f32 to vector<16x128xf32>
    %500 = arith.subf %498, %499 : vector<16x128xf32>
    %501 = math.exp %500 : vector<16x128xf32>
    %502 = arith.mulf %501, %490 : vector<16x128xf32>
    %503 = arith.addf %478, %502 : vector<16x128xf32>
    %504 = vector.extract_strided_slice %1 {offsets = [0, 0, 4], sizes = [4, 20, 128], strides = [1, 1, 1]} : vector<4x20x132xf32> to vector<4x20x128xf32>
    %505 = vector.extract_strided_slice %3 {offsets = [0, 0, 4], sizes = [3, 20, 128], strides = [1, 1, 1]} : vector<3x20x132xf32> to vector<3x20x128xf32>
    %506 = vector.extract_strided_slice %5 {offsets = [0, 4], sizes = [20, 128], strides = [1, 1]} : vector<20x132xf32> to vector<20x128xf32>
    %507 = vector.extract_strided_slice %7 {offsets = [0, 4], sizes = [20, 128], strides = [1, 1]} : vector<20x132xf32> to vector<20x128xf32>
    %508 = vector.extract_strided_slice %504 {offsets = [0, 0, 0], sizes = [4, 16, 128], strides = [1, 1, 1]} : vector<4x20x128xf32> to vector<4x16x128xf32>
    %509 = vector.extract_strided_slice %505 {offsets = [0, 0, 0], sizes = [3, 16, 128], strides = [1, 1, 1]} : vector<3x20x128xf32> to vector<3x16x128xf32>
    %510 = vector.extract_strided_slice %506 {offsets = [0, 0], sizes = [16, 128], strides = [1, 1]} : vector<20x128xf32> to vector<16x128xf32>
    %511 = vector.extract_strided_slice %507 {offsets = [0, 0], sizes = [16, 128], strides = [1, 1]} : vector<20x128xf32> to vector<16x128xf32>
    %512 = arith.mulf %8, %508 : vector<4x16x128xf32>
    %cst_142 = arith.constant dense<0.000000e+00> : vector<16x128xf32>
    %513 = vector.multi_reduction <add>, %512, %cst_142 [0] : vector<4x16x128xf32> to vector<16x128xf32>
    %514 = arith.mulf %9, %509 : vector<3x16x128xf32>
    %cst_143 = arith.constant dense<0.000000e+00> : vector<16x128xf32>
    %515 = vector.multi_reduction <add>, %514, %cst_143 [0] : vector<3x16x128xf32> to vector<16x128xf32>
    %516 = arith.addf %10, %510 : vector<16x128xf32>
    %cst_144 = arith.constant 2.000000e+00 : f32
    %517 = vector.broadcast %cst_144 : f32 to vector<16x128xf32>
    %518 = arith.mulf %517, %513 : vector<16x128xf32>
    %519 = arith.subf %516, %518 : vector<16x128xf32>
    %520 = arith.addf %11, %511 : vector<16x128xf32>
    %cst_145 = arith.constant 2.000000e+00 : f32
    %521 = vector.broadcast %cst_145 : f32 to vector<16x128xf32>
    %522 = arith.mulf %521, %515 : vector<16x128xf32>
    %523 = arith.subf %520, %522 : vector<16x128xf32>
    %cst_146 = arith.constant 0.000000e+00 : f32
    %524 = vector.broadcast %cst_146 : f32 to vector<16x128xf32>
    %525 = arith.subf %524, %523 : vector<16x128xf32>
    %cst_147 = arith.constant 5.000000e+01 : f32
    %526 = vector.broadcast %cst_147 : f32 to vector<16x128xf32>
    %527 = arith.mulf %525, %526 : vector<16x128xf32>
    %cst_148 = arith.constant 1.600000e-01 : f32
    %528 = vector.broadcast %cst_148 : f32 to vector<16x128xf32>
    %529 = arith.subf %527, %528 : vector<16x128xf32>
    %530 = math.exp %529 : vector<16x128xf32>
    %531 = arith.mulf %530, %519 : vector<16x128xf32>
    %532 = arith.addf %503, %531 : vector<16x128xf32>
    %533 = vector.extract_strided_slice %504 {offsets = [0, 1, 0], sizes = [4, 16, 128], strides = [1, 1, 1]} : vector<4x20x128xf32> to vector<4x16x128xf32>
    %534 = vector.extract_strided_slice %505 {offsets = [0, 1, 0], sizes = [3, 16, 128], strides = [1, 1, 1]} : vector<3x20x128xf32> to vector<3x16x128xf32>
    %535 = vector.extract_strided_slice %506 {offsets = [1, 0], sizes = [16, 128], strides = [1, 1]} : vector<20x128xf32> to vector<16x128xf32>
    %536 = vector.extract_strided_slice %507 {offsets = [1, 0], sizes = [16, 128], strides = [1, 1]} : vector<20x128xf32> to vector<16x128xf32>
    %537 = arith.mulf %8, %533 : vector<4x16x128xf32>
    %cst_149 = arith.constant dense<0.000000e+00> : vector<16x128xf32>
    %538 = vector.multi_reduction <add>, %537, %cst_149 [0] : vector<4x16x128xf32> to vector<16x128xf32>
    %539 = arith.mulf %9, %534 : vector<3x16x128xf32>
    %cst_150 = arith.constant dense<0.000000e+00> : vector<16x128xf32>
    %540 = vector.multi_reduction <add>, %539, %cst_150 [0] : vector<3x16x128xf32> to vector<16x128xf32>
    %541 = arith.addf %10, %535 : vector<16x128xf32>
    %cst_151 = arith.constant 2.000000e+00 : f32
    %542 = vector.broadcast %cst_151 : f32 to vector<16x128xf32>
    %543 = arith.mulf %542, %538 : vector<16x128xf32>
    %544 = arith.subf %541, %543 : vector<16x128xf32>
    %545 = arith.addf %11, %536 : vector<16x128xf32>
    %cst_152 = arith.constant 2.000000e+00 : f32
    %546 = vector.broadcast %cst_152 : f32 to vector<16x128xf32>
    %547 = arith.mulf %546, %540 : vector<16x128xf32>
    %548 = arith.subf %545, %547 : vector<16x128xf32>
    %cst_153 = arith.constant 0.000000e+00 : f32
    %549 = vector.broadcast %cst_153 : f32 to vector<16x128xf32>
    %550 = arith.subf %549, %548 : vector<16x128xf32>
    %cst_154 = arith.constant 5.000000e+01 : f32
    %551 = vector.broadcast %cst_154 : f32 to vector<16x128xf32>
    %552 = arith.mulf %550, %551 : vector<16x128xf32>
    %cst_155 = arith.constant 1.000000e-01 : f32
    %553 = vector.broadcast %cst_155 : f32 to vector<16x128xf32>
    %554 = arith.subf %552, %553 : vector<16x128xf32>
    %555 = math.exp %554 : vector<16x128xf32>
    %556 = arith.mulf %555, %544 : vector<16x128xf32>
    %557 = arith.addf %532, %556 : vector<16x128xf32>
    %558 = vector.extract_strided_slice %504 {offsets = [0, 2, 0], sizes = [4, 16, 128], strides = [1, 1, 1]} : vector<4x20x128xf32> to vector<4x16x128xf32>
    %559 = vector.extract_strided_slice %505 {offsets = [0, 2, 0], sizes = [3, 16, 128], strides = [1, 1, 1]} : vector<3x20x128xf32> to vector<3x16x128xf32>
    %560 = vector.extract_strided_slice %506 {offsets = [2, 0], sizes = [16, 128], strides = [1, 1]} : vector<20x128xf32> to vector<16x128xf32>
    %561 = vector.extract_strided_slice %507 {offsets = [2, 0], sizes = [16, 128], strides = [1, 1]} : vector<20x128xf32> to vector<16x128xf32>
    %562 = arith.mulf %8, %558 : vector<4x16x128xf32>
    %cst_156 = arith.constant dense<0.000000e+00> : vector<16x128xf32>
    %563 = vector.multi_reduction <add>, %562, %cst_156 [0] : vector<4x16x128xf32> to vector<16x128xf32>
    %564 = arith.mulf %9, %559 : vector<3x16x128xf32>
    %cst_157 = arith.constant dense<0.000000e+00> : vector<16x128xf32>
    %565 = vector.multi_reduction <add>, %564, %cst_157 [0] : vector<3x16x128xf32> to vector<16x128xf32>
    %566 = arith.addf %10, %560 : vector<16x128xf32>
    %cst_158 = arith.constant 2.000000e+00 : f32
    %567 = vector.broadcast %cst_158 : f32 to vector<16x128xf32>
    %568 = arith.mulf %567, %563 : vector<16x128xf32>
    %569 = arith.subf %566, %568 : vector<16x128xf32>
    %570 = arith.addf %11, %561 : vector<16x128xf32>
    %cst_159 = arith.constant 2.000000e+00 : f32
    %571 = vector.broadcast %cst_159 : f32 to vector<16x128xf32>
    %572 = arith.mulf %571, %565 : vector<16x128xf32>
    %573 = arith.subf %570, %572 : vector<16x128xf32>
    %cst_160 = arith.constant 0.000000e+00 : f32
    %574 = vector.broadcast %cst_160 : f32 to vector<16x128xf32>
    %575 = arith.subf %574, %573 : vector<16x128xf32>
    %cst_161 = arith.constant 5.000000e+01 : f32
    %576 = vector.broadcast %cst_161 : f32 to vector<16x128xf32>
    %577 = arith.mulf %575, %576 : vector<16x128xf32>
    %cst_162 = arith.constant 8.000000e-02 : f32
    %578 = vector.broadcast %cst_162 : f32 to vector<16x128xf32>
    %579 = arith.subf %577, %578 : vector<16x128xf32>
    %580 = math.exp %579 : vector<16x128xf32>
    %581 = arith.mulf %580, %569 : vector<16x128xf32>
    %582 = arith.addf %557, %581 : vector<16x128xf32>
    %583 = vector.extract_strided_slice %504 {offsets = [0, 3, 0], sizes = [4, 16, 128], strides = [1, 1, 1]} : vector<4x20x128xf32> to vector<4x16x128xf32>
    %584 = vector.extract_strided_slice %505 {offsets = [0, 3, 0], sizes = [3, 16, 128], strides = [1, 1, 1]} : vector<3x20x128xf32> to vector<3x16x128xf32>
    %585 = vector.extract_strided_slice %506 {offsets = [3, 0], sizes = [16, 128], strides = [1, 1]} : vector<20x128xf32> to vector<16x128xf32>
    %586 = vector.extract_strided_slice %507 {offsets = [3, 0], sizes = [16, 128], strides = [1, 1]} : vector<20x128xf32> to vector<16x128xf32>
    %587 = arith.mulf %8, %583 : vector<4x16x128xf32>
    %cst_163 = arith.constant dense<0.000000e+00> : vector<16x128xf32>
    %588 = vector.multi_reduction <add>, %587, %cst_163 [0] : vector<4x16x128xf32> to vector<16x128xf32>
    %589 = arith.mulf %9, %584 : vector<3x16x128xf32>
    %cst_164 = arith.constant dense<0.000000e+00> : vector<16x128xf32>
    %590 = vector.multi_reduction <add>, %589, %cst_164 [0] : vector<3x16x128xf32> to vector<16x128xf32>
    %591 = arith.addf %10, %585 : vector<16x128xf32>
    %cst_165 = arith.constant 2.000000e+00 : f32
    %592 = vector.broadcast %cst_165 : f32 to vector<16x128xf32>
    %593 = arith.mulf %592, %588 : vector<16x128xf32>
    %594 = arith.subf %591, %593 : vector<16x128xf32>
    %595 = arith.addf %11, %586 : vector<16x128xf32>
    %cst_166 = arith.constant 2.000000e+00 : f32
    %596 = vector.broadcast %cst_166 : f32 to vector<16x128xf32>
    %597 = arith.mulf %596, %590 : vector<16x128xf32>
    %598 = arith.subf %595, %597 : vector<16x128xf32>
    %cst_167 = arith.constant 0.000000e+00 : f32
    %599 = vector.broadcast %cst_167 : f32 to vector<16x128xf32>
    %600 = arith.subf %599, %598 : vector<16x128xf32>
    %cst_168 = arith.constant 5.000000e+01 : f32
    %601 = vector.broadcast %cst_168 : f32 to vector<16x128xf32>
    %602 = arith.mulf %600, %601 : vector<16x128xf32>
    %cst_169 = arith.constant 1.000000e-01 : f32
    %603 = vector.broadcast %cst_169 : f32 to vector<16x128xf32>
    %604 = arith.subf %602, %603 : vector<16x128xf32>
    %605 = math.exp %604 : vector<16x128xf32>
    %606 = arith.mulf %605, %594 : vector<16x128xf32>
    %607 = arith.addf %582, %606 : vector<16x128xf32>
    %608 = vector.extract_strided_slice %504 {offsets = [0, 4, 0], sizes = [4, 16, 128], strides = [1, 1, 1]} : vector<4x20x128xf32> to vector<4x16x128xf32>
    %609 = vector.extract_strided_slice %505 {offsets = [0, 4, 0], sizes = [3, 16, 128], strides = [1, 1, 1]} : vector<3x20x128xf32> to vector<3x16x128xf32>
    %610 = vector.extract_strided_slice %506 {offsets = [4, 0], sizes = [16, 128], strides = [1, 1]} : vector<20x128xf32> to vector<16x128xf32>
    %611 = vector.extract_strided_slice %507 {offsets = [4, 0], sizes = [16, 128], strides = [1, 1]} : vector<20x128xf32> to vector<16x128xf32>
    %612 = arith.mulf %8, %608 : vector<4x16x128xf32>
    %cst_170 = arith.constant dense<0.000000e+00> : vector<16x128xf32>
    %613 = vector.multi_reduction <add>, %612, %cst_170 [0] : vector<4x16x128xf32> to vector<16x128xf32>
    %614 = arith.mulf %9, %609 : vector<3x16x128xf32>
    %cst_171 = arith.constant dense<0.000000e+00> : vector<16x128xf32>
    %615 = vector.multi_reduction <add>, %614, %cst_171 [0] : vector<3x16x128xf32> to vector<16x128xf32>
    %616 = arith.addf %10, %610 : vector<16x128xf32>
    %cst_172 = arith.constant 2.000000e+00 : f32
    %617 = vector.broadcast %cst_172 : f32 to vector<16x128xf32>
    %618 = arith.mulf %617, %613 : vector<16x128xf32>
    %619 = arith.subf %616, %618 : vector<16x128xf32>
    %620 = arith.addf %11, %611 : vector<16x128xf32>
    %cst_173 = arith.constant 2.000000e+00 : f32
    %621 = vector.broadcast %cst_173 : f32 to vector<16x128xf32>
    %622 = arith.mulf %621, %615 : vector<16x128xf32>
    %623 = arith.subf %620, %622 : vector<16x128xf32>
    %cst_174 = arith.constant 0.000000e+00 : f32
    %624 = vector.broadcast %cst_174 : f32 to vector<16x128xf32>
    %625 = arith.subf %624, %623 : vector<16x128xf32>
    %cst_175 = arith.constant 5.000000e+01 : f32
    %626 = vector.broadcast %cst_175 : f32 to vector<16x128xf32>
    %627 = arith.mulf %625, %626 : vector<16x128xf32>
    %cst_176 = arith.constant 1.600000e-01 : f32
    %628 = vector.broadcast %cst_176 : f32 to vector<16x128xf32>
    %629 = arith.subf %627, %628 : vector<16x128xf32>
    %630 = math.exp %629 : vector<16x128xf32>
    %631 = arith.mulf %630, %619 : vector<16x128xf32>
    %632 = arith.addf %607, %631 : vector<16x128xf32>
    %633 = vector.shape_cast %632 : vector<16x128xf32> to vector<1x16x128xf32>
    %cst_177 = arith.constant dense<0.000000e+00> : vector<1xf32>
    %634 = vector.multi_reduction <add>, %633, %cst_177 [1, 2] : vector<1x16x128xf32> to vector<1xf32>
    %635 = vector.shape_cast %634 : vector<1xf32> to vector<1x1x1xf32>
    %636 = vector.extract %635[0, 0, 0] : f32 from vector<1x1x1xf32>
    %637 = vector.broadcast %636 : f32 to vector<8x128xf32>
    %c0_178 = arith.constant 0 : index
    %c0_179 = arith.constant 0 : index
    %c0_180 = arith.constant 0 : index
    %638 = vector.load %arg3[%c0_178, %c0_179, %c0_180] : memref<1x8x128xf32, #tpu.memory_space<vmem>>, vector<1x8x128xf32>
    %639 = vector.shape_cast %638 : vector<1x8x128xf32> to vector<8x128xf32>
    %640 = vector.shape_cast %637 : vector<8x128xf32> to vector<1x8x128xf32>
    tpu.vector_store %arg3[%c0_178, %c0_179, %c0_180], %640 {strides = array<i32>} : memref<1x8x128xf32, #tpu.memory_space<vmem>>, vector<1x8x128xf32>,
    return
  }
  func.func @transform_0(%arg0: i32) -> (i32, i32, i32, i32) {
    %c0_i32 = arith.constant 0 : i32
    %c0_i32_0 = arith.constant 0 : i32
    %c0_i32_1 = arith.constant 0 : i32
    %c0_i32_2 = arith.constant 0 : i32
    return %arg0, %c0_i32, %c0_i32_0, %c0_i32_1 : i32, i32, i32, i32
  }
  func.func @transform_1(%arg0: i32) -> (i32, i32, i32, i32) {
    %c0_i32 = arith.constant 0 : i32
    %c0_i32_0 = arith.constant 0 : i32
    %c0_i32_1 = arith.constant 0 : i32
    %c0_i32_2 = arith.constant 0 : i32
    return %arg0, %c0_i32, %c0_i32_0, %c0_i32_1 : i32, i32, i32, i32
  }
  func.func @transform_2(%arg0: i32) -> (i32, i32, i32) {
    %c0_i32 = arith.constant 0 : i32
    %c0_i32_0 = arith.constant 0 : i32
    %c0_i32_1 = arith.constant 0 : i32
    return %arg0, %c0_i32, %c0_i32_0 : i32, i32, i32
  }
}

</mosaic_0001>

<llo_original>
// kernel: tpu_custom_call.1
$region0: #{tpu_custom_call.1}
  #allocation0 [shape = 'u32[]', space=smem, size = 0x4, offset = 0x4, fixed_abs, tag = 'smem constant byte address 0x4 - core index']
  #allocation1 [shape = 'u32[144,128]{1,0:T(1,128)}', space=vmem, size = 0x12000, scoped, tag = 'internal scratch']
  %s0 = inlined_call_operand.vmem [shape: f32[2,4,20,132], index: 0, kind: input, shape index: {}]
  %s1 = inlined_call_operand.vmem [shape: f32[2,3,20,132], index: 1, kind: input, shape index: {}]
  %s2 = inlined_call_operand.hbm [shape: f32[2,8,128], index: 2, kind: output, shape index: {}]
  %s3 = sld [smem:[#allocation0]]
  $region41: #{tpu_custom_call.1} parent=0
    _
  %s5 = ssub.s32 1, %s3
  %s6 = scalar_select 0, %s5, %s3
  $region1: #{tpu_custom_call.1} parent=0
    #allocation2 [shape = 'u8[8192]{0}', space=vmem, size = 0x2000, scoped, tag = 'output window, operand 0']
    #allocation3 [shape = 's32[2]{0}', space=sflag, size = 0x8, scoped, tag = 'scoped memory for tpu_custom_call.1']
    %7 = vsyncpa [#allocation3], 0
    %s8 = scalar_lea.sflag [#allocation3], 1
    %9 = vsyncpa %s8, 0
    loop: start=0, step=1, limit=4
    $region2: #{tpu_custom_call.1} parent=1 // loop_pre_header
      _
    $region3: #{tpu_custom_call.1} parent=1 // loop_header
      %s11 = sphi 0, %s15
      %p12 = scmp.ge.s32.totalorder %s11, 4
      %s21 = sphi 0, %s23
      %s24 = sphi 0, %s21
      %s25 = sphi 0, %s24
      %s41 = sphi 0, %s25
      %s47 = sphi 0, %s49
      %s50 = sphi 0, %s47
      %s51 = sphi 0, %s50
      %s67 = sphi 0, %s51
      %s73 = sphi 0, %s75
      %s76 = sphi 0, %s73
      %s77 = sphi 0, %s76
      %s93 = sphi 0, %s77
    $region4: #{tpu_custom_call.1} parent=1 // loop_header_branch
      %14 = sbr.rel (%p12) target = $region8
    $region5: #{tpu_custom_call.1} parent=1 // loop_body
      %s16 = ssub.s32 %s11, 1
      %s17 = ssub.s32 %s11, 2
      %s18 = sadd.s32 %s11, 1
      %s19 = ssub.s32 %s11, %s18
      %p20 = scmp.eq.s32.totalorder %s19, 0
      %s22 = sadd.s32 %s21, 1
      %s23 = scalar_select %p20, %s21, %s22
      %p26 = pneg %p20
      %p27 = scmp.eq.s32.totalorder %s11, 1
      %p28 = por %p26, %p27
      %p29 = scmp.ne.s32.totalorder %s21, %s24
      %p30 = scmp.eq.s32.totalorder %s11, 0
      %p31 = por %p29, %p30
      %p32 = scmp.ne.s32.totalorder %s21, %s24
      %p33 = scmp.eq.s32.totalorder %s16, 1
      %p34 = por %p32, %p33
      %p35 = scmp.ne.s32.totalorder %s24, %s25
      %p36 = scmp.eq.s32.totalorder %s16, 0
      %p37 = por %p35, %p36
      %p38 = scmp.ne.s32.totalorder %s24, %s25
      %p39 = scmp.eq.s32.totalorder %s17, 1
      %p40 = por %p38, %p39
      %p42 = scmp.ne.s32.totalorder %s25, %s41
      %p43 = scmp.eq.s32.totalorder %s17, 0
      %p44 = por %p42, %p43
      %s45 = ssub.s32 %s11, %s18
      %p46 = scmp.eq.s32.totalorder %s45, 0
      %s48 = sadd.s32 %s47, 1
      %s49 = scalar_select %p46, %s47, %s48
      %p52 = pneg %p46
      %p53 = scmp.eq.s32.totalorder %s11, 1
      %p54 = por %p52, %p53
      %p55 = scmp.ne.s32.totalorder %s47, %s50
      %p56 = scmp.eq.s32.totalorder %s11, 0
      %p57 = por %p55, %p56
      %p58 = scmp.ne.s32.totalorder %s47, %s50
      %p59 = scmp.eq.s32.totalorder %s16, 1
      %p60 = por %p58, %p59
      %p61 = scmp.ne.s32.totalorder %s50, %s51
      %p62 = scmp.eq.s32.totalorder %s16, 0
      %p63 = por %p61, %p62
      %p64 = scmp.ne.s32.totalorder %s50, %s51
      %p65 = scmp.eq.s32.totalorder %s17, 1
      %p66 = por %p64, %p65
      %p68 = scmp.ne.s32.totalorder %s51, %s67
      %p69 = scmp.eq.s32.totalorder %s17, 0
      %p70 = por %p68, %p69
      %s71 = ssub.s32 %s11, %s18
      %p72 = scmp.eq.s32.totalorder %s71, 0
      %s74 = sadd.s32 %s73, 1
      %s75 = scalar_select %p72, %s73, %s74
      %p78 = pneg %p72
      %p79 = scmp.eq.s32.totalorder %s11, 1
      %p80 = por %p78, %p79
      %p81 = scmp.ne.s32.totalorder %s73, %s76
      %p82 = scmp.eq.s32.totalorder %s11, 0
      %p83 = por %p81, %p82
      %p84 = scmp.ne.s32.totalorder %s73, %s76
      %p85 = scmp.eq.s32.totalorder %s16, 1
      %p86 = por %p84, %p85
      %p87 = scmp.ne.s32.totalorder %s76, %s77
      %p88 = scmp.eq.s32.totalorder %s16, 0
      %p89 = por %p87, %p88
      %p90 = scmp.ne.s32.totalorder %s76, %s77
      %p91 = scmp.eq.s32.totalorder %s17, 1
      %p92 = por %p90, %p91
      %p94 = scmp.ne.s32.totalorder %s77, %s93
      %p95 = scmp.eq.s32.totalorder %s17, 0
      %p96 = por %p94, %p95
      %p97 = scmp.le.s32.totalorder 1, %s11
      %p98 = scmp.lt.s32.totalorder %s11, 3
      %p99 = pnand %p97, %p98
      %p100 = pneg %p99
      // Predicated region
      $region9: #{tpu_custom_call.1} parent=5 // pred_check
        _
      $region10: #{tpu_custom_call.1} parent=5 // pred_check_branch
        %102 = sbr.rel (%p99) target = $region12
      $region11: #{tpu_custom_call.1} parent=5 // pred_region
        %s103 = ssub.s32 %s11, 1
      $region12: #{tpu_custom_call.1} parent=5 // pred_fallthru
        _
      %p104 = scmp.lt.s32.totalorder %s11, 2
      // Predicated region
      $region13: #{tpu_custom_call.1} parent=5 // pred_check
        %p105 = pneg %p104
      $region14: #{tpu_custom_call.1} parent=5 // pred_check_branch
        %107 = sbr.rel (%p105) target = $region16
      $region15: #{tpu_custom_call.1} parent=5 // pred_region
        // Predicated region
        $region17: #{tpu_custom_call.1} parent=15 // pred_check
          %p108 = pneg %p31
        $region18: #{tpu_custom_call.1} parent=15 // pred_check_branch
          %110 = sbr.rel (%p108) target = $region20
        $region19: #{tpu_custom_call.1} parent=15 // pred_region
          %p111 = scmp.lt.s32.totalorder %s11, 1
          %s112 = scalar_select %p111, %s11, 1
          %s113 = smul.addr %s112, 24
          %s114 = smul.addr %s113, 8
          %s115 = scalar_lea.vmem %s0, %s114
        $region20: #{tpu_custom_call.1} parent=15 // pred_fallthru
          _
        // Predicated region
        $region21: #{tpu_custom_call.1} parent=15 // pred_check
          %p116 = pneg %p57
        $region22: #{tpu_custom_call.1} parent=15 // pred_check_branch
          %118 = sbr.rel (%p116) target = $region24
        $region23: #{tpu_custom_call.1} parent=15 // pred_region
          %p119 = scmp.lt.s32.totalorder %s11, 1
          %s120 = scalar_select %p119, %s11, 1
          %s121 = smul.addr %s120, 18
          %s122 = smul.addr %s121, 8
          %s123 = scalar_lea.vmem %s1, %s122
        $region24: #{tpu_custom_call.1} parent=15 // pred_fallthru
          _
      $region16: #{tpu_custom_call.1} parent=5 // pred_fallthru
        _
      %p124 = scmp.le.s32.totalorder 1, %s11
      %p125 = scmp.lt.s32.totalorder %s11, 3
      %p126 = pnand %p124, %p125
      %p127 = pneg %p126
      // Predicated region
      $region25: #{tpu_custom_call.1} parent=5 // pred_check
        _
      $region26: #{tpu_custom_call.1} parent=5 // pred_check_branch
        %129 = sbr.rel (%p126) target = $region28
      $region27: #{tpu_custom_call.1} parent=5 // pred_region
        %s130 = ssub.s32 %s11, 1
        %p131 = scmp.lt.s32.totalorder %s16, 1
        %s132 = scalar_select %p131, %s16, 1
        %s133 = smul.addr %s132, 24
        %s134 = smul.addr %s133, 8
        %s135 = scalar_lea.vmem %s0, %s134
        %p136 = pneg %p37
        %p137 = pneg %p34
        %p138 = scmp.lt.s32.totalorder %s16, 1
        %s139 = scalar_select %p138, %s16, 1
        %s140 = smul.addr %s139, 18
        %s141 = smul.addr %s140, 8
        %s142 = scalar_lea.vmem %s1, %s141
        %p143 = pneg %p63
        %p144 = pneg %p60
        %p145 = pneg %p89
        %p146 = pneg %p86
        %s147 = sand.u32 %s76, 1
        %s148 = scalar_lea.sflag [#allocation3], %s147
        %s149 = sand.u32 %s76, 1
        %s150 = smul.addr %s149, 8
        %s151 = scalar_lea.vmem [#allocation2], %s150
        %p152 = scmp.lt.s32.totalorder %s16, 1
        %s153 = scalar_select %p152, %s16, 1
        %s154 = smul.addr %s153, 24
        %s155 = smul.addr %s154, 8
        %s156 = scalar_lea.vmem %s0, %s155
        %p157 = scmp.lt.s32.totalorder %s16, 1
        %s158 = scalar_select %p157, %s16, 1
        %s159 = smul.addr %s158, 18
        %s160 = smul.addr %s159, 8
        %s161 = scalar_lea.vmem %s1, %s160
        %v162 = vld [vmem:[%s156] sm:$0xff]
        %v163 = vld [vmem:[%s156 + $0x8] sm:$0xff]
        %v164 = vld [vmem:[%s156 + $0x10] sm:$0xff]
        %v165 = vld [vmem:[%s156 + $0x18] sm:$0xff]
        %v166 = vld [vmem:[%s156 + $0x20] sm:$0xf]
        %v167 = vld [vmem:[%s156 + $0x28] sm:$0xf]
        %v168 = vld [vmem:[%s156 + $0x30] sm:$0xff]
        %v169 = vld [vmem:[%s156 + $0x38] sm:$0xff]
        %v170 = vld [vmem:[%s156 + $0x40] sm:$0xff]
        %v171 = vld [vmem:[%s156 + $0x48] sm:$0xff]
        %v172 = vld [vmem:[%s156 + $0x50] sm:$0xf]
        %v173 = vld [vmem:[%s156 + $0x58] sm:$0xf]
        %v174 = vld [vmem:[%s156 + $0x60] sm:$0xff]
        %v175 = vld [vmem:[%s156 + $0x68] sm:$0xff]
        %v176 = vld [vmem:[%s156 + $0x70] sm:$0xff]
        %v177 = vld [vmem:[%s156 + $0x78] sm:$0xff]
        %v178 = vld [vmem:[%s156 + $0x80] sm:$0xf]
        %v179 = vld [vmem:[%s156 + $0x88] sm:$0xf]
        %v180 = vld [vmem:[%s156 + $0x90] sm:$0xff]
        %v181 = vld [vmem:[%s156 + $0x98] sm:$0xff]
        %v182 = vld [vmem:[%s156 + $0xa0] sm:$0xff]
        %v183 = vld [vmem:[%s156 + $0xa8] sm:$0xff]
        %v184 = vld [vmem:[%s156 + $0xb0] sm:$0xf]
        %v185 = vld [vmem:[%s156 + $0xb8] sm:$0xf]
        %v186 = vld [vmem:[%s161] sm:$0xff]
        %v187 = vld [vmem:[%s161 + $0x8] sm:$0xff]
        %v188 = vld [vmem:[%s161 + $0x10] sm:$0xff]
        %v189 = vld [vmem:[%s161 + $0x18] sm:$0xff]
        %v190 = vld [vmem:[%s161 + $0x20] sm:$0xf]
        %v191 = vld [vmem:[%s161 + $0x28] sm:$0xf]
        %v192 = vld [vmem:[%s161 + $0x30] sm:$0xff]
        %v193 = vld [vmem:[%s161 + $0x38] sm:$0xff]
        %v194 = vld [vmem:[%s161 + $0x40] sm:$0xff]
        %v195 = vld [vmem:[%s161 + $0x48] sm:$0xff]
        %v196 = vld [vmem:[%s161 + $0x50] sm:$0xf]
        %v197 = vld [vmem:[%s161 + $0x58] sm:$0xf]
        %v198 = vld [vmem:[%s161 + $0x60] sm:$0xff]
        %v199 = vld [vmem:[%s161 + $0x68] sm:$0xff]
        %v200 = vld [vmem:[%s161 + $0x70] sm:$0xff]
        %v201 = vld [vmem:[%s161 + $0x78] sm:$0xff]
        %v202 = vld [vmem:[%s161 + $0x80] sm:$0xf]
        %v203 = vld [vmem:[%s161 + $0x88] sm:$0xf]
        %v204 = vmul.f32 %v162, %v162
        %v205 = vmul.f32 %v163, %v163
        %v206 = vmul.f32 %v164, %v164
        %v207 = vmul.f32 %v165, %v165
        %v208 = vmul.f32 %v166, %v166
        %v209 = vmul.f32 %v167, %v167
        %v210 = vmul.f32 %v168, %v168
        %v211 = vmul.f32 %v169, %v169
        %v212 = vmul.f32 %v170, %v170
        %v213 = vmul.f32 %v171, %v171
        %v214 = vmul.f32 %v172, %v172
        %v215 = vmul.f32 %v173, %v173
        %v216 = vmul.f32 %v174, %v174
        %v217 = vmul.f32 %v175, %v175
        %v218 = vmul.f32 %v176, %v176
        %v219 = vmul.f32 %v177, %v177
        %v220 = vmul.f32 %v178, %v178
        %v221 = vmul.f32 %v179, %v179
        %v222 = vmul.f32 %v180, %v180
        %v223 = vmul.f32 %v181, %v181
        %v224 = vmul.f32 %v182, %v182
        %v225 = vmul.f32 %v183, %v183
        %v226 = vmul.f32 %v184, %v184
        %v227 = vmul.f32 %v185, %v185
        %v228 = vadd.f32 %v204, %v210
        %v229 = vadd.f32 %v228, %v216
        %v230 = vadd.f32 %v229, %v222
        %vm231 = vcmask 31744
        %v232 = vsel %vm231, %v205, 0.0
        %v233 = vsel %vm231, %v211, 0.0
        %v234 = vadd.f32 %v232, %v233
        %v235 = vsel %vm231, %v217, 0.0
        %v236 = vadd.f32 %v234, %v235
        %v237 = vsel %vm231, %v223, 0.0
        %v238 = vadd.f32 %v236, %v237
        %v239 = vadd.f32 %v206, %v212
        %v240 = vadd.f32 %v239, %v218
        %v241 = vadd.f32 %v240, %v224
        %v242 = vsel %vm231, %v207, 0.0
        %v243 = vsel %vm231, %v213, 0.0
        %v244 = vadd.f32 %v242, %v243
        %v245 = vsel %vm231, %v219, 0.0
        %v246 = vadd.f32 %v244, %v245
        %v247 = vsel %vm231, %v225, 0.0
        %v248 = vadd.f32 %v246, %v247
        %vm249 = vcmask 1043456
        %v250 = vsel %vm249, %v208, 0.0
        %v251 = vsel %vm249, %v214, 0.0
        %v252 = vadd.f32 %v250, %v251
        %v253 = vsel %vm249, %v220, 0.0
        %v254 = vadd.f32 %v252, %v253
        %v255 = vsel %vm249, %v226, 0.0
        %v256 = vadd.f32 %v254, %v255
        %vm257 = vcmask 27648
        %v258 = vsel %vm257, %v209, 0.0
        %v259 = vsel %vm257, %v215, 0.0
        %v260 = vadd.f32 %v258, %v259
        %v261 = vsel %vm257, %v221, 0.0
        %v262 = vadd.f32 %v260, %v261
        %v263 = vsel %vm257, %v227, 0.0
        %v264 = vadd.f32 %v262, %v263
        %v265 = vmul.f32 %v186, %v186
        %v266 = vmul.f32 %v187, %v187
        %v267 = vmul.f32 %v188, %v188
        %v268 = vmul.f32 %v189, %v189
        %v269 = vmul.f32 %v190, %v190
        %v270 = vmul.f32 %v191, %v191
        %v271 = vmul.f32 %v192, %v192
        %v272 = vmul.f32 %v193, %v193
        %v273 = vmul.f32 %v194, %v194
        %v274 = vmul.f32 %v195, %v195
        %v275 = vmul.f32 %v196, %v196
        %v276 = vmul.f32 %v197, %v197
        %v277 = vmul.f32 %v198, %v198
        %v278 = vmul.f32 %v199, %v199
        %v279 = vmul.f32 %v200, %v200
        %v280 = vmul.f32 %v201, %v201
        %v281 = vmul.f32 %v202, %v202
        %v282 = vmul.f32 %v203, %v203
        %v283 = vadd.f32 %v265, %v271
        %v284 = vadd.f32 %v283, %v277
        %v285 = vsel %vm231, %v266, 0.0
        %v286 = vsel %vm231, %v272, 0.0
        %v287 = vadd.f32 %v285, %v286
        %v288 = vsel %vm231, %v278, 0.0
        %v289 = vadd.f32 %v287, %v288
        %v290 = vadd.f32 %v267, %v273
        %v291 = vadd.f32 %v290, %v279
        %v292 = vsel %vm231, %v268, 0.0
        %v293 = vsel %vm231, %v274, 0.0
        %v294 = vadd.f32 %v292, %v293
        %v295 = vsel %vm231, %v280, 0.0
        %v296 = vadd.f32 %v294, %v295
        %v297 = vsel %vm249, %v269, 0.0
        %v298 = vsel %vm249, %v275, 0.0
        %v299 = vadd.f32 %v297, %v298
        %v300 = vsel %vm249, %v281, 0.0
        %v301 = vadd.f32 %v299, %v300
        %v302 = vsel %vm257, %v270, 0.0
        %v303 = vsel %vm257, %v276, 0.0
        %v304 = vadd.f32 %v302, %v303
        %v305 = vsel %vm257, %v282, 0.0
        %v306 = vadd.f32 %v304, %v305
        %vm315 = vcmask 1041408
        %v316 = vrot.slane %v162, 6
        %v317 = vrot.slane %v164, 6
        %v318 = vsel %vm315, %v316, %v317
        %v319 = vrot.slane %v168, 6
        %v320 = vrot.slane %v170, 6
        %v321 = vsel %vm315, %v319, %v320
        %v322 = vrot.slane %v174, 6
        %v323 = vrot.slane %v176, 6
        %v324 = vsel %vm315, %v322, %v323
        %v325 = vrot.slane %v180, 6
        %v326 = vrot.slane %v182, 6
        %v327 = vsel %vm315, %v325, %v326
        %328 = vrot.lane.b32.xlu0 %v316, 2
        %v329 = vpop.permute.xlu0 %328
        %330 = vrot.lane.b32.xlu0 %v318, 2
        %v331 = vpop.permute.xlu0 %330
        %332 = vrot.lane.b32.xlu0 %v317, 2
        %v333 = vpop.permute.xlu0 %332
        %334 = vrot.lane.b32.xlu0 %v319, 2
        %v335 = vpop.permute.xlu0 %334
        %336 = vrot.lane.b32.xlu0 %v321, 2
        %v337 = vpop.permute.xlu0 %336
        %338 = vrot.lane.b32.xlu0 %v320, 2
        %v339 = vpop.permute.xlu0 %338
        %340 = vrot.lane.b32.xlu0 %v322, 2
        %v341 = vpop.permute.xlu0 %340
        %342 = vrot.lane.b32.xlu0 %v324, 2
        %v343 = vpop.permute.xlu0 %342
        %344 = vrot.lane.b32.xlu0 %v323, 2
        %v345 = vpop.permute.xlu0 %344
        %346 = vrot.lane.b32.xlu0 %v325, 2
        %v347 = vpop.permute.xlu0 %346
        %348 = vrot.lane.b32.xlu0 %v327, 2
        %v349 = vpop.permute.xlu0 %348
        %350 = vrot.lane.b32.xlu0 %v326, 2
        %v351 = vpop.permute.xlu0 %350
        %v364 = vmul.f32 %v162, %v329
        %v365 = vmul.f32 %v163, %v329
        %v366 = vmul.f32 %v164, %v331
        %v367 = vmul.f32 %v165, %v331
        %v368 = vmul.f32 %v166, %v333
        %v369 = vmul.f32 %v167, %v333
        %v370 = vmul.f32 %v168, %v335
        %v371 = vmul.f32 %v169, %v335
        %v372 = vmul.f32 %v170, %v337
        %v373 = vmul.f32 %v171, %v337
        %v374 = vmul.f32 %v172, %v339
        %v375 = vmul.f32 %v173, %v339
        %v376 = vmul.f32 %v174, %v341
        %v377 = vmul.f32 %v175, %v341
        %v378 = vmul.f32 %v176, %v343
        %v379 = vmul.f32 %v177, %v343
        %v380 = vmul.f32 %v178, %v345
        %v381 = vmul.f32 %v179, %v345
        %v382 = vmul.f32 %v180, %v347
        %v383 = vmul.f32 %v181, %v347
        %v384 = vmul.f32 %v182, %v349
        %v385 = vmul.f32 %v183, %v349
        %v386 = vmul.f32 %v184, %v351
        %v387 = vmul.f32 %v185, %v351
        %vm388 = vcmask 1047570
        %v389 = vsel %vm388, %v364, 0.0
        %v390 = vsel %vm388, %v370, 0.0
        %v391 = vadd.f32 %v389, %v390
        %v392 = vsel %vm388, %v376, 0.0
        %v393 = vadd.f32 %v391, %v392
        %v394 = vsel %vm388, %v382, 0.0
        %v395 = vadd.f32 %v393, %v394
        %vm396 = vcmask 15362
        %v397 = vsel %vm396, %v365, 0.0
        %v398 = vsel %vm396, %v371, 0.0
        %v399 = vadd.f32 %v397, %v398
        %v400 = vsel %vm396, %v377, 0.0
        %v401 = vadd.f32 %v399, %v400
        %v402 = vsel %vm396, %v383, 0.0
        %v403 = vadd.f32 %v401, %v402
        %vm404 = vcmask 1047568
        %v405 = vsel %vm404, %v366, 0.0
        %v406 = vsel %vm404, %v372, 0.0
        %v407 = vadd.f32 %v405, %v406
        %v408 = vsel %vm404, %v378, 0.0
        %v409 = vadd.f32 %v407, %v408
        %v410 = vsel %vm404, %v384, 0.0
        %v411 = vadd.f32 %v409, %v410
        %vm412 = vcmask 15360
        %v413 = vsel %vm412, %v367, 0.0
        %v414 = vsel %vm412, %v373, 0.0
        %v415 = vadd.f32 %v413, %v414
        %v416 = vsel %vm412, %v379, 0.0
        %v417 = vadd.f32 %v415, %v416
        %v418 = vsel %vm412, %v385, 0.0
        %v419 = vadd.f32 %v417, %v418
        %vm420 = vcmask 1041424
        %v421 = vsel %vm420, %v368, 0.0
        %v422 = vsel %vm420, %v374, 0.0
        %v423 = vadd.f32 %v421, %v422
        %v424 = vsel %vm420, %v380, 0.0
        %v425 = vadd.f32 %v423, %v424
        %v426 = vsel %vm420, %v386, 0.0
        %v427 = vadd.f32 %v425, %v426
        %vm428 = vcmask 9216
        %v429 = vsel %vm428, %v369, 0.0
        %v430 = vsel %vm428, %v375, 0.0
        %v431 = vadd.f32 %v429, %v430
        %v432 = vsel %vm428, %v381, 0.0
        %v433 = vadd.f32 %v431, %v432
        %v434 = vsel %vm428, %v387, 0.0
        %v435 = vadd.f32 %v433, %v434
        %v442 = vrot.slane %v186, 6
        %v443 = vrot.slane %v188, 6
        %v444 = vsel %vm315, %v442, %v443
        %v445 = vrot.slane %v192, 6
        %v446 = vrot.slane %v194, 6
        %v447 = vsel %vm315, %v445, %v446
        %v448 = vrot.slane %v198, 6
        %v449 = vrot.slane %v200, 6
        %v450 = vsel %vm315, %v448, %v449
        %451 = vrot.lane.b32.xlu0 %v442, 2
        %v452 = vpop.permute.xlu0 %451
        %453 = vrot.lane.b32.xlu0 %v444, 2
        %v454 = vpop.permute.xlu0 %453
        %455 = vrot.lane.b32.xlu0 %v443, 2
        %v456 = vpop.permute.xlu0 %455
        %457 = vrot.lane.b32.xlu0 %v445, 2
        %v458 = vpop.permute.xlu0 %457
        %459 = vrot.lane.b32.xlu0 %v447, 2
        %v460 = vpop.permute.xlu0 %459
        %461 = vrot.lane.b32.xlu0 %v446, 2
        %v462 = vpop.permute.xlu0 %461
        %463 = vrot.lane.b32.xlu0 %v448, 2
        %v464 = vpop.permute.xlu0 %463
        %465 = vrot.lane.b32.xlu0 %v450, 2
        %v466 = vpop.permute.xlu0 %465
        %467 = vrot.lane.b32.xlu0 %v449, 2
        %v468 = vpop.permute.xlu0 %467
        %v478 = vmul.f32 %v186, %v452
        %v479 = vmul.f32 %v187, %v452
        %v480 = vmul.f32 %v188, %v454
        %v481 = vmul.f32 %v189, %v454
        %v482 = vmul.f32 %v190, %v456
        %v483 = vmul.f32 %v191, %v456
        %v484 = vmul.f32 %v192, %v458
        %v485 = vmul.f32 %v193, %v458
        %v486 = vmul.f32 %v194, %v460
        %v487 = vmul.f32 %v195, %v460
        %v488 = vmul.f32 %v196, %v462
        %v489 = vmul.f32 %v197, %v462
        %v490 = vmul.f32 %v198, %v464
        %v491 = vmul.f32 %v199, %v464
        %v492 = vmul.f32 %v200, %v466
        %v493 = vmul.f32 %v201, %v466
        %v494 = vmul.f32 %v202, %v468
        %v495 = vmul.f32 %v203, %v468
        %v496 = vsel %vm388, %v478, 0.0
        %v497 = vsel %vm388, %v484, 0.0
        %v498 = vadd.f32 %v496, %v497
        %v499 = vsel %vm388, %v490, 0.0
        %v500 = vadd.f32 %v498, %v499
        %v501 = vsel %vm396, %v479, 0.0
        %v502 = vsel %vm396, %v485, 0.0
        %v503 = vadd.f32 %v501, %v502
        %v504 = vsel %vm396, %v491, 0.0
        %v505 = vadd.f32 %v503, %v504
        %v506 = vsel %vm404, %v480, 0.0
        %v507 = vsel %vm404, %v486, 0.0
        %v508 = vadd.f32 %v506, %v507
        %v509 = vsel %vm404, %v492, 0.0
        %v510 = vadd.f32 %v508, %v509
        %v511 = vsel %vm412, %v481, 0.0
        %v512 = vsel %vm412, %v487, 0.0
        %v513 = vadd.f32 %v511, %v512
        %v514 = vsel %vm412, %v493, 0.0
        %v515 = vadd.f32 %v513, %v514
        %v516 = vsel %vm420, %v482, 0.0
        %v517 = vsel %vm420, %v488, 0.0
        %v518 = vadd.f32 %v516, %v517
        %v519 = vsel %vm420, %v494, 0.0
        %v520 = vadd.f32 %v518, %v519
        %v521 = vsel %vm428, %v483, 0.0
        %v522 = vsel %vm428, %v489, 0.0
        %v523 = vadd.f32 %v521, %v522
        %v524 = vsel %vm428, %v495, 0.0
        %v525 = vadd.f32 %v523, %v524
        %v528 = vrot.slane %v230, 6
        %v529 = vrot.slane %v241, 6
        %v530 = vsel %vm315, %v528, %v529
        %531 = vrot.lane.b32.xlu0 %v528, 2
        %v532 = vpop.permute.xlu0 %531
        %533 = vrot.lane.b32.xlu0 %v530, 2
        %v534 = vpop.permute.xlu0 %533
        %535 = vrot.lane.b32.xlu0 %v529, 2
        %v536 = vpop.permute.xlu0 %535
        %v540 = vadd.f32 %v230, %v532
        %v541 = vadd.f32 %v238, %v532
        %v542 = vadd.f32 %v241, %v534
        %v543 = vadd.f32 %v248, %v534
        %v544 = vadd.f32 %v256, %v536
        %v545 = vadd.f32 %v264, %v536
        %v546 = vmul.f32 %v395, 2.0
        %v547 = vmul.f32 %v403, 2.0
        %v548 = vmul.f32 %v411, 2.0
        %v549 = vmul.f32 %v419, 2.0
        %v550 = vmul.f32 %v427, 2.0
        %v551 = vmul.f32 %v435, 2.0
        %v552 = vsub.f32 %v540, %v546
        %v553 = vsub.f32 %v541, %v547
        %v554 = vsub.f32 %v542, %v548
        %v555 = vsub.f32 %v543, %v549
        %v556 = vsub.f32 %v544, %v550
        %v557 = vsub.f32 %v545, %v551
        %v560 = vrot.slane %v284, 6
        %v561 = vrot.slane %v291, 6
        %v562 = vsel %vm315, %v560, %v561
        %563 = vrot.lane.b32.xlu0 %v560, 2
        %v564 = vpop.permute.xlu0 %563
        %565 = vrot.lane.b32.xlu0 %v562, 2
        %v566 = vpop.permute.xlu0 %565
        %567 = vrot.lane.b32.xlu0 %v561, 2
        %v568 = vpop.permute.xlu0 %567
        %v572 = vadd.f32 %v284, %v564
        %v573 = vadd.f32 %v289, %v564
        %v574 = vadd.f32 %v291, %v566
        %v575 = vadd.f32 %v296, %v566
        %v576 = vadd.f32 %v301, %v568
        %v577 = vadd.f32 %v306, %v568
        %v578 = vmul.f32 %v500, 2.0
        %v579 = vmul.f32 %v505, 2.0
        %v580 = vmul.f32 %v510, 2.0
        %v581 = vmul.f32 %v515, 2.0
        %v582 = vmul.f32 %v520, 2.0
        %v583 = vmul.f32 %v525, 2.0
        %v584 = vsub.f32 %v572, %v578
        %v585 = vsub.f32 %v573, %v579
        %v586 = vsub.f32 %v574, %v580
        %v587 = vsub.f32 %v575, %v581
        %v588 = vsub.f32 %v576, %v582
        %v589 = vsub.f32 %v577, %v583
        %v590 = vsub.f32 0.0, %v584
        %v591 = vsub.f32 0.0, %v585
        %v592 = vsub.f32 0.0, %v586
        %v593 = vsub.f32 0.0, %v587
        %v594 = vsub.f32 0.0, %v588
        %v595 = vsub.f32 0.0, %v589
        %v596 = vmul.f32 %v590, 50.0
        %v597 = vmul.f32 %v591, 50.0
        %v598 = vmul.f32 %v592, 50.0
        %v599 = vmul.f32 %v593, 50.0
        %v600 = vmul.f32 %v594, 50.0
        %v601 = vmul.f32 %v595, 50.0
        %v602 = vsub.f32 %v596, 0.16
        %v603 = vsub.f32 %v597, 0.16
        %v604 = vsub.f32 %v598, 0.16
        %v605 = vsub.f32 %v599, 0.16
        %v606 = vsub.f32 %v600, 0.16
        %v607 = vsub.f32 %v601, 0.16
        %v608 = vmul.f32 %v602, 1.442695
        %v609 = vpow.pop %v608
        %v610 = vmul.f32 %v603, 1.442695
        %v611 = vpow.pop %v610
        %v612 = vmul.f32 %v604, 1.442695
        %v613 = vpow.pop %v612
        %v614 = vmul.f32 %v605, 1.442695
        %v615 = vpow.pop %v614
        %v616 = vmul.f32 %v606, 1.442695
        %v617 = vpow.pop %v616
        %v618 = vmul.f32 %v607, 1.442695
        %v619 = vpow.pop %v618
        %v620 = vmul.f32 %v609, %v552
        %v621 = vmul.f32 %v611, %v553
        %v622 = vmul.f32 %v613, %v554
        %v623 = vmul.f32 %v615, %v555
        %v624 = vmul.f32 %v617, %v556
        %v625 = vmul.f32 %v619, %v557
        %v626 = vadd.f32 %v620, 0.0
        %v627 = vadd.f32 %v621, 0.0
        %v628 = vadd.f32 %v622, 0.0
        %v629 = vadd.f32 %v623, 0.0
        %v630 = vadd.f32 %v624, 0.0
        %v631 = vadd.f32 %v625, 0.0
        %vm636 = vcmask 1040384
        %v637 = vrot.slane %v162, 7
        %v638 = vrot.slane %v164, 7
        %v639 = vsel %vm636, %v637, %v638
        %v640 = vrot.slane %v166, 7
        %v641 = vsel %vm636, %v638, %v640
        %v642 = vrot.slane %v168, 7
        %v643 = vrot.slane %v170, 7
        %v644 = vsel %vm636, %v642, %v643
        %v645 = vrot.slane %v172, 7
        %v646 = vsel %vm636, %v643, %v645
        %v647 = vrot.slane %v174, 7
        %v648 = vrot.slane %v176, 7
        %v649 = vsel %vm636, %v647, %v648
        %v650 = vrot.slane %v178, 7
        %v651 = vsel %vm636, %v648, %v650
        %v652 = vrot.slane %v180, 7
        %v653 = vrot.slane %v182, 7
        %v654 = vsel %vm636, %v652, %v653
        %v655 = vrot.slane %v184, 7
        %v656 = vsel %vm636, %v653, %v655
        %657 = vrot.lane.b32.xlu0 %v637, 2
        %v658 = vpop.permute.xlu0 %657
        %659 = vrot.lane.b32.xlu0 %v639, 2
        %v660 = vpop.permute.xlu0 %659
        %661 = vrot.lane.b32.xlu0 %v641, 2
        %v662 = vpop.permute.xlu0 %661
        %663 = vrot.lane.b32.xlu0 %v642, 2
        %v664 = vpop.permute.xlu0 %663
        %665 = vrot.lane.b32.xlu0 %v644, 2
        %v666 = vpop.permute.xlu0 %665
        %667 = vrot.lane.b32.xlu0 %v646, 2
        %v668 = vpop.permute.xlu0 %667
        %669 = vrot.lane.b32.xlu0 %v647, 2
        %v670 = vpop.permute.xlu0 %669
        %671 = vrot.lane.b32.xlu0 %v649, 2
        %v672 = vpop.permute.xlu0 %671
        %673 = vrot.lane.b32.xlu0 %v651, 2
        %v674 = vpop.permute.xlu0 %673
        %675 = vrot.lane.b32.xlu0 %v652, 2
        %v676 = vpop.permute.xlu0 %675
        %677 = vrot.lane.b32.xlu0 %v654, 2
        %v678 = vpop.permute.xlu0 %677
        %679 = vrot.lane.b32.xlu0 %v656, 2
        %v680 = vpop.permute.xlu0 %679
        %v693 = vmul.f32 %v162, %v658
        %v694 = vmul.f32 %v163, %v658
        %v695 = vmul.f32 %v164, %v660
        %v696 = vmul.f32 %v165, %v660
        %v697 = vmul.f32 %v166, %v662
        %v698 = vmul.f32 %v167, %v662
        %v699 = vmul.f32 %v168, %v664
        %v700 = vmul.f32 %v169, %v664
        %v701 = vmul.f32 %v170, %v666
        %v702 = vmul.f32 %v171, %v666
        %v703 = vmul.f32 %v172, %v668
        %v704 = vmul.f32 %v173, %v668
        %v705 = vmul.f32 %v174, %v670
        %v706 = vmul.f32 %v175, %v670
        %v707 = vmul.f32 %v176, %v672
        %v708 = vmul.f32 %v177, %v672
        %v709 = vmul.f32 %v178, %v674
        %v710 = vmul.f32 %v179, %v674
        %v711 = vmul.f32 %v180, %v676
        %v712 = vmul.f32 %v181, %v676
        %v713 = vmul.f32 %v182, %v678
        %v714 = vmul.f32 %v183, %v678
        %v715 = vmul.f32 %v184, %v680
        %v716 = vmul.f32 %v185, %v680
        %v717 = vsel %vm388, %v693, 0.0
        %v718 = vsel %vm388, %v699, 0.0
        %v719 = vadd.f32 %v717, %v718
        %v720 = vsel %vm388, %v705, 0.0
        %v721 = vadd.f32 %v719, %v720
        %v722 = vsel %vm388, %v711, 0.0
        %v723 = vadd.f32 %v721, %v722
        %v724 = vsel %vm396, %v694, 0.0
        %v725 = vsel %vm396, %v700, 0.0
        %v726 = vadd.f32 %v724, %v725
        %v727 = vsel %vm396, %v706, 0.0
        %v728 = vadd.f32 %v726, %v727
        %v729 = vsel %vm396, %v712, 0.0
        %v730 = vadd.f32 %v728, %v729
        %v731 = vsel %vm404, %v695, 0.0
        %v732 = vsel %vm404, %v701, 0.0
        %v733 = vadd.f32 %v731, %v732
        %v734 = vsel %vm404, %v707, 0.0
        %v735 = vadd.f32 %v733, %v734
        %v736 = vsel %vm404, %v713, 0.0
        %v737 = vadd.f32 %v735, %v736
        %v738 = vsel %vm412, %v696, 0.0
        %v739 = vsel %vm412, %v702, 0.0
        %v740 = vadd.f32 %v738, %v739
        %v741 = vsel %vm412, %v708, 0.0
        %v742 = vadd.f32 %v740, %v741
        %v743 = vsel %vm412, %v714, 0.0
        %v744 = vadd.f32 %v742, %v743
        %v745 = vsel %vm420, %v697, 0.0
        %v746 = vsel %vm420, %v703, 0.0
        %v747 = vadd.f32 %v745, %v746
        %v748 = vsel %vm420, %v709, 0.0
        %v749 = vadd.f32 %v747, %v748
        %v750 = vsel %vm420, %v715, 0.0
        %v751 = vadd.f32 %v749, %v750
        %v752 = vsel %vm428, %v698, 0.0
        %v753 = vsel %vm428, %v704, 0.0
        %v754 = vadd.f32 %v752, %v753
        %v755 = vsel %vm428, %v710, 0.0
        %v756 = vadd.f32 %v754, %v755
        %v757 = vsel %vm428, %v716, 0.0
        %v758 = vadd.f32 %v756, %v757
        %v762 = vrot.slane %v186, 7
        %v763 = vrot.slane %v188, 7
        %v764 = vsel %vm636, %v762, %v763
        %v765 = vrot.slane %v190, 7
        %v766 = vsel %vm636, %v763, %v765
        %v767 = vrot.slane %v192, 7
        %v768 = vrot.slane %v194, 7
        %v769 = vsel %vm636, %v767, %v768
        %v770 = vrot.slane %v196, 7
        %v771 = vsel %vm636, %v768, %v770
        %v772 = vrot.slane %v198, 7
        %v773 = vrot.slane %v200, 7
        %v774 = vsel %vm636, %v772, %v773
        %v775 = vrot.slane %v202, 7
        %v776 = vsel %vm636, %v773, %v775
        %777 = vrot.lane.b32.xlu0 %v762, 2
        %v778 = vpop.permute.xlu0 %777
        %779 = vrot.lane.b32.xlu0 %v764, 2
        %v780 = vpop.permute.xlu0 %779
        %781 = vrot.lane.b32.xlu0 %v766, 2
        %v782 = vpop.permute.xlu0 %781
        %783 = vrot.lane.b32.xlu0 %v767, 2
        %v784 = vpop.permute.xlu0 %783
        %785 = vrot.lane.b32.xlu0 %v769, 2
        %v786 = vpop.permute.xlu0 %785
        %787 = vrot.lane.b32.xlu0 %v771, 2
        %v788 = vpop.permute.xlu0 %787
        %789 = vrot.lane.b32.xlu0 %v772, 2
        %v790 = vpop.permute.xlu0 %789
        %791 = vrot.lane.b32.xlu0 %v774, 2
        %v792 = vpop.permute.xlu0 %791
        %793 = vrot.lane.b32.xlu0 %v776, 2
        %v794 = vpop.permute.xlu0 %793
        %v804 = vmul.f32 %v186, %v778
        %v805 = vmul.f32 %v187, %v778
        %v806 = vmul.f32 %v188, %v780
        %v807 = vmul.f32 %v189, %v780
        %v808 = vmul.f32 %v190, %v782
        %v809 = vmul.f32 %v191, %v782
        %v810 = vmul.f32 %v192, %v784
        %v811 = vmul.f32 %v193, %v784
        %v812 = vmul.f32 %v194, %v786
        %v813 = vmul.f32 %v195, %v786
        %v814 = vmul.f32 %v196, %v788
        %v815 = vmul.f32 %v197, %v788
        %v816 = vmul.f32 %v198, %v790
        %v817 = vmul.f32 %v199, %v790
        %v818 = vmul.f32 %v200, %v792
        %v819 = vmul.f32 %v201, %v792
        %v820 = vmul.f32 %v202, %v794
        %v821 = vmul.f32 %v203, %v794
        %v822 = vsel %vm388, %v804, 0.0
        %v823 = vsel %vm388, %v810, 0.0
        %v824 = vadd.f32 %v822, %v823
        %v825 = vsel %vm388, %v816, 0.0
        %v826 = vadd.f32 %v824, %v825
        %v827 = vsel %vm396, %v805, 0.0
        %v828 = vsel %vm396, %v811, 0.0
        %v829 = vadd.f32 %v827, %v828
        %v830 = vsel %vm396, %v817, 0.0
        %v831 = vadd.f32 %v829, %v830
        %v832 = vsel %vm404, %v806, 0.0
        %v833 = vsel %vm404, %v812, 0.0
        %v834 = vadd.f32 %v832, %v833
        %v835 = vsel %vm404, %v818, 0.0
        %v836 = vadd.f32 %v834, %v835
        %v837 = vsel %vm412, %v807, 0.0
        %v838 = vsel %vm412, %v813, 0.0
        %v839 = vadd.f32 %v837, %v838
        %v840 = vsel %vm412, %v819, 0.0
        %v841 = vadd.f32 %v839, %v840
        %v842 = vsel %vm420, %v808, 0.0
        %v843 = vsel %vm420, %v814, 0.0
        %v844 = vadd.f32 %v842, %v843
        %v845 = vsel %vm420, %v820, 0.0
        %v846 = vadd.f32 %v844, %v845
        %v847 = vsel %vm428, %v809, 0.0
        %v848 = vsel %vm428, %v815, 0.0
        %v849 = vadd.f32 %v847, %v848
        %v850 = vsel %vm428, %v821, 0.0
        %v851 = vadd.f32 %v849, %v850
        %v853 = vrot.slane %v230, 7
        %v854 = vrot.slane %v241, 7
        %v855 = vsel %vm636, %v853, %v854
        %v856 = vrot.slane %v256, 7
        %v857 = vsel %vm636, %v854, %v856
        %858 = vrot.lane.b32.xlu0 %v853, 2
        %v859 = vpop.permute.xlu0 %858
        %860 = vrot.lane.b32.xlu0 %v855, 2
        %v861 = vpop.permute.xlu0 %860
        %862 = vrot.lane.b32.xlu0 %v857, 2
        %v863 = vpop.permute.xlu0 %862
        %v867 = vadd.f32 %v230, %v859
        %v868 = vadd.f32 %v238, %v859
        %v869 = vadd.f32 %v241, %v861
        %v870 = vadd.f32 %v248, %v861
        %v871 = vadd.f32 %v256, %v863
        %v872 = vadd.f32 %v264, %v863
        %v873 = vmul.f32 %v723, 2.0
        %v874 = vmul.f32 %v730, 2.0
        %v875 = vmul.f32 %v737, 2.0
        %v876 = vmul.f32 %v744, 2.0
        %v877 = vmul.f32 %v751, 2.0
        %v878 = vmul.f32 %v758, 2.0
        %v879 = vsub.f32 %v867, %v873
        %v880 = vsub.f32 %v868, %v874
        %v881 = vsub.f32 %v869, %v875
        %v882 = vsub.f32 %v870, %v876
        %v883 = vsub.f32 %v871, %v877
        %v884 = vsub.f32 %v872, %v878
        %v886 = vrot.slane %v284, 7
        %v887 = vrot.slane %v291, 7
        %v888 = vsel %vm636, %v886, %v887
        %v889 = vrot.slane %v301, 7
        %v890 = vsel %vm636, %v887, %v889
        %891 = vrot.lane.b32.xlu0 %v886, 2
        %v892 = vpop.permute.xlu0 %891
        %893 = vrot.lane.b32.xlu0 %v888, 2
        %v894 = vpop.permute.xlu0 %893
        %895 = vrot.lane.b32.xlu0 %v890, 2
        %v896 = vpop.permute.xlu0 %895
        %v900 = vadd.f32 %v284, %v892
        %v901 = vadd.f32 %v289, %v892
        %v902 = vadd.f32 %v291, %v894
        %v903 = vadd.f32 %v296, %v894
        %v904 = vadd.f32 %v301, %v896
        %v905 = vadd.f32 %v306, %v896
        %v906 = vmul.f32 %v826, 2.0
        %v907 = vmul.f32 %v831, 2.0
        %v908 = vmul.f32 %v836, 2.0
        %v909 = vmul.f32 %v841, 2.0
        %v910 = vmul.f32 %v846, 2.0
        %v911 = vmul.f32 %v851, 2.0
        %v912 = vsub.f32 %v900, %v906
        %v913 = vsub.f32 %v901, %v907
        %v914 = vsub.f32 %v902, %v908
        %v915 = vsub.f32 %v903, %v909
        %v916 = vsub.f32 %v904, %v910
        %v917 = vsub.f32 %v905, %v911
        %v918 = vsub.f32 0.0, %v912
        %v919 = vsub.f32 0.0, %v913
        %v920 = vsub.f32 0.0, %v914
        %v921 = vsub.f32 0.0, %v915
        %v922 = vsub.f32 0.0, %v916
        %v923 = vsub.f32 0.0, %v917
        %v924 = vmul.f32 %v918, 50.0
        %v925 = vmul.f32 %v919, 50.0
        %v926 = vmul.f32 %v920, 50.0
        %v927 = vmul.f32 %v921, 50.0
        %v928 = vmul.f32 %v922, 50.0
        %v929 = vmul.f32 %v923, 50.0
        %v930 = vsub.f32 %v924, 0.1
        %v931 = vsub.f32 %v925, 0.1
        %v932 = vsub.f32 %v926, 0.1
        %v933 = vsub.f32 %v927, 0.1
        %v934 = vsub.f32 %v928, 0.1
        %v935 = vsub.f32 %v929, 0.1
        %v936 = vmul.f32 %v930, 1.442695
        %v937 = vpow.pop %v936
        %v938 = vmul.f32 %v931, 1.442695
        %v939 = vpow.pop %v938
        %v940 = vmul.f32 %v932, 1.442695
        %v941 = vpow.pop %v940
        %v942 = vmul.f32 %v933, 1.442695
        %v943 = vpow.pop %v942
        %v944 = vmul.f32 %v934, 1.442695
        %v945 = vpow.pop %v944
        %v946 = vmul.f32 %v935, 1.442695
        %v947 = vpow.pop %v946
        %v948 = vmul.f32 %v937, %v879
        %v949 = vmul.f32 %v939, %v880
        %v950 = vmul.f32 %v941, %v881
        %v951 = vmul.f32 %v943, %v882
        %v952 = vmul.f32 %v945, %v883
        %v953 = vmul.f32 %v947, %v884
        %v954 = vadd.f32 %v626, %v948
        %v955 = vadd.f32 %v627, %v949
        %v956 = vadd.f32 %v628, %v950
        %v957 = vadd.f32 %v629, %v951
        %v958 = vadd.f32 %v630, %v952
        %v959 = vadd.f32 %v631, %v953
        %960 = vrot.lane.b32.xlu0 %v162, 2
        %v961 = vpop.permute.xlu0 %960
        %962 = vrot.lane.b32.xlu0 %v164, 2
        %v963 = vpop.permute.xlu0 %962
        %964 = vrot.lane.b32.xlu0 %v166, 2
        %v965 = vpop.permute.xlu0 %964
        %966 = vrot.lane.b32.xlu0 %v168, 2
        %v967 = vpop.permute.xlu0 %966
        %968 = vrot.lane.b32.xlu0 %v170, 2
        %v969 = vpop.permute.xlu0 %968
        %970 = vrot.lane.b32.xlu0 %v172, 2
        %v971 = vpop.permute.xlu0 %970
        %972 = vrot.lane.b32.xlu0 %v174, 2
        %v973 = vpop.permute.xlu0 %972
        %974 = vrot.lane.b32.xlu0 %v176, 2
        %v975 = vpop.permute.xlu0 %974
        %976 = vrot.lane.b32.xlu0 %v178, 2
        %v977 = vpop.permute.xlu0 %976
        %978 = vrot.lane.b32.xlu0 %v180, 2
        %v979 = vpop.permute.xlu0 %978
        %980 = vrot.lane.b32.xlu0 %v182, 2
        %v981 = vpop.permute.xlu0 %980
        %982 = vrot.lane.b32.xlu0 %v184, 2
        %v983 = vpop.permute.xlu0 %982
        %v996 = vmul.f32 %v162, %v961
        %v997 = vmul.f32 %v163, %v961
        %v998 = vmul.f32 %v164, %v963
        %v999 = vmul.f32 %v165, %v963
        %v1000 = vmul.f32 %v166, %v965
        %v1001 = vmul.f32 %v167, %v965
        %v1002 = vmul.f32 %v168, %v967
        %v1003 = vmul.f32 %v169, %v967
        %v1004 = vmul.f32 %v170, %v969
        %v1005 = vmul.f32 %v171, %v969
        %v1006 = vmul.f32 %v172, %v971
        %v1007 = vmul.f32 %v173, %v971
        %v1008 = vmul.f32 %v174, %v973
        %v1009 = vmul.f32 %v175, %v973
        %v1010 = vmul.f32 %v176, %v975
        %v1011 = vmul.f32 %v177, %v975
        %v1012 = vmul.f32 %v178, %v977
        %v1013 = vmul.f32 %v179, %v977
        %v1014 = vmul.f32 %v180, %v979
        %v1015 = vmul.f32 %v181, %v979
        %v1016 = vmul.f32 %v182, %v981
        %v1017 = vmul.f32 %v183, %v981
        %v1018 = vmul.f32 %v184, %v983
        %v1019 = vmul.f32 %v185, %v983
        %v1020 = vsel %vm388, %v996, 0.0
        %v1021 = vsel %vm388, %v1002, 0.0
        %v1022 = vadd.f32 %v1020, %v1021
        %v1023 = vsel %vm388, %v1008, 0.0
        %v1024 = vadd.f32 %v1022, %v1023
        %v1025 = vsel %vm388, %v1014, 0.0
        %v1026 = vadd.f32 %v1024, %v1025
        %v1027 = vsel %vm396, %v997, 0.0
        %v1028 = vsel %vm396, %v1003, 0.0
        %v1029 = vadd.f32 %v1027, %v1028
        %v1030 = vsel %vm396, %v1009, 0.0
        %v1031 = vadd.f32 %v1029, %v1030
        %v1032 = vsel %vm396, %v1015, 0.0
        %v1033 = vadd.f32 %v1031, %v1032
        %v1034 = vsel %vm404, %v998, 0.0
        %v1035 = vsel %vm404, %v1004, 0.0
        %v1036 = vadd.f32 %v1034, %v1035
        %v1037 = vsel %vm404, %v1010, 0.0
        %v1038 = vadd.f32 %v1036, %v1037
        %v1039 = vsel %vm404, %v1016, 0.0
        %v1040 = vadd.f32 %v1038, %v1039
        %v1041 = vsel %vm412, %v999, 0.0
        %v1042 = vsel %vm412, %v1005, 0.0
        %v1043 = vadd.f32 %v1041, %v1042
        %v1044 = vsel %vm412, %v1011, 0.0
        %v1045 = vadd.f32 %v1043, %v1044
        %v1046 = vsel %vm412, %v1017, 0.0
        %v1047 = vadd.f32 %v1045, %v1046
        %v1048 = vsel %vm420, %v1000, 0.0
        %v1049 = vsel %vm420, %v1006, 0.0
        %v1050 = vadd.f32 %v1048, %v1049
        %v1051 = vsel %vm420, %v1012, 0.0
        %v1052 = vadd.f32 %v1050, %v1051
        %v1053 = vsel %vm420, %v1018, 0.0
        %v1054 = vadd.f32 %v1052, %v1053
        %v1055 = vsel %vm428, %v1001, 0.0
        %v1056 = vsel %vm428, %v1007, 0.0
        %v1057 = vadd.f32 %v1055, %v1056
        %v1058 = vsel %vm428, %v1013, 0.0
        %v1059 = vadd.f32 %v1057, %v1058
        %v1060 = vsel %vm428, %v1019, 0.0
        %v1061 = vadd.f32 %v1059, %v1060
        %1062 = vrot.lane.b32.xlu0 %v186, 2
        %v1063 = vpop.permute.xlu0 %1062
        %1064 = vrot.lane.b32.xlu0 %v188, 2
        %v1065 = vpop.permute.xlu0 %1064
        %1066 = vrot.lane.b32.xlu0 %v190, 2
        %v1067 = vpop.permute.xlu0 %1066
        %1068 = vrot.lane.b32.xlu0 %v192, 2
        %v1069 = vpop.permute.xlu0 %1068
        %1070 = vrot.lane.b32.xlu0 %v194, 2
        %v1071 = vpop.permute.xlu0 %1070
        %1072 = vrot.lane.b32.xlu0 %v196, 2
        %v1073 = vpop.permute.xlu0 %1072
        %1074 = vrot.lane.b32.xlu0 %v198, 2
        %v1075 = vpop.permute.xlu0 %1074
        %1076 = vrot.lane.b32.xlu0 %v200, 2
        %v1077 = vpop.permute.xlu0 %1076
        %1078 = vrot.lane.b32.xlu0 %v202, 2
        %v1079 = vpop.permute.xlu0 %1078
        %v1089 = vmul.f32 %v186, %v1063
        %v1090 = vmul.f32 %v187, %v1063
        %v1091 = vmul.f32 %v188, %v1065
        %v1092 = vmul.f32 %v189, %v1065
        %v1093 = vmul.f32 %v190, %v1067
        %v1094 = vmul.f32 %v191, %v1067
        %v1095 = vmul.f32 %v192, %v1069
        %v1096 = vmul.f32 %v193, %v1069
        %v1097 = vmul.f32 %v194, %v1071
        %v1098 = vmul.f32 %v195, %v1071
        %v1099 = vmul.f32 %v196, %v1073
        %v1100 = vmul.f32 %v197, %v1073
        %v1101 = vmul.f32 %v198, %v1075
        %v1102 = vmul.f32 %v199, %v1075
        %v1103 = vmul.f32 %v200, %v1077
        %v1104 = vmul.f32 %v201, %v1077
        %v1105 = vmul.f32 %v202, %v1079
        %v1106 = vmul.f32 %v203, %v1079
        %v1107 = vsel %vm388, %v1089, 0.0
        %v1108 = vsel %vm388, %v1095, 0.0
        %v1109 = vadd.f32 %v1107, %v1108
        %v1110 = vsel %vm388, %v1101, 0.0
        %v1111 = vadd.f32 %v1109, %v1110
        %v1112 = vsel %vm396, %v1090, 0.0
        %v1113 = vsel %vm396, %v1096, 0.0
        %v1114 = vadd.f32 %v1112, %v1113
        %v1115 = vsel %vm396, %v1102, 0.0
        %v1116 = vadd.f32 %v1114, %v1115
        %v1117 = vsel %vm404, %v1091, 0.0
        %v1118 = vsel %vm404, %v1097, 0.0
        %v1119 = vadd.f32 %v1117, %v1118
        %v1120 = vsel %vm404, %v1103, 0.0
        %v1121 = vadd.f32 %v1119, %v1120
        %v1122 = vsel %vm412, %v1092, 0.0
        %v1123 = vsel %vm412, %v1098, 0.0
        %v1124 = vadd.f32 %v1122, %v1123
        %v1125 = vsel %vm412, %v1104, 0.0
        %v1126 = vadd.f32 %v1124, %v1125
        %v1127 = vsel %vm420, %v1093, 0.0
        %v1128 = vsel %vm420, %v1099, 0.0
        %v1129 = vadd.f32 %v1127, %v1128
        %v1130 = vsel %vm420, %v1105, 0.0
        %v1131 = vadd.f32 %v1129, %v1130
        %v1132 = vsel %vm428, %v1094, 0.0
        %v1133 = vsel %vm428, %v1100, 0.0
        %v1134 = vadd.f32 %v1132, %v1133
        %v1135 = vsel %vm428, %v1106, 0.0
        %v1136 = vadd.f32 %v1134, %v1135
        %1137 = vrot.lane.b32.xlu0 %v230, 2
        %v1138 = vpop.permute.xlu0 %1137
        %1139 = vrot.lane.b32.xlu0 %v241, 2
        %v1140 = vpop.permute.xlu0 %1139
        %1141 = vrot.lane.b32.xlu0 %v256, 2
        %v1142 = vpop.permute.xlu0 %1141
        %v1146 = vadd.f32 %v230, %v1138
        %v1147 = vadd.f32 %v238, %v1138
        %v1148 = vadd.f32 %v241, %v1140
        %v1149 = vadd.f32 %v248, %v1140
        %v1150 = vadd.f32 %v256, %v1142
        %v1151 = vadd.f32 %v264, %v1142
        %v1152 = vmul.f32 %v1026, 2.0
        %v1153 = vmul.f32 %v1033, 2.0
        %v1154 = vmul.f32 %v1040, 2.0
        %v1155 = vmul.f32 %v1047, 2.0
        %v1156 = vmul.f32 %v1054, 2.0
        %v1157 = vmul.f32 %v1061, 2.0
        %v1158 = vsub.f32 %v1146, %v1152
        %v1159 = vsub.f32 %v1147, %v1153
        %v1160 = vsub.f32 %v1148, %v1154
        %v1161 = vsub.f32 %v1149, %v1155
        %v1162 = vsub.f32 %v1150, %v1156
        %v1163 = vsub.f32 %v1151, %v1157
        %1164 = vrot.lane.b32.xlu0 %v284, 2
        %v1165 = vpop.permute.xlu0 %1164
        %1166 = vrot.lane.b32.xlu0 %v291, 2
        %v1167 = vpop.permute.xlu0 %1166
        %1168 = vrot.lane.b32.xlu0 %v301, 2
        %v1169 = vpop.permute.xlu0 %1168
        %v1173 = vadd.f32 %v284, %v1165
        %v1174 = vadd.f32 %v289, %v1165
        %v1175 = vadd.f32 %v291, %v1167
        %v1176 = vadd.f32 %v296, %v1167
        %v1177 = vadd.f32 %v301, %v1169
        %v1178 = vadd.f32 %v306, %v1169
        %v1179 = vmul.f32 %v1111, 2.0
        %v1180 = vmul.f32 %v1116, 2.0
        %v1181 = vmul.f32 %v1121, 2.0
        %v1182 = vmul.f32 %v1126, 2.0
        %v1183 = vmul.f32 %v1131, 2.0
        %v1184 = vmul.f32 %v1136, 2.0
        %v1185 = vsub.f32 %v1173, %v1179
        %v1186 = vsub.f32 %v1174, %v1180
        %v1187 = vsub.f32 %v1175, %v1181
        %v1188 = vsub.f32 %v1176, %v1182
        %v1189 = vsub.f32 %v1177, %v1183
        %v1190 = vsub.f32 %v1178, %v1184
        %v1191 = vsub.f32 0.0, %v1185
        %v1192 = vsub.f32 0.0, %v1186
        %v1193 = vsub.f32 0.0, %v1187
        %v1194 = vsub.f32 0.0, %v1188
        %v1195 = vsub.f32 0.0, %v1189
        %v1196 = vsub.f32 0.0, %v1190
        %v1197 = vmul.f32 %v1191, 50.0
        %v1198 = vmul.f32 %v1192, 50.0
        %v1199 = vmul.f32 %v1193, 50.0
        %v1200 = vmul.f32 %v1194, 50.0
        %v1201 = vmul.f32 %v1195, 50.0
        %v1202 = vmul.f32 %v1196, 50.0
        %v1203 = vsub.f32 %v1197, 0.08
        %v1204 = vsub.f32 %v1198, 0.08
        %v1205 = vsub.f32 %v1199, 0.08
        %v1206 = vsub.f32 %v1200, 0.08
        %v1207 = vsub.f32 %v1201, 0.08
        %v1208 = vsub.f32 %v1202, 0.08
        %v1209 = vmul.f32 %v1203, 1.442695
        %v1210 = vpow.pop %v1209
        %v1211 = vmul.f32 %v1204, 1.442695
        %v1212 = vpow.pop %v1211
        %v1213 = vmul.f32 %v1205, 1.442695
        %v1214 = vpow.pop %v1213
        %v1215 = vmul.f32 %v1206, 1.442695
        %v1216 = vpow.pop %v1215
        %v1217 = vmul.f32 %v1207, 1.442695
        %v1218 = vpow.pop %v1217
        %v1219 = vmul.f32 %v1208, 1.442695
        %v1220 = vpow.pop %v1219
        %v1221 = vmul.f32 %v1210, %v1158
        %v1222 = vmul.f32 %v1212, %v1159
        %v1223 = vmul.f32 %v1214, %v1160
        %v1224 = vmul.f32 %v1216, %v1161
        %v1225 = vmul.f32 %v1218, %v1162
        %v1226 = vmul.f32 %v1220, %v1163
        %v1227 = vadd.f32 %v954, %v1221
        %v1228 = vadd.f32 %v955, %v1222
        %v1229 = vadd.f32 %v956, %v1223
        %v1230 = vadd.f32 %v957, %v1224
        %v1231 = vadd.f32 %v958, %v1225
        %v1232 = vadd.f32 %v959, %v1226
        %vm1233 = vcmask 1046528
        %v1234 = vrot.slane %v162, 1
        %v1235 = vrot.slane %v164, 1
        %v1236 = vsel %vm1233, %v1234, %v1235
        %v1237 = vrot.slane %v166, 1
        %v1238 = vsel %vm1233, %v1235, %v1237
        %v1239 = vrot.slane %v168, 1
        %v1240 = vrot.slane %v170, 1
        %v1241 = vsel %vm1233, %v1239, %v1240
        %v1242 = vrot.slane %v172, 1
        %v1243 = vsel %vm1233, %v1240, %v1242
        %v1244 = vrot.slane %v174, 1
        %v1245 = vrot.slane %v176, 1
        %v1246 = vsel %vm1233, %v1244, %v1245
        %v1247 = vrot.slane %v178, 1
        %v1248 = vsel %vm1233, %v1245, %v1247
        %v1249 = vrot.slane %v180, 1
        %v1250 = vrot.slane %v182, 1
        %v1251 = vsel %vm1233, %v1249, %v1250
        %v1252 = vrot.slane %v184, 1
        %v1253 = vsel %vm1233, %v1250, %v1252
        %1254 = vrot.lane.b32.xlu0 %v1236, 2
        %v1255 = vpop.permute.xlu0 %1254
        %1256 = vrot.lane.b32.xlu0 %v1238, 2
        %v1257 = vpop.permute.xlu0 %1256
        %1258 = vrot.lane.b32.xlu0 %v1237, 2
        %v1259 = vpop.permute.xlu0 %1258
        %1260 = vrot.lane.b32.xlu0 %v1241, 2
        %v1261 = vpop.permute.xlu0 %1260
        %1262 = vrot.lane.b32.xlu0 %v1243, 2
        %v1263 = vpop.permute.xlu0 %1262
        %1264 = vrot.lane.b32.xlu0 %v1242, 2
        %v1265 = vpop.permute.xlu0 %1264
        %1266 = vrot.lane.b32.xlu0 %v1246, 2
        %v1267 = vpop.permute.xlu0 %1266
        %1268 = vrot.lane.b32.xlu0 %v1248, 2
        %v1269 = vpop.permute.xlu0 %1268
        %1270 = vrot.lane.b32.xlu0 %v1247, 2
        %v1271 = vpop.permute.xlu0 %1270
        %1272 = vrot.lane.b32.xlu0 %v1251, 2
        %v1273 = vpop.permute.xlu0 %1272
        %1274 = vrot.lane.b32.xlu0 %v1253, 2
        %v1275 = vpop.permute.xlu0 %1274
        %1276 = vrot.lane.b32.xlu0 %v1252, 2
        %v1277 = vpop.permute.xlu0 %1276
        %v1290 = vmul.f32 %v162, %v1255
        %v1291 = vmul.f32 %v163, %v1255
        %v1292 = vmul.f32 %v164, %v1257
        %v1293 = vmul.f32 %v165, %v1257
        %v1294 = vmul.f32 %v166, %v1259
        %v1295 = vmul.f32 %v167, %v1259
        %v1296 = vmul.f32 %v168, %v1261
        %v1297 = vmul.f32 %v169, %v1261
        %v1298 = vmul.f32 %v170, %v1263
        %v1299 = vmul.f32 %v171, %v1263
        %v1300 = vmul.f32 %v172, %v1265
        %v1301 = vmul.f32 %v173, %v1265
        %v1302 = vmul.f32 %v174, %v1267
        %v1303 = vmul.f32 %v175, %v1267
        %v1304 = vmul.f32 %v176, %v1269
        %v1305 = vmul.f32 %v177, %v1269
        %v1306 = vmul.f32 %v178, %v1271
        %v1307 = vmul.f32 %v179, %v1271
        %v1308 = vmul.f32 %v180, %v1273
        %v1309 = vmul.f32 %v181, %v1273
        %v1310 = vmul.f32 %v182, %v1275
        %v1311 = vmul.f32 %v183, %v1275
        %v1312 = vmul.f32 %v184, %v1277
        %v1313 = vmul.f32 %v185, %v1277
        %v1314 = vsel %vm388, %v1290, 0.0
        %v1315 = vsel %vm388, %v1296, 0.0
        %v1316 = vadd.f32 %v1314, %v1315
        %v1317 = vsel %vm388, %v1302, 0.0
        %v1318 = vadd.f32 %v1316, %v1317
        %v1319 = vsel %vm388, %v1308, 0.0
        %v1320 = vadd.f32 %v1318, %v1319
        %v1321 = vsel %vm396, %v1291, 0.0
        %v1322 = vsel %vm396, %v1297, 0.0
        %v1323 = vadd.f32 %v1321, %v1322
        %v1324 = vsel %vm396, %v1303, 0.0
        %v1325 = vadd.f32 %v1323, %v1324
        %v1326 = vsel %vm396, %v1309, 0.0
        %v1327 = vadd.f32 %v1325, %v1326
        %v1328 = vsel %vm404, %v1292, 0.0
        %v1329 = vsel %vm404, %v1298, 0.0
        %v1330 = vadd.f32 %v1328, %v1329
        %v1331 = vsel %vm404, %v1304, 0.0
        %v1332 = vadd.f32 %v1330, %v1331
        %v1333 = vsel %vm404, %v1310, 0.0
        %v1334 = vadd.f32 %v1332, %v1333
        %v1335 = vsel %vm412, %v1293, 0.0
        %v1336 = vsel %vm412, %v1299, 0.0
        %v1337 = vadd.f32 %v1335, %v1336
        %v1338 = vsel %vm412, %v1305, 0.0
        %v1339 = vadd.f32 %v1337, %v1338
        %v1340 = vsel %vm412, %v1311, 0.0
        %v1341 = vadd.f32 %v1339, %v1340
        %v1342 = vsel %vm420, %v1294, 0.0
        %v1343 = vsel %vm420, %v1300, 0.0
        %v1344 = vadd.f32 %v1342, %v1343
        %v1345 = vsel %vm420, %v1306, 0.0
        %v1346 = vadd.f32 %v1344, %v1345
        %v1347 = vsel %vm420, %v1312, 0.0
        %v1348 = vadd.f32 %v1346, %v1347
        %v1349 = vsel %vm428, %v1295, 0.0
        %v1350 = vsel %vm428, %v1301, 0.0
        %v1351 = vadd.f32 %v1349, %v1350
        %v1352 = vsel %vm428, %v1307, 0.0
        %v1353 = vadd.f32 %v1351, %v1352
        %v1354 = vsel %vm428, %v1313, 0.0
        %v1355 = vadd.f32 %v1353, %v1354
        %v1356 = vrot.slane %v186, 1
        %v1357 = vrot.slane %v188, 1
        %v1358 = vsel %vm1233, %v1356, %v1357
        %v1359 = vrot.slane %v190, 1
        %v1360 = vsel %vm1233, %v1357, %v1359
        %v1361 = vrot.slane %v192, 1
        %v1362 = vrot.slane %v194, 1
        %v1363 = vsel %vm1233, %v1361, %v1362
        %v1364 = vrot.slane %v196, 1
        %v1365 = vsel %vm1233, %v1362, %v1364
        %v1366 = vrot.slane %v198, 1
        %v1367 = vrot.slane %v200, 1
        %v1368 = vsel %vm1233, %v1366, %v1367
        %v1369 = vrot.slane %v202, 1
        %v1370 = vsel %vm1233, %v1367, %v1369
        %1371 = vrot.lane.b32.xlu0 %v1358, 2
        %v1372 = vpop.permute.xlu0 %1371
        %1373 = vrot.lane.b32.xlu0 %v1360, 2
        %v1374 = vpop.permute.xlu0 %1373
        %1375 = vrot.lane.b32.xlu0 %v1359, 2
        %v1376 = vpop.permute.xlu0 %1375
        %1377 = vrot.lane.b32.xlu0 %v1363, 2
        %v1378 = vpop.permute.xlu0 %1377
        %1379 = vrot.lane.b32.xlu0 %v1365, 2
        %v1380 = vpop.permute.xlu0 %1379
        %1381 = vrot.lane.b32.xlu0 %v1364, 2
        %v1382 = vpop.permute.xlu0 %1381
        %1383 = vrot.lane.b32.xlu0 %v1368, 2
        %v1384 = vpop.permute.xlu0 %1383
        %1385 = vrot.lane.b32.xlu0 %v1370, 2
        %v1386 = vpop.permute.xlu0 %1385
        %1387 = vrot.lane.b32.xlu0 %v1369, 2
        %v1388 = vpop.permute.xlu0 %1387
        %v1398 = vmul.f32 %v186, %v1372
        %v1399 = vmul.f32 %v187, %v1372
        %v1400 = vmul.f32 %v188, %v1374
        %v1401 = vmul.f32 %v189, %v1374
        %v1402 = vmul.f32 %v190, %v1376
        %v1403 = vmul.f32 %v191, %v1376
        %v1404 = vmul.f32 %v192, %v1378
        %v1405 = vmul.f32 %v193, %v1378
        %v1406 = vmul.f32 %v194, %v1380
        %v1407 = vmul.f32 %v195, %v1380
        %v1408 = vmul.f32 %v196, %v1382
        %v1409 = vmul.f32 %v197, %v1382
        %v1410 = vmul.f32 %v198, %v1384
        %v1411 = vmul.f32 %v199, %v1384
        %v1412 = vmul.f32 %v200, %v1386
        %v1413 = vmul.f32 %v201, %v1386
        %v1414 = vmul.f32 %v202, %v1388
        %v1415 = vmul.f32 %v203, %v1388
        %v1416 = vsel %vm388, %v1398, 0.0
        %v1417 = vsel %vm388, %v1404, 0.0
        %v1418 = vadd.f32 %v1416, %v1417
        %v1419 = vsel %vm388, %v1410, 0.0
        %v1420 = vadd.f32 %v1418, %v1419
        %v1421 = vsel %vm396, %v1399, 0.0
        %v1422 = vsel %vm396, %v1405, 0.0
        %v1423 = vadd.f32 %v1421, %v1422
        %v1424 = vsel %vm396, %v1411, 0.0
        %v1425 = vadd.f32 %v1423, %v1424
        %v1426 = vsel %vm404, %v1400, 0.0
        %v1427 = vsel %vm404, %v1406, 0.0
        %v1428 = vadd.f32 %v1426, %v1427
        %v1429 = vsel %vm404, %v1412, 0.0
        %v1430 = vadd.f32 %v1428, %v1429
        %v1431 = vsel %vm412, %v1401, 0.0
        %v1432 = vsel %vm412, %v1407, 0.0
        %v1433 = vadd.f32 %v1431, %v1432
        %v1434 = vsel %vm412, %v1413, 0.0
        %v1435 = vadd.f32 %v1433, %v1434
        %v1436 = vsel %vm420, %v1402, 0.0
        %v1437 = vsel %vm420, %v1408, 0.0
        %v1438 = vadd.f32 %v1436, %v1437
        %v1439 = vsel %vm420, %v1414, 0.0
        %v1440 = vadd.f32 %v1438, %v1439
        %v1441 = vsel %vm428, %v1403, 0.0
        %v1442 = vsel %vm428, %v1409, 0.0
        %v1443 = vadd.f32 %v1441, %v1442
        %v1444 = vsel %vm428, %v1415, 0.0
        %v1445 = vadd.f32 %v1443, %v1444
        %v1446 = vrot.slane %v230, 1
        %v1447 = vrot.slane %v241, 1
        %v1448 = vsel %vm1233, %v1446, %v1447
        %v1449 = vrot.slane %v256, 1
        %v1450 = vsel %vm1233, %v1447, %v1449
        %1451 = vrot.lane.b32.xlu0 %v1448, 2
        %v1452 = vpop.permute.xlu0 %1451
        %1453 = vrot.lane.b32.xlu0 %v1450, 2
        %v1454 = vpop.permute.xlu0 %1453
        %1455 = vrot.lane.b32.xlu0 %v1449, 2
        %v1456 = vpop.permute.xlu0 %1455
        %v1460 = vadd.f32 %v230, %v1452
        %v1461 = vadd.f32 %v238, %v1452
        %v1462 = vadd.f32 %v241, %v1454
        %v1463 = vadd.f32 %v248, %v1454
        %v1464 = vadd.f32 %v256, %v1456
        %v1465 = vadd.f32 %v264, %v1456
        %v1466 = vmul.f32 %v1320, 2.0
        %v1467 = vmul.f32 %v1327, 2.0
        %v1468 = vmul.f32 %v1334, 2.0
        %v1469 = vmul.f32 %v1341, 2.0
        %v1470 = vmul.f32 %v1348, 2.0
        %v1471 = vmul.f32 %v1355, 2.0
        %v1472 = vsub.f32 %v1460, %v1466
        %v1473 = vsub.f32 %v1461, %v1467
        %v1474 = vsub.f32 %v1462, %v1468
        %v1475 = vsub.f32 %v1463, %v1469
        %v1476 = vsub.f32 %v1464, %v1470
        %v1477 = vsub.f32 %v1465, %v1471
        %v1478 = vrot.slane %v284, 1
        %v1479 = vrot.slane %v291, 1
        %v1480 = vsel %vm1233, %v1478, %v1479
        %v1481 = vrot.slane %v301, 1
        %v1482 = vsel %vm1233, %v1479, %v1481
        %1483 = vrot.lane.b32.xlu0 %v1480, 2
        %v1484 = vpop.permute.xlu0 %1483
        %1485 = vrot.lane.b32.xlu0 %v1482, 2
        %v1486 = vpop.permute.xlu0 %1485
        %1487 = vrot.lane.b32.xlu0 %v1481, 2
        %v1488 = vpop.permute.xlu0 %1487
        %v1492 = vadd.f32 %v284, %v1484
        %v1493 = vadd.f32 %v289, %v1484
        %v1494 = vadd.f32 %v291, %v1486
        %v1495 = vadd.f32 %v296, %v1486
        %v1496 = vadd.f32 %v301, %v1488
        %v1497 = vadd.f32 %v306, %v1488
        %v1498 = vmul.f32 %v1420, 2.0
        %v1499 = vmul.f32 %v1425, 2.0
        %v1500 = vmul.f32 %v1430, 2.0
        %v1501 = vmul.f32 %v1435, 2.0
        %v1502 = vmul.f32 %v1440, 2.0
        %v1503 = vmul.f32 %v1445, 2.0
        %v1504 = vsub.f32 %v1492, %v1498
        %v1505 = vsub.f32 %v1493, %v1499
        %v1506 = vsub.f32 %v1494, %v1500
        %v1507 = vsub.f32 %v1495, %v1501
        %v1508 = vsub.f32 %v1496, %v1502
        %v1509 = vsub.f32 %v1497, %v1503
        %v1510 = vsub.f32 0.0, %v1504
        %v1511 = vsub.f32 0.0, %v1505
        %v1512 = vsub.f32 0.0, %v1506
        %v1513 = vsub.f32 0.0, %v1507
        %v1514 = vsub.f32 0.0, %v1508
        %v1515 = vsub.f32 0.0, %v1509
        %v1516 = vmul.f32 %v1510, 50.0
        %v1517 = vmul.f32 %v1511, 50.0
        %v1518 = vmul.f32 %v1512, 50.0
        %v1519 = vmul.f32 %v1513, 50.0
        %v1520 = vmul.f32 %v1514, 50.0
        %v1521 = vmul.f32 %v1515, 50.0
        %v1522 = vsub.f32 %v1516, 0.1
        %v1523 = vsub.f32 %v1517, 0.1
        %v1524 = vsub.f32 %v1518, 0.1
        %v1525 = vsub.f32 %v1519, 0.1
        %v1526 = vsub.f32 %v1520, 0.1
        %v1527 = vsub.f32 %v1521, 0.1
        %v1528 = vmul.f32 %v1522, 1.442695
        %v1529 = vpow.pop %v1528
        %v1530 = vmul.f32 %v1523, 1.442695
        %v1531 = vpow.pop %v1530
        %v1532 = vmul.f32 %v1524, 1.442695
        %v1533 = vpow.pop %v1532
        %v1534 = vmul.f32 %v1525, 1.442695
        %v1535 = vpow.pop %v1534
        %v1536 = vmul.f32 %v1526, 1.442695
        %v1537 = vpow.pop %v1536
        %v1538 = vmul.f32 %v1527, 1.442695
        %v1539 = vpow.pop %v1538
        %v1540 = vmul.f32 %v1529, %v1472
        %v1541 = vmul.f32 %v1531, %v1473
        %v1542 = vmul.f32 %v1533, %v1474
        %v1543 = vmul.f32 %v1535, %v1475
        %v1544 = vmul.f32 %v1537, %v1476
        %v1545 = vmul.f32 %v1539, %v1477
        %v1546 = vadd.f32 %v1227, %v1540
        %v1547 = vadd.f32 %v1228, %v1541
        %v1548 = vadd.f32 %v1229, %v1542
        %v1549 = vadd.f32 %v1230, %v1543
        %v1550 = vadd.f32 %v1231, %v1544
        %v1551 = vadd.f32 %v1232, %v1545
        %vm1552 = vcmask 1045504
        %v1553 = vrot.slane %v162, 2
        %v1554 = vrot.slane %v164, 2
        %v1555 = vsel %vm1552, %v1553, %v1554
        %v1556 = vrot.slane %v166, 2
        %v1557 = vsel %vm1552, %v1554, %v1556
        %v1558 = vrot.slane %v168, 2
        %v1559 = vrot.slane %v170, 2
        %v1560 = vsel %vm1552, %v1558, %v1559
        %v1561 = vrot.slane %v172, 2
        %v1562 = vsel %vm1552, %v1559, %v1561
        %v1563 = vrot.slane %v174, 2
        %v1564 = vrot.slane %v176, 2
        %v1565 = vsel %vm1552, %v1563, %v1564
        %v1566 = vrot.slane %v178, 2
        %v1567 = vsel %vm1552, %v1564, %v1566
        %v1568 = vrot.slane %v180, 2
        %v1569 = vrot.slane %v182, 2
        %v1570 = vsel %vm1552, %v1568, %v1569
        %v1571 = vrot.slane %v184, 2
        %v1572 = vsel %vm1552, %v1569, %v1571
        %1573 = vrot.lane.b32.xlu0 %v1555, 2
        %v1574 = vpop.permute.xlu0 %1573
        %1575 = vrot.lane.b32.xlu0 %v1557, 2
        %v1576 = vpop.permute.xlu0 %1575
        %1577 = vrot.lane.b32.xlu0 %v1556, 2
        %v1578 = vpop.permute.xlu0 %1577
        %1579 = vrot.lane.b32.xlu0 %v1560, 2
        %v1580 = vpop.permute.xlu0 %1579
        %1581 = vrot.lane.b32.xlu0 %v1562, 2
        %v1582 = vpop.permute.xlu0 %1581
        %1583 = vrot.lane.b32.xlu0 %v1561, 2
        %v1584 = vpop.permute.xlu0 %1583
        %1585 = vrot.lane.b32.xlu0 %v1565, 2
        %v1586 = vpop.permute.xlu0 %1585
        %1587 = vrot.lane.b32.xlu0 %v1567, 2
        %v1588 = vpop.permute.xlu0 %1587
        %1589 = vrot.lane.b32.xlu0 %v1566, 2
        %v1590 = vpop.permute.xlu0 %1589
        %1591 = vrot.lane.b32.xlu0 %v1570, 2
        %v1592 = vpop.permute.xlu0 %1591
        %1593 = vrot.lane.b32.xlu0 %v1572, 2
        %v1594 = vpop.permute.xlu0 %1593
        %1595 = vrot.lane.b32.xlu0 %v1571, 2
        %v1596 = vpop.permute.xlu0 %1595
        %v1609 = vmul.f32 %v162, %v1574
        %v1610 = vmul.f32 %v163, %v1574
        %v1611 = vmul.f32 %v164, %v1576
        %v1612 = vmul.f32 %v165, %v1576
        %v1613 = vmul.f32 %v166, %v1578
        %v1614 = vmul.f32 %v167, %v1578
        %v1615 = vmul.f32 %v168, %v1580
        %v1616 = vmul.f32 %v169, %v1580
        %v1617 = vmul.f32 %v170, %v1582
        %v1618 = vmul.f32 %v171, %v1582
        %v1619 = vmul.f32 %v172, %v1584
        %v1620 = vmul.f32 %v173, %v1584
        %v1621 = vmul.f32 %v174, %v1586
        %v1622 = vmul.f32 %v175, %v1586
        %v1623 = vmul.f32 %v176, %v1588
        %v1624 = vmul.f32 %v177, %v1588
        %v1625 = vmul.f32 %v178, %v1590
        %v1626 = vmul.f32 %v179, %v1590
        %v1627 = vmul.f32 %v180, %v1592
        %v1628 = vmul.f32 %v181, %v1592
        %v1629 = vmul.f32 %v182, %v1594
        %v1630 = vmul.f32 %v183, %v1594
        %v1631 = vmul.f32 %v184, %v1596
        %v1632 = vmul.f32 %v185, %v1596
        %v1633 = vsel %vm388, %v1609, 0.0
        %v1634 = vsel %vm388, %v1615, 0.0
        %v1635 = vadd.f32 %v1633, %v1634
        %v1636 = vsel %vm388, %v1621, 0.0
        %v1637 = vadd.f32 %v1635, %v1636
        %v1638 = vsel %vm388, %v1627, 0.0
        %v1639 = vadd.f32 %v1637, %v1638
        %v1640 = vsel %vm396, %v1610, 0.0
        %v1641 = vsel %vm396, %v1616, 0.0
        %v1642 = vadd.f32 %v1640, %v1641
        %v1643 = vsel %vm396, %v1622, 0.0
        %v1644 = vadd.f32 %v1642, %v1643
        %v1645 = vsel %vm396, %v1628, 0.0
        %v1646 = vadd.f32 %v1644, %v1645
        %v1647 = vsel %vm404, %v1611, 0.0
        %v1648 = vsel %vm404, %v1617, 0.0
        %v1649 = vadd.f32 %v1647, %v1648
        %v1650 = vsel %vm404, %v1623, 0.0
        %v1651 = vadd.f32 %v1649, %v1650
        %v1652 = vsel %vm404, %v1629, 0.0
        %v1653 = vadd.f32 %v1651, %v1652
        %v1654 = vsel %vm412, %v1612, 0.0
        %v1655 = vsel %vm412, %v1618, 0.0
        %v1656 = vadd.f32 %v1654, %v1655
        %v1657 = vsel %vm412, %v1624, 0.0
        %v1658 = vadd.f32 %v1656, %v1657
        %v1659 = vsel %vm412, %v1630, 0.0
        %v1660 = vadd.f32 %v1658, %v1659
        %v1661 = vsel %vm420, %v1613, 0.0
        %v1662 = vsel %vm420, %v1619, 0.0
        %v1663 = vadd.f32 %v1661, %v1662
        %v1664 = vsel %vm420, %v1625, 0.0
        %v1665 = vadd.f32 %v1663, %v1664
        %v1666 = vsel %vm420, %v1631, 0.0
        %v1667 = vadd.f32 %v1665, %v1666
        %v1668 = vsel %vm428, %v1614, 0.0
        %v1669 = vsel %vm428, %v1620, 0.0
        %v1670 = vadd.f32 %v1668, %v1669
        %v1671 = vsel %vm428, %v1626, 0.0
        %v1672 = vadd.f32 %v1670, %v1671
        %v1673 = vsel %vm428, %v1632, 0.0
        %v1674 = vadd.f32 %v1672, %v1673
        %v1675 = vrot.slane %v186, 2
        %v1676 = vrot.slane %v188, 2
        %v1677 = vsel %vm1552, %v1675, %v1676
        %v1678 = vrot.slane %v190, 2
        %v1679 = vsel %vm1552, %v1676, %v1678
        %v1680 = vrot.slane %v192, 2
        %v1681 = vrot.slane %v194, 2
        %v1682 = vsel %vm1552, %v1680, %v1681
        %v1683 = vrot.slane %v196, 2
        %v1684 = vsel %vm1552, %v1681, %v1683
        %v1685 = vrot.slane %v198, 2
        %v1686 = vrot.slane %v200, 2
        %v1687 = vsel %vm1552, %v1685, %v1686
        %v1688 = vrot.slane %v202, 2
        %v1689 = vsel %vm1552, %v1686, %v1688
        %1690 = vrot.lane.b32.xlu0 %v1677, 2
        %v1691 = vpop.permute.xlu0 %1690
        %1692 = vrot.lane.b32.xlu0 %v1679, 2
        %v1693 = vpop.permute.xlu0 %1692
        %1694 = vrot.lane.b32.xlu0 %v1678, 2
        %v1695 = vpop.permute.xlu0 %1694
        %1696 = vrot.lane.b32.xlu0 %v1682, 2
        %v1697 = vpop.permute.xlu0 %1696
        %1698 = vrot.lane.b32.xlu0 %v1684, 2
        %v1699 = vpop.permute.xlu0 %1698
        %1700 = vrot.lane.b32.xlu0 %v1683, 2
        %v1701 = vpop.permute.xlu0 %1700
        %1702 = vrot.lane.b32.xlu0 %v1687, 2
        %v1703 = vpop.permute.xlu0 %1702
        %1704 = vrot.lane.b32.xlu0 %v1689, 2
        %v1705 = vpop.permute.xlu0 %1704
        %1706 = vrot.lane.b32.xlu0 %v1688, 2
        %v1707 = vpop.permute.xlu0 %1706
        %v1717 = vmul.f32 %v186, %v1691
        %v1718 = vmul.f32 %v187, %v1691
        %v1719 = vmul.f32 %v188, %v1693
        %v1720 = vmul.f32 %v189, %v1693
        %v1721 = vmul.f32 %v190, %v1695
        %v1722 = vmul.f32 %v191, %v1695
        %v1723 = vmul.f32 %v192, %v1697
        %v1724 = vmul.f32 %v193, %v1697
        %v1725 = vmul.f32 %v194, %v1699
        %v1726 = vmul.f32 %v195, %v1699
        %v1727 = vmul.f32 %v196, %v1701
        %v1728 = vmul.f32 %v197, %v1701
        %v1729 = vmul.f32 %v198, %v1703
        %v1730 = vmul.f32 %v199, %v1703
        %v1731 = vmul.f32 %v200, %v1705
        %v1732 = vmul.f32 %v201, %v1705
        %v1733 = vmul.f32 %v202, %v1707
        %v1734 = vmul.f32 %v203, %v1707
        %v1735 = vsel %vm388, %v1717, 0.0
        %v1736 = vsel %vm388, %v1723, 0.0
        %v1737 = vadd.f32 %v1735, %v1736
        %v1738 = vsel %vm388, %v1729, 0.0
        %v1739 = vadd.f32 %v1737, %v1738
        %v1740 = vsel %vm396, %v1718, 0.0
        %v1741 = vsel %vm396, %v1724, 0.0
        %v1742 = vadd.f32 %v1740, %v1741
        %v1743 = vsel %vm396, %v1730, 0.0
        %v1744 = vadd.f32 %v1742, %v1743
        %v1745 = vsel %vm404, %v1719, 0.0
        %v1746 = vsel %vm404, %v1725, 0.0
        %v1747 = vadd.f32 %v1745, %v1746
        %v1748 = vsel %vm404, %v1731, 0.0
        %v1749 = vadd.f32 %v1747, %v1748
        %v1750 = vsel %vm412, %v1720, 0.0
        %v1751 = vsel %vm412, %v1726, 0.0
        %v1752 = vadd.f32 %v1750, %v1751
        %v1753 = vsel %vm412, %v1732, 0.0
        %v1754 = vadd.f32 %v1752, %v1753
        %v1755 = vsel %vm420, %v1721, 0.0
        %v1756 = vsel %vm420, %v1727, 0.0
        %v1757 = vadd.f32 %v1755, %v1756
        %v1758 = vsel %vm420, %v1733, 0.0
        %v1759 = vadd.f32 %v1757, %v1758
        %v1760 = vsel %vm428, %v1722, 0.0
        %v1761 = vsel %vm428, %v1728, 0.0
        %v1762 = vadd.f32 %v1760, %v1761
        %v1763 = vsel %vm428, %v1734, 0.0
        %v1764 = vadd.f32 %v1762, %v1763
        %v1765 = vrot.slane %v230, 2
        %v1766 = vrot.slane %v241, 2
        %v1767 = vsel %vm1552, %v1765, %v1766
        %v1768 = vrot.slane %v256, 2
        %v1769 = vsel %vm1552, %v1766, %v1768
        %1770 = vrot.lane.b32.xlu0 %v1767, 2
        %v1771 = vpop.permute.xlu0 %1770
        %1772 = vrot.lane.b32.xlu0 %v1769, 2
        %v1773 = vpop.permute.xlu0 %1772
        %1774 = vrot.lane.b32.xlu0 %v1768, 2
        %v1775 = vpop.permute.xlu0 %1774
        %v1779 = vadd.f32 %v230, %v1771
        %v1780 = vadd.f32 %v238, %v1771
        %v1781 = vadd.f32 %v241, %v1773
        %v1782 = vadd.f32 %v248, %v1773
        %v1783 = vadd.f32 %v256, %v1775
        %v1784 = vadd.f32 %v264, %v1775
        %v1785 = vmul.f32 %v1639, 2.0
        %v1786 = vmul.f32 %v1646, 2.0
        %v1787 = vmul.f32 %v1653, 2.0
        %v1788 = vmul.f32 %v1660, 2.0
        %v1789 = vmul.f32 %v1667, 2.0
        %v1790 = vmul.f32 %v1674, 2.0
        %v1791 = vsub.f32 %v1779, %v1785
        %v1792 = vsub.f32 %v1780, %v1786
        %v1793 = vsub.f32 %v1781, %v1787
        %v1794 = vsub.f32 %v1782, %v1788
        %v1795 = vsub.f32 %v1783, %v1789
        %v1796 = vsub.f32 %v1784, %v1790
        %v1797 = vrot.slane %v284, 2
        %v1798 = vrot.slane %v291, 2
        %v1799 = vsel %vm1552, %v1797, %v1798
        %v1800 = vrot.slane %v301, 2
        %v1801 = vsel %vm1552, %v1798, %v1800
        %1802 = vrot.lane.b32.xlu0 %v1799, 2
        %v1803 = vpop.permute.xlu0 %1802
        %1804 = vrot.lane.b32.xlu0 %v1801, 2
        %v1805 = vpop.permute.xlu0 %1804
        %1806 = vrot.lane.b32.xlu0 %v1800, 2
        %v1807 = vpop.permute.xlu0 %1806
        %v1811 = vadd.f32 %v284, %v1803
        %v1812 = vadd.f32 %v289, %v1803
        %v1813 = vadd.f32 %v291, %v1805
        %v1814 = vadd.f32 %v296, %v1805
        %v1815 = vadd.f32 %v301, %v1807
        %v1816 = vadd.f32 %v306, %v1807
        %v1817 = vmul.f32 %v1739, 2.0
        %v1818 = vmul.f32 %v1744, 2.0
        %v1819 = vmul.f32 %v1749, 2.0
        %v1820 = vmul.f32 %v1754, 2.0
        %v1821 = vmul.f32 %v1759, 2.0
        %v1822 = vmul.f32 %v1764, 2.0
        %v1823 = vsub.f32 %v1811, %v1817
        %v1824 = vsub.f32 %v1812, %v1818
        %v1825 = vsub.f32 %v1813, %v1819
        %v1826 = vsub.f32 %v1814, %v1820
        %v1827 = vsub.f32 %v1815, %v1821
        %v1828 = vsub.f32 %v1816, %v1822
        %v1829 = vsub.f32 0.0, %v1823
        %v1830 = vsub.f32 0.0, %v1824
        %v1831 = vsub.f32 0.0, %v1825
        %v1832 = vsub.f32 0.0, %v1826
        %v1833 = vsub.f32 0.0, %v1827
        %v1834 = vsub.f32 0.0, %v1828
        %v1835 = vmul.f32 %v1829, 50.0
        %v1836 = vmul.f32 %v1830, 50.0
        %v1837 = vmul.f32 %v1831, 50.0
        %v1838 = vmul.f32 %v1832, 50.0
        %v1839 = vmul.f32 %v1833, 50.0
        %v1840 = vmul.f32 %v1834, 50.0
        %v1841 = vsub.f32 %v1835, 0.16
        %v1842 = vsub.f32 %v1836, 0.16
        %v1843 = vsub.f32 %v1837, 0.16
        %v1844 = vsub.f32 %v1838, 0.16
        %v1845 = vsub.f32 %v1839, 0.16
        %v1846 = vsub.f32 %v1840, 0.16
        %v1847 = vmul.f32 %v1841, 1.442695
        %v1848 = vpow.pop %v1847
        %v1849 = vmul.f32 %v1842, 1.442695
        %v1850 = vpow.pop %v1849
        %v1851 = vmul.f32 %v1843, 1.442695
        %v1852 = vpow.pop %v1851
        %v1853 = vmul.f32 %v1844, 1.442695
        %v1854 = vpow.pop %v1853
        %v1855 = vmul.f32 %v1845, 1.442695
        %v1856 = vpow.pop %v1855
        %v1857 = vmul.f32 %v1846, 1.442695
        %v1858 = vpow.pop %v1857
        %v1859 = vmul.f32 %v1848, %v1791
        %v1860 = vmul.f32 %v1850, %v1792
        %v1861 = vmul.f32 %v1852, %v1793
        %v1862 = vmul.f32 %v1854, %v1794
        %v1863 = vmul.f32 %v1856, %v1795
        %v1864 = vmul.f32 %v1858, %v1796
        %v1865 = vadd.f32 %v1546, %v1859
        %v1866 = vadd.f32 %v1547, %v1860
        %v1867 = vadd.f32 %v1548, %v1861
        %v1868 = vadd.f32 %v1549, %v1862
        %v1869 = vadd.f32 %v1550, %v1863
        %v1870 = vadd.f32 %v1551, %v1864
        %v1879 = vrot.slane %v163, 6
        %v1880 = vrot.slane %v165, 6
        %v1881 = vsel %vm315, %v1879, %v1880
        %v1882 = vrot.slane %v169, 6
        %v1883 = vrot.slane %v171, 6
        %v1884 = vsel %vm315, %v1882, %v1883
        %v1885 = vrot.slane %v175, 6
        %v1886 = vrot.slane %v177, 6
        %v1887 = vsel %vm315, %v1885, %v1886
        %v1888 = vrot.slane %v181, 6
        %v1889 = vrot.slane %v183, 6
        %v1890 = vsel %vm315, %v1888, %v1889
        %1891 = vrot.lane.b32.xlu0 %v316, 1
        %v1892 = vpop.permute.xlu0 %1891
        %1893 = vrot.lane.b32.xlu0 %v1879, 1
        %v1894 = vpop.permute.xlu0 %1893
        %1895 = vrot.lane.b32.xlu0 %v318, 1
        %v1896 = vpop.permute.xlu0 %1895
        %1897 = vrot.lane.b32.xlu0 %v1881, 1
        %v1898 = vpop.permute.xlu0 %1897
        %1899 = vrot.lane.b32.xlu0 %v317, 1
        %v1900 = vpop.permute.xlu0 %1899
        %1901 = vrot.lane.b32.xlu0 %v1880, 1
        %v1902 = vpop.permute.xlu0 %1901
        %1903 = vrot.lane.b32.xlu0 %v319, 1
        %v1904 = vpop.permute.xlu0 %1903
        %1905 = vrot.lane.b32.xlu0 %v1882, 1
        %v1906 = vpop.permute.xlu0 %1905
        %1907 = vrot.lane.b32.xlu0 %v321, 1
        %v1908 = vpop.permute.xlu0 %1907
        %1909 = vrot.lane.b32.xlu0 %v1884, 1
        %v1910 = vpop.permute.xlu0 %1909
        %1911 = vrot.lane.b32.xlu0 %v320, 1
        %v1912 = vpop.permute.xlu0 %1911
        %1913 = vrot.lane.b32.xlu0 %v1883, 1
        %v1914 = vpop.permute.xlu0 %1913
        %1915 = vrot.lane.b32.xlu0 %v322, 1
        %v1916 = vpop.permute.xlu0 %1915
        %1917 = vrot.lane.b32.xlu0 %v1885, 1
        %v1918 = vpop.permute.xlu0 %1917
        %1919 = vrot.lane.b32.xlu0 %v324, 1
        %v1920 = vpop.permute.xlu0 %1919
        %1921 = vrot.lane.b32.xlu0 %v1887, 1
        %v1922 = vpop.permute.xlu0 %1921
        %1923 = vrot.lane.b32.xlu0 %v323, 1
        %v1924 = vpop.permute.xlu0 %1923
        %1925 = vrot.lane.b32.xlu0 %v1886, 1
        %v1926 = vpop.permute.xlu0 %1925
        %1927 = vrot.lane.b32.xlu0 %v325, 1
        %v1928 = vpop.permute.xlu0 %1927
        %1929 = vrot.lane.b32.xlu0 %v1888, 1
        %v1930 = vpop.permute.xlu0 %1929
        %1931 = vrot.lane.b32.xlu0 %v327, 1
        %v1932 = vpop.permute.xlu0 %1931
        %1933 = vrot.lane.b32.xlu0 %v1890, 1
        %v1934 = vpop.permute.xlu0 %1933
        %1935 = vrot.lane.b32.xlu0 %v326, 1
        %v1936 = vpop.permute.xlu0 %1935
        %1937 = vrot.lane.b32.xlu0 %v1889, 1
        %v1938 = vpop.permute.xlu0 %1937
        %vm1939 = vcmask 7168
        %v1940 = vsel %vm1939, %v1892, %v1894
        %v1941 = vsel %vm1939, %v1896, %v1898
        %v1942 = vsel %vm1939, %v1900, %v1902
        %v1943 = vsel %vm1939, %v1904, %v1906
        %v1944 = vsel %vm1939, %v1908, %v1910
        %v1945 = vsel %vm1939, %v1912, %v1914
        %v1946 = vsel %vm1939, %v1916, %v1918
        %v1947 = vsel %vm1939, %v1920, %v1922
        %v1948 = vsel %vm1939, %v1924, %v1926
        %v1949 = vsel %vm1939, %v1928, %v1930
        %v1950 = vsel %vm1939, %v1932, %v1934
        %v1951 = vsel %vm1939, %v1936, %v1938
        %v1976 = vmul.f32 %v162, %v1892
        %v1977 = vmul.f32 %v163, %v1940
        %v1978 = vmul.f32 %v164, %v1896
        %v1979 = vmul.f32 %v165, %v1941
        %v1980 = vmul.f32 %v166, %v1900
        %v1981 = vmul.f32 %v167, %v1942
        %v1982 = vmul.f32 %v168, %v1904
        %v1983 = vmul.f32 %v169, %v1943
        %v1984 = vmul.f32 %v170, %v1908
        %v1985 = vmul.f32 %v171, %v1944
        %v1986 = vmul.f32 %v172, %v1912
        %v1987 = vmul.f32 %v173, %v1945
        %v1988 = vmul.f32 %v174, %v1916
        %v1989 = vmul.f32 %v175, %v1946
        %v1990 = vmul.f32 %v176, %v1920
        %v1991 = vmul.f32 %v177, %v1947
        %v1992 = vmul.f32 %v178, %v1924
        %v1993 = vmul.f32 %v179, %v1948
        %v1994 = vmul.f32 %v180, %v1928
        %v1995 = vmul.f32 %v181, %v1949
        %v1996 = vmul.f32 %v182, %v1932
        %v1997 = vmul.f32 %v183, %v1950
        %v1998 = vmul.f32 %v184, %v1936
        %v1999 = vmul.f32 %v185, %v1951
        %v2000 = vsel %vm388, %v1976, 0.0
        %v2001 = vsel %vm388, %v1982, 0.0
        %v2002 = vadd.f32 %v2000, %v2001
        %v2003 = vsel %vm388, %v1988, 0.0
        %v2004 = vadd.f32 %v2002, %v2003
        %v2005 = vsel %vm388, %v1994, 0.0
        %v2006 = vadd.f32 %v2004, %v2005
        %v2007 = vsel %vm396, %v1977, 0.0
        %v2008 = vsel %vm396, %v1983, 0.0
        %v2009 = vadd.f32 %v2007, %v2008
        %v2010 = vsel %vm396, %v1989, 0.0
        %v2011 = vadd.f32 %v2009, %v2010
        %v2012 = vsel %vm396, %v1995, 0.0
        %v2013 = vadd.f32 %v2011, %v2012
        %v2014 = vsel %vm404, %v1978, 0.0
        %v2015 = vsel %vm404, %v1984, 0.0
        %v2016 = vadd.f32 %v2014, %v2015
        %v2017 = vsel %vm404, %v1990, 0.0
        %v2018 = vadd.f32 %v2016, %v2017
        %v2019 = vsel %vm404, %v1996, 0.0
        %v2020 = vadd.f32 %v2018, %v2019
        %v2021 = vsel %vm412, %v1979, 0.0
        %v2022 = vsel %vm412, %v1985, 0.0
        %v2023 = vadd.f32 %v2021, %v2022
        %v2024 = vsel %vm412, %v1991, 0.0
        %v2025 = vadd.f32 %v2023, %v2024
        %v2026 = vsel %vm412, %v1997, 0.0
        %v2027 = vadd.f32 %v2025, %v2026
        %v2028 = vsel %vm420, %v1980, 0.0
        %v2029 = vsel %vm420, %v1986, 0.0
        %v2030 = vadd.f32 %v2028, %v2029
        %v2031 = vsel %vm420, %v1992, 0.0
        %v2032 = vadd.f32 %v2030, %v2031
        %v2033 = vsel %vm420, %v1998, 0.0
        %v2034 = vadd.f32 %v2032, %v2033
        %v2035 = vsel %vm428, %v1981, 0.0
        %v2036 = vsel %vm428, %v1987, 0.0
        %v2037 = vadd.f32 %v2035, %v2036
        %v2038 = vsel %vm428, %v1993, 0.0
        %v2039 = vadd.f32 %v2037, %v2038
        %v2040 = vsel %vm428, %v1999, 0.0
        %v2041 = vadd.f32 %v2039, %v2040
        %v2048 = vrot.slane %v187, 6
        %v2049 = vrot.slane %v189, 6
        %v2050 = vsel %vm315, %v2048, %v2049
        %v2051 = vrot.slane %v193, 6
        %v2052 = vrot.slane %v195, 6
        %v2053 = vsel %vm315, %v2051, %v2052
        %v2054 = vrot.slane %v199, 6
        %v2055 = vrot.slane %v201, 6
        %v2056 = vsel %vm315, %v2054, %v2055
        %2057 = vrot.lane.b32.xlu0 %v442, 1
        %v2058 = vpop.permute.xlu0 %2057
        %2059 = vrot.lane.b32.xlu0 %v2048, 1
        %v2060 = vpop.permute.xlu0 %2059
        %2061 = vrot.lane.b32.xlu0 %v444, 1
        %v2062 = vpop.permute.xlu0 %2061
        %2063 = vrot.lane.b32.xlu0 %v2050, 1
        %v2064 = vpop.permute.xlu0 %2063
        %2065 = vrot.lane.b32.xlu0 %v443, 1
        %v2066 = vpop.permute.xlu0 %2065
        %2067 = vrot.lane.b32.xlu0 %v2049, 1
        %v2068 = vpop.permute.xlu0 %2067
        %2069 = vrot.lane.b32.xlu0 %v445, 1
        %v2070 = vpop.permute.xlu0 %2069
        %2071 = vrot.lane.b32.xlu0 %v2051, 1
        %v2072 = vpop.permute.xlu0 %2071
        %2073 = vrot.lane.b32.xlu0 %v447, 1
        %v2074 = vpop.permute.xlu0 %2073
        %2075 = vrot.lane.b32.xlu0 %v2053, 1
        %v2076 = vpop.permute.xlu0 %2075
        %2077 = vrot.lane.b32.xlu0 %v446, 1
        %v2078 = vpop.permute.xlu0 %2077
        %2079 = vrot.lane.b32.xlu0 %v2052, 1
        %v2080 = vpop.permute.xlu0 %2079
        %2081 = vrot.lane.b32.xlu0 %v448, 1
        %v2082 = vpop.permute.xlu0 %2081
        %2083 = vrot.lane.b32.xlu0 %v2054, 1
        %v2084 = vpop.permute.xlu0 %2083
        %2085 = vrot.lane.b32.xlu0 %v450, 1
        %v2086 = vpop.permute.xlu0 %2085
        %2087 = vrot.lane.b32.xlu0 %v2056, 1
        %v2088 = vpop.permute.xlu0 %2087
        %2089 = vrot.lane.b32.xlu0 %v449, 1
        %v2090 = vpop.permute.xlu0 %2089
        %2091 = vrot.lane.b32.xlu0 %v2055, 1
        %v2092 = vpop.permute.xlu0 %2091
        %v2093 = vsel %vm1939, %v2058, %v2060
        %v2094 = vsel %vm1939, %v2062, %v2064
        %v2095 = vsel %vm1939, %v2066, %v2068
        %v2096 = vsel %vm1939, %v2070, %v2072
        %v2097 = vsel %vm1939, %v2074, %v2076
        %v2098 = vsel %vm1939, %v2078, %v2080
        %v2099 = vsel %vm1939, %v2082, %v2084
        %v2100 = vsel %vm1939, %v2086, %v2088
        %v2101 = vsel %vm1939, %v2090, %v2092
        %v2120 = vmul.f32 %v186, %v2058
        %v2121 = vmul.f32 %v187, %v2093
        %v2122 = vmul.f32 %v188, %v2062
        %v2123 = vmul.f32 %v189, %v2094
        %v2124 = vmul.f32 %v190, %v2066
        %v2125 = vmul.f32 %v191, %v2095
        %v2126 = vmul.f32 %v192, %v2070
        %v2127 = vmul.f32 %v193, %v2096
        %v2128 = vmul.f32 %v194, %v2074
        %v2129 = vmul.f32 %v195, %v2097
        %v2130 = vmul.f32 %v196, %v2078
        %v2131 = vmul.f32 %v197, %v2098
        %v2132 = vmul.f32 %v198, %v2082
        %v2133 = vmul.f32 %v199, %v2099
        %v2134 = vmul.f32 %v200, %v2086
        %v2135 = vmul.f32 %v201, %v2100
        %v2136 = vmul.f32 %v202, %v2090
        %v2137 = vmul.f32 %v203, %v2101
        %v2138 = vsel %vm388, %v2120, 0.0
        %v2139 = vsel %vm388, %v2126, 0.0
        %v2140 = vadd.f32 %v2138, %v2139
        %v2141 = vsel %vm388, %v2132, 0.0
        %v2142 = vadd.f32 %v2140, %v2141
        %v2143 = vsel %vm396, %v2121, 0.0
        %v2144 = vsel %vm396, %v2127, 0.0
        %v2145 = vadd.f32 %v2143, %v2144
        %v2146 = vsel %vm396, %v2133, 0.0
        %v2147 = vadd.f32 %v2145, %v2146
        %v2148 = vsel %vm404, %v2122, 0.0
        %v2149 = vsel %vm404, %v2128, 0.0
        %v2150 = vadd.f32 %v2148, %v2149
        %v2151 = vsel %vm404, %v2134, 0.0
        %v2152 = vadd.f32 %v2150, %v2151
        %v2153 = vsel %vm412, %v2123, 0.0
        %v2154 = vsel %vm412, %v2129, 0.0
        %v2155 = vadd.f32 %v2153, %v2154
        %v2156 = vsel %vm412, %v2135, 0.0
        %v2157 = vadd.f32 %v2155, %v2156
        %v2158 = vsel %vm420, %v2124, 0.0
        %v2159 = vsel %vm420, %v2130, 0.0
        %v2160 = vadd.f32 %v2158, %v2159
        %v2161 = vsel %vm420, %v2136, 0.0
        %v2162 = vadd.f32 %v2160, %v2161
        %v2163 = vsel %vm428, %v2125, 0.0
        %v2164 = vsel %vm428, %v2131, 0.0
        %v2165 = vadd.f32 %v2163, %v2164
        %v2166 = vsel %vm428, %v2137, 0.0
        %v2167 = vadd.f32 %v2165, %v2166
        %v2170 = vrot.slane %v238, 6
        %v2171 = vrot.slane %v248, 6
        %v2172 = vsel %vm315, %v2170, %v2171
        %2173 = vrot.lane.b32.xlu0 %v528, 1
        %v2174 = vpop.permute.xlu0 %2173
        %2175 = vrot.lane.b32.xlu0 %v2170, 1
        %v2176 = vpop.permute.xlu0 %2175
        %2177 = vrot.lane.b32.xlu0 %v530, 1
        %v2178 = vpop.permute.xlu0 %2177
        %2179 = vrot.lane.b32.xlu0 %v2172, 1
        %v2180 = vpop.permute.xlu0 %2179
        %2181 = vrot.lane.b32.xlu0 %v529, 1
        %v2182 = vpop.permute.xlu0 %2181
        %2183 = vrot.lane.b32.xlu0 %v2171, 1
        %v2184 = vpop.permute.xlu0 %2183
        %v2185 = vsel %vm1939, %v2174, %v2176
        %v2186 = vsel %vm1939, %v2178, %v2180
        %v2187 = vsel %vm1939, %v2182, %v2184
        %v2194 = vadd.f32 %v230, %v2174
        %v2195 = vadd.f32 %v238, %v2185
        %v2196 = vadd.f32 %v241, %v2178
        %v2197 = vadd.f32 %v248, %v2186
        %v2198 = vadd.f32 %v256, %v2182
        %v2199 = vadd.f32 %v264, %v2187
        %v2200 = vmul.f32 %v2006, 2.0
        %v2201 = vmul.f32 %v2013, 2.0
        %v2202 = vmul.f32 %v2020, 2.0
        %v2203 = vmul.f32 %v2027, 2.0
        %v2204 = vmul.f32 %v2034, 2.0
        %v2205 = vmul.f32 %v2041, 2.0
        %v2206 = vsub.f32 %v2194, %v2200
        %v2207 = vsub.f32 %v2195, %v2201
        %v2208 = vsub.f32 %v2196, %v2202
        %v2209 = vsub.f32 %v2197, %v2203
        %v2210 = vsub.f32 %v2198, %v2204
        %v2211 = vsub.f32 %v2199, %v2205
        %v2214 = vrot.slane %v289, 6
        %v2215 = vrot.slane %v296, 6
        %v2216 = vsel %vm315, %v2214, %v2215
        %2217 = vrot.lane.b32.xlu0 %v560, 1
        %v2218 = vpop.permute.xlu0 %2217
        %2219 = vrot.lane.b32.xlu0 %v2214, 1
        %v2220 = vpop.permute.xlu0 %2219
        %2221 = vrot.lane.b32.xlu0 %v562, 1
        %v2222 = vpop.permute.xlu0 %2221
        %2223 = vrot.lane.b32.xlu0 %v2216, 1
        %v2224 = vpop.permute.xlu0 %2223
        %2225 = vrot.lane.b32.xlu0 %v561, 1
        %v2226 = vpop.permute.xlu0 %2225
        %2227 = vrot.lane.b32.xlu0 %v2215, 1
        %v2228 = vpop.permute.xlu0 %2227
        %v2229 = vsel %vm1939, %v2218, %v2220
        %v2230 = vsel %vm1939, %v2222, %v2224
        %v2231 = vsel %vm1939, %v2226, %v2228
        %v2238 = vadd.f32 %v284, %v2218
        %v2239 = vadd.f32 %v289, %v2229
        %v2240 = vadd.f32 %v291, %v2222
        %v2241 = vadd.f32 %v296, %v2230
        %v2242 = vadd.f32 %v301, %v2226
        %v2243 = vadd.f32 %v306, %v2231
        %v2244 = vmul.f32 %v2142, 2.0
        %v2245 = vmul.f32 %v2147, 2.0
        %v2246 = vmul.f32 %v2152, 2.0
        %v2247 = vmul.f32 %v2157, 2.0
        %v2248 = vmul.f32 %v2162, 2.0
        %v2249 = vmul.f32 %v2167, 2.0
        %v2250 = vsub.f32 %v2238, %v2244
        %v2251 = vsub.f32 %v2239, %v2245
        %v2252 = vsub.f32 %v2240, %v2246
        %v2253 = vsub.f32 %v2241, %v2247
        %v2254 = vsub.f32 %v2242, %v2248
        %v2255 = vsub.f32 %v2243, %v2249
        %v2256 = vsub.f32 0.0, %v2250
        %v2257 = vsub.f32 0.0, %v2251
        %v2258 = vsub.f32 0.0, %v2252
        %v2259 = vsub.f32 0.0, %v2253
        %v2260 = vsub.f32 0.0, %v2254
        %v2261 = vsub.f32 0.0, %v2255
        %v2262 = vmul.f32 %v2256, 50.0
        %v2263 = vmul.f32 %v2257, 50.0
        %v2264 = vmul.f32 %v2258, 50.0
        %v2265 = vmul.f32 %v2259, 50.0
        %v2266 = vmul.f32 %v2260, 50.0
        %v2267 = vmul.f32 %v2261, 50.0
        %v2268 = vsub.f32 %v2262, 0.1
        %v2269 = vsub.f32 %v2263, 0.1
        %v2270 = vsub.f32 %v2264, 0.1
        %v2271 = vsub.f32 %v2265, 0.1
        %v2272 = vsub.f32 %v2266, 0.1
        %v2273 = vsub.f32 %v2267, 0.1
        %v2274 = vmul.f32 %v2268, 1.442695
        %v2275 = vpow.pop %v2274
        %v2276 = vmul.f32 %v2269, 1.442695
        %v2277 = vpow.pop %v2276
        %v2278 = vmul.f32 %v2270, 1.442695
        %v2279 = vpow.pop %v2278
        %v2280 = vmul.f32 %v2271, 1.442695
        %v2281 = vpow.pop %v2280
        %v2282 = vmul.f32 %v2272, 1.442695
        %v2283 = vpow.pop %v2282
        %v2284 = vmul.f32 %v2273, 1.442695
        %v2285 = vpow.pop %v2284
        %v2286 = vmul.f32 %v2275, %v2206
        %v2287 = vmul.f32 %v2277, %v2207
        %v2288 = vmul.f32 %v2279, %v2208
        %v2289 = vmul.f32 %v2281, %v2209
        %v2290 = vmul.f32 %v2283, %v2210
        %v2291 = vmul.f32 %v2285, %v2211
        %v2292 = vadd.f32 %v1865, %v2286
        %v2293 = vadd.f32 %v1866, %v2287
        %v2294 = vadd.f32 %v1867, %v2288
        %v2295 = vadd.f32 %v1868, %v2289
        %v2296 = vadd.f32 %v1869, %v2290
        %v2297 = vadd.f32 %v1870, %v2291
        %v2302 = vrot.slane %v163, 7
        %v2303 = vrot.slane %v165, 7
        %v2304 = vsel %vm636, %v2302, %v2303
        %v2305 = vrot.slane %v167, 7
        %v2306 = vsel %vm636, %v2303, %v2305
        %v2307 = vrot.slane %v169, 7
        %v2308 = vrot.slane %v171, 7
        %v2309 = vsel %vm636, %v2307, %v2308
        %v2310 = vrot.slane %v173, 7
        %v2311 = vsel %vm636, %v2308, %v2310
        %v2312 = vrot.slane %v175, 7
        %v2313 = vrot.slane %v177, 7
        %v2314 = vsel %vm636, %v2312, %v2313
        %v2315 = vrot.slane %v179, 7
        %v2316 = vsel %vm636, %v2313, %v2315
        %v2317 = vrot.slane %v181, 7
        %v2318 = vrot.slane %v183, 7
        %v2319 = vsel %vm636, %v2317, %v2318
        %v2320 = vrot.slane %v185, 7
        %v2321 = vsel %vm636, %v2318, %v2320
        %2322 = vrot.lane.b32.xlu0 %v637, 1
        %v2323 = vpop.permute.xlu0 %2322
        %2324 = vrot.lane.b32.xlu0 %v2302, 1
        %v2325 = vpop.permute.xlu0 %2324
        %2326 = vrot.lane.b32.xlu0 %v639, 1
        %v2327 = vpop.permute.xlu0 %2326
        %2328 = vrot.lane.b32.xlu0 %v2304, 1
        %v2329 = vpop.permute.xlu0 %2328
        %2330 = vrot.lane.b32.xlu0 %v641, 1
        %v2331 = vpop.permute.xlu0 %2330
        %2332 = vrot.lane.b32.xlu0 %v2306, 1
        %v2333 = vpop.permute.xlu0 %2332
        %2334 = vrot.lane.b32.xlu0 %v642, 1
        %v2335 = vpop.permute.xlu0 %2334
        %2336 = vrot.lane.b32.xlu0 %v2307, 1
        %v2337 = vpop.permute.xlu0 %2336
        %2338 = vrot.lane.b32.xlu0 %v644, 1
        %v2339 = vpop.permute.xlu0 %2338
        %2340 = vrot.lane.b32.xlu0 %v2309, 1
        %v2341 = vpop.permute.xlu0 %2340
        %2342 = vrot.lane.b32.xlu0 %v646, 1
        %v2343 = vpop.permute.xlu0 %2342
        %2344 = vrot.lane.b32.xlu0 %v2311, 1
        %v2345 = vpop.permute.xlu0 %2344
        %2346 = vrot.lane.b32.xlu0 %v647, 1
        %v2347 = vpop.permute.xlu0 %2346
        %2348 = vrot.lane.b32.xlu0 %v2312, 1
        %v2349 = vpop.permute.xlu0 %2348
        %2350 = vrot.lane.b32.xlu0 %v649, 1
        %v2351 = vpop.permute.xlu0 %2350
        %2352 = vrot.lane.b32.xlu0 %v2314, 1
        %v2353 = vpop.permute.xlu0 %2352
        %2354 = vrot.lane.b32.xlu0 %v651, 1
        %v2355 = vpop.permute.xlu0 %2354
        %2356 = vrot.lane.b32.xlu0 %v2316, 1
        %v2357 = vpop.permute.xlu0 %2356
        %2358 = vrot.lane.b32.xlu0 %v652, 1
        %v2359 = vpop.permute.xlu0 %2358
        %2360 = vrot.lane.b32.xlu0 %v2317, 1
        %v2361 = vpop.permute.xlu0 %2360
        %2362 = vrot.lane.b32.xlu0 %v654, 1
        %v2363 = vpop.permute.xlu0 %2362
        %2364 = vrot.lane.b32.xlu0 %v2319, 1
        %v2365 = vpop.permute.xlu0 %2364
        %2366 = vrot.lane.b32.xlu0 %v656, 1
        %v2367 = vpop.permute.xlu0 %2366
        %2368 = vrot.lane.b32.xlu0 %v2321, 1
        %v2369 = vpop.permute.xlu0 %2368
        %v2370 = vsel %vm1939, %v2323, %v2325
        %v2371 = vsel %vm1939, %v2327, %v2329
        %v2372 = vsel %vm1939, %v2331, %v2333
        %v2373 = vsel %vm1939, %v2335, %v2337
        %v2374 = vsel %vm1939, %v2339, %v2341
        %v2375 = vsel %vm1939, %v2343, %v2345
        %v2376 = vsel %vm1939, %v2347, %v2349
        %v2377 = vsel %vm1939, %v2351, %v2353
        %v2378 = vsel %vm1939, %v2355, %v2357
        %v2379 = vsel %vm1939, %v2359, %v2361
        %v2380 = vsel %vm1939, %v2363, %v2365
        %v2381 = vsel %vm1939, %v2367, %v2369
        %v2406 = vmul.f32 %v162, %v2323
        %v2407 = vmul.f32 %v163, %v2370
        %v2408 = vmul.f32 %v164, %v2327
        %v2409 = vmul.f32 %v165, %v2371
        %v2410 = vmul.f32 %v166, %v2331
        %v2411 = vmul.f32 %v167, %v2372
        %v2412 = vmul.f32 %v168, %v2335
        %v2413 = vmul.f32 %v169, %v2373
        %v2414 = vmul.f32 %v170, %v2339
        %v2415 = vmul.f32 %v171, %v2374
        %v2416 = vmul.f32 %v172, %v2343
        %v2417 = vmul.f32 %v173, %v2375
        %v2418 = vmul.f32 %v174, %v2347
        %v2419 = vmul.f32 %v175, %v2376
        %v2420 = vmul.f32 %v176, %v2351
        %v2421 = vmul.f32 %v177, %v2377
        %v2422 = vmul.f32 %v178, %v2355
        %v2423 = vmul.f32 %v179, %v2378
        %v2424 = vmul.f32 %v180, %v2359
        %v2425 = vmul.f32 %v181, %v2379
        %v2426 = vmul.f32 %v182, %v2363
        %v2427 = vmul.f32 %v183, %v2380
        %v2428 = vmul.f32 %v184, %v2367
        %v2429 = vmul.f32 %v185, %v2381
        %v2430 = vsel %vm388, %v2406, 0.0
        %v2431 = vsel %vm388, %v2412, 0.0
        %v2432 = vadd.f32 %v2430, %v2431
        %v2433 = vsel %vm388, %v2418, 0.0
        %v2434 = vadd.f32 %v2432, %v2433
        %v2435 = vsel %vm388, %v2424, 0.0
        %v2436 = vadd.f32 %v2434, %v2435
        %v2437 = vsel %vm396, %v2407, 0.0
        %v2438 = vsel %vm396, %v2413, 0.0
        %v2439 = vadd.f32 %v2437, %v2438
        %v2440 = vsel %vm396, %v2419, 0.0
        %v2441 = vadd.f32 %v2439, %v2440
        %v2442 = vsel %vm396, %v2425, 0.0
        %v2443 = vadd.f32 %v2441, %v2442
        %v2444 = vsel %vm404, %v2408, 0.0
        %v2445 = vsel %vm404, %v2414, 0.0
        %v2446 = vadd.f32 %v2444, %v2445
        %v2447 = vsel %vm404, %v2420, 0.0
        %v2448 = vadd.f32 %v2446, %v2447
        %v2449 = vsel %vm404, %v2426, 0.0
        %v2450 = vadd.f32 %v2448, %v2449
        %v2451 = vsel %vm412, %v2409, 0.0
        %v2452 = vsel %vm412, %v2415, 0.0
        %v2453 = vadd.f32 %v2451, %v2452
        %v2454 = vsel %vm412, %v2421, 0.0
        %v2455 = vadd.f32 %v2453, %v2454
        %v2456 = vsel %vm412, %v2427, 0.0
        %v2457 = vadd.f32 %v2455, %v2456
        %v2458 = vsel %vm420, %v2410, 0.0
        %v2459 = vsel %vm420, %v2416, 0.0
        %v2460 = vadd.f32 %v2458, %v2459
        %v2461 = vsel %vm420, %v2422, 0.0
        %v2462 = vadd.f32 %v2460, %v2461
        %v2463 = vsel %vm420, %v2428, 0.0
        %v2464 = vadd.f32 %v2462, %v2463
        %v2465 = vsel %vm428, %v2411, 0.0
        %v2466 = vsel %vm428, %v2417, 0.0
        %v2467 = vadd.f32 %v2465, %v2466
        %v2468 = vsel %vm428, %v2423, 0.0
        %v2469 = vadd.f32 %v2467, %v2468
        %v2470 = vsel %vm428, %v2429, 0.0
        %v2471 = vadd.f32 %v2469, %v2470
        %v2475 = vrot.slane %v187, 7
        %v2476 = vrot.slane %v189, 7
        %v2477 = vsel %vm636, %v2475, %v2476
        %v2478 = vrot.slane %v191, 7
        %v2479 = vsel %vm636, %v2476, %v2478
        %v2480 = vrot.slane %v193, 7
        %v2481 = vrot.slane %v195, 7
        %v2482 = vsel %vm636, %v2480, %v2481
        %v2483 = vrot.slane %v197, 7
        %v2484 = vsel %vm636, %v2481, %v2483
        %v2485 = vrot.slane %v199, 7
        %v2486 = vrot.slane %v201, 7
        %v2487 = vsel %vm636, %v2485, %v2486
        %v2488 = vrot.slane %v203, 7
        %v2489 = vsel %vm636, %v2486, %v2488
        %2490 = vrot.lane.b32.xlu0 %v762, 1
        %v2491 = vpop.permute.xlu0 %2490
        %2492 = vrot.lane.b32.xlu0 %v2475, 1
        %v2493 = vpop.permute.xlu0 %2492
        %2494 = vrot.lane.b32.xlu0 %v764, 1
        %v2495 = vpop.permute.xlu0 %2494
        %2496 = vrot.lane.b32.xlu0 %v2477, 1
        %v2497 = vpop.permute.xlu0 %2496
        %2498 = vrot.lane.b32.xlu0 %v766, 1
        %v2499 = vpop.permute.xlu0 %2498
        %2500 = vrot.lane.b32.xlu0 %v2479, 1
        %v2501 = vpop.permute.xlu0 %2500
        %2502 = vrot.lane.b32.xlu0 %v767, 1
        %v2503 = vpop.permute.xlu0 %2502
        %2504 = vrot.lane.b32.xlu0 %v2480, 1
        %v2505 = vpop.permute.xlu0 %2504
        %2506 = vrot.lane.b32.xlu0 %v769, 1
        %v2507 = vpop.permute.xlu0 %2506
        %2508 = vrot.lane.b32.xlu0 %v2482, 1
        %v2509 = vpop.permute.xlu0 %2508
        %2510 = vrot.lane.b32.xlu0 %v771, 1
        %v2511 = vpop.permute.xlu0 %2510
        %2512 = vrot.lane.b32.xlu0 %v2484, 1
        %v2513 = vpop.permute.xlu0 %2512
        %2514 = vrot.lane.b32.xlu0 %v772, 1
        %v2515 = vpop.permute.xlu0 %2514
        %2516 = vrot.lane.b32.xlu0 %v2485, 1
        %v2517 = vpop.permute.xlu0 %2516
        %2518 = vrot.lane.b32.xlu0 %v774, 1
        %v2519 = vpop.permute.xlu0 %2518
        %2520 = vrot.lane.b32.xlu0 %v2487, 1
        %v2521 = vpop.permute.xlu0 %2520
        %2522 = vrot.lane.b32.xlu0 %v776, 1
        %v2523 = vpop.permute.xlu0 %2522
        %2524 = vrot.lane.b32.xlu0 %v2489, 1
        %v2525 = vpop.permute.xlu0 %2524
        %v2526 = vsel %vm1939, %v2491, %v2493
        %v2527 = vsel %vm1939, %v2495, %v2497
        %v2528 = vsel %vm1939, %v2499, %v2501
        %v2529 = vsel %vm1939, %v2503, %v2505
        %v2530 = vsel %vm1939, %v2507, %v2509
        %v2531 = vsel %vm1939, %v2511, %v2513
        %v2532 = vsel %vm1939, %v2515, %v2517
        %v2533 = vsel %vm1939, %v2519, %v2521
        %v2534 = vsel %vm1939, %v2523, %v2525
        %v2553 = vmul.f32 %v186, %v2491
        %v2554 = vmul.f32 %v187, %v2526
        %v2555 = vmul.f32 %v188, %v2495
        %v2556 = vmul.f32 %v189, %v2527
        %v2557 = vmul.f32 %v190, %v2499
        %v2558 = vmul.f32 %v191, %v2528
        %v2559 = vmul.f32 %v192, %v2503
        %v2560 = vmul.f32 %v193, %v2529
        %v2561 = vmul.f32 %v194, %v2507
        %v2562 = vmul.f32 %v195, %v2530
        %v2563 = vmul.f32 %v196, %v2511
        %v2564 = vmul.f32 %v197, %v2531
        %v2565 = vmul.f32 %v198, %v2515
        %v2566 = vmul.f32 %v199, %v2532
        %v2567 = vmul.f32 %v200, %v2519
        %v2568 = vmul.f32 %v201, %v2533
        %v2569 = vmul.f32 %v202, %v2523
        %v2570 = vmul.f32 %v203, %v2534
        %v2571 = vsel %vm388, %v2553, 0.0
        %v2572 = vsel %vm388, %v2559, 0.0
        %v2573 = vadd.f32 %v2571, %v2572
        %v2574 = vsel %vm388, %v2565, 0.0
        %v2575 = vadd.f32 %v2573, %v2574
        %v2576 = vsel %vm396, %v2554, 0.0
        %v2577 = vsel %vm396, %v2560, 0.0
        %v2578 = vadd.f32 %v2576, %v2577
        %v2579 = vsel %vm396, %v2566, 0.0
        %v2580 = vadd.f32 %v2578, %v2579
        %v2581 = vsel %vm404, %v2555, 0.0
        %v2582 = vsel %vm404, %v2561, 0.0
        %v2583 = vadd.f32 %v2581, %v2582
        %v2584 = vsel %vm404, %v2567, 0.0
        %v2585 = vadd.f32 %v2583, %v2584
        %v2586 = vsel %vm412, %v2556, 0.0
        %v2587 = vsel %vm412, %v2562, 0.0
        %v2588 = vadd.f32 %v2586, %v2587
        %v2589 = vsel %vm412, %v2568, 0.0
        %v2590 = vadd.f32 %v2588, %v2589
        %v2591 = vsel %vm420, %v2557, 0.0
        %v2592 = vsel %vm420, %v2563, 0.0
        %v2593 = vadd.f32 %v2591, %v2592
        %v2594 = vsel %vm420, %v2569, 0.0
        %v2595 = vadd.f32 %v2593, %v2594
        %v2596 = vsel %vm428, %v2558, 0.0
        %v2597 = vsel %vm428, %v2564, 0.0
        %v2598 = vadd.f32 %v2596, %v2597
        %v2599 = vsel %vm428, %v2570, 0.0
        %v2600 = vadd.f32 %v2598, %v2599
        %v2602 = vrot.slane %v238, 7
        %v2603 = vrot.slane %v248, 7
        %v2604 = vsel %vm636, %v2602, %v2603
        %v2605 = vrot.slane %v264, 7
        %v2606 = vsel %vm636, %v2603, %v2605
        %2607 = vrot.lane.b32.xlu0 %v853, 1
        %v2608 = vpop.permute.xlu0 %2607
        %2609 = vrot.lane.b32.xlu0 %v2602, 1
        %v2610 = vpop.permute.xlu0 %2609
        %2611 = vrot.lane.b32.xlu0 %v855, 1
        %v2612 = vpop.permute.xlu0 %2611
        %2613 = vrot.lane.b32.xlu0 %v2604, 1
        %v2614 = vpop.permute.xlu0 %2613
        %2615 = vrot.lane.b32.xlu0 %v857, 1
        %v2616 = vpop.permute.xlu0 %2615
        %2617 = vrot.lane.b32.xlu0 %v2606, 1
        %v2618 = vpop.permute.xlu0 %2617
        %v2619 = vsel %vm1939, %v2608, %v2610
        %v2620 = vsel %vm1939, %v2612, %v2614
        %v2621 = vsel %vm1939, %v2616, %v2618
        %v2628 = vadd.f32 %v230, %v2608
        %v2629 = vadd.f32 %v238, %v2619
        %v2630 = vadd.f32 %v241, %v2612
        %v2631 = vadd.f32 %v248, %v2620
        %v2632 = vadd.f32 %v256, %v2616
        %v2633 = vadd.f32 %v264, %v2621
        %v2634 = vmul.f32 %v2436, 2.0
        %v2635 = vmul.f32 %v2443, 2.0
        %v2636 = vmul.f32 %v2450, 2.0
        %v2637 = vmul.f32 %v2457, 2.0
        %v2638 = vmul.f32 %v2464, 2.0
        %v2639 = vmul.f32 %v2471, 2.0
        %v2640 = vsub.f32 %v2628, %v2634
        %v2641 = vsub.f32 %v2629, %v2635
        %v2642 = vsub.f32 %v2630, %v2636
        %v2643 = vsub.f32 %v2631, %v2637
        %v2644 = vsub.f32 %v2632, %v2638
        %v2645 = vsub.f32 %v2633, %v2639
        %v2647 = vrot.slane %v289, 7
        %v2648 = vrot.slane %v296, 7
        %v2649 = vsel %vm636, %v2647, %v2648
        %v2650 = vrot.slane %v306, 7
        %v2651 = vsel %vm636, %v2648, %v2650
        %2652 = vrot.lane.b32.xlu0 %v886, 1
        %v2653 = vpop.permute.xlu0 %2652
        %2654 = vrot.lane.b32.xlu0 %v2647, 1
        %v2655 = vpop.permute.xlu0 %2654
        %2656 = vrot.lane.b32.xlu0 %v888, 1
        %v2657 = vpop.permute.xlu0 %2656
        %2658 = vrot.lane.b32.xlu0 %v2649, 1
        %v2659 = vpop.permute.xlu0 %2658
        %2660 = vrot.lane.b32.xlu0 %v890, 1
        %v2661 = vpop.permute.xlu0 %2660
        %2662 = vrot.lane.b32.xlu0 %v2651, 1
        %v2663 = vpop.permute.xlu0 %2662
        %v2664 = vsel %vm1939, %v2653, %v2655
        %v2665 = vsel %vm1939, %v2657, %v2659
        %v2666 = vsel %vm1939, %v2661, %v2663
        %v2673 = vadd.f32 %v284, %v2653
        %v2674 = vadd.f32 %v289, %v2664
        %v2675 = vadd.f32 %v291, %v2657
        %v2676 = vadd.f32 %v296, %v2665
        %v2677 = vadd.f32 %v301, %v2661
        %v2678 = vadd.f32 %v306, %v2666
        %v2679 = vmul.f32 %v2575, 2.0
        %v2680 = vmul.f32 %v2580, 2.0
        %v2681 = vmul.f32 %v2585, 2.0
        %v2682 = vmul.f32 %v2590, 2.0
        %v2683 = vmul.f32 %v2595, 2.0
        %v2684 = vmul.f32 %v2600, 2.0
        %v2685 = vsub.f32 %v2673, %v2679
        %v2686 = vsub.f32 %v2674, %v2680
        %v2687 = vsub.f32 %v2675, %v2681
        %v2688 = vsub.f32 %v2676, %v2682
        %v2689 = vsub.f32 %v2677, %v2683
        %v2690 = vsub.f32 %v2678, %v2684
        %v2691 = vsub.f32 0.0, %v2685
        %v2692 = vsub.f32 0.0, %v2686
        %v2693 = vsub.f32 0.0, %v2687
        %v2694 = vsub.f32 0.0, %v2688
        %v2695 = vsub.f32 0.0, %v2689
        %v2696 = vsub.f32 0.0, %v2690
        %v2697 = vmul.f32 %v2691, 50.0
        %v2698 = vmul.f32 %v2692, 50.0
        %v2699 = vmul.f32 %v2693, 50.0
        %v2700 = vmul.f32 %v2694, 50.0
        %v2701 = vmul.f32 %v2695, 50.0
        %v2702 = vmul.f32 %v2696, 50.0
        %v2703 = vsub.f32 %v2697, 0.04
        %v2704 = vsub.f32 %v2698, 0.04
        %v2705 = vsub.f32 %v2699, 0.04
        %v2706 = vsub.f32 %v2700, 0.04
        %v2707 = vsub.f32 %v2701, 0.04
        %v2708 = vsub.f32 %v2702, 0.04
        %v2709 = vmul.f32 %v2703, 1.442695
        %v2710 = vpow.pop %v2709
        %v2711 = vmul.f32 %v2704, 1.442695
        %v2712 = vpow.pop %v2711
        %v2713 = vmul.f32 %v2705, 1.442695
        %v2714 = vpow.pop %v2713
        %v2715 = vmul.f32 %v2706, 1.442695
        %v2716 = vpow.pop %v2715
        %v2717 = vmul.f32 %v2707, 1.442695
        %v2718 = vpow.pop %v2717
        %v2719 = vmul.f32 %v2708, 1.442695
        %v2720 = vpow.pop %v2719
        %v2721 = vmul.f32 %v2710, %v2640
        %v2722 = vmul.f32 %v2712, %v2641
        %v2723 = vmul.f32 %v2714, %v2642
        %v2724 = vmul.f32 %v2716, %v2643
        %v2725 = vmul.f32 %v2718, %v2644
        %v2726 = vmul.f32 %v2720, %v2645
        %v2727 = vadd.f32 %v2292, %v2721
        %v2728 = vadd.f32 %v2293, %v2722
        %v2729 = vadd.f32 %v2294, %v2723
        %v2730 = vadd.f32 %v2295, %v2724
        %v2731 = vadd.f32 %v2296, %v2725
        %v2732 = vadd.f32 %v2297, %v2726
        %2733 = vrot.lane.b32.xlu0 %v162, 1
        %v2734 = vpop.permute.xlu0 %2733
        %2735 = vrot.lane.b32.xlu0 %v163, 1
        %v2736 = vpop.permute.xlu0 %2735
        %2737 = vrot.lane.b32.xlu0 %v164, 1
        %v2738 = vpop.permute.xlu0 %2737
        %2739 = vrot.lane.b32.xlu0 %v165, 1
        %v2740 = vpop.permute.xlu0 %2739
        %2741 = vrot.lane.b32.xlu0 %v166, 1
        %v2742 = vpop.permute.xlu0 %2741
        %2743 = vrot.lane.b32.xlu0 %v167, 1
        %v2744 = vpop.permute.xlu0 %2743
        %2745 = vrot.lane.b32.xlu0 %v168, 1
        %v2746 = vpop.permute.xlu0 %2745
        %2747 = vrot.lane.b32.xlu0 %v169, 1
        %v2748 = vpop.permute.xlu0 %2747
        %2749 = vrot.lane.b32.xlu0 %v170, 1
        %v2750 = vpop.permute.xlu0 %2749
        %2751 = vrot.lane.b32.xlu0 %v171, 1
        %v2752 = vpop.permute.xlu0 %2751
        %2753 = vrot.lane.b32.xlu0 %v172, 1
        %v2754 = vpop.permute.xlu0 %2753
        %2755 = vrot.lane.b32.xlu0 %v173, 1
        %v2756 = vpop.permute.xlu0 %2755
        %2757 = vrot.lane.b32.xlu0 %v174, 1
        %v2758 = vpop.permute.xlu0 %2757
        %2759 = vrot.lane.b32.xlu0 %v175, 1
        %v2760 = vpop.permute.xlu0 %2759
        %2761 = vrot.lane.b32.xlu0 %v176, 1
        %v2762 = vpop.permute.xlu0 %2761
        %2763 = vrot.lane.b32.xlu0 %v177, 1
        %v2764 = vpop.permute.xlu0 %2763
        %2765 = vrot.lane.b32.xlu0 %v178, 1
        %v2766 = vpop.permute.xlu0 %2765
        %2767 = vrot.lane.b32.xlu0 %v179, 1
        %v2768 = vpop.permute.xlu0 %2767
        %2769 = vrot.lane.b32.xlu0 %v180, 1
        %v2770 = vpop.permute.xlu0 %2769
        %2771 = vrot.lane.b32.xlu0 %v181, 1
        %v2772 = vpop.permute.xlu0 %2771
        %2773 = vrot.lane.b32.xlu0 %v182, 1
        %v2774 = vpop.permute.xlu0 %2773
        %2775 = vrot.lane.b32.xlu0 %v183, 1
        %v2776 = vpop.permute.xlu0 %2775
        %2777 = vrot.lane.b32.xlu0 %v184, 1
        %v2778 = vpop.permute.xlu0 %2777
        %2779 = vrot.lane.b32.xlu0 %v185, 1
        %v2780 = vpop.permute.xlu0 %2779
        %v2781 = vsel %vm1939, %v2734, %v2736
        %v2782 = vsel %vm1939, %v2738, %v2740
        %v2783 = vsel %vm1939, %v2742, %v2744
        %v2784 = vsel %vm1939, %v2746, %v2748
        %v2785 = vsel %vm1939, %v2750, %v2752
        %v2786 = vsel %vm1939, %v2754, %v2756
        %v2787 = vsel %vm1939, %v2758, %v2760
        %v2788 = vsel %vm1939, %v2762, %v2764
        %v2789 = vsel %vm1939, %v2766, %v2768
        %v2790 = vsel %vm1939, %v2770, %v2772
        %v2791 = vsel %vm1939, %v2774, %v2776
        %v2792 = vsel %vm1939, %v2778, %v2780
        %v2817 = vmul.f32 %v162, %v2734
        %v2818 = vmul.f32 %v163, %v2781
        %v2819 = vmul.f32 %v164, %v2738
        %v2820 = vmul.f32 %v165, %v2782
        %v2821 = vmul.f32 %v166, %v2742
        %v2822 = vmul.f32 %v167, %v2783
        %v2823 = vmul.f32 %v168, %v2746
        %v2824 = vmul.f32 %v169, %v2784
        %v2825 = vmul.f32 %v170, %v2750
        %v2826 = vmul.f32 %v171, %v2785
        %v2827 = vmul.f32 %v172, %v2754
        %v2828 = vmul.f32 %v173, %v2786
        %v2829 = vmul.f32 %v174, %v2758
        %v2830 = vmul.f32 %v175, %v2787
        %v2831 = vmul.f32 %v176, %v2762
        %v2832 = vmul.f32 %v177, %v2788
        %v2833 = vmul.f32 %v178, %v2766
        %v2834 = vmul.f32 %v179, %v2789
        %v2835 = vmul.f32 %v180, %v2770
        %v2836 = vmul.f32 %v181, %v2790
        %v2837 = vmul.f32 %v182, %v2774
        %v2838 = vmul.f32 %v183, %v2791
        %v2839 = vmul.f32 %v184, %v2778
        %v2840 = vmul.f32 %v185, %v2792
        %v2841 = vsel %vm388, %v2817, 0.0
        %v2842 = vsel %vm388, %v2823, 0.0
        %v2843 = vadd.f32 %v2841, %v2842
        %v2844 = vsel %vm388, %v2829, 0.0
        %v2845 = vadd.f32 %v2843, %v2844
        %v2846 = vsel %vm388, %v2835, 0.0
        %v2847 = vadd.f32 %v2845, %v2846
        %v2848 = vsel %vm396, %v2818, 0.0
        %v2849 = vsel %vm396, %v2824, 0.0
        %v2850 = vadd.f32 %v2848, %v2849
        %v2851 = vsel %vm396, %v2830, 0.0
        %v2852 = vadd.f32 %v2850, %v2851
        %v2853 = vsel %vm396, %v2836, 0.0
        %v2854 = vadd.f32 %v2852, %v2853
        %v2855 = vsel %vm404, %v2819, 0.0
        %v2856 = vsel %vm404, %v2825, 0.0
        %v2857 = vadd.f32 %v2855, %v2856
        %v2858 = vsel %vm404, %v2831, 0.0
        %v2859 = vadd.f32 %v2857, %v2858
        %v2860 = vsel %vm404, %v2837, 0.0
        %v2861 = vadd.f32 %v2859, %v2860
        %v2862 = vsel %vm412, %v2820, 0.0
        %v2863 = vsel %vm412, %v2826, 0.0
        %v2864 = vadd.f32 %v2862, %v2863
        %v2865 = vsel %vm412, %v2832, 0.0
        %v2866 = vadd.f32 %v2864, %v2865
        %v2867 = vsel %vm412, %v2838, 0.0
        %v2868 = vadd.f32 %v2866, %v2867
        %v2869 = vsel %vm420, %v2821, 0.0
        %v2870 = vsel %vm420, %v2827, 0.0
        %v2871 = vadd.f32 %v2869, %v2870
        %v2872 = vsel %vm420, %v2833, 0.0
        %v2873 = vadd.f32 %v2871, %v2872
        %v2874 = vsel %vm420, %v2839, 0.0
        %v2875 = vadd.f32 %v2873, %v2874
        %v2876 = vsel %vm428, %v2822, 0.0
        %v2877 = vsel %vm428, %v2828, 0.0
        %v2878 = vadd.f32 %v2876, %v2877
        %v2879 = vsel %vm428, %v2834, 0.0
        %v2880 = vadd.f32 %v2878, %v2879
        %v2881 = vsel %vm428, %v2840, 0.0
        %v2882 = vadd.f32 %v2880, %v2881
        %2883 = vrot.lane.b32.xlu0 %v186, 1
        %v2884 = vpop.permute.xlu0 %2883
        %2885 = vrot.lane.b32.xlu0 %v187, 1
        %v2886 = vpop.permute.xlu0 %2885
        %2887 = vrot.lane.b32.xlu0 %v188, 1
        %v2888 = vpop.permute.xlu0 %2887
        %2889 = vrot.lane.b32.xlu0 %v189, 1
        %v2890 = vpop.permute.xlu0 %2889
        %2891 = vrot.lane.b32.xlu0 %v190, 1
        %v2892 = vpop.permute.xlu0 %2891
        %2893 = vrot.lane.b32.xlu0 %v191, 1
        %v2894 = vpop.permute.xlu0 %2893
        %2895 = vrot.lane.b32.xlu0 %v192, 1
        %v2896 = vpop.permute.xlu0 %2895
        %2897 = vrot.lane.b32.xlu0 %v193, 1
        %v2898 = vpop.permute.xlu0 %2897
        %2899 = vrot.lane.b32.xlu0 %v194, 1
        %v2900 = vpop.permute.xlu0 %2899
        %2901 = vrot.lane.b32.xlu0 %v195, 1
        %v2902 = vpop.permute.xlu0 %2901
        %2903 = vrot.lane.b32.xlu0 %v196, 1
        %v2904 = vpop.permute.xlu0 %2903
        %2905 = vrot.lane.b32.xlu0 %v197, 1
        %v2906 = vpop.permute.xlu0 %2905
        %2907 = vrot.lane.b32.xlu0 %v198, 1
        %v2908 = vpop.permute.xlu0 %2907
        %2909 = vrot.lane.b32.xlu0 %v199, 1
        %v2910 = vpop.permute.xlu0 %2909
        %2911 = vrot.lane.b32.xlu0 %v200, 1
        %v2912 = vpop.permute.xlu0 %2911
        %2913 = vrot.lane.b32.xlu0 %v201, 1
        %v2914 = vpop.permute.xlu0 %2913
        %2915 = vrot.lane.b32.xlu0 %v202, 1
        %v2916 = vpop.permute.xlu0 %2915
        %2917 = vrot.lane.b32.xlu0 %v203, 1
        %v2918 = vpop.permute.xlu0 %2917
        %v2919 = vsel %vm1939, %v2884, %v2886
        %v2920 = vsel %vm1939, %v2888, %v2890
        %v2921 = vsel %vm1939, %v2892, %v2894
        %v2922 = vsel %vm1939, %v2896, %v2898
        %v2923 = vsel %vm1939, %v2900, %v2902
        %v2924 = vsel %vm1939, %v2904, %v2906
        %v2925 = vsel %vm1939, %v2908, %v2910
        %v2926 = vsel %vm1939, %v2912, %v2914
        %v2927 = vsel %vm1939, %v2916, %v2918
        %v2946 = vmul.f32 %v186, %v2884
        %v2947 = vmul.f32 %v187, %v2919
        %v2948 = vmul.f32 %v188, %v2888
        %v2949 = vmul.f32 %v189, %v2920
        %v2950 = vmul.f32 %v190, %v2892
        %v2951 = vmul.f32 %v191, %v2921
        %v2952 = vmul.f32 %v192, %v2896
        %v2953 = vmul.f32 %v193, %v2922
        %v2954 = vmul.f32 %v194, %v2900
        %v2955 = vmul.f32 %v195, %v2923
        %v2956 = vmul.f32 %v196, %v2904
        %v2957 = vmul.f32 %v197, %v2924
        %v2958 = vmul.f32 %v198, %v2908
        %v2959 = vmul.f32 %v199, %v2925
        %v2960 = vmul.f32 %v200, %v2912
        %v2961 = vmul.f32 %v201, %v2926
        %v2962 = vmul.f32 %v202, %v2916
        %v2963 = vmul.f32 %v203, %v2927
        %v2964 = vsel %vm388, %v2946, 0.0
        %v2965 = vsel %vm388, %v2952, 0.0
        %v2966 = vadd.f32 %v2964, %v2965
        %v2967 = vsel %vm388, %v2958, 0.0
        %v2968 = vadd.f32 %v2966, %v2967
        %v2969 = vsel %vm396, %v2947, 0.0
        %v2970 = vsel %vm396, %v2953, 0.0
        %v2971 = vadd.f32 %v2969, %v2970
        %v2972 = vsel %vm396, %v2959, 0.0
        %v2973 = vadd.f32 %v2971, %v2972
        %v2974 = vsel %vm404, %v2948, 0.0
        %v2975 = vsel %vm404, %v2954, 0.0
        %v2976 = vadd.f32 %v2974, %v2975
        %v2977 = vsel %vm404, %v2960, 0.0
        %v2978 = vadd.f32 %v2976, %v2977
        %v2979 = vsel %vm412, %v2949, 0.0
        %v2980 = vsel %vm412, %v2955, 0.0
        %v2981 = vadd.f32 %v2979, %v2980
        %v2982 = vsel %vm412, %v2961, 0.0
        %v2983 = vadd.f32 %v2981, %v2982
        %v2984 = vsel %vm420, %v2950, 0.0
        %v2985 = vsel %vm420, %v2956, 0.0
        %v2986 = vadd.f32 %v2984, %v2985
        %v2987 = vsel %vm420, %v2962, 0.0
        %v2988 = vadd.f32 %v2986, %v2987
        %v2989 = vsel %vm428, %v2951, 0.0
        %v2990 = vsel %vm428, %v2957, 0.0
        %v2991 = vadd.f32 %v2989, %v2990
        %v2992 = vsel %vm428, %v2963, 0.0
        %v2993 = vadd.f32 %v2991, %v2992
        %2994 = vrot.lane.b32.xlu0 %v230, 1
        %v2995 = vpop.permute.xlu0 %2994
        %2996 = vrot.lane.b32.xlu0 %v238, 1
        %v2997 = vpop.permute.xlu0 %2996
        %2998 = vrot.lane.b32.xlu0 %v241, 1
        %v2999 = vpop.permute.xlu0 %2998
        %3000 = vrot.lane.b32.xlu0 %v248, 1
        %v3001 = vpop.permute.xlu0 %3000
        %3002 = vrot.lane.b32.xlu0 %v256, 1
        %v3003 = vpop.permute.xlu0 %3002
        %3004 = vrot.lane.b32.xlu0 %v264, 1
        %v3005 = vpop.permute.xlu0 %3004
        %v3006 = vsel %vm1939, %v2995, %v2997
        %v3007 = vsel %vm1939, %v2999, %v3001
        %v3008 = vsel %vm1939, %v3003, %v3005
        %v3015 = vadd.f32 %v230, %v2995
        %v3016 = vadd.f32 %v238, %v3006
        %v3017 = vadd.f32 %v241, %v2999
        %v3018 = vadd.f32 %v248, %v3007
        %v3019 = vadd.f32 %v256, %v3003
        %v3020 = vadd.f32 %v264, %v3008
        %v3021 = vmul.f32 %v2847, 2.0
        %v3022 = vmul.f32 %v2854, 2.0
        %v3023 = vmul.f32 %v2861, 2.0
        %v3024 = vmul.f32 %v2868, 2.0
        %v3025 = vmul.f32 %v2875, 2.0
        %v3026 = vmul.f32 %v2882, 2.0
        %v3027 = vsub.f32 %v3015, %v3021
        %v3028 = vsub.f32 %v3016, %v3022
        %v3029 = vsub.f32 %v3017, %v3023
        %v3030 = vsub.f32 %v3018, %v3024
        %v3031 = vsub.f32 %v3019, %v3025
        %v3032 = vsub.f32 %v3020, %v3026
        %3033 = vrot.lane.b32.xlu0 %v284, 1
        %v3034 = vpop.permute.xlu0 %3033
        %3035 = vrot.lane.b32.xlu0 %v289, 1
        %v3036 = vpop.permute.xlu0 %3035
        %3037 = vrot.lane.b32.xlu0 %v291, 1
        %v3038 = vpop.permute.xlu0 %3037
        %3039 = vrot.lane.b32.xlu0 %v296, 1
        %v3040 = vpop.permute.xlu0 %3039
        %3041 = vrot.lane.b32.xlu0 %v301, 1
        %v3042 = vpop.permute.xlu0 %3041
        %3043 = vrot.lane.b32.xlu0 %v306, 1
        %v3044 = vpop.permute.xlu0 %3043
        %v3045 = vsel %vm1939, %v3034, %v3036
        %v3046 = vsel %vm1939, %v3038, %v3040
        %v3047 = vsel %vm1939, %v3042, %v3044
        %v3054 = vadd.f32 %v284, %v3034
        %v3055 = vadd.f32 %v289, %v3045
        %v3056 = vadd.f32 %v291, %v3038
        %v3057 = vadd.f32 %v296, %v3046
        %v3058 = vadd.f32 %v301, %v3042
        %v3059 = vadd.f32 %v306, %v3047
        %v3060 = vmul.f32 %v2968, 2.0
        %v3061 = vmul.f32 %v2973, 2.0
        %v3062 = vmul.f32 %v2978, 2.0
        %v3063 = vmul.f32 %v2983, 2.0
        %v3064 = vmul.f32 %v2988, 2.0
        %v3065 = vmul.f32 %v2993, 2.0
        %v3066 = vsub.f32 %v3054, %v3060
        %v3067 = vsub.f32 %v3055, %v3061
        %v3068 = vsub.f32 %v3056, %v3062
        %v3069 = vsub.f32 %v3057, %v3063
        %v3070 = vsub.f32 %v3058, %v3064
        %v3071 = vsub.f32 %v3059, %v3065
        %v3072 = vsub.f32 0.0, %v3066
        %v3073 = vsub.f32 0.0, %v3067
        %v3074 = vsub.f32 0.0, %v3068
        %v3075 = vsub.f32 0.0, %v3069
        %v3076 = vsub.f32 0.0, %v3070
        %v3077 = vsub.f32 0.0, %v3071
        %v3078 = vmul.f32 %v3072, 50.0
        %v3079 = vmul.f32 %v3073, 50.0
        %v3080 = vmul.f32 %v3074, 50.0
        %v3081 = vmul.f32 %v3075, 50.0
        %v3082 = vmul.f32 %v3076, 50.0
        %v3083 = vmul.f32 %v3077, 50.0
        %v3084 = vsub.f32 %v3078, 0.02
        %v3085 = vsub.f32 %v3079, 0.02
        %v3086 = vsub.f32 %v3080, 0.02
        %v3087 = vsub.f32 %v3081, 0.02
        %v3088 = vsub.f32 %v3082, 0.02
        %v3089 = vsub.f32 %v3083, 0.02
        %v3090 = vmul.f32 %v3084, 1.442695
        %v3091 = vpow.pop %v3090
        %v3092 = vmul.f32 %v3085, 1.442695
        %v3093 = vpow.pop %v3092
        %v3094 = vmul.f32 %v3086, 1.442695
        %v3095 = vpow.pop %v3094
        %v3096 = vmul.f32 %v3087, 1.442695
        %v3097 = vpow.pop %v3096
        %v3098 = vmul.f32 %v3088, 1.442695
        %v3099 = vpow.pop %v3098
        %v3100 = vmul.f32 %v3089, 1.442695
        %v3101 = vpow.pop %v3100
        %v3102 = vmul.f32 %v3091, %v3027
        %v3103 = vmul.f32 %v3093, %v3028
        %v3104 = vmul.f32 %v3095, %v3029
        %v3105 = vmul.f32 %v3097, %v3030
        %v3106 = vmul.f32 %v3099, %v3031
        %v3107 = vmul.f32 %v3101, %v3032
        %v3108 = vadd.f32 %v2727, %v3102
        %v3109 = vadd.f32 %v2728, %v3103
        %v3110 = vadd.f32 %v2729, %v3104
        %v3111 = vadd.f32 %v2730, %v3105
        %v3112 = vadd.f32 %v2731, %v3106
        %v3113 = vadd.f32 %v2732, %v3107
        %v3114 = vrot.slane %v163, 1
        %v3115 = vrot.slane %v165, 1
        %v3116 = vsel %vm1233, %v3114, %v3115
        %v3117 = vrot.slane %v167, 1
        %v3118 = vsel %vm1233, %v3115, %v3117
        %v3119 = vrot.slane %v169, 1
        %v3120 = vrot.slane %v171, 1
        %v3121 = vsel %vm1233, %v3119, %v3120
        %v3122 = vrot.slane %v173, 1
        %v3123 = vsel %vm1233, %v3120, %v3122
        %v3124 = vrot.slane %v175, 1
        %v3125 = vrot.slane %v177, 1
        %v3126 = vsel %vm1233, %v3124, %v3125
        %v3127 = vrot.slane %v179, 1
        %v3128 = vsel %vm1233, %v3125, %v3127
        %v3129 = vrot.slane %v181, 1
        %v3130 = vrot.slane %v183, 1
        %v3131 = vsel %vm1233, %v3129, %v3130
        %v3132 = vrot.slane %v185, 1
        %v3133 = vsel %vm1233, %v3130, %v3132
        %3134 = vrot.lane.b32.xlu0 %v1236, 1
        %v3135 = vpop.permute.xlu0 %3134
        %3136 = vrot.lane.b32.xlu0 %v3116, 1
        %v3137 = vpop.permute.xlu0 %3136
        %3138 = vrot.lane.b32.xlu0 %v1238, 1
        %v3139 = vpop.permute.xlu0 %3138
        %3140 = vrot.lane.b32.xlu0 %v3118, 1
        %v3141 = vpop.permute.xlu0 %3140
        %3142 = vrot.lane.b32.xlu0 %v1237, 1
        %v3143 = vpop.permute.xlu0 %3142
        %3144 = vrot.lane.b32.xlu0 %v3117, 1
        %v3145 = vpop.permute.xlu0 %3144
        %3146 = vrot.lane.b32.xlu0 %v1241, 1
        %v3147 = vpop.permute.xlu0 %3146
        %3148 = vrot.lane.b32.xlu0 %v3121, 1
        %v3149 = vpop.permute.xlu0 %3148
        %3150 = vrot.lane.b32.xlu0 %v1243, 1
        %v3151 = vpop.permute.xlu0 %3150
        %3152 = vrot.lane.b32.xlu0 %v3123, 1
        %v3153 = vpop.permute.xlu0 %3152
        %3154 = vrot.lane.b32.xlu0 %v1242, 1
        %v3155 = vpop.permute.xlu0 %3154
        %3156 = vrot.lane.b32.xlu0 %v3122, 1
        %v3157 = vpop.permute.xlu0 %3156
        %3158 = vrot.lane.b32.xlu0 %v1246, 1
        %v3159 = vpop.permute.xlu0 %3158
        %3160 = vrot.lane.b32.xlu0 %v3126, 1
        %v3161 = vpop.permute.xlu0 %3160
        %3162 = vrot.lane.b32.xlu0 %v1248, 1
        %v3163 = vpop.permute.xlu0 %3162
        %3164 = vrot.lane.b32.xlu0 %v3128, 1
        %v3165 = vpop.permute.xlu0 %3164
        %3166 = vrot.lane.b32.xlu0 %v1247, 1
        %v3167 = vpop.permute.xlu0 %3166
        %3168 = vrot.lane.b32.xlu0 %v3127, 1
        %v3169 = vpop.permute.xlu0 %3168
        %3170 = vrot.lane.b32.xlu0 %v1251, 1
        %v3171 = vpop.permute.xlu0 %3170
        %3172 = vrot.lane.b32.xlu0 %v3131, 1
        %v3173 = vpop.permute.xlu0 %3172
        %3174 = vrot.lane.b32.xlu0 %v1253, 1
        %v3175 = vpop.permute.xlu0 %3174
        %3176 = vrot.lane.b32.xlu0 %v3133, 1
        %v3177 = vpop.permute.xlu0 %3176
        %3178 = vrot.lane.b32.xlu0 %v1252, 1
        %v3179 = vpop.permute.xlu0 %3178
        %3180 = vrot.lane.b32.xlu0 %v3132, 1
        %v3181 = vpop.permute.xlu0 %3180
        %v3182 = vsel %vm1939, %v3135, %v3137
        %v3183 = vsel %vm1939, %v3139, %v3141
        %v3184 = vsel %vm1939, %v3143, %v3145
        %v3185 = vsel %vm1939, %v3147, %v3149
        %v3186 = vsel %vm1939, %v3151, %v3153
        %v3187 = vsel %vm1939, %v3155, %v3157
        %v3188 = vsel %vm1939, %v3159, %v3161
        %v3189 = vsel %vm1939, %v3163, %v3165
        %v3190 = vsel %vm1939, %v3167, %v3169
        %v3191 = vsel %vm1939, %v3171, %v3173
        %v3192 = vsel %vm1939, %v3175, %v3177
        %v3193 = vsel %vm1939, %v3179, %v3181
        %v3218 = vmul.f32 %v162, %v3135
        %v3219 = vmul.f32 %v163, %v3182
        %v3220 = vmul.f32 %v164, %v3139
        %v3221 = vmul.f32 %v165, %v3183
        %v3222 = vmul.f32 %v166, %v3143
        %v3223 = vmul.f32 %v167, %v3184
        %v3224 = vmul.f32 %v168, %v3147
        %v3225 = vmul.f32 %v169, %v3185
        %v3226 = vmul.f32 %v170, %v3151
        %v3227 = vmul.f32 %v171, %v3186
        %v3228 = vmul.f32 %v172, %v3155
        %v3229 = vmul.f32 %v173, %v3187
        %v3230 = vmul.f32 %v174, %v3159
        %v3231 = vmul.f32 %v175, %v3188
        %v3232 = vmul.f32 %v176, %v3163
        %v3233 = vmul.f32 %v177, %v3189
        %v3234 = vmul.f32 %v178, %v3167
        %v3235 = vmul.f32 %v179, %v3190
        %v3236 = vmul.f32 %v180, %v3171
        %v3237 = vmul.f32 %v181, %v3191
        %v3238 = vmul.f32 %v182, %v3175
        %v3239 = vmul.f32 %v183, %v3192
        %v3240 = vmul.f32 %v184, %v3179
        %v3241 = vmul.f32 %v185, %v3193
        %v3242 = vsel %vm388, %v3218, 0.0
        %v3243 = vsel %vm388, %v3224, 0.0
        %v3244 = vadd.f32 %v3242, %v3243
        %v3245 = vsel %vm388, %v3230, 0.0
        %v3246 = vadd.f32 %v3244, %v3245
        %v3247 = vsel %vm388, %v3236, 0.0
        %v3248 = vadd.f32 %v3246, %v3247
        %v3249 = vsel %vm396, %v3219, 0.0
        %v3250 = vsel %vm396, %v3225, 0.0
        %v3251 = vadd.f32 %v3249, %v3250
        %v3252 = vsel %vm396, %v3231, 0.0
        %v3253 = vadd.f32 %v3251, %v3252
        %v3254 = vsel %vm396, %v3237, 0.0
        %v3255 = vadd.f32 %v3253, %v3254
        %v3256 = vsel %vm404, %v3220, 0.0
        %v3257 = vsel %vm404, %v3226, 0.0
        %v3258 = vadd.f32 %v3256, %v3257
        %v3259 = vsel %vm404, %v3232, 0.0
        %v3260 = vadd.f32 %v3258, %v3259
        %v3261 = vsel %vm404, %v3238, 0.0
        %v3262 = vadd.f32 %v3260, %v3261
        %v3263 = vsel %vm412, %v3221, 0.0
        %v3264 = vsel %vm412, %v3227, 0.0
        %v3265 = vadd.f32 %v3263, %v3264
        %v3266 = vsel %vm412, %v3233, 0.0
        %v3267 = vadd.f32 %v3265, %v3266
        %v3268 = vsel %vm412, %v3239, 0.0
        %v3269 = vadd.f32 %v3267, %v3268
        %v3270 = vsel %vm420, %v3222, 0.0
        %v3271 = vsel %vm420, %v3228, 0.0
        %v3272 = vadd.f32 %v3270, %v3271
        %v3273 = vsel %vm420, %v3234, 0.0
        %v3274 = vadd.f32 %v3272, %v3273
        %v3275 = vsel %vm420, %v3240, 0.0
        %v3276 = vadd.f32 %v3274, %v3275
        %v3277 = vsel %vm428, %v3223, 0.0
        %v3278 = vsel %vm428, %v3229, 0.0
        %v3279 = vadd.f32 %v3277, %v3278
        %v3280 = vsel %vm428, %v3235, 0.0
        %v3281 = vadd.f32 %v3279, %v3280
        %v3282 = vsel %vm428, %v3241, 0.0
        %v3283 = vadd.f32 %v3281, %v3282
        %v3284 = vrot.slane %v187, 1
        %v3285 = vrot.slane %v189, 1
        %v3286 = vsel %vm1233, %v3284, %v3285
        %v3287 = vrot.slane %v191, 1
        %v3288 = vsel %vm1233, %v3285, %v3287
        %v3289 = vrot.slane %v193, 1
        %v3290 = vrot.slane %v195, 1
        %v3291 = vsel %vm1233, %v3289, %v3290
        %v3292 = vrot.slane %v197, 1
        %v3293 = vsel %vm1233, %v3290, %v3292
        %v3294 = vrot.slane %v199, 1
        %v3295 = vrot.slane %v201, 1
        %v3296 = vsel %vm1233, %v3294, %v3295
        %v3297 = vrot.slane %v203, 1
        %v3298 = vsel %vm1233, %v3295, %v3297
        %3299 = vrot.lane.b32.xlu0 %v1358, 1
        %v3300 = vpop.permute.xlu0 %3299
        %3301 = vrot.lane.b32.xlu0 %v3286, 1
        %v3302 = vpop.permute.xlu0 %3301
        %3303 = vrot.lane.b32.xlu0 %v1360, 1
        %v3304 = vpop.permute.xlu0 %3303
        %3305 = vrot.lane.b32.xlu0 %v3288, 1
        %v3306 = vpop.permute.xlu0 %3305
        %3307 = vrot.lane.b32.xlu0 %v1359, 1
        %v3308 = vpop.permute.xlu0 %3307
        %3309 = vrot.lane.b32.xlu0 %v3287, 1
        %v3310 = vpop.permute.xlu0 %3309
        %3311 = vrot.lane.b32.xlu0 %v1363, 1
        %v3312 = vpop.permute.xlu0 %3311
        %3313 = vrot.lane.b32.xlu0 %v3291, 1
        %v3314 = vpop.permute.xlu0 %3313
        %3315 = vrot.lane.b32.xlu0 %v1365, 1
        %v3316 = vpop.permute.xlu0 %3315
        %3317 = vrot.lane.b32.xlu0 %v3293, 1
        %v3318 = vpop.permute.xlu0 %3317
        %3319 = vrot.lane.b32.xlu0 %v1364, 1
        %v3320 = vpop.permute.xlu0 %3319
        %3321 = vrot.lane.b32.xlu0 %v3292, 1
        %v3322 = vpop.permute.xlu0 %3321
        %3323 = vrot.lane.b32.xlu0 %v1368, 1
        %v3324 = vpop.permute.xlu0 %3323
        %3325 = vrot.lane.b32.xlu0 %v3296, 1
        %v3326 = vpop.permute.xlu0 %3325
        %3327 = vrot.lane.b32.xlu0 %v1370, 1
        %v3328 = vpop.permute.xlu0 %3327
        %3329 = vrot.lane.b32.xlu0 %v3298, 1
        %v3330 = vpop.permute.xlu0 %3329
        %3331 = vrot.lane.b32.xlu0 %v1369, 1
        %v3332 = vpop.permute.xlu0 %3331
        %3333 = vrot.lane.b32.xlu0 %v3297, 1
        %v3334 = vpop.permute.xlu0 %3333
        %v3335 = vsel %vm1939, %v3300, %v3302
        %v3336 = vsel %vm1939, %v3304, %v3306
        %v3337 = vsel %vm1939, %v3308, %v3310
        %v3338 = vsel %vm1939, %v3312, %v3314
        %v3339 = vsel %vm1939, %v3316, %v3318
        %v3340 = vsel %vm1939, %v3320, %v3322
        %v3341 = vsel %vm1939, %v3324, %v3326
        %v3342 = vsel %vm1939, %v3328, %v3330
        %v3343 = vsel %vm1939, %v3332, %v3334
        %v3362 = vmul.f32 %v186, %v3300
        %v3363 = vmul.f32 %v187, %v3335
        %v3364 = vmul.f32 %v188, %v3304
        %v3365 = vmul.f32 %v189, %v3336
        %v3366 = vmul.f32 %v190, %v3308
        %v3367 = vmul.f32 %v191, %v3337
        %v3368 = vmul.f32 %v192, %v3312
        %v3369 = vmul.f32 %v193, %v3338
        %v3370 = vmul.f32 %v194, %v3316
        %v3371 = vmul.f32 %v195, %v3339
        %v3372 = vmul.f32 %v196, %v3320
        %v3373 = vmul.f32 %v197, %v3340
        %v3374 = vmul.f32 %v198, %v3324
        %v3375 = vmul.f32 %v199, %v3341
        %v3376 = vmul.f32 %v200, %v3328
        %v3377 = vmul.f32 %v201, %v3342
        %v3378 = vmul.f32 %v202, %v3332
        %v3379 = vmul.f32 %v203, %v3343
        %v3380 = vsel %vm388, %v3362, 0.0
        %v3381 = vsel %vm388, %v3368, 0.0
        %v3382 = vadd.f32 %v3380, %v3381
        %v3383 = vsel %vm388, %v3374, 0.0
        %v3384 = vadd.f32 %v3382, %v3383
        %v3385 = vsel %vm396, %v3363, 0.0
        %v3386 = vsel %vm396, %v3369, 0.0
        %v3387 = vadd.f32 %v3385, %v3386
        %v3388 = vsel %vm396, %v3375, 0.0
        %v3389 = vadd.f32 %v3387, %v3388
        %v3390 = vsel %vm404, %v3364, 0.0
        %v3391 = vsel %vm404, %v3370, 0.0
        %v3392 = vadd.f32 %v3390, %v3391
        %v3393 = vsel %vm404, %v3376, 0.0
        %v3394 = vadd.f32 %v3392, %v3393
        %v3395 = vsel %vm412, %v3365, 0.0
        %v3396 = vsel %vm412, %v3371, 0.0
        %v3397 = vadd.f32 %v3395, %v3396
        %v3398 = vsel %vm412, %v3377, 0.0
        %v3399 = vadd.f32 %v3397, %v3398
        %v3400 = vsel %vm420, %v3366, 0.0
        %v3401 = vsel %vm420, %v3372, 0.0
        %v3402 = vadd.f32 %v3400, %v3401
        %v3403 = vsel %vm420, %v3378, 0.0
        %v3404 = vadd.f32 %v3402, %v3403
        %v3405 = vsel %vm428, %v3367, 0.0
        %v3406 = vsel %vm428, %v3373, 0.0
        %v3407 = vadd.f32 %v3405, %v3406
        %v3408 = vsel %vm428, %v3379, 0.0
        %v3409 = vadd.f32 %v3407, %v3408
        %v3410 = vrot.slane %v238, 1
        %v3411 = vrot.slane %v248, 1
        %v3412 = vsel %vm1233, %v3410, %v3411
        %v3413 = vrot.slane %v264, 1
        %v3414 = vsel %vm1233, %v3411, %v3413
        %3415 = vrot.lane.b32.xlu0 %v1448, 1
        %v3416 = vpop.permute.xlu0 %3415
        %3417 = vrot.lane.b32.xlu0 %v3412, 1
        %v3418 = vpop.permute.xlu0 %3417
        %3419 = vrot.lane.b32.xlu0 %v1450, 1
        %v3420 = vpop.permute.xlu0 %3419
        %3421 = vrot.lane.b32.xlu0 %v3414, 1
        %v3422 = vpop.permute.xlu0 %3421
        %3423 = vrot.lane.b32.xlu0 %v1449, 1
        %v3424 = vpop.permute.xlu0 %3423
        %3425 = vrot.lane.b32.xlu0 %v3413, 1
        %v3426 = vpop.permute.xlu0 %3425
        %v3427 = vsel %vm1939, %v3416, %v3418
        %v3428 = vsel %vm1939, %v3420, %v3422
        %v3429 = vsel %vm1939, %v3424, %v3426
        %v3436 = vadd.f32 %v230, %v3416
        %v3437 = vadd.f32 %v238, %v3427
        %v3438 = vadd.f32 %v241, %v3420
        %v3439 = vadd.f32 %v248, %v3428
        %v3440 = vadd.f32 %v256, %v3424
        %v3441 = vadd.f32 %v264, %v3429
        %v3442 = vmul.f32 %v3248, 2.0
        %v3443 = vmul.f32 %v3255, 2.0
        %v3444 = vmul.f32 %v3262, 2.0
        %v3445 = vmul.f32 %v3269, 2.0
        %v3446 = vmul.f32 %v3276, 2.0
        %v3447 = vmul.f32 %v3283, 2.0
        %v3448 = vsub.f32 %v3436, %v3442
        %v3449 = vsub.f32 %v3437, %v3443
        %v3450 = vsub.f32 %v3438, %v3444
        %v3451 = vsub.f32 %v3439, %v3445
        %v3452 = vsub.f32 %v3440, %v3446
        %v3453 = vsub.f32 %v3441, %v3447
        %v3454 = vrot.slane %v289, 1
        %v3455 = vrot.slane %v296, 1
        %v3456 = vsel %vm1233, %v3454, %v3455
        %v3457 = vrot.slane %v306, 1
        %v3458 = vsel %vm1233, %v3455, %v3457
        %3459 = vrot.lane.b32.xlu0 %v1480, 1
        %v3460 = vpop.permute.xlu0 %3459
        %3461 = vrot.lane.b32.xlu0 %v3456, 1
        %v3462 = vpop.permute.xlu0 %3461
        %3463 = vrot.lane.b32.xlu0 %v1482, 1
        %v3464 = vpop.permute.xlu0 %3463
        %3465 = vrot.lane.b32.xlu0 %v3458, 1
        %v3466 = vpop.permute.xlu0 %3465
        %3467 = vrot.lane.b32.xlu0 %v1481, 1
        %v3468 = vpop.permute.xlu0 %3467
        %3469 = vrot.lane.b32.xlu0 %v3457, 1
        %v3470 = vpop.permute.xlu0 %3469
        %v3471 = vsel %vm1939, %v3460, %v3462
        %v3472 = vsel %vm1939, %v3464, %v3466
        %v3473 = vsel %vm1939, %v3468, %v3470
        %v3480 = vadd.f32 %v284, %v3460
        %v3481 = vadd.f32 %v289, %v3471
        %v3482 = vadd.f32 %v291, %v3464
        %v3483 = vadd.f32 %v296, %v3472
        %v3484 = vadd.f32 %v301, %v3468
        %v3485 = vadd.f32 %v306, %v3473
        %v3486 = vmul.f32 %v3384, 2.0
        %v3487 = vmul.f32 %v3389, 2.0
        %v3488 = vmul.f32 %v3394, 2.0
        %v3489 = vmul.f32 %v3399, 2.0
        %v3490 = vmul.f32 %v3404, 2.0
        %v3491 = vmul.f32 %v3409, 2.0
        %v3492 = vsub.f32 %v3480, %v3486
        %v3493 = vsub.f32 %v3481, %v3487
        %v3494 = vsub.f32 %v3482, %v3488
        %v3495 = vsub.f32 %v3483, %v3489
        %v3496 = vsub.f32 %v3484, %v3490
        %v3497 = vsub.f32 %v3485, %v3491
        %v3498 = vsub.f32 0.0, %v3492
        %v3499 = vsub.f32 0.0, %v3493
        %v3500 = vsub.f32 0.0, %v3494
        %v3501 = vsub.f32 0.0, %v3495
        %v3502 = vsub.f32 0.0, %v3496
        %v3503 = vsub.f32 0.0, %v3497
        %v3504 = vmul.f32 %v3498, 50.0
        %v3505 = vmul.f32 %v3499, 50.0
        %v3506 = vmul.f32 %v3500, 50.0
        %v3507 = vmul.f32 %v3501, 50.0
        %v3508 = vmul.f32 %v3502, 50.0
        %v3509 = vmul.f32 %v3503, 50.0
        %v3510 = vsub.f32 %v3504, 0.04
        %v3511 = vsub.f32 %v3505, 0.04
        %v3512 = vsub.f32 %v3506, 0.04
        %v3513 = vsub.f32 %v3507, 0.04
        %v3514 = vsub.f32 %v3508, 0.04
        %v3515 = vsub.f32 %v3509, 0.04
        %v3516 = vmul.f32 %v3510, 1.442695
        %v3517 = vpow.pop %v3516
        %v3518 = vmul.f32 %v3511, 1.442695
        %v3519 = vpow.pop %v3518
        %v3520 = vmul.f32 %v3512, 1.442695
        %v3521 = vpow.pop %v3520
        %v3522 = vmul.f32 %v3513, 1.442695
        %v3523 = vpow.pop %v3522
        %v3524 = vmul.f32 %v3514, 1.442695
        %v3525 = vpow.pop %v3524
        %v3526 = vmul.f32 %v3515, 1.442695
        %v3527 = vpow.pop %v3526
        %v3528 = vmul.f32 %v3517, %v3448
        %v3529 = vmul.f32 %v3519, %v3449
        %v3530 = vmul.f32 %v3521, %v3450
        %v3531 = vmul.f32 %v3523, %v3451
        %v3532 = vmul.f32 %v3525, %v3452
        %v3533 = vmul.f32 %v3527, %v3453
        %v3534 = vadd.f32 %v3108, %v3528
        %v3535 = vadd.f32 %v3109, %v3529
        %v3536 = vadd.f32 %v3110, %v3530
        %v3537 = vadd.f32 %v3111, %v3531
        %v3538 = vadd.f32 %v3112, %v3532
        %v3539 = vadd.f32 %v3113, %v3533
        %v3540 = vrot.slane %v163, 2
        %v3541 = vrot.slane %v165, 2
        %v3542 = vsel %vm1552, %v3540, %v3541
        %v3543 = vrot.slane %v167, 2
        %v3544 = vsel %vm1552, %v3541, %v3543
        %v3545 = vrot.slane %v169, 2
        %v3546 = vrot.slane %v171, 2
        %v3547 = vsel %vm1552, %v3545, %v3546
        %v3548 = vrot.slane %v173, 2
        %v3549 = vsel %vm1552, %v3546, %v3548
        %v3550 = vrot.slane %v175, 2
        %v3551 = vrot.slane %v177, 2
        %v3552 = vsel %vm1552, %v3550, %v3551
        %v3553 = vrot.slane %v179, 2
        %v3554 = vsel %vm1552, %v3551, %v3553
        %v3555 = vrot.slane %v181, 2
        %v3556 = vrot.slane %v183, 2
        %v3557 = vsel %vm1552, %v3555, %v3556
        %v3558 = vrot.slane %v185, 2
        %v3559 = vsel %vm1552, %v3556, %v3558
        %3560 = vrot.lane.b32.xlu0 %v1555, 1
        %v3561 = vpop.permute.xlu0 %3560
        %3562 = vrot.lane.b32.xlu0 %v3542, 1
        %v3563 = vpop.permute.xlu0 %3562
        %3564 = vrot.lane.b32.xlu0 %v1557, 1
        %v3565 = vpop.permute.xlu0 %3564
        %3566 = vrot.lane.b32.xlu0 %v3544, 1
        %v3567 = vpop.permute.xlu0 %3566
        %3568 = vrot.lane.b32.xlu0 %v1556, 1
        %v3569 = vpop.permute.xlu0 %3568
        %3570 = vrot.lane.b32.xlu0 %v3543, 1
        %v3571 = vpop.permute.xlu0 %3570
        %3572 = vrot.lane.b32.xlu0 %v1560, 1
        %v3573 = vpop.permute.xlu0 %3572
        %3574 = vrot.lane.b32.xlu0 %v3547, 1
        %v3575 = vpop.permute.xlu0 %3574
        %3576 = vrot.lane.b32.xlu0 %v1562, 1
        %v3577 = vpop.permute.xlu0 %3576
        %3578 = vrot.lane.b32.xlu0 %v3549, 1
        %v3579 = vpop.permute.xlu0 %3578
        %3580 = vrot.lane.b32.xlu0 %v1561, 1
        %v3581 = vpop.permute.xlu0 %3580
        %3582 = vrot.lane.b32.xlu0 %v3548, 1
        %v3583 = vpop.permute.xlu0 %3582
        %3584 = vrot.lane.b32.xlu0 %v1565, 1
        %v3585 = vpop.permute.xlu0 %3584
        %3586 = vrot.lane.b32.xlu0 %v3552, 1
        %v3587 = vpop.permute.xlu0 %3586
        %3588 = vrot.lane.b32.xlu0 %v1567, 1
        %v3589 = vpop.permute.xlu0 %3588
        %3590 = vrot.lane.b32.xlu0 %v3554, 1
        %v3591 = vpop.permute.xlu0 %3590
        %3592 = vrot.lane.b32.xlu0 %v1566, 1
        %v3593 = vpop.permute.xlu0 %3592
        %3594 = vrot.lane.b32.xlu0 %v3553, 1
        %v3595 = vpop.permute.xlu0 %3594
        %3596 = vrot.lane.b32.xlu0 %v1570, 1
        %v3597 = vpop.permute.xlu0 %3596
        %3598 = vrot.lane.b32.xlu0 %v3557, 1
        %v3599 = vpop.permute.xlu0 %3598
        %3600 = vrot.lane.b32.xlu0 %v1572, 1
        %v3601 = vpop.permute.xlu0 %3600
        %3602 = vrot.lane.b32.xlu0 %v3559, 1
        %v3603 = vpop.permute.xlu0 %3602
        %3604 = vrot.lane.b32.xlu0 %v1571, 1
        %v3605 = vpop.permute.xlu0 %3604
        %3606 = vrot.lane.b32.xlu0 %v3558, 1
        %v3607 = vpop.permute.xlu0 %3606
        %v3608 = vsel %vm1939, %v3561, %v3563
        %v3609 = vsel %vm1939, %v3565, %v3567
        %v3610 = vsel %vm1939, %v3569, %v3571
        %v3611 = vsel %vm1939, %v3573, %v3575
        %v3612 = vsel %vm1939, %v3577, %v3579
        %v3613 = vsel %vm1939, %v3581, %v3583
        %v3614 = vsel %vm1939, %v3585, %v3587
        %v3615 = vsel %vm1939, %v3589, %v3591
        %v3616 = vsel %vm1939, %v3593, %v3595
        %v3617 = vsel %vm1939, %v3597, %v3599
        %v3618 = vsel %vm1939, %v3601, %v3603
        %v3619 = vsel %vm1939, %v3605, %v3607
        %v3644 = vmul.f32 %v162, %v3561
        %v3645 = vmul.f32 %v163, %v3608
        %v3646 = vmul.f32 %v164, %v3565
        %v3647 = vmul.f32 %v165, %v3609
        %v3648 = vmul.f32 %v166, %v3569
        %v3649 = vmul.f32 %v167, %v3610
        %v3650 = vmul.f32 %v168, %v3573
        %v3651 = vmul.f32 %v169, %v3611
        %v3652 = vmul.f32 %v170, %v3577
        %v3653 = vmul.f32 %v171, %v3612
        %v3654 = vmul.f32 %v172, %v3581
        %v3655 = vmul.f32 %v173, %v3613
        %v3656 = vmul.f32 %v174, %v3585
        %v3657 = vmul.f32 %v175, %v3614
        %v3658 = vmul.f32 %v176, %v3589
        %v3659 = vmul.f32 %v177, %v3615
        %v3660 = vmul.f32 %v178, %v3593
        %v3661 = vmul.f32 %v179, %v3616
        %v3662 = vmul.f32 %v180, %v3597
        %v3663 = vmul.f32 %v181, %v3617
        %v3664 = vmul.f32 %v182, %v3601
        %v3665 = vmul.f32 %v183, %v3618
        %v3666 = vmul.f32 %v184, %v3605
        %v3667 = vmul.f32 %v185, %v3619
        %v3668 = vsel %vm388, %v3644, 0.0
        %v3669 = vsel %vm388, %v3650, 0.0
        %v3670 = vadd.f32 %v3668, %v3669
        %v3671 = vsel %vm388, %v3656, 0.0
        %v3672 = vadd.f32 %v3670, %v3671
        %v3673 = vsel %vm388, %v3662, 0.0
        %v3674 = vadd.f32 %v3672, %v3673
        %v3675 = vsel %vm396, %v3645, 0.0
        %v3676 = vsel %vm396, %v3651, 0.0
        %v3677 = vadd.f32 %v3675, %v3676
        %v3678 = vsel %vm396, %v3657, 0.0
        %v3679 = vadd.f32 %v3677, %v3678
        %v3680 = vsel %vm396, %v3663, 0.0
        %v3681 = vadd.f32 %v3679, %v3680
        %v3682 = vsel %vm404, %v3646, 0.0
        %v3683 = vsel %vm404, %v3652, 0.0
        %v3684 = vadd.f32 %v3682, %v3683
        %v3685 = vsel %vm404, %v3658, 0.0
        %v3686 = vadd.f32 %v3684, %v3685
        %v3687 = vsel %vm404, %v3664, 0.0
        %v3688 = vadd.f32 %v3686, %v3687
        %v3689 = vsel %vm412, %v3647, 0.0
        %v3690 = vsel %vm412, %v3653, 0.0
        %v3691 = vadd.f32 %v3689, %v3690
        %v3692 = vsel %vm412, %v3659, 0.0
        %v3693 = vadd.f32 %v3691, %v3692
        %v3694 = vsel %vm412, %v3665, 0.0
        %v3695 = vadd.f32 %v3693, %v3694
        %v3696 = vsel %vm420, %v3648, 0.0
        %v3697 = vsel %vm420, %v3654, 0.0
        %v3698 = vadd.f32 %v3696, %v3697
        %v3699 = vsel %vm420, %v3660, 0.0
        %v3700 = vadd.f32 %v3698, %v3699
        %v3701 = vsel %vm420, %v3666, 0.0
        %v3702 = vadd.f32 %v3700, %v3701
        %v3703 = vsel %vm428, %v3649, 0.0
        %v3704 = vsel %vm428, %v3655, 0.0
        %v3705 = vadd.f32 %v3703, %v3704
        %v3706 = vsel %vm428, %v3661, 0.0
        %v3707 = vadd.f32 %v3705, %v3706
        %v3708 = vsel %vm428, %v3667, 0.0
        %v3709 = vadd.f32 %v3707, %v3708
        %v3710 = vrot.slane %v187, 2
        %v3711 = vrot.slane %v189, 2
        %v3712 = vsel %vm1552, %v3710, %v3711
        %v3713 = vrot.slane %v191, 2
        %v3714 = vsel %vm1552, %v3711, %v3713
        %v3715 = vrot.slane %v193, 2
        %v3716 = vrot.slane %v195, 2
        %v3717 = vsel %vm1552, %v3715, %v3716
        %v3718 = vrot.slane %v197, 2
        %v3719 = vsel %vm1552, %v3716, %v3718
        %v3720 = vrot.slane %v199, 2
        %v3721 = vrot.slane %v201, 2
        %v3722 = vsel %vm1552, %v3720, %v3721
        %v3723 = vrot.slane %v203, 2
        %v3724 = vsel %vm1552, %v3721, %v3723
        %3725 = vrot.lane.b32.xlu0 %v1677, 1
        %v3726 = vpop.permute.xlu0 %3725
        %3727 = vrot.lane.b32.xlu0 %v3712, 1
        %v3728 = vpop.permute.xlu0 %3727
        %3729 = vrot.lane.b32.xlu0 %v1679, 1
        %v3730 = vpop.permute.xlu0 %3729
        %3731 = vrot.lane.b32.xlu0 %v3714, 1
        %v3732 = vpop.permute.xlu0 %3731
        %3733 = vrot.lane.b32.xlu0 %v1678, 1
        %v3734 = vpop.permute.xlu0 %3733
        %3735 = vrot.lane.b32.xlu0 %v3713, 1
        %v3736 = vpop.permute.xlu0 %3735
        %3737 = vrot.lane.b32.xlu0 %v1682, 1
        %v3738 = vpop.permute.xlu0 %3737
        %3739 = vrot.lane.b32.xlu0 %v3717, 1
        %v3740 = vpop.permute.xlu0 %3739
        %3741 = vrot.lane.b32.xlu0 %v1684, 1
        %v3742 = vpop.permute.xlu0 %3741
        %3743 = vrot.lane.b32.xlu0 %v3719, 1
        %v3744 = vpop.permute.xlu0 %3743
        %3745 = vrot.lane.b32.xlu0 %v1683, 1
        %v3746 = vpop.permute.xlu0 %3745
        %3747 = vrot.lane.b32.xlu0 %v3718, 1
        %v3748 = vpop.permute.xlu0 %3747
        %3749 = vrot.lane.b32.xlu0 %v1687, 1
        %v3750 = vpop.permute.xlu0 %3749
        %3751 = vrot.lane.b32.xlu0 %v3722, 1
        %v3752 = vpop.permute.xlu0 %3751
        %3753 = vrot.lane.b32.xlu0 %v1689, 1
        %v3754 = vpop.permute.xlu0 %3753
        %3755 = vrot.lane.b32.xlu0 %v3724, 1
        %v3756 = vpop.permute.xlu0 %3755
        %3757 = vrot.lane.b32.xlu0 %v1688, 1
        %v3758 = vpop.permute.xlu0 %3757
        %3759 = vrot.lane.b32.xlu0 %v3723, 1
        %v3760 = vpop.permute.xlu0 %3759
        %v3761 = vsel %vm1939, %v3726, %v3728
        %v3762 = vsel %vm1939, %v3730, %v3732
        %v3763 = vsel %vm1939, %v3734, %v3736
        %v3764 = vsel %vm1939, %v3738, %v3740
        %v3765 = vsel %vm1939, %v3742, %v3744
        %v3766 = vsel %vm1939, %v3746, %v3748
        %v3767 = vsel %vm1939, %v3750, %v3752
        %v3768 = vsel %vm1939, %v3754, %v3756
        %v3769 = vsel %vm1939, %v3758, %v3760
        %v3788 = vmul.f32 %v186, %v3726
        %v3789 = vmul.f32 %v187, %v3761
        %v3790 = vmul.f32 %v188, %v3730
        %v3791 = vmul.f32 %v189, %v3762
        %v3792 = vmul.f32 %v190, %v3734
        %v3793 = vmul.f32 %v191, %v3763
        %v3794 = vmul.f32 %v192, %v3738
        %v3795 = vmul.f32 %v193, %v3764
        %v3796 = vmul.f32 %v194, %v3742
        %v3797 = vmul.f32 %v195, %v3765
        %v3798 = vmul.f32 %v196, %v3746
        %v3799 = vmul.f32 %v197, %v3766
        %v3800 = vmul.f32 %v198, %v3750
        %v3801 = vmul.f32 %v199, %v3767
        %v3802 = vmul.f32 %v200, %v3754
        %v3803 = vmul.f32 %v201, %v3768
        %v3804 = vmul.f32 %v202, %v3758
        %v3805 = vmul.f32 %v203, %v3769
        %v3806 = vsel %vm388, %v3788, 0.0
        %v3807 = vsel %vm388, %v3794, 0.0
        %v3808 = vadd.f32 %v3806, %v3807
        %v3809 = vsel %vm388, %v3800, 0.0
        %v3810 = vadd.f32 %v3808, %v3809
        %v3811 = vsel %vm396, %v3789, 0.0
        %v3812 = vsel %vm396, %v3795, 0.0
        %v3813 = vadd.f32 %v3811, %v3812
        %v3814 = vsel %vm396, %v3801, 0.0
        %v3815 = vadd.f32 %v3813, %v3814
        %v3816 = vsel %vm404, %v3790, 0.0
        %v3817 = vsel %vm404, %v3796, 0.0
        %v3818 = vadd.f32 %v3816, %v3817
        %v3819 = vsel %vm404, %v3802, 0.0
        %v3820 = vadd.f32 %v3818, %v3819
        %v3821 = vsel %vm412, %v3791, 0.0
        %v3822 = vsel %vm412, %v3797, 0.0
        %v3823 = vadd.f32 %v3821, %v3822
        %v3824 = vsel %vm412, %v3803, 0.0
        %v3825 = vadd.f32 %v3823, %v3824
        %v3826 = vsel %vm420, %v3792, 0.0
        %v3827 = vsel %vm420, %v3798, 0.0
        %v3828 = vadd.f32 %v3826, %v3827
        %v3829 = vsel %vm420, %v3804, 0.0
        %v3830 = vadd.f32 %v3828, %v3829
        %v3831 = vsel %vm428, %v3793, 0.0
        %v3832 = vsel %vm428, %v3799, 0.0
        %v3833 = vadd.f32 %v3831, %v3832
        %v3834 = vsel %vm428, %v3805, 0.0
        %v3835 = vadd.f32 %v3833, %v3834
        %v3836 = vrot.slane %v238, 2
        %v3837 = vrot.slane %v248, 2
        %v3838 = vsel %vm1552, %v3836, %v3837
        %v3839 = vrot.slane %v264, 2
        %v3840 = vsel %vm1552, %v3837, %v3839
        %3841 = vrot.lane.b32.xlu0 %v1767, 1
        %v3842 = vpop.permute.xlu0 %3841
        %3843 = vrot.lane.b32.xlu0 %v3838, 1
        %v3844 = vpop.permute.xlu0 %3843
        %3845 = vrot.lane.b32.xlu0 %v1769, 1
        %v3846 = vpop.permute.xlu0 %3845
        %3847 = vrot.lane.b32.xlu0 %v3840, 1
        %v3848 = vpop.permute.xlu0 %3847
        %3849 = vrot.lane.b32.xlu0 %v1768, 1
        %v3850 = vpop.permute.xlu0 %3849
        %3851 = vrot.lane.b32.xlu0 %v3839, 1
        %v3852 = vpop.permute.xlu0 %3851
        %v3853 = vsel %vm1939, %v3842, %v3844
        %v3854 = vsel %vm1939, %v3846, %v3848
        %v3855 = vsel %vm1939, %v3850, %v3852
        %v3862 = vadd.f32 %v230, %v3842
        %v3863 = vadd.f32 %v238, %v3853
        %v3864 = vadd.f32 %v241, %v3846
        %v3865 = vadd.f32 %v248, %v3854
        %v3866 = vadd.f32 %v256, %v3850
        %v3867 = vadd.f32 %v264, %v3855
        %v3868 = vmul.f32 %v3674, 2.0
        %v3869 = vmul.f32 %v3681, 2.0
        %v3870 = vmul.f32 %v3688, 2.0
        %v3871 = vmul.f32 %v3695, 2.0
        %v3872 = vmul.f32 %v3702, 2.0
        %v3873 = vmul.f32 %v3709, 2.0
        %v3874 = vsub.f32 %v3862, %v3868
        %v3875 = vsub.f32 %v3863, %v3869
        %v3876 = vsub.f32 %v3864, %v3870
        %v3877 = vsub.f32 %v3865, %v3871
        %v3878 = vsub.f32 %v3866, %v3872
        %v3879 = vsub.f32 %v3867, %v3873
        %v3880 = vrot.slane %v289, 2
        %v3881 = vrot.slane %v296, 2
        %v3882 = vsel %vm1552, %v3880, %v3881
        %v3883 = vrot.slane %v306, 2
        %v3884 = vsel %vm1552, %v3881, %v3883
        %3885 = vrot.lane.b32.xlu0 %v1799, 1
        %v3886 = vpop.permute.xlu0 %3885
        %3887 = vrot.lane.b32.xlu0 %v3882, 1
        %v3888 = vpop.permute.xlu0 %3887
        %3889 = vrot.lane.b32.xlu0 %v1801, 1
        %v3890 = vpop.permute.xlu0 %3889
        %3891 = vrot.lane.b32.xlu0 %v3884, 1
        %v3892 = vpop.permute.xlu0 %3891
        %3893 = vrot.lane.b32.xlu0 %v1800, 1
        %v3894 = vpop.permute.xlu0 %3893
        %3895 = vrot.lane.b32.xlu0 %v3883, 1
        %v3896 = vpop.permute.xlu0 %3895
        %v3897 = vsel %vm1939, %v3886, %v3888
        %v3898 = vsel %vm1939, %v3890, %v3892
        %v3899 = vsel %vm1939, %v3894, %v3896
        %v3906 = vadd.f32 %v284, %v3886
        %v3907 = vadd.f32 %v289, %v3897
        %v3908 = vadd.f32 %v291, %v3890
        %v3909 = vadd.f32 %v296, %v3898
        %v3910 = vadd.f32 %v301, %v3894
        %v3911 = vadd.f32 %v306, %v3899
        %v3912 = vmul.f32 %v3810, 2.0
        %v3913 = vmul.f32 %v3815, 2.0
        %v3914 = vmul.f32 %v3820, 2.0
        %v3915 = vmul.f32 %v3825, 2.0
        %v3916 = vmul.f32 %v3830, 2.0
        %v3917 = vmul.f32 %v3835, 2.0
        %v3918 = vsub.f32 %v3906, %v3912
        %v3919 = vsub.f32 %v3907, %v3913
        %v3920 = vsub.f32 %v3908, %v3914
        %v3921 = vsub.f32 %v3909, %v3915
        %v3922 = vsub.f32 %v3910, %v3916
        %v3923 = vsub.f32 %v3911, %v3917
        %v3924 = vsub.f32 0.0, %v3918
        %v3925 = vsub.f32 0.0, %v3919
        %v3926 = vsub.f32 0.0, %v3920
        %v3927 = vsub.f32 0.0, %v3921
        %v3928 = vsub.f32 0.0, %v3922
        %v3929 = vsub.f32 0.0, %v3923
        %v3930 = vmul.f32 %v3924, 50.0
        %v3931 = vmul.f32 %v3925, 50.0
        %v3932 = vmul.f32 %v3926, 50.0
        %v3933 = vmul.f32 %v3927, 50.0
        %v3934 = vmul.f32 %v3928, 50.0
        %v3935 = vmul.f32 %v3929, 50.0
        %v3936 = vsub.f32 %v3930, 0.1
        %v3937 = vsub.f32 %v3931, 0.1
        %v3938 = vsub.f32 %v3932, 0.1
        %v3939 = vsub.f32 %v3933, 0.1
        %v3940 = vsub.f32 %v3934, 0.1
        %v3941 = vsub.f32 %v3935, 0.1
        %v3942 = vmul.f32 %v3936, 1.442695
        %v3943 = vpow.pop %v3942
        %v3944 = vmul.f32 %v3937, 1.442695
        %v3945 = vpow.pop %v3944
        %v3946 = vmul.f32 %v3938, 1.442695
        %v3947 = vpow.pop %v3946
        %v3948 = vmul.f32 %v3939, 1.442695
        %v3949 = vpow.pop %v3948
        %v3950 = vmul.f32 %v3940, 1.442695
        %v3951 = vpow.pop %v3950
        %v3952 = vmul.f32 %v3941, 1.442695
        %v3953 = vpow.pop %v3952
        %v3954 = vmul.f32 %v3943, %v3874
        %v3955 = vmul.f32 %v3945, %v3875
        %v3956 = vmul.f32 %v3947, %v3876
        %v3957 = vmul.f32 %v3949, %v3877
        %v3958 = vmul.f32 %v3951, %v3878
        %v3959 = vmul.f32 %v3953, %v3879
        %v3960 = vadd.f32 %v3534, %v3954
        %v3961 = vadd.f32 %v3535, %v3955
        %v3962 = vadd.f32 %v3536, %v3956
        %v3963 = vadd.f32 %v3537, %v3957
        %v3964 = vadd.f32 %v3538, %v3958
        %v3965 = vadd.f32 %v3539, %v3959
        %v3990 = vmul.f32 %v162, %v316
        %v3991 = vmul.f32 %v163, %v1879
        %v3992 = vmul.f32 %v164, %v318
        %v3993 = vmul.f32 %v165, %v1881
        %v3994 = vmul.f32 %v166, %v317
        %v3995 = vmul.f32 %v167, %v1880
        %v3996 = vmul.f32 %v168, %v319
        %v3997 = vmul.f32 %v169, %v1882
        %v3998 = vmul.f32 %v170, %v321
        %v3999 = vmul.f32 %v171, %v1884
        %v4000 = vmul.f32 %v172, %v320
        %v4001 = vmul.f32 %v173, %v1883
        %v4002 = vmul.f32 %v174, %v322
        %v4003 = vmul.f32 %v175, %v1885
        %v4004 = vmul.f32 %v176, %v324
        %v4005 = vmul.f32 %v177, %v1887
        %v4006 = vmul.f32 %v178, %v323
        %v4007 = vmul.f32 %v179, %v1886
        %v4008 = vmul.f32 %v180, %v325
        %v4009 = vmul.f32 %v181, %v1888
        %v4010 = vmul.f32 %v182, %v327
        %v4011 = vmul.f32 %v183, %v1890
        %v4012 = vmul.f32 %v184, %v326
        %v4013 = vmul.f32 %v185, %v1889
        %v4014 = vsel %vm388, %v3990, 0.0
        %v4015 = vsel %vm388, %v3996, 0.0
        %v4016 = vadd.f32 %v4014, %v4015
        %v4017 = vsel %vm388, %v4002, 0.0
        %v4018 = vadd.f32 %v4016, %v4017
        %v4019 = vsel %vm388, %v4008, 0.0
        %v4020 = vadd.f32 %v4018, %v4019
        %v4021 = vsel %vm396, %v3991, 0.0
        %v4022 = vsel %vm396, %v3997, 0.0
        %v4023 = vadd.f32 %v4021, %v4022
        %v4024 = vsel %vm396, %v4003, 0.0
        %v4025 = vadd.f32 %v4023, %v4024
        %v4026 = vsel %vm396, %v4009, 0.0
        %v4027 = vadd.f32 %v4025, %v4026
        %v4028 = vsel %vm404, %v3992, 0.0
        %v4029 = vsel %vm404, %v3998, 0.0
        %v4030 = vadd.f32 %v4028, %v4029
        %v4031 = vsel %vm404, %v4004, 0.0
        %v4032 = vadd.f32 %v4030, %v4031
        %v4033 = vsel %vm404, %v4010, 0.0
        %v4034 = vadd.f32 %v4032, %v4033
        %v4035 = vsel %vm412, %v3993, 0.0
        %v4036 = vsel %vm412, %v3999, 0.0
        %v4037 = vadd.f32 %v4035, %v4036
        %v4038 = vsel %vm412, %v4005, 0.0
        %v4039 = vadd.f32 %v4037, %v4038
        %v4040 = vsel %vm412, %v4011, 0.0
        %v4041 = vadd.f32 %v4039, %v4040
        %v4042 = vsel %vm420, %v3994, 0.0
        %v4043 = vsel %vm420, %v4000, 0.0
        %v4044 = vadd.f32 %v4042, %v4043
        %v4045 = vsel %vm420, %v4006, 0.0
        %v4046 = vadd.f32 %v4044, %v4045
        %v4047 = vsel %vm420, %v4012, 0.0
        %v4048 = vadd.f32 %v4046, %v4047
        %v4049 = vsel %vm428, %v3995, 0.0
        %v4050 = vsel %vm428, %v4001, 0.0
        %v4051 = vadd.f32 %v4049, %v4050
        %v4052 = vsel %vm428, %v4007, 0.0
        %v4053 = vadd.f32 %v4051, %v4052
        %v4054 = vsel %vm428, %v4013, 0.0
        %v4055 = vadd.f32 %v4053, %v4054
        %v4074 = vmul.f32 %v186, %v442
        %v4075 = vmul.f32 %v187, %v2048
        %v4076 = vmul.f32 %v188, %v444
        %v4077 = vmul.f32 %v189, %v2050
        %v4078 = vmul.f32 %v190, %v443
        %v4079 = vmul.f32 %v191, %v2049
        %v4080 = vmul.f32 %v192, %v445
        %v4081 = vmul.f32 %v193, %v2051
        %v4082 = vmul.f32 %v194, %v447
        %v4083 = vmul.f32 %v195, %v2053
        %v4084 = vmul.f32 %v196, %v446
        %v4085 = vmul.f32 %v197, %v2052
        %v4086 = vmul.f32 %v198, %v448
        %v4087 = vmul.f32 %v199, %v2054
        %v4088 = vmul.f32 %v200, %v450
        %v4089 = vmul.f32 %v201, %v2056
        %v4090 = vmul.f32 %v202, %v449
        %v4091 = vmul.f32 %v203, %v2055
        %v4092 = vsel %vm388, %v4074, 0.0
        %v4093 = vsel %vm388, %v4080, 0.0
        %v4094 = vadd.f32 %v4092, %v4093
        %v4095 = vsel %vm388, %v4086, 0.0
        %v4096 = vadd.f32 %v4094, %v4095
        %v4097 = vsel %vm396, %v4075, 0.0
        %v4098 = vsel %vm396, %v4081, 0.0
        %v4099 = vadd.f32 %v4097, %v4098
        %v4100 = vsel %vm396, %v4087, 0.0
        %v4101 = vadd.f32 %v4099, %v4100
        %v4102 = vsel %vm404, %v4076, 0.0
        %v4103 = vsel %vm404, %v4082, 0.0
        %v4104 = vadd.f32 %v4102, %v4103
        %v4105 = vsel %vm404, %v4088, 0.0
        %v4106 = vadd.f32 %v4104, %v4105
        %v4107 = vsel %vm412, %v4077, 0.0
        %v4108 = vsel %vm412, %v4083, 0.0
        %v4109 = vadd.f32 %v4107, %v4108
        %v4110 = vsel %vm412, %v4089, 0.0
        %v4111 = vadd.f32 %v4109, %v4110
        %v4112 = vsel %vm420, %v4078, 0.0
        %v4113 = vsel %vm420, %v4084, 0.0
        %v4114 = vadd.f32 %v4112, %v4113
        %v4115 = vsel %vm420, %v4090, 0.0
        %v4116 = vadd.f32 %v4114, %v4115
        %v4117 = vsel %vm428, %v4079, 0.0
        %v4118 = vsel %vm428, %v4085, 0.0
        %v4119 = vadd.f32 %v4117, %v4118
        %v4120 = vsel %vm428, %v4091, 0.0
        %v4121 = vadd.f32 %v4119, %v4120
        %v4128 = vadd.f32 %v230, %v528
        %v4129 = vadd.f32 %v238, %v2170
        %v4130 = vadd.f32 %v241, %v530
        %v4131 = vadd.f32 %v248, %v2172
        %v4132 = vadd.f32 %v256, %v529
        %v4133 = vadd.f32 %v264, %v2171
        %v4134 = vmul.f32 %v4020, 2.0
        %v4135 = vmul.f32 %v4027, 2.0
        %v4136 = vmul.f32 %v4034, 2.0
        %v4137 = vmul.f32 %v4041, 2.0
        %v4138 = vmul.f32 %v4048, 2.0
        %v4139 = vmul.f32 %v4055, 2.0
        %v4140 = vsub.f32 %v4128, %v4134
        %v4141 = vsub.f32 %v4129, %v4135
        %v4142 = vsub.f32 %v4130, %v4136
        %v4143 = vsub.f32 %v4131, %v4137
        %v4144 = vsub.f32 %v4132, %v4138
        %v4145 = vsub.f32 %v4133, %v4139
        %v4152 = vadd.f32 %v284, %v560
        %v4153 = vadd.f32 %v289, %v2214
        %v4154 = vadd.f32 %v291, %v562
        %v4155 = vadd.f32 %v296, %v2216
        %v4156 = vadd.f32 %v301, %v561
        %v4157 = vadd.f32 %v306, %v2215
        %v4158 = vmul.f32 %v4096, 2.0
        %v4159 = vmul.f32 %v4101, 2.0
        %v4160 = vmul.f32 %v4106, 2.0
        %v4161 = vmul.f32 %v4111, 2.0
        %v4162 = vmul.f32 %v4116, 2.0
        %v4163 = vmul.f32 %v4121, 2.0
        %v4164 = vsub.f32 %v4152, %v4158
        %v4165 = vsub.f32 %v4153, %v4159
        %v4166 = vsub.f32 %v4154, %v4160
        %v4167 = vsub.f32 %v4155, %v4161
        %v4168 = vsub.f32 %v4156, %v4162
        %v4169 = vsub.f32 %v4157, %v4163
        %v4170 = vsub.f32 0.0, %v4164
        %v4171 = vsub.f32 0.0, %v4165
        %v4172 = vsub.f32 0.0, %v4166
        %v4173 = vsub.f32 0.0, %v4167
        %v4174 = vsub.f32 0.0, %v4168
        %v4175 = vsub.f32 0.0, %v4169
        %v4176 = vmul.f32 %v4170, 50.0
        %v4177 = vmul.f32 %v4171, 50.0
        %v4178 = vmul.f32 %v4172, 50.0
        %v4179 = vmul.f32 %v4173, 50.0
        %v4180 = vmul.f32 %v4174, 50.0
        %v4181 = vmul.f32 %v4175, 50.0
        %v4182 = vsub.f32 %v4176, 0.08
        %v4183 = vsub.f32 %v4177, 0.08
        %v4184 = vsub.f32 %v4178, 0.08
        %v4185 = vsub.f32 %v4179, 0.08
        %v4186 = vsub.f32 %v4180, 0.08
        %v4187 = vsub.f32 %v4181, 0.08
        %v4188 = vmul.f32 %v4182, 1.442695
        %v4189 = vpow.pop %v4188
        %v4190 = vmul.f32 %v4183, 1.442695
        %v4191 = vpow.pop %v4190
        %v4192 = vmul.f32 %v4184, 1.442695
        %v4193 = vpow.pop %v4192
        %v4194 = vmul.f32 %v4185, 1.442695
        %v4195 = vpow.pop %v4194
        %v4196 = vmul.f32 %v4186, 1.442695
        %v4197 = vpow.pop %v4196
        %v4198 = vmul.f32 %v4187, 1.442695
        %v4199 = vpow.pop %v4198
        %v4200 = vmul.f32 %v4189, %v4140
        %v4201 = vmul.f32 %v4191, %v4141
        %v4202 = vmul.f32 %v4193, %v4142
        %v4203 = vmul.f32 %v4195, %v4143
        %v4204 = vmul.f32 %v4197, %v4144
        %v4205 = vmul.f32 %v4199, %v4145
        %v4206 = vadd.f32 %v3960, %v4200
        %v4207 = vadd.f32 %v3961, %v4201
        %v4208 = vadd.f32 %v3962, %v4202
        %v4209 = vadd.f32 %v3963, %v4203
        %v4210 = vadd.f32 %v3964, %v4204
        %v4211 = vadd.f32 %v3965, %v4205
        %v4236 = vmul.f32 %v162, %v637
        %v4237 = vmul.f32 %v163, %v2302
        %v4238 = vmul.f32 %v164, %v639
        %v4239 = vmul.f32 %v165, %v2304
        %v4240 = vmul.f32 %v166, %v641
        %v4241 = vmul.f32 %v167, %v2306
        %v4242 = vmul.f32 %v168, %v642
        %v4243 = vmul.f32 %v169, %v2307
        %v4244 = vmul.f32 %v170, %v644
        %v4245 = vmul.f32 %v171, %v2309
        %v4246 = vmul.f32 %v172, %v646
        %v4247 = vmul.f32 %v173, %v2311
        %v4248 = vmul.f32 %v174, %v647
        %v4249 = vmul.f32 %v175, %v2312
        %v4250 = vmul.f32 %v176, %v649
        %v4251 = vmul.f32 %v177, %v2314
        %v4252 = vmul.f32 %v178, %v651
        %v4253 = vmul.f32 %v179, %v2316
        %v4254 = vmul.f32 %v180, %v652
        %v4255 = vmul.f32 %v181, %v2317
        %v4256 = vmul.f32 %v182, %v654
        %v4257 = vmul.f32 %v183, %v2319
        %v4258 = vmul.f32 %v184, %v656
        %v4259 = vmul.f32 %v185, %v2321
        %v4260 = vsel %vm388, %v4236, 0.0
        %v4261 = vsel %vm388, %v4242, 0.0
        %v4262 = vadd.f32 %v4260, %v4261
        %v4263 = vsel %vm388, %v4248, 0.0
        %v4264 = vadd.f32 %v4262, %v4263
        %v4265 = vsel %vm388, %v4254, 0.0
        %v4266 = vadd.f32 %v4264, %v4265
        %v4267 = vsel %vm396, %v4237, 0.0
        %v4268 = vsel %vm396, %v4243, 0.0
        %v4269 = vadd.f32 %v4267, %v4268
        %v4270 = vsel %vm396, %v4249, 0.0
        %v4271 = vadd.f32 %v4269, %v4270
        %v4272 = vsel %vm396, %v4255, 0.0
        %v4273 = vadd.f32 %v4271, %v4272
        %v4274 = vsel %vm404, %v4238, 0.0
        %v4275 = vsel %vm404, %v4244, 0.0
        %v4276 = vadd.f32 %v4274, %v4275
        %v4277 = vsel %vm404, %v4250, 0.0
        %v4278 = vadd.f32 %v4276, %v4277
        %v4279 = vsel %vm404, %v4256, 0.0
        %v4280 = vadd.f32 %v4278, %v4279
        %v4281 = vsel %vm412, %v4239, 0.0
        %v4282 = vsel %vm412, %v4245, 0.0
        %v4283 = vadd.f32 %v4281, %v4282
        %v4284 = vsel %vm412, %v4251, 0.0
        %v4285 = vadd.f32 %v4283, %v4284
        %v4286 = vsel %vm412, %v4257, 0.0
        %v4287 = vadd.f32 %v4285, %v4286
        %v4288 = vsel %vm420, %v4240, 0.0
        %v4289 = vsel %vm420, %v4246, 0.0
        %v4290 = vadd.f32 %v4288, %v4289
        %v4291 = vsel %vm420, %v4252, 0.0
        %v4292 = vadd.f32 %v4290, %v4291
        %v4293 = vsel %vm420, %v4258, 0.0
        %v4294 = vadd.f32 %v4292, %v4293
        %v4295 = vsel %vm428, %v4241, 0.0
        %v4296 = vsel %vm428, %v4247, 0.0
        %v4297 = vadd.f32 %v4295, %v4296
        %v4298 = vsel %vm428, %v4253, 0.0
        %v4299 = vadd.f32 %v4297, %v4298
        %v4300 = vsel %vm428, %v4259, 0.0
        %v4301 = vadd.f32 %v4299, %v4300
        %v4320 = vmul.f32 %v186, %v762
        %v4321 = vmul.f32 %v187, %v2475
        %v4322 = vmul.f32 %v188, %v764
        %v4323 = vmul.f32 %v189, %v2477
        %v4324 = vmul.f32 %v190, %v766
        %v4325 = vmul.f32 %v191, %v2479
        %v4326 = vmul.f32 %v192, %v767
        %v4327 = vmul.f32 %v193, %v2480
        %v4328 = vmul.f32 %v194, %v769
        %v4329 = vmul.f32 %v195, %v2482
        %v4330 = vmul.f32 %v196, %v771
        %v4331 = vmul.f32 %v197, %v2484
        %v4332 = vmul.f32 %v198, %v772
        %v4333 = vmul.f32 %v199, %v2485
        %v4334 = vmul.f32 %v200, %v774
        %v4335 = vmul.f32 %v201, %v2487
        %v4336 = vmul.f32 %v202, %v776
        %v4337 = vmul.f32 %v203, %v2489
        %v4338 = vsel %vm388, %v4320, 0.0
        %v4339 = vsel %vm388, %v4326, 0.0
        %v4340 = vadd.f32 %v4338, %v4339
        %v4341 = vsel %vm388, %v4332, 0.0
        %v4342 = vadd.f32 %v4340, %v4341
        %v4343 = vsel %vm396, %v4321, 0.0
        %v4344 = vsel %vm396, %v4327, 0.0
        %v4345 = vadd.f32 %v4343, %v4344
        %v4346 = vsel %vm396, %v4333, 0.0
        %v4347 = vadd.f32 %v4345, %v4346
        %v4348 = vsel %vm404, %v4322, 0.0
        %v4349 = vsel %vm404, %v4328, 0.0
        %v4350 = vadd.f32 %v4348, %v4349
        %v4351 = vsel %vm404, %v4334, 0.0
        %v4352 = vadd.f32 %v4350, %v4351
        %v4353 = vsel %vm412, %v4323, 0.0
        %v4354 = vsel %vm412, %v4329, 0.0
        %v4355 = vadd.f32 %v4353, %v4354
        %v4356 = vsel %vm412, %v4335, 0.0
        %v4357 = vadd.f32 %v4355, %v4356
        %v4358 = vsel %vm420, %v4324, 0.0
        %v4359 = vsel %vm420, %v4330, 0.0
        %v4360 = vadd.f32 %v4358, %v4359
        %v4361 = vsel %vm420, %v4336, 0.0
        %v4362 = vadd.f32 %v4360, %v4361
        %v4363 = vsel %vm428, %v4325, 0.0
        %v4364 = vsel %vm428, %v4331, 0.0
        %v4365 = vadd.f32 %v4363, %v4364
        %v4366 = vsel %vm428, %v4337, 0.0
        %v4367 = vadd.f32 %v4365, %v4366
        %v4374 = vadd.f32 %v230, %v853
        %v4375 = vadd.f32 %v238, %v2602
        %v4376 = vadd.f32 %v241, %v855
        %v4377 = vadd.f32 %v248, %v2604
        %v4378 = vadd.f32 %v256, %v857
        %v4379 = vadd.f32 %v264, %v2606
        %v4380 = vmul.f32 %v4266, 2.0
        %v4381 = vmul.f32 %v4273, 2.0
        %v4382 = vmul.f32 %v4280, 2.0
        %v4383 = vmul.f32 %v4287, 2.0
        %v4384 = vmul.f32 %v4294, 2.0
        %v4385 = vmul.f32 %v4301, 2.0
        %v4386 = vsub.f32 %v4374, %v4380
        %v4387 = vsub.f32 %v4375, %v4381
        %v4388 = vsub.f32 %v4376, %v4382
        %v4389 = vsub.f32 %v4377, %v4383
        %v4390 = vsub.f32 %v4378, %v4384
        %v4391 = vsub.f32 %v4379, %v4385
        %v4398 = vadd.f32 %v284, %v886
        %v4399 = vadd.f32 %v289, %v2647
        %v4400 = vadd.f32 %v291, %v888
        %v4401 = vadd.f32 %v296, %v2649
        %v4402 = vadd.f32 %v301, %v890
        %v4403 = vadd.f32 %v306, %v2651
        %v4404 = vmul.f32 %v4342, 2.0
        %v4405 = vmul.f32 %v4347, 2.0
        %v4406 = vmul.f32 %v4352, 2.0
        %v4407 = vmul.f32 %v4357, 2.0
        %v4408 = vmul.f32 %v4362, 2.0
        %v4409 = vmul.f32 %v4367, 2.0
        %v4410 = vsub.f32 %v4398, %v4404
        %v4411 = vsub.f32 %v4399, %v4405
        %v4412 = vsub.f32 %v4400, %v4406
        %v4413 = vsub.f32 %v4401, %v4407
        %v4414 = vsub.f32 %v4402, %v4408
        %v4415 = vsub.f32 %v4403, %v4409
        %v4416 = vsub.f32 0.0, %v4410
        %v4417 = vsub.f32 0.0, %v4411
        %v4418 = vsub.f32 0.0, %v4412
        %v4419 = vsub.f32 0.0, %v4413
        %v4420 = vsub.f32 0.0, %v4414
        %v4421 = vsub.f32 0.0, %v4415
        %v4422 = vmul.f32 %v4416, 50.0
        %v4423 = vmul.f32 %v4417, 50.0
        %v4424 = vmul.f32 %v4418, 50.0
        %v4425 = vmul.f32 %v4419, 50.0
        %v4426 = vmul.f32 %v4420, 50.0
        %v4427 = vmul.f32 %v4421, 50.0
        %v4428 = vsub.f32 %v4422, 0.02
        %v4429 = vsub.f32 %v4423, 0.02
        %v4430 = vsub.f32 %v4424, 0.02
        %v4431 = vsub.f32 %v4425, 0.02
        %v4432 = vsub.f32 %v4426, 0.02
        %v4433 = vsub.f32 %v4427, 0.02
        %v4434 = vmul.f32 %v4428, 1.442695
        %v4435 = vpow.pop %v4434
        %v4436 = vmul.f32 %v4429, 1.442695
        %v4437 = vpow.pop %v4436
        %v4438 = vmul.f32 %v4430, 1.442695
        %v4439 = vpow.pop %v4438
        %v4440 = vmul.f32 %v4431, 1.442695
        %v4441 = vpow.pop %v4440
        %v4442 = vmul.f32 %v4432, 1.442695
        %v4443 = vpow.pop %v4442
        %v4444 = vmul.f32 %v4433, 1.442695
        %v4445 = vpow.pop %v4444
        %v4446 = vmul.f32 %v4435, %v4386
        %v4447 = vmul.f32 %v4437, %v4387
        %v4448 = vmul.f32 %v4439, %v4388
        %v4449 = vmul.f32 %v4441, %v4389
        %v4450 = vmul.f32 %v4443, %v4390
        %v4451 = vmul.f32 %v4445, %v4391
        %v4452 = vadd.f32 %v4206, %v4446
        %v4453 = vadd.f32 %v4207, %v4447
        %v4454 = vadd.f32 %v4208, %v4448
        %v4455 = vadd.f32 %v4209, %v4449
        %v4456 = vadd.f32 %v4210, %v4450
        %v4457 = vadd.f32 %v4211, %v4451
        %v4482 = vmul.f32 %v162, %v1236
        %v4483 = vmul.f32 %v163, %v3116
        %v4484 = vmul.f32 %v164, %v1238
        %v4485 = vmul.f32 %v165, %v3118
        %v4486 = vmul.f32 %v166, %v1237
        %v4487 = vmul.f32 %v167, %v3117
        %v4488 = vmul.f32 %v168, %v1241
        %v4489 = vmul.f32 %v169, %v3121
        %v4490 = vmul.f32 %v170, %v1243
        %v4491 = vmul.f32 %v171, %v3123
        %v4492 = vmul.f32 %v172, %v1242
        %v4493 = vmul.f32 %v173, %v3122
        %v4494 = vmul.f32 %v174, %v1246
        %v4495 = vmul.f32 %v175, %v3126
        %v4496 = vmul.f32 %v176, %v1248
        %v4497 = vmul.f32 %v177, %v3128
        %v4498 = vmul.f32 %v178, %v1247
        %v4499 = vmul.f32 %v179, %v3127
        %v4500 = vmul.f32 %v180, %v1251
        %v4501 = vmul.f32 %v181, %v3131
        %v4502 = vmul.f32 %v182, %v1253
        %v4503 = vmul.f32 %v183, %v3133
        %v4504 = vmul.f32 %v184, %v1252
        %v4505 = vmul.f32 %v185, %v3132
        %v4506 = vsel %vm388, %v4482, 0.0
        %v4507 = vsel %vm388, %v4488, 0.0
        %v4508 = vadd.f32 %v4506, %v4507
        %v4509 = vsel %vm388, %v4494, 0.0
        %v4510 = vadd.f32 %v4508, %v4509
        %v4511 = vsel %vm388, %v4500, 0.0
        %v4512 = vadd.f32 %v4510, %v4511
        %v4513 = vsel %vm396, %v4483, 0.0
        %v4514 = vsel %vm396, %v4489, 0.0
        %v4515 = vadd.f32 %v4513, %v4514
        %v4516 = vsel %vm396, %v4495, 0.0
        %v4517 = vadd.f32 %v4515, %v4516
        %v4518 = vsel %vm396, %v4501, 0.0
        %v4519 = vadd.f32 %v4517, %v4518
        %v4520 = vsel %vm404, %v4484, 0.0
        %v4521 = vsel %vm404, %v4490, 0.0
        %v4522 = vadd.f32 %v4520, %v4521
        %v4523 = vsel %vm404, %v4496, 0.0
        %v4524 = vadd.f32 %v4522, %v4523
        %v4525 = vsel %vm404, %v4502, 0.0
        %v4526 = vadd.f32 %v4524, %v4525
        %v4527 = vsel %vm412, %v4485, 0.0
        %v4528 = vsel %vm412, %v4491, 0.0
        %v4529 = vadd.f32 %v4527, %v4528
        %v4530 = vsel %vm412, %v4497, 0.0
        %v4531 = vadd.f32 %v4529, %v4530
        %v4532 = vsel %vm412, %v4503, 0.0
        %v4533 = vadd.f32 %v4531, %v4532
        %v4534 = vsel %vm420, %v4486, 0.0
        %v4535 = vsel %vm420, %v4492, 0.0
        %v4536 = vadd.f32 %v4534, %v4535
        %v4537 = vsel %vm420, %v4498, 0.0
        %v4538 = vadd.f32 %v4536, %v4537
        %v4539 = vsel %vm420, %v4504, 0.0
        %v4540 = vadd.f32 %v4538, %v4539
        %v4541 = vsel %vm428, %v4487, 0.0
        %v4542 = vsel %vm428, %v4493, 0.0
        %v4543 = vadd.f32 %v4541, %v4542
        %v4544 = vsel %vm428, %v4499, 0.0
        %v4545 = vadd.f32 %v4543, %v4544
        %v4546 = vsel %vm428, %v4505, 0.0
        %v4547 = vadd.f32 %v4545, %v4546
        %v4566 = vmul.f32 %v186, %v1358
        %v4567 = vmul.f32 %v187, %v3286
        %v4568 = vmul.f32 %v188, %v1360
        %v4569 = vmul.f32 %v189, %v3288
        %v4570 = vmul.f32 %v190, %v1359
        %v4571 = vmul.f32 %v191, %v3287
        %v4572 = vmul.f32 %v192, %v1363
        %v4573 = vmul.f32 %v193, %v3291
        %v4574 = vmul.f32 %v194, %v1365
        %v4575 = vmul.f32 %v195, %v3293
        %v4576 = vmul.f32 %v196, %v1364
        %v4577 = vmul.f32 %v197, %v3292
        %v4578 = vmul.f32 %v198, %v1368
        %v4579 = vmul.f32 %v199, %v3296
        %v4580 = vmul.f32 %v200, %v1370
        %v4581 = vmul.f32 %v201, %v3298
        %v4582 = vmul.f32 %v202, %v1369
        %v4583 = vmul.f32 %v203, %v3297
        %v4584 = vsel %vm388, %v4566, 0.0
        %v4585 = vsel %vm388, %v4572, 0.0
        %v4586 = vadd.f32 %v4584, %v4585
        %v4587 = vsel %vm388, %v4578, 0.0
        %v4588 = vadd.f32 %v4586, %v4587
        %v4589 = vsel %vm396, %v4567, 0.0
        %v4590 = vsel %vm396, %v4573, 0.0
        %v4591 = vadd.f32 %v4589, %v4590
        %v4592 = vsel %vm396, %v4579, 0.0
        %v4593 = vadd.f32 %v4591, %v4592
        %v4594 = vsel %vm404, %v4568, 0.0
        %v4595 = vsel %vm404, %v4574, 0.0
        %v4596 = vadd.f32 %v4594, %v4595
        %v4597 = vsel %vm404, %v4580, 0.0
        %v4598 = vadd.f32 %v4596, %v4597
        %v4599 = vsel %vm412, %v4569, 0.0
        %v4600 = vsel %vm412, %v4575, 0.0
        %v4601 = vadd.f32 %v4599, %v4600
        %v4602 = vsel %vm412, %v4581, 0.0
        %v4603 = vadd.f32 %v4601, %v4602
        %v4604 = vsel %vm420, %v4570, 0.0
        %v4605 = vsel %vm420, %v4576, 0.0
        %v4606 = vadd.f32 %v4604, %v4605
        %v4607 = vsel %vm420, %v4582, 0.0
        %v4608 = vadd.f32 %v4606, %v4607
        %v4609 = vsel %vm428, %v4571, 0.0
        %v4610 = vsel %vm428, %v4577, 0.0
        %v4611 = vadd.f32 %v4609, %v4610
        %v4612 = vsel %vm428, %v4583, 0.0
        %v4613 = vadd.f32 %v4611, %v4612
        %v4620 = vadd.f32 %v230, %v1448
        %v4621 = vadd.f32 %v238, %v3412
        %v4622 = vadd.f32 %v241, %v1450
        %v4623 = vadd.f32 %v248, %v3414
        %v4624 = vadd.f32 %v256, %v1449
        %v4625 = vadd.f32 %v264, %v3413
        %v4626 = vmul.f32 %v4512, 2.0
        %v4627 = vmul.f32 %v4519, 2.0
        %v4628 = vmul.f32 %v4526, 2.0
        %v4629 = vmul.f32 %v4533, 2.0
        %v4630 = vmul.f32 %v4540, 2.0
        %v4631 = vmul.f32 %v4547, 2.0
        %v4632 = vsub.f32 %v4620, %v4626
        %v4633 = vsub.f32 %v4621, %v4627
        %v4634 = vsub.f32 %v4622, %v4628
        %v4635 = vsub.f32 %v4623, %v4629
        %v4636 = vsub.f32 %v4624, %v4630
        %v4637 = vsub.f32 %v4625, %v4631
        %v4644 = vadd.f32 %v284, %v1480
        %v4645 = vadd.f32 %v289, %v3456
        %v4646 = vadd.f32 %v291, %v1482
        %v4647 = vadd.f32 %v296, %v3458
        %v4648 = vadd.f32 %v301, %v1481
        %v4649 = vadd.f32 %v306, %v3457
        %v4650 = vmul.f32 %v4588, 2.0
        %v4651 = vmul.f32 %v4593, 2.0
        %v4652 = vmul.f32 %v4598, 2.0
        %v4653 = vmul.f32 %v4603, 2.0
        %v4654 = vmul.f32 %v4608, 2.0
        %v4655 = vmul.f32 %v4613, 2.0
        %v4656 = vsub.f32 %v4644, %v4650
        %v4657 = vsub.f32 %v4645, %v4651
        %v4658 = vsub.f32 %v4646, %v4652
        %v4659 = vsub.f32 %v4647, %v4653
        %v4660 = vsub.f32 %v4648, %v4654
        %v4661 = vsub.f32 %v4649, %v4655
        %v4662 = vsub.f32 0.0, %v4656
        %v4663 = vsub.f32 0.0, %v4657
        %v4664 = vsub.f32 0.0, %v4658
        %v4665 = vsub.f32 0.0, %v4659
        %v4666 = vsub.f32 0.0, %v4660
        %v4667 = vsub.f32 0.0, %v4661
        %v4668 = vmul.f32 %v4662, 50.0
        %v4669 = vmul.f32 %v4663, 50.0
        %v4670 = vmul.f32 %v4664, 50.0
        %v4671 = vmul.f32 %v4665, 50.0
        %v4672 = vmul.f32 %v4666, 50.0
        %v4673 = vmul.f32 %v4667, 50.0
        %v4674 = vsub.f32 %v4668, 0.02
        %v4675 = vsub.f32 %v4669, 0.02
        %v4676 = vsub.f32 %v4670, 0.02
        %v4677 = vsub.f32 %v4671, 0.02
        %v4678 = vsub.f32 %v4672, 0.02
        %v4679 = vsub.f32 %v4673, 0.02
        %v4680 = vmul.f32 %v4674, 1.442695
        %v4681 = vpow.pop %v4680
        %v4682 = vmul.f32 %v4675, 1.442695
        %v4683 = vpow.pop %v4682
        %v4684 = vmul.f32 %v4676, 1.442695
        %v4685 = vpow.pop %v4684
        %v4686 = vmul.f32 %v4677, 1.442695
        %v4687 = vpow.pop %v4686
        %v4688 = vmul.f32 %v4678, 1.442695
        %v4689 = vpow.pop %v4688
        %v4690 = vmul.f32 %v4679, 1.442695
        %v4691 = vpow.pop %v4690
        %v4692 = vmul.f32 %v4681, %v4632
        %v4693 = vmul.f32 %v4683, %v4633
        %v4694 = vmul.f32 %v4685, %v4634
        %v4695 = vmul.f32 %v4687, %v4635
        %v4696 = vmul.f32 %v4689, %v4636
        %v4697 = vmul.f32 %v4691, %v4637
        %v4698 = vadd.f32 %v4452, %v4692
        %v4699 = vadd.f32 %v4453, %v4693
        %v4700 = vadd.f32 %v4454, %v4694
        %v4701 = vadd.f32 %v4455, %v4695
        %v4702 = vadd.f32 %v4456, %v4696
        %v4703 = vadd.f32 %v4457, %v4697
        %v4728 = vmul.f32 %v162, %v1555
        %v4729 = vmul.f32 %v163, %v3542
        %v4730 = vmul.f32 %v164, %v1557
        %v4731 = vmul.f32 %v165, %v3544
        %v4732 = vmul.f32 %v166, %v1556
        %v4733 = vmul.f32 %v167, %v3543
        %v4734 = vmul.f32 %v168, %v1560
        %v4735 = vmul.f32 %v169, %v3547
        %v4736 = vmul.f32 %v170, %v1562
        %v4737 = vmul.f32 %v171, %v3549
        %v4738 = vmul.f32 %v172, %v1561
        %v4739 = vmul.f32 %v173, %v3548
        %v4740 = vmul.f32 %v174, %v1565
        %v4741 = vmul.f32 %v175, %v3552
        %v4742 = vmul.f32 %v176, %v1567
        %v4743 = vmul.f32 %v177, %v3554
        %v4744 = vmul.f32 %v178, %v1566
        %v4745 = vmul.f32 %v179, %v3553
        %v4746 = vmul.f32 %v180, %v1570
        %v4747 = vmul.f32 %v181, %v3557
        %v4748 = vmul.f32 %v182, %v1572
        %v4749 = vmul.f32 %v183, %v3559
        %v4750 = vmul.f32 %v184, %v1571
        %v4751 = vmul.f32 %v185, %v3558
        %v4752 = vsel %vm388, %v4728, 0.0
        %v4753 = vsel %vm388, %v4734, 0.0
        %v4754 = vadd.f32 %v4752, %v4753
        %v4755 = vsel %vm388, %v4740, 0.0
        %v4756 = vadd.f32 %v4754, %v4755
        %v4757 = vsel %vm388, %v4746, 0.0
        %v4758 = vadd.f32 %v4756, %v4757
        %v4759 = vsel %vm396, %v4729, 0.0
        %v4760 = vsel %vm396, %v4735, 0.0
        %v4761 = vadd.f32 %v4759, %v4760
        %v4762 = vsel %vm396, %v4741, 0.0
        %v4763 = vadd.f32 %v4761, %v4762
        %v4764 = vsel %vm396, %v4747, 0.0
        %v4765 = vadd.f32 %v4763, %v4764
        %v4766 = vsel %vm404, %v4730, 0.0
        %v4767 = vsel %vm404, %v4736, 0.0
        %v4768 = vadd.f32 %v4766, %v4767
        %v4769 = vsel %vm404, %v4742, 0.0
        %v4770 = vadd.f32 %v4768, %v4769
        %v4771 = vsel %vm404, %v4748, 0.0
        %v4772 = vadd.f32 %v4770, %v4771
        %v4773 = vsel %vm412, %v4731, 0.0
        %v4774 = vsel %vm412, %v4737, 0.0
        %v4775 = vadd.f32 %v4773, %v4774
        %v4776 = vsel %vm412, %v4743, 0.0
        %v4777 = vadd.f32 %v4775, %v4776
        %v4778 = vsel %vm412, %v4749, 0.0
        %v4779 = vadd.f32 %v4777, %v4778
        %v4780 = vsel %vm420, %v4732, 0.0
        %v4781 = vsel %vm420, %v4738, 0.0
        %v4782 = vadd.f32 %v4780, %v4781
        %v4783 = vsel %vm420, %v4744, 0.0
        %v4784 = vadd.f32 %v4782, %v4783
        %v4785 = vsel %vm420, %v4750, 0.0
        %v4786 = vadd.f32 %v4784, %v4785
        %v4787 = vsel %vm428, %v4733, 0.0
        %v4788 = vsel %vm428, %v4739, 0.0
        %v4789 = vadd.f32 %v4787, %v4788
        %v4790 = vsel %vm428, %v4745, 0.0
        %v4791 = vadd.f32 %v4789, %v4790
        %v4792 = vsel %vm428, %v4751, 0.0
        %v4793 = vadd.f32 %v4791, %v4792
        %v4812 = vmul.f32 %v186, %v1677
        %v4813 = vmul.f32 %v187, %v3712
        %v4814 = vmul.f32 %v188, %v1679
        %v4815 = vmul.f32 %v189, %v3714
        %v4816 = vmul.f32 %v190, %v1678
        %v4817 = vmul.f32 %v191, %v3713
        %v4818 = vmul.f32 %v192, %v1682
        %v4819 = vmul.f32 %v193, %v3717
        %v4820 = vmul.f32 %v194, %v1684
        %v4821 = vmul.f32 %v195, %v3719
        %v4822 = vmul.f32 %v196, %v1683
        %v4823 = vmul.f32 %v197, %v3718
        %v4824 = vmul.f32 %v198, %v1687
        %v4825 = vmul.f32 %v199, %v3722
        %v4826 = vmul.f32 %v200, %v1689
        %v4827 = vmul.f32 %v201, %v3724
        %v4828 = vmul.f32 %v202, %v1688
        %v4829 = vmul.f32 %v203, %v3723
        %v4830 = vsel %vm388, %v4812, 0.0
        %v4831 = vsel %vm388, %v4818, 0.0
        %v4832 = vadd.f32 %v4830, %v4831
        %v4833 = vsel %vm388, %v4824, 0.0
        %v4834 = vadd.f32 %v4832, %v4833
        %v4835 = vsel %vm396, %v4813, 0.0
        %v4836 = vsel %vm396, %v4819, 0.0
        %v4837 = vadd.f32 %v4835, %v4836
        %v4838 = vsel %vm396, %v4825, 0.0
        %v4839 = vadd.f32 %v4837, %v4838
        %v4840 = vsel %vm404, %v4814, 0.0
        %v4841 = vsel %vm404, %v4820, 0.0
        %v4842 = vadd.f32 %v4840, %v4841
        %v4843 = vsel %vm404, %v4826, 0.0
        %v4844 = vadd.f32 %v4842, %v4843
        %v4845 = vsel %vm412, %v4815, 0.0
        %v4846 = vsel %vm412, %v4821, 0.0
        %v4847 = vadd.f32 %v4845, %v4846
        %v4848 = vsel %vm412, %v4827, 0.0
        %v4849 = vadd.f32 %v4847, %v4848
        %v4850 = vsel %vm420, %v4816, 0.0
        %v4851 = vsel %vm420, %v4822, 0.0
        %v4852 = vadd.f32 %v4850, %v4851
        %v4853 = vsel %vm420, %v4828, 0.0
        %v4854 = vadd.f32 %v4852, %v4853
        %v4855 = vsel %vm428, %v4817, 0.0
        %v4856 = vsel %vm428, %v4823, 0.0
        %v4857 = vadd.f32 %v4855, %v4856
        %v4858 = vsel %vm428, %v4829, 0.0
        %v4859 = vadd.f32 %v4857, %v4858
        %v4866 = vadd.f32 %v230, %v1767
        %v4867 = vadd.f32 %v238, %v3838
        %v4868 = vadd.f32 %v241, %v1769
        %v4869 = vadd.f32 %v248, %v3840
        %v4870 = vadd.f32 %v256, %v1768
        %v4871 = vadd.f32 %v264, %v3839
        %v4872 = vmul.f32 %v4758, 2.0
        %v4873 = vmul.f32 %v4765, 2.0
        %v4874 = vmul.f32 %v4772, 2.0
        %v4875 = vmul.f32 %v4779, 2.0
        %v4876 = vmul.f32 %v4786, 2.0
        %v4877 = vmul.f32 %v4793, 2.0
        %v4878 = vsub.f32 %v4866, %v4872
        %v4879 = vsub.f32 %v4867, %v4873
        %v4880 = vsub.f32 %v4868, %v4874
        %v4881 = vsub.f32 %v4869, %v4875
        %v4882 = vsub.f32 %v4870, %v4876
        %v4883 = vsub.f32 %v4871, %v4877
        %v4890 = vadd.f32 %v284, %v1799
        %v4891 = vadd.f32 %v289, %v3882
        %v4892 = vadd.f32 %v291, %v1801
        %v4893 = vadd.f32 %v296, %v3884
        %v4894 = vadd.f32 %v301, %v1800
        %v4895 = vadd.f32 %v306, %v3883
        %v4896 = vmul.f32 %v4834, 2.0
        %v4897 = vmul.f32 %v4839, 2.0
        %v4898 = vmul.f32 %v4844, 2.0
        %v4899 = vmul.f32 %v4849, 2.0
        %v4900 = vmul.f32 %v4854, 2.0
        %v4901 = vmul.f32 %v4859, 2.0
        %v4902 = vsub.f32 %v4890, %v4896
        %v4903 = vsub.f32 %v4891, %v4897
        %v4904 = vsub.f32 %v4892, %v4898
        %v4905 = vsub.f32 %v4893, %v4899
        %v4906 = vsub.f32 %v4894, %v4900
        %v4907 = vsub.f32 %v4895, %v4901
        %v4908 = vsub.f32 0.0, %v4902
        %v4909 = vsub.f32 0.0, %v4903
        %v4910 = vsub.f32 0.0, %v4904
        %v4911 = vsub.f32 0.0, %v4905
        %v4912 = vsub.f32 0.0, %v4906
        %v4913 = vsub.f32 0.0, %v4907
        %v4914 = vmul.f32 %v4908, 50.0
        %v4915 = vmul.f32 %v4909, 50.0
        %v4916 = vmul.f32 %v4910, 50.0
        %v4917 = vmul.f32 %v4911, 50.0
        %v4918 = vmul.f32 %v4912, 50.0
        %v4919 = vmul.f32 %v4913, 50.0
        %v4920 = vsub.f32 %v4914, 0.08
        %v4921 = vsub.f32 %v4915, 0.08
        %v4922 = vsub.f32 %v4916, 0.08
        %v4923 = vsub.f32 %v4917, 0.08
        %v4924 = vsub.f32 %v4918, 0.08
        %v4925 = vsub.f32 %v4919, 0.08
        %v4926 = vmul.f32 %v4920, 1.442695
        %v4927 = vpow.pop %v4926
        %v4928 = vmul.f32 %v4921, 1.442695
        %v4929 = vpow.pop %v4928
        %v4930 = vmul.f32 %v4922, 1.442695
        %v4931 = vpow.pop %v4930
        %v4932 = vmul.f32 %v4923, 1.442695
        %v4933 = vpow.pop %v4932
        %v4934 = vmul.f32 %v4924, 1.442695
        %v4935 = vpow.pop %v4934
        %v4936 = vmul.f32 %v4925, 1.442695
        %v4937 = vpow.pop %v4936
        %v4938 = vmul.f32 %v4927, %v4878
        %v4939 = vmul.f32 %v4929, %v4879
        %v4940 = vmul.f32 %v4931, %v4880
        %v4941 = vmul.f32 %v4933, %v4881
        %v4942 = vmul.f32 %v4935, %v4882
        %v4943 = vmul.f32 %v4937, %v4883
        %v4944 = vadd.f32 %v4698, %v4938
        %v4945 = vadd.f32 %v4699, %v4939
        %v4946 = vadd.f32 %v4700, %v4940
        %v4947 = vadd.f32 %v4701, %v4941
        %v4948 = vadd.f32 %v4702, %v4942
        %v4949 = vadd.f32 %v4703, %v4943
        %4950 = vrot.lane.b32.xlu0 %v316, 127
        %v4951 = vpop.permute.xlu0 %4950
        %4952 = vrot.lane.b32.xlu0 %v1879, 127
        %v4953 = vpop.permute.xlu0 %4952
        %4954 = vrot.lane.b32.xlu0 %v318, 127
        %v4955 = vpop.permute.xlu0 %4954
        %4956 = vrot.lane.b32.xlu0 %v1881, 127
        %v4957 = vpop.permute.xlu0 %4956
        %4958 = vrot.lane.b32.xlu0 %v317, 127
        %v4959 = vpop.permute.xlu0 %4958
        %4960 = vrot.lane.b32.xlu0 %v1880, 127
        %v4961 = vpop.permute.xlu0 %4960
        %4962 = vrot.lane.b32.xlu0 %v319, 127
        %v4963 = vpop.permute.xlu0 %4962
        %4964 = vrot.lane.b32.xlu0 %v1882, 127
        %v4965 = vpop.permute.xlu0 %4964
        %4966 = vrot.lane.b32.xlu0 %v321, 127
        %v4967 = vpop.permute.xlu0 %4966
        %4968 = vrot.lane.b32.xlu0 %v1884, 127
        %v4969 = vpop.permute.xlu0 %4968
        %4970 = vrot.lane.b32.xlu0 %v320, 127
        %v4971 = vpop.permute.xlu0 %4970
        %4972 = vrot.lane.b32.xlu0 %v1883, 127
        %v4973 = vpop.permute.xlu0 %4972
        %4974 = vrot.lane.b32.xlu0 %v322, 127
        %v4975 = vpop.permute.xlu0 %4974
        %4976 = vrot.lane.b32.xlu0 %v1885, 127
        %v4977 = vpop.permute.xlu0 %4976
        %4978 = vrot.lane.b32.xlu0 %v324, 127
        %v4979 = vpop.permute.xlu0 %4978
        %4980 = vrot.lane.b32.xlu0 %v1887, 127
        %v4981 = vpop.permute.xlu0 %4980
        %4982 = vrot.lane.b32.xlu0 %v323, 127
        %v4983 = vpop.permute.xlu0 %4982
        %4984 = vrot.lane.b32.xlu0 %v1886, 127
        %v4985 = vpop.permute.xlu0 %4984
        %4986 = vrot.lane.b32.xlu0 %v325, 127
        %v4987 = vpop.permute.xlu0 %4986
        %4988 = vrot.lane.b32.xlu0 %v1888, 127
        %v4989 = vpop.permute.xlu0 %4988
        %4990 = vrot.lane.b32.xlu0 %v327, 127
        %v4991 = vpop.permute.xlu0 %4990
        %4992 = vrot.lane.b32.xlu0 %v1890, 127
        %v4993 = vpop.permute.xlu0 %4992
        %4994 = vrot.lane.b32.xlu0 %v326, 127
        %v4995 = vpop.permute.xlu0 %4994
        %4996 = vrot.lane.b32.xlu0 %v1889, 127
        %v4997 = vpop.permute.xlu0 %4996
        %vm4998 = vcmask 1039360
        %v4999 = vsel %vm4998, %v4951, %v4953
        %v5000 = vsel %vm4998, %v4955, %v4957
        %v5001 = vsel %vm4998, %v4959, %v4961
        %v5002 = vsel %vm4998, %v4963, %v4965
        %v5003 = vsel %vm4998, %v4967, %v4969
        %v5004 = vsel %vm4998, %v4971, %v4973
        %v5005 = vsel %vm4998, %v4975, %v4977
        %v5006 = vsel %vm4998, %v4979, %v4981
        %v5007 = vsel %vm4998, %v4983, %v4985
        %v5008 = vsel %vm4998, %v4987, %v4989
        %v5009 = vsel %vm4998, %v4991, %v4993
        %v5010 = vsel %vm4998, %v4995, %v4997
        %v5035 = vmul.f32 %v162, %v4999
        %v5036 = vmul.f32 %v163, %v4953
        %v5037 = vmul.f32 %v164, %v5000
        %v5038 = vmul.f32 %v165, %v4957
        %v5039 = vmul.f32 %v166, %v5001
        %v5040 = vmul.f32 %v167, %v4961
        %v5041 = vmul.f32 %v168, %v5002
        %v5042 = vmul.f32 %v169, %v4965
        %v5043 = vmul.f32 %v170, %v5003
        %v5044 = vmul.f32 %v171, %v4969
        %v5045 = vmul.f32 %v172, %v5004
        %v5046 = vmul.f32 %v173, %v4973
        %v5047 = vmul.f32 %v174, %v5005
        %v5048 = vmul.f32 %v175, %v4977
        %v5049 = vmul.f32 %v176, %v5006
        %v5050 = vmul.f32 %v177, %v4981
        %v5051 = vmul.f32 %v178, %v5007
        %v5052 = vmul.f32 %v179, %v4985
        %v5053 = vmul.f32 %v180, %v5008
        %v5054 = vmul.f32 %v181, %v4989
        %v5055 = vmul.f32 %v182, %v5009
        %v5056 = vmul.f32 %v183, %v4993
        %v5057 = vmul.f32 %v184, %v5010
        %v5058 = vmul.f32 %v185, %v4997
        %v5059 = vsel %vm388, %v5035, 0.0
        %v5060 = vsel %vm388, %v5041, 0.0
        %v5061 = vadd.f32 %v5059, %v5060
        %v5062 = vsel %vm388, %v5047, 0.0
        %v5063 = vadd.f32 %v5061, %v5062
        %v5064 = vsel %vm388, %v5053, 0.0
        %v5065 = vadd.f32 %v5063, %v5064
        %v5066 = vsel %vm396, %v5036, 0.0
        %v5067 = vsel %vm396, %v5042, 0.0
        %v5068 = vadd.f32 %v5066, %v5067
        %v5069 = vsel %vm396, %v5048, 0.0
        %v5070 = vadd.f32 %v5068, %v5069
        %v5071 = vsel %vm396, %v5054, 0.0
        %v5072 = vadd.f32 %v5070, %v5071
        %v5073 = vsel %vm404, %v5037, 0.0
        %v5074 = vsel %vm404, %v5043, 0.0
        %v5075 = vadd.f32 %v5073, %v5074
        %v5076 = vsel %vm404, %v5049, 0.0
        %v5077 = vadd.f32 %v5075, %v5076
        %v5078 = vsel %vm404, %v5055, 0.0
        %v5079 = vadd.f32 %v5077, %v5078
        %v5080 = vsel %vm412, %v5038, 0.0
        %v5081 = vsel %vm412, %v5044, 0.0
        %v5082 = vadd.f32 %v5080, %v5081
        %v5083 = vsel %vm412, %v5050, 0.0
        %v5084 = vadd.f32 %v5082, %v5083
        %v5085 = vsel %vm412, %v5056, 0.0
        %v5086 = vadd.f32 %v5084, %v5085
        %v5087 = vsel %vm420, %v5039, 0.0
        %v5088 = vsel %vm420, %v5045, 0.0
        %v5089 = vadd.f32 %v5087, %v5088
        %v5090 = vsel %vm420, %v5051, 0.0
        %v5091 = vadd.f32 %v5089, %v5090
        %v5092 = vsel %vm420, %v5057, 0.0
        %v5093 = vadd.f32 %v5091, %v5092
        %v5094 = vsel %vm428, %v5040, 0.0
        %v5095 = vsel %vm428, %v5046, 0.0
        %v5096 = vadd.f32 %v5094, %v5095
        %v5097 = vsel %vm428, %v5052, 0.0
        %v5098 = vadd.f32 %v5096, %v5097
        %v5099 = vsel %vm428, %v5058, 0.0
        %v5100 = vadd.f32 %v5098, %v5099
        %5101 = vrot.lane.b32.xlu0 %v442, 127
        %v5102 = vpop.permute.xlu0 %5101
        %5103 = vrot.lane.b32.xlu0 %v2048, 127
        %v5104 = vpop.permute.xlu0 %5103
        %5105 = vrot.lane.b32.xlu0 %v444, 127
        %v5106 = vpop.permute.xlu0 %5105
        %5107 = vrot.lane.b32.xlu0 %v2050, 127
        %v5108 = vpop.permute.xlu0 %5107
        %5109 = vrot.lane.b32.xlu0 %v443, 127
        %v5110 = vpop.permute.xlu0 %5109
        %5111 = vrot.lane.b32.xlu0 %v2049, 127
        %v5112 = vpop.permute.xlu0 %5111
        %5113 = vrot.lane.b32.xlu0 %v445, 127
        %v5114 = vpop.permute.xlu0 %5113
        %5115 = vrot.lane.b32.xlu0 %v2051, 127
        %v5116 = vpop.permute.xlu0 %5115
        %5117 = vrot.lane.b32.xlu0 %v447, 127
        %v5118 = vpop.permute.xlu0 %5117
        %5119 = vrot.lane.b32.xlu0 %v2053, 127
        %v5120 = vpop.permute.xlu0 %5119
        %5121 = vrot.lane.b32.xlu0 %v446, 127
        %v5122 = vpop.permute.xlu0 %5121
        %5123 = vrot.lane.b32.xlu0 %v2052, 127
        %v5124 = vpop.permute.xlu0 %5123
        %5125 = vrot.lane.b32.xlu0 %v448, 127
        %v5126 = vpop.permute.xlu0 %5125
        %5127 = vrot.lane.b32.xlu0 %v2054, 127
        %v5128 = vpop.permute.xlu0 %5127
        %5129 = vrot.lane.b32.xlu0 %v450, 127
        %v5130 = vpop.permute.xlu0 %5129
        %5131 = vrot.lane.b32.xlu0 %v2056, 127
        %v5132 = vpop.permute.xlu0 %5131
        %5133 = vrot.lane.b32.xlu0 %v449, 127
        %v5134 = vpop.permute.xlu0 %5133
        %5135 = vrot.lane.b32.xlu0 %v2055, 127
        %v5136 = vpop.permute.xlu0 %5135
        %v5137 = vsel %vm4998, %v5102, %v5104
        %v5138 = vsel %vm4998, %v5106, %v5108
        %v5139 = vsel %vm4998, %v5110, %v5112
        %v5140 = vsel %vm4998, %v5114, %v5116
        %v5141 = vsel %vm4998, %v5118, %v5120
        %v5142 = vsel %vm4998, %v5122, %v5124
        %v5143 = vsel %vm4998, %v5126, %v5128
        %v5144 = vsel %vm4998, %v5130, %v5132
        %v5145 = vsel %vm4998, %v5134, %v5136
        %v5164 = vmul.f32 %v186, %v5137
        %v5165 = vmul.f32 %v187, %v5104
        %v5166 = vmul.f32 %v188, %v5138
        %v5167 = vmul.f32 %v189, %v5108
        %v5168 = vmul.f32 %v190, %v5139
        %v5169 = vmul.f32 %v191, %v5112
        %v5170 = vmul.f32 %v192, %v5140
        %v5171 = vmul.f32 %v193, %v5116
        %v5172 = vmul.f32 %v194, %v5141
        %v5173 = vmul.f32 %v195, %v5120
        %v5174 = vmul.f32 %v196, %v5142
        %v5175 = vmul.f32 %v197, %v5124
        %v5176 = vmul.f32 %v198, %v5143
        %v5177 = vmul.f32 %v199, %v5128
        %v5178 = vmul.f32 %v200, %v5144
        %v5179 = vmul.f32 %v201, %v5132
        %v5180 = vmul.f32 %v202, %v5145
        %v5181 = vmul.f32 %v203, %v5136
        %v5182 = vsel %vm388, %v5164, 0.0
        %v5183 = vsel %vm388, %v5170, 0.0
        %v5184 = vadd.f32 %v5182, %v5183
        %v5185 = vsel %vm388, %v5176, 0.0
        %v5186 = vadd.f32 %v5184, %v5185
        %v5187 = vsel %vm396, %v5165, 0.0
        %v5188 = vsel %vm396, %v5171, 0.0
        %v5189 = vadd.f32 %v5187, %v5188
        %v5190 = vsel %vm396, %v5177, 0.0
        %v5191 = vadd.f32 %v5189, %v5190
        %v5192 = vsel %vm404, %v5166, 0.0
        %v5193 = vsel %vm404, %v5172, 0.0
        %v5194 = vadd.f32 %v5192, %v5193
        %v5195 = vsel %vm404, %v5178, 0.0
        %v5196 = vadd.f32 %v5194, %v5195
        %v5197 = vsel %vm412, %v5167, 0.0
        %v5198 = vsel %vm412, %v5173, 0.0
        %v5199 = vadd.f32 %v5197, %v5198
        %v5200 = vsel %vm412, %v5179, 0.0
        %v5201 = vadd.f32 %v5199, %v5200
        %v5202 = vsel %vm420, %v5168, 0.0
        %v5203 = vsel %vm420, %v5174, 0.0
        %v5204 = vadd.f32 %v5202, %v5203
        %v5205 = vsel %vm420, %v5180, 0.0
        %v5206 = vadd.f32 %v5204, %v5205
        %v5207 = vsel %vm428, %v5169, 0.0
        %v5208 = vsel %vm428, %v5175, 0.0
        %v5209 = vadd.f32 %v5207, %v5208
        %v5210 = vsel %vm428, %v5181, 0.0
        %v5211 = vadd.f32 %v5209, %v5210
        %5212 = vrot.lane.b32.xlu0 %v528, 127
        %v5213 = vpop.permute.xlu0 %5212
        %5214 = vrot.lane.b32.xlu0 %v2170, 127
        %v5215 = vpop.permute.xlu0 %5214
        %5216 = vrot.lane.b32.xlu0 %v530, 127
        %v5217 = vpop.permute.xlu0 %5216
        %5218 = vrot.lane.b32.xlu0 %v2172, 127
        %v5219 = vpop.permute.xlu0 %5218
        %5220 = vrot.lane.b32.xlu0 %v529, 127
        %v5221 = vpop.permute.xlu0 %5220
        %5222 = vrot.lane.b32.xlu0 %v2171, 127
        %v5223 = vpop.permute.xlu0 %5222
        %v5224 = vsel %vm4998, %v5213, %v5215
        %v5225 = vsel %vm4998, %v5217, %v5219
        %v5226 = vsel %vm4998, %v5221, %v5223
        %v5233 = vadd.f32 %v230, %v5224
        %v5234 = vadd.f32 %v238, %v5215
        %v5235 = vadd.f32 %v241, %v5225
        %v5236 = vadd.f32 %v248, %v5219
        %v5237 = vadd.f32 %v256, %v5226
        %v5238 = vadd.f32 %v264, %v5223
        %v5239 = vmul.f32 %v5065, 2.0
        %v5240 = vmul.f32 %v5072, 2.0
        %v5241 = vmul.f32 %v5079, 2.0
        %v5242 = vmul.f32 %v5086, 2.0
        %v5243 = vmul.f32 %v5093, 2.0
        %v5244 = vmul.f32 %v5100, 2.0
        %v5245 = vsub.f32 %v5233, %v5239
        %v5246 = vsub.f32 %v5234, %v5240
        %v5247 = vsub.f32 %v5235, %v5241
        %v5248 = vsub.f32 %v5236, %v5242
        %v5249 = vsub.f32 %v5237, %v5243
        %v5250 = vsub.f32 %v5238, %v5244
        %5251 = vrot.lane.b32.xlu0 %v560, 127
        %v5252 = vpop.permute.xlu0 %5251
        %5253 = vrot.lane.b32.xlu0 %v2214, 127
        %v5254 = vpop.permute.xlu0 %5253
        %5255 = vrot.lane.b32.xlu0 %v562, 127
        %v5256 = vpop.permute.xlu0 %5255
        %5257 = vrot.lane.b32.xlu0 %v2216, 127
        %v5258 = vpop.permute.xlu0 %5257
        %5259 = vrot.lane.b32.xlu0 %v561, 127
        %v5260 = vpop.permute.xlu0 %5259
        %5261 = vrot.lane.b32.xlu0 %v2215, 127
        %v5262 = vpop.permute.xlu0 %5261
        %v5263 = vsel %vm4998, %v5252, %v5254
        %v5264 = vsel %vm4998, %v5256, %v5258
        %v5265 = vsel %vm4998, %v5260, %v5262
        %v5272 = vadd.f32 %v284, %v5263
        %v5273 = vadd.f32 %v289, %v5254
        %v5274 = vadd.f32 %v291, %v5264
        %v5275 = vadd.f32 %v296, %v5258
        %v5276 = vadd.f32 %v301, %v5265
        %v5277 = vadd.f32 %v306, %v5262
        %v5278 = vmul.f32 %v5186, 2.0
        %v5279 = vmul.f32 %v5191, 2.0
        %v5280 = vmul.f32 %v5196, 2.0
        %v5281 = vmul.f32 %v5201, 2.0
        %v5282 = vmul.f32 %v5206, 2.0
        %v5283 = vmul.f32 %v5211, 2.0
        %v5284 = vsub.f32 %v5272, %v5278
        %v5285 = vsub.f32 %v5273, %v5279
        %v5286 = vsub.f32 %v5274, %v5280
        %v5287 = vsub.f32 %v5275, %v5281
        %v5288 = vsub.f32 %v5276, %v5282
        %v5289 = vsub.f32 %v5277, %v5283
        %v5290 = vsub.f32 0.0, %v5284
        %v5291 = vsub.f32 0.0, %v5285
        %v5292 = vsub.f32 0.0, %v5286
        %v5293 = vsub.f32 0.0, %v5287
        %v5294 = vsub.f32 0.0, %v5288
        %v5295 = vsub.f32 0.0, %v5289
        %v5296 = vmul.f32 %v5290, 50.0
        %v5297 = vmul.f32 %v5291, 50.0
        %v5298 = vmul.f32 %v5292, 50.0
        %v5299 = vmul.f32 %v5293, 50.0
        %v5300 = vmul.f32 %v5294, 50.0
        %v5301 = vmul.f32 %v5295, 50.0
        %v5302 = vsub.f32 %v5296, 0.1
        %v5303 = vsub.f32 %v5297, 0.1
        %v5304 = vsub.f32 %v5298, 0.1
        %v5305 = vsub.f32 %v5299, 0.1
        %v5306 = vsub.f32 %v5300, 0.1
        %v5307 = vsub.f32 %v5301, 0.1
        %v5308 = vmul.f32 %v5302, 1.442695
        %v5309 = vpow.pop %v5308
        %v5310 = vmul.f32 %v5303, 1.442695
        %v5311 = vpow.pop %v5310
        %v5312 = vmul.f32 %v5304, 1.442695
        %v5313 = vpow.pop %v5312
        %v5314 = vmul.f32 %v5305, 1.442695
        %v5315 = vpow.pop %v5314
        %v5316 = vmul.f32 %v5306, 1.442695
        %v5317 = vpow.pop %v5316
        %v5318 = vmul.f32 %v5307, 1.442695
        %v5319 = vpow.pop %v5318
        %v5320 = vmul.f32 %v5309, %v5245
        %v5321 = vmul.f32 %v5311, %v5246
        %v5322 = vmul.f32 %v5313, %v5247
        %v5323 = vmul.f32 %v5315, %v5248
        %v5324 = vmul.f32 %v5317, %v5249
        %v5325 = vmul.f32 %v5319, %v5250
        %v5326 = vadd.f32 %v4944, %v5320
        %v5327 = vadd.f32 %v4945, %v5321
        %v5328 = vadd.f32 %v4946, %v5322
        %v5329 = vadd.f32 %v4947, %v5323
        %v5330 = vadd.f32 %v4948, %v5324
        %v5331 = vadd.f32 %v4949, %v5325
        %5332 = vrot.lane.b32.xlu0 %v637, 127
        %v5333 = vpop.permute.xlu0 %5332
        %5334 = vrot.lane.b32.xlu0 %v2302, 127
        %v5335 = vpop.permute.xlu0 %5334
        %5336 = vrot.lane.b32.xlu0 %v639, 127
        %v5337 = vpop.permute.xlu0 %5336
        %5338 = vrot.lane.b32.xlu0 %v2304, 127
        %v5339 = vpop.permute.xlu0 %5338
        %5340 = vrot.lane.b32.xlu0 %v641, 127
        %v5341 = vpop.permute.xlu0 %5340
        %5342 = vrot.lane.b32.xlu0 %v2306, 127
        %v5343 = vpop.permute.xlu0 %5342
        %5344 = vrot.lane.b32.xlu0 %v642, 127
        %v5345 = vpop.permute.xlu0 %5344
        %5346 = vrot.lane.b32.xlu0 %v2307, 127
        %v5347 = vpop.permute.xlu0 %5346
        %5348 = vrot.lane.b32.xlu0 %v644, 127
        %v5349 = vpop.permute.xlu0 %5348
        %5350 = vrot.lane.b32.xlu0 %v2309, 127
        %v5351 = vpop.permute.xlu0 %5350
        %5352 = vrot.lane.b32.xlu0 %v646, 127
        %v5353 = vpop.permute.xlu0 %5352
        %5354 = vrot.lane.b32.xlu0 %v2311, 127
        %v5355 = vpop.permute.xlu0 %5354
        %5356 = vrot.lane.b32.xlu0 %v647, 127
        %v5357 = vpop.permute.xlu0 %5356
        %5358 = vrot.lane.b32.xlu0 %v2312, 127
        %v5359 = vpop.permute.xlu0 %5358
        %5360 = vrot.lane.b32.xlu0 %v649, 127
        %v5361 = vpop.permute.xlu0 %5360
        %5362 = vrot.lane.b32.xlu0 %v2314, 127
        %v5363 = vpop.permute.xlu0 %5362
        %5364 = vrot.lane.b32.xlu0 %v651, 127
        %v5365 = vpop.permute.xlu0 %5364
        %5366 = vrot.lane.b32.xlu0 %v2316, 127
        %v5367 = vpop.permute.xlu0 %5366
        %5368 = vrot.lane.b32.xlu0 %v652, 127
        %v5369 = vpop.permute.xlu0 %5368
        %5370 = vrot.lane.b32.xlu0 %v2317, 127
        %v5371 = vpop.permute.xlu0 %5370
        %5372 = vrot.lane.b32.xlu0 %v654, 127
        %v5373 = vpop.permute.xlu0 %5372
        %5374 = vrot.lane.b32.xlu0 %v2319, 127
        %v5375 = vpop.permute.xlu0 %5374
        %5376 = vrot.lane.b32.xlu0 %v656, 127
        %v5377 = vpop.permute.xlu0 %5376
        %5378 = vrot.lane.b32.xlu0 %v2321, 127
        %v5379 = vpop.permute.xlu0 %5378
        %v5380 = vsel %vm4998, %v5333, %v5335
        %v5381 = vsel %vm4998, %v5337, %v5339
        %v5382 = vsel %vm4998, %v5341, %v5343
        %v5383 = vsel %vm4998, %v5345, %v5347
        %v5384 = vsel %vm4998, %v5349, %v5351
        %v5385 = vsel %vm4998, %v5353, %v5355
        %v5386 = vsel %vm4998, %v5357, %v5359
        %v5387 = vsel %vm4998, %v5361, %v5363
        %v5388 = vsel %vm4998, %v5365, %v5367
        %v5389 = vsel %vm4998, %v5369, %v5371
        %v5390 = vsel %vm4998, %v5373, %v5375
        %v5391 = vsel %vm4998, %v5377, %v5379
        %v5416 = vmul.f32 %v162, %v5380
        %v5417 = vmul.f32 %v163, %v5335
        %v5418 = vmul.f32 %v164, %v5381
        %v5419 = vmul.f32 %v165, %v5339
        %v5420 = vmul.f32 %v166, %v5382
        %v5421 = vmul.f32 %v167, %v5343
        %v5422 = vmul.f32 %v168, %v5383
        %v5423 = vmul.f32 %v169, %v5347
        %v5424 = vmul.f32 %v170, %v5384
        %v5425 = vmul.f32 %v171, %v5351
        %v5426 = vmul.f32 %v172, %v5385
        %v5427 = vmul.f32 %v173, %v5355
        %v5428 = vmul.f32 %v174, %v5386
        %v5429 = vmul.f32 %v175, %v5359
        %v5430 = vmul.f32 %v176, %v5387
        %v5431 = vmul.f32 %v177, %v5363
        %v5432 = vmul.f32 %v178, %v5388
        %v5433 = vmul.f32 %v179, %v5367
        %v5434 = vmul.f32 %v180, %v5389
        %v5435 = vmul.f32 %v181, %v5371
        %v5436 = vmul.f32 %v182, %v5390
        %v5437 = vmul.f32 %v183, %v5375
        %v5438 = vmul.f32 %v184, %v5391
        %v5439 = vmul.f32 %v185, %v5379
        %v5440 = vsel %vm388, %v5416, 0.0
        %v5441 = vsel %vm388, %v5422, 0.0
        %v5442 = vadd.f32 %v5440, %v5441
        %v5443 = vsel %vm388, %v5428, 0.0
        %v5444 = vadd.f32 %v5442, %v5443
        %v5445 = vsel %vm388, %v5434, 0.0
        %v5446 = vadd.f32 %v5444, %v5445
        %v5447 = vsel %vm396, %v5417, 0.0
        %v5448 = vsel %vm396, %v5423, 0.0
        %v5449 = vadd.f32 %v5447, %v5448
        %v5450 = vsel %vm396, %v5429, 0.0
        %v5451 = vadd.f32 %v5449, %v5450
        %v5452 = vsel %vm396, %v5435, 0.0
        %v5453 = vadd.f32 %v5451, %v5452
        %v5454 = vsel %vm404, %v5418, 0.0
        %v5455 = vsel %vm404, %v5424, 0.0
        %v5456 = vadd.f32 %v5454, %v5455
        %v5457 = vsel %vm404, %v5430, 0.0
        %v5458 = vadd.f32 %v5456, %v5457
        %v5459 = vsel %vm404, %v5436, 0.0
        %v5460 = vadd.f32 %v5458, %v5459
        %v5461 = vsel %vm412, %v5419, 0.0
        %v5462 = vsel %vm412, %v5425, 0.0
        %v5463 = vadd.f32 %v5461, %v5462
        %v5464 = vsel %vm412, %v5431, 0.0
        %v5465 = vadd.f32 %v5463, %v5464
        %v5466 = vsel %vm412, %v5437, 0.0
        %v5467 = vadd.f32 %v5465, %v5466
        %v5468 = vsel %vm420, %v5420, 0.0
        %v5469 = vsel %vm420, %v5426, 0.0
        %v5470 = vadd.f32 %v5468, %v5469
        %v5471 = vsel %vm420, %v5432, 0.0
        %v5472 = vadd.f32 %v5470, %v5471
        %v5473 = vsel %vm420, %v5438, 0.0
        %v5474 = vadd.f32 %v5472, %v5473
        %v5475 = vsel %vm428, %v5421, 0.0
        %v5476 = vsel %vm428, %v5427, 0.0
        %v5477 = vadd.f32 %v5475, %v5476
        %v5478 = vsel %vm428, %v5433, 0.0
        %v5479 = vadd.f32 %v5477, %v5478
        %v5480 = vsel %vm428, %v5439, 0.0
        %v5481 = vadd.f32 %v5479, %v5480
        %5482 = vrot.lane.b32.xlu0 %v762, 127
        %v5483 = vpop.permute.xlu0 %5482
        %5484 = vrot.lane.b32.xlu0 %v2475, 127
        %v5485 = vpop.permute.xlu0 %5484
        %5486 = vrot.lane.b32.xlu0 %v764, 127
        %v5487 = vpop.permute.xlu0 %5486
        %5488 = vrot.lane.b32.xlu0 %v2477, 127
        %v5489 = vpop.permute.xlu0 %5488
        %5490 = vrot.lane.b32.xlu0 %v766, 127
        %v5491 = vpop.permute.xlu0 %5490
        %5492 = vrot.lane.b32.xlu0 %v2479, 127
        %v5493 = vpop.permute.xlu0 %5492
        %5494 = vrot.lane.b32.xlu0 %v767, 127
        %v5495 = vpop.permute.xlu0 %5494
        %5496 = vrot.lane.b32.xlu0 %v2480, 127
        %v5497 = vpop.permute.xlu0 %5496
        %5498 = vrot.lane.b32.xlu0 %v769, 127
        %v5499 = vpop.permute.xlu0 %5498
        %5500 = vrot.lane.b32.xlu0 %v2482, 127
        %v5501 = vpop.permute.xlu0 %5500
        %5502 = vrot.lane.b32.xlu0 %v771, 127
        %v5503 = vpop.permute.xlu0 %5502
        %5504 = vrot.lane.b32.xlu0 %v2484, 127
        %v5505 = vpop.permute.xlu0 %5504
        %5506 = vrot.lane.b32.xlu0 %v772, 127
        %v5507 = vpop.permute.xlu0 %5506
        %5508 = vrot.lane.b32.xlu0 %v2485, 127
        %v5509 = vpop.permute.xlu0 %5508
        %5510 = vrot.lane.b32.xlu0 %v774, 127
        %v5511 = vpop.permute.xlu0 %5510
        %5512 = vrot.lane.b32.xlu0 %v2487, 127
        %v5513 = vpop.permute.xlu0 %5512
        %5514 = vrot.lane.b32.xlu0 %v776, 127
        %v5515 = vpop.permute.xlu0 %5514
        %5516 = vrot.lane.b32.xlu0 %v2489, 127
        %v5517 = vpop.permute.xlu0 %5516
        %v5518 = vsel %vm4998, %v5483, %v5485
        %v5519 = vsel %vm4998, %v5487, %v5489
        %v5520 = vsel %vm4998, %v5491, %v5493
        %v5521 = vsel %vm4998, %v5495, %v5497
        %v5522 = vsel %vm4998, %v5499, %v5501
        %v5523 = vsel %vm4998, %v5503, %v5505
        %v5524 = vsel %vm4998, %v5507, %v5509
        %v5525 = vsel %vm4998, %v5511, %v5513
        %v5526 = vsel %vm4998, %v5515, %v5517
        %v5545 = vmul.f32 %v186, %v5518
        %v5546 = vmul.f32 %v187, %v5485
        %v5547 = vmul.f32 %v188, %v5519
        %v5548 = vmul.f32 %v189, %v5489
        %v5549 = vmul.f32 %v190, %v5520
        %v5550 = vmul.f32 %v191, %v5493
        %v5551 = vmul.f32 %v192, %v5521
        %v5552 = vmul.f32 %v193, %v5497
        %v5553 = vmul.f32 %v194, %v5522
        %v5554 = vmul.f32 %v195, %v5501
        %v5555 = vmul.f32 %v196, %v5523
        %v5556 = vmul.f32 %v197, %v5505
        %v5557 = vmul.f32 %v198, %v5524
        %v5558 = vmul.f32 %v199, %v5509
        %v5559 = vmul.f32 %v200, %v5525
        %v5560 = vmul.f32 %v201, %v5513
        %v5561 = vmul.f32 %v202, %v5526
        %v5562 = vmul.f32 %v203, %v5517
        %v5563 = vsel %vm388, %v5545, 0.0
        %v5564 = vsel %vm388, %v5551, 0.0
        %v5565 = vadd.f32 %v5563, %v5564
        %v5566 = vsel %vm388, %v5557, 0.0
        %v5567 = vadd.f32 %v5565, %v5566
        %v5568 = vsel %vm396, %v5546, 0.0
        %v5569 = vsel %vm396, %v5552, 0.0
        %v5570 = vadd.f32 %v5568, %v5569
        %v5571 = vsel %vm396, %v5558, 0.0
        %v5572 = vadd.f32 %v5570, %v5571
        %v5573 = vsel %vm404, %v5547, 0.0
        %v5574 = vsel %vm404, %v5553, 0.0
        %v5575 = vadd.f32 %v5573, %v5574
        %v5576 = vsel %vm404, %v5559, 0.0
        %v5577 = vadd.f32 %v5575, %v5576
        %v5578 = vsel %vm412, %v5548, 0.0
        %v5579 = vsel %vm412, %v5554, 0.0
        %v5580 = vadd.f32 %v5578, %v5579
        %v5581 = vsel %vm412, %v5560, 0.0
        %v5582 = vadd.f32 %v5580, %v5581
        %v5583 = vsel %vm420, %v5549, 0.0
        %v5584 = vsel %vm420, %v5555, 0.0
        %v5585 = vadd.f32 %v5583, %v5584
        %v5586 = vsel %vm420, %v5561, 0.0
        %v5587 = vadd.f32 %v5585, %v5586
        %v5588 = vsel %vm428, %v5550, 0.0
        %v5589 = vsel %vm428, %v5556, 0.0
        %v5590 = vadd.f32 %v5588, %v5589
        %v5591 = vsel %vm428, %v5562, 0.0
        %v5592 = vadd.f32 %v5590, %v5591
        %5593 = vrot.lane.b32.xlu0 %v853, 127
        %v5594 = vpop.permute.xlu0 %5593
        %5595 = vrot.lane.b32.xlu0 %v2602, 127
        %v5596 = vpop.permute.xlu0 %5595
        %5597 = vrot.lane.b32.xlu0 %v855, 127
        %v5598 = vpop.permute.xlu0 %5597
        %5599 = vrot.lane.b32.xlu0 %v2604, 127
        %v5600 = vpop.permute.xlu0 %5599
        %5601 = vrot.lane.b32.xlu0 %v857, 127
        %v5602 = vpop.permute.xlu0 %5601
        %5603 = vrot.lane.b32.xlu0 %v2606, 127
        %v5604 = vpop.permute.xlu0 %5603
        %v5605 = vsel %vm4998, %v5594, %v5596
        %v5606 = vsel %vm4998, %v5598, %v5600
        %v5607 = vsel %vm4998, %v5602, %v5604
        %v5614 = vadd.f32 %v230, %v5605
        %v5615 = vadd.f32 %v238, %v5596
        %v5616 = vadd.f32 %v241, %v5606
        %v5617 = vadd.f32 %v248, %v5600
        %v5618 = vadd.f32 %v256, %v5607
        %v5619 = vadd.f32 %v264, %v5604
        %v5620 = vmul.f32 %v5446, 2.0
        %v5621 = vmul.f32 %v5453, 2.0
        %v5622 = vmul.f32 %v5460, 2.0
        %v5623 = vmul.f32 %v5467, 2.0
        %v5624 = vmul.f32 %v5474, 2.0
        %v5625 = vmul.f32 %v5481, 2.0
        %v5626 = vsub.f32 %v5614, %v5620
        %v5627 = vsub.f32 %v5615, %v5621
        %v5628 = vsub.f32 %v5616, %v5622
        %v5629 = vsub.f32 %v5617, %v5623
        %v5630 = vsub.f32 %v5618, %v5624
        %v5631 = vsub.f32 %v5619, %v5625
        %5632 = vrot.lane.b32.xlu0 %v886, 127
        %v5633 = vpop.permute.xlu0 %5632
        %5634 = vrot.lane.b32.xlu0 %v2647, 127
        %v5635 = vpop.permute.xlu0 %5634
        %5636 = vrot.lane.b32.xlu0 %v888, 127
        %v5637 = vpop.permute.xlu0 %5636
        %5638 = vrot.lane.b32.xlu0 %v2649, 127
        %v5639 = vpop.permute.xlu0 %5638
        %5640 = vrot.lane.b32.xlu0 %v890, 127
        %v5641 = vpop.permute.xlu0 %5640
        %5642 = vrot.lane.b32.xlu0 %v2651, 127
        %v5643 = vpop.permute.xlu0 %5642
        %v5644 = vsel %vm4998, %v5633, %v5635
        %v5645 = vsel %vm4998, %v5637, %v5639
        %v5646 = vsel %vm4998, %v5641, %v5643
        %v5653 = vadd.f32 %v284, %v5644
        %v5654 = vadd.f32 %v289, %v5635
        %v5655 = vadd.f32 %v291, %v5645
        %v5656 = vadd.f32 %v296, %v5639
        %v5657 = vadd.f32 %v301, %v5646
        %v5658 = vadd.f32 %v306, %v5643
        %v5659 = vmul.f32 %v5567, 2.0
        %v5660 = vmul.f32 %v5572, 2.0
        %v5661 = vmul.f32 %v5577, 2.0
        %v5662 = vmul.f32 %v5582, 2.0
        %v5663 = vmul.f32 %v5587, 2.0
        %v5664 = vmul.f32 %v5592, 2.0
        %v5665 = vsub.f32 %v5653, %v5659
        %v5666 = vsub.f32 %v5654, %v5660
        %v5667 = vsub.f32 %v5655, %v5661
        %v5668 = vsub.f32 %v5656, %v5662
        %v5669 = vsub.f32 %v5657, %v5663
        %v5670 = vsub.f32 %v5658, %v5664
        %v5671 = vsub.f32 0.0, %v5665
        %v5672 = vsub.f32 0.0, %v5666
        %v5673 = vsub.f32 0.0, %v5667
        %v5674 = vsub.f32 0.0, %v5668
        %v5675 = vsub.f32 0.0, %v5669
        %v5676 = vsub.f32 0.0, %v5670
        %v5677 = vmul.f32 %v5671, 50.0
        %v5678 = vmul.f32 %v5672, 50.0
        %v5679 = vmul.f32 %v5673, 50.0
        %v5680 = vmul.f32 %v5674, 50.0
        %v5681 = vmul.f32 %v5675, 50.0
        %v5682 = vmul.f32 %v5676, 50.0
        %v5683 = vsub.f32 %v5677, 0.04
        %v5684 = vsub.f32 %v5678, 0.04
        %v5685 = vsub.f32 %v5679, 0.04
        %v5686 = vsub.f32 %v5680, 0.04
        %v5687 = vsub.f32 %v5681, 0.04
        %v5688 = vsub.f32 %v5682, 0.04
        %v5689 = vmul.f32 %v5683, 1.442695
        %v5690 = vpow.pop %v5689
        %v5691 = vmul.f32 %v5684, 1.442695
        %v5692 = vpow.pop %v5691
        %v5693 = vmul.f32 %v5685, 1.442695
        %v5694 = vpow.pop %v5693
        %v5695 = vmul.f32 %v5686, 1.442695
        %v5696 = vpow.pop %v5695
        %v5697 = vmul.f32 %v5687, 1.442695
        %v5698 = vpow.pop %v5697
        %v5699 = vmul.f32 %v5688, 1.442695
        %v5700 = vpow.pop %v5699
        %v5701 = vmul.f32 %v5690, %v5626
        %v5702 = vmul.f32 %v5692, %v5627
        %v5703 = vmul.f32 %v5694, %v5628
        %v5704 = vmul.f32 %v5696, %v5629
        %v5705 = vmul.f32 %v5698, %v5630
        %v5706 = vmul.f32 %v5700, %v5631
        %v5707 = vadd.f32 %v5326, %v5701
        %v5708 = vadd.f32 %v5327, %v5702
        %v5709 = vadd.f32 %v5328, %v5703
        %v5710 = vadd.f32 %v5329, %v5704
        %v5711 = vadd.f32 %v5330, %v5705
        %v5712 = vadd.f32 %v5331, %v5706
        %5713 = vrot.lane.b32.xlu0 %v162, 127
        %v5714 = vpop.permute.xlu0 %5713
        %5715 = vrot.lane.b32.xlu0 %v163, 127
        %v5716 = vpop.permute.xlu0 %5715
        %5717 = vrot.lane.b32.xlu0 %v164, 127
        %v5718 = vpop.permute.xlu0 %5717
        %5719 = vrot.lane.b32.xlu0 %v165, 127
        %v5720 = vpop.permute.xlu0 %5719
        %5721 = vrot.lane.b32.xlu0 %v166, 127
        %v5722 = vpop.permute.xlu0 %5721
        %5723 = vrot.lane.b32.xlu0 %v167, 127
        %v5724 = vpop.permute.xlu0 %5723
        %5725 = vrot.lane.b32.xlu0 %v168, 127
        %v5726 = vpop.permute.xlu0 %5725
        %5727 = vrot.lane.b32.xlu0 %v169, 127
        %v5728 = vpop.permute.xlu0 %5727
        %5729 = vrot.lane.b32.xlu0 %v170, 127
        %v5730 = vpop.permute.xlu0 %5729
        %5731 = vrot.lane.b32.xlu0 %v171, 127
        %v5732 = vpop.permute.xlu0 %5731
        %5733 = vrot.lane.b32.xlu0 %v172, 127
        %v5734 = vpop.permute.xlu0 %5733
        %5735 = vrot.lane.b32.xlu0 %v173, 127
        %v5736 = vpop.permute.xlu0 %5735
        %5737 = vrot.lane.b32.xlu0 %v174, 127
        %v5738 = vpop.permute.xlu0 %5737
        %5739 = vrot.lane.b32.xlu0 %v175, 127
        %v5740 = vpop.permute.xlu0 %5739
        %5741 = vrot.lane.b32.xlu0 %v176, 127
        %v5742 = vpop.permute.xlu0 %5741
        %5743 = vrot.lane.b32.xlu0 %v177, 127
        %v5744 = vpop.permute.xlu0 %5743
        %5745 = vrot.lane.b32.xlu0 %v178, 127
        %v5746 = vpop.permute.xlu0 %5745
        %5747 = vrot.lane.b32.xlu0 %v179, 127
        %v5748 = vpop.permute.xlu0 %5747
        %5749 = vrot.lane.b32.xlu0 %v180, 127
        %v5750 = vpop.permute.xlu0 %5749
        %5751 = vrot.lane.b32.xlu0 %v181, 127
        %v5752 = vpop.permute.xlu0 %5751
        %5753 = vrot.lane.b32.xlu0 %v182, 127
        %v5754 = vpop.permute.xlu0 %5753
        %5755 = vrot.lane.b32.xlu0 %v183, 127
        %v5756 = vpop.permute.xlu0 %5755
        %5757 = vrot.lane.b32.xlu0 %v184, 127
        %v5758 = vpop.permute.xlu0 %5757
        %5759 = vrot.lane.b32.xlu0 %v185, 127
        %v5760 = vpop.permute.xlu0 %5759
        %v5761 = vsel %vm4998, %v5714, %v5716
        %v5762 = vsel %vm4998, %v5718, %v5720
        %v5763 = vsel %vm4998, %v5722, %v5724
        %v5764 = vsel %vm4998, %v5726, %v5728
        %v5765 = vsel %vm4998, %v5730, %v5732
        %v5766 = vsel %vm4998, %v5734, %v5736
        %v5767 = vsel %vm4998, %v5738, %v5740
        %v5768 = vsel %vm4998, %v5742, %v5744
        %v5769 = vsel %vm4998, %v5746, %v5748
        %v5770 = vsel %vm4998, %v5750, %v5752
        %v5771 = vsel %vm4998, %v5754, %v5756
        %v5772 = vsel %vm4998, %v5758, %v5760
        %v5797 = vmul.f32 %v162, %v5761
        %v5798 = vmul.f32 %v163, %v5716
        %v5799 = vmul.f32 %v164, %v5762
        %v5800 = vmul.f32 %v165, %v5720
        %v5801 = vmul.f32 %v166, %v5763
        %v5802 = vmul.f32 %v167, %v5724
        %v5803 = vmul.f32 %v168, %v5764
        %v5804 = vmul.f32 %v169, %v5728
        %v5805 = vmul.f32 %v170, %v5765
        %v5806 = vmul.f32 %v171, %v5732
        %v5807 = vmul.f32 %v172, %v5766
        %v5808 = vmul.f32 %v173, %v5736
        %v5809 = vmul.f32 %v174, %v5767
        %v5810 = vmul.f32 %v175, %v5740
        %v5811 = vmul.f32 %v176, %v5768
        %v5812 = vmul.f32 %v177, %v5744
        %v5813 = vmul.f32 %v178, %v5769
        %v5814 = vmul.f32 %v179, %v5748
        %v5815 = vmul.f32 %v180, %v5770
        %v5816 = vmul.f32 %v181, %v5752
        %v5817 = vmul.f32 %v182, %v5771
        %v5818 = vmul.f32 %v183, %v5756
        %v5819 = vmul.f32 %v184, %v5772
        %v5820 = vmul.f32 %v185, %v5760
        %v5821 = vsel %vm388, %v5797, 0.0
        %v5822 = vsel %vm388, %v5803, 0.0
        %v5823 = vadd.f32 %v5821, %v5822
        %v5824 = vsel %vm388, %v5809, 0.0
        %v5825 = vadd.f32 %v5823, %v5824
        %v5826 = vsel %vm388, %v5815, 0.0
        %v5827 = vadd.f32 %v5825, %v5826
        %v5828 = vsel %vm396, %v5798, 0.0
        %v5829 = vsel %vm396, %v5804, 0.0
        %v5830 = vadd.f32 %v5828, %v5829
        %v5831 = vsel %vm396, %v5810, 0.0
        %v5832 = vadd.f32 %v5830, %v5831
        %v5833 = vsel %vm396, %v5816, 0.0
        %v5834 = vadd.f32 %v5832, %v5833
        %v5835 = vsel %vm404, %v5799, 0.0
        %v5836 = vsel %vm404, %v5805, 0.0
        %v5837 = vadd.f32 %v5835, %v5836
        %v5838 = vsel %vm404, %v5811, 0.0
        %v5839 = vadd.f32 %v5837, %v5838
        %v5840 = vsel %vm404, %v5817, 0.0
        %v5841 = vadd.f32 %v5839, %v5840
        %v5842 = vsel %vm412, %v5800, 0.0
        %v5843 = vsel %vm412, %v5806, 0.0
        %v5844 = vadd.f32 %v5842, %v5843
        %v5845 = vsel %vm412, %v5812, 0.0
        %v5846 = vadd.f32 %v5844, %v5845
        %v5847 = vsel %vm412, %v5818, 0.0
        %v5848 = vadd.f32 %v5846, %v5847
        %v5849 = vsel %vm420, %v5801, 0.0
        %v5850 = vsel %vm420, %v5807, 0.0
        %v5851 = vadd.f32 %v5849, %v5850
        %v5852 = vsel %vm420, %v5813, 0.0
        %v5853 = vadd.f32 %v5851, %v5852
        %v5854 = vsel %vm420, %v5819, 0.0
        %v5855 = vadd.f32 %v5853, %v5854
        %v5856 = vsel %vm428, %v5802, 0.0
        %v5857 = vsel %vm428, %v5808, 0.0
        %v5858 = vadd.f32 %v5856, %v5857
        %v5859 = vsel %vm428, %v5814, 0.0
        %v5860 = vadd.f32 %v5858, %v5859
        %v5861 = vsel %vm428, %v5820, 0.0
        %v5862 = vadd.f32 %v5860, %v5861
        %5863 = vrot.lane.b32.xlu0 %v186, 127
        %v5864 = vpop.permute.xlu0 %5863
        %5865 = vrot.lane.b32.xlu0 %v187, 127
        %v5866 = vpop.permute.xlu0 %5865
        %5867 = vrot.lane.b32.xlu0 %v188, 127
        %v5868 = vpop.permute.xlu0 %5867
        %5869 = vrot.lane.b32.xlu0 %v189, 127
        %v5870 = vpop.permute.xlu0 %5869
        %5871 = vrot.lane.b32.xlu0 %v190, 127
        %v5872 = vpop.permute.xlu0 %5871
        %5873 = vrot.lane.b32.xlu0 %v191, 127
        %v5874 = vpop.permute.xlu0 %5873
        %5875 = vrot.lane.b32.xlu0 %v192, 127
        %v5876 = vpop.permute.xlu0 %5875
        %5877 = vrot.lane.b32.xlu0 %v193, 127
        %v5878 = vpop.permute.xlu0 %5877
        %5879 = vrot.lane.b32.xlu0 %v194, 127
        %v5880 = vpop.permute.xlu0 %5879
        %5881 = vrot.lane.b32.xlu0 %v195, 127
        %v5882 = vpop.permute.xlu0 %5881
        %5883 = vrot.lane.b32.xlu0 %v196, 127
        %v5884 = vpop.permute.xlu0 %5883
        %5885 = vrot.lane.b32.xlu0 %v197, 127
        %v5886 = vpop.permute.xlu0 %5885
        %5887 = vrot.lane.b32.xlu0 %v198, 127
        %v5888 = vpop.permute.xlu0 %5887
        %5889 = vrot.lane.b32.xlu0 %v199, 127
        %v5890 = vpop.permute.xlu0 %5889
        %5891 = vrot.lane.b32.xlu0 %v200, 127
        %v5892 = vpop.permute.xlu0 %5891
        %5893 = vrot.lane.b32.xlu0 %v201, 127
        %v5894 = vpop.permute.xlu0 %5893
        %5895 = vrot.lane.b32.xlu0 %v202, 127
        %v5896 = vpop.permute.xlu0 %5895
        %5897 = vrot.lane.b32.xlu0 %v203, 127
        %v5898 = vpop.permute.xlu0 %5897
        %v5899 = vsel %vm4998, %v5864, %v5866
        %v5900 = vsel %vm4998, %v5868, %v5870
        %v5901 = vsel %vm4998, %v5872, %v5874
        %v5902 = vsel %vm4998, %v5876, %v5878
        %v5903 = vsel %vm4998, %v5880, %v5882
        %v5904 = vsel %vm4998, %v5884, %v5886
        %v5905 = vsel %vm4998, %v5888, %v5890
        %v5906 = vsel %vm4998, %v5892, %v5894
        %v5907 = vsel %vm4998, %v5896, %v5898
        %v5926 = vmul.f32 %v186, %v5899
        %v5927 = vmul.f32 %v187, %v5866
        %v5928 = vmul.f32 %v188, %v5900
        %v5929 = vmul.f32 %v189, %v5870
        %v5930 = vmul.f32 %v190, %v5901
        %v5931 = vmul.f32 %v191, %v5874
        %v5932 = vmul.f32 %v192, %v5902
        %v5933 = vmul.f32 %v193, %v5878
        %v5934 = vmul.f32 %v194, %v5903
        %v5935 = vmul.f32 %v195, %v5882
        %v5936 = vmul.f32 %v196, %v5904
        %v5937 = vmul.f32 %v197, %v5886
        %v5938 = vmul.f32 %v198, %v5905
        %v5939 = vmul.f32 %v199, %v5890
        %v5940 = vmul.f32 %v200, %v5906
        %v5941 = vmul.f32 %v201, %v5894
        %v5942 = vmul.f32 %v202, %v5907
        %v5943 = vmul.f32 %v203, %v5898
        %v5944 = vsel %vm388, %v5926, 0.0
        %v5945 = vsel %vm388, %v5932, 0.0
        %v5946 = vadd.f32 %v5944, %v5945
        %v5947 = vsel %vm388, %v5938, 0.0
        %v5948 = vadd.f32 %v5946, %v5947
        %v5949 = vsel %vm396, %v5927, 0.0
        %v5950 = vsel %vm396, %v5933, 0.0
        %v5951 = vadd.f32 %v5949, %v5950
        %v5952 = vsel %vm396, %v5939, 0.0
        %v5953 = vadd.f32 %v5951, %v5952
        %v5954 = vsel %vm404, %v5928, 0.0
        %v5955 = vsel %vm404, %v5934, 0.0
        %v5956 = vadd.f32 %v5954, %v5955
        %v5957 = vsel %vm404, %v5940, 0.0
        %v5958 = vadd.f32 %v5956, %v5957
        %v5959 = vsel %vm412, %v5929, 0.0
        %v5960 = vsel %vm412, %v5935, 0.0
        %v5961 = vadd.f32 %v5959, %v5960
        %v5962 = vsel %vm412, %v5941, 0.0
        %v5963 = vadd.f32 %v5961, %v5962
        %v5964 = vsel %vm420, %v5930, 0.0
        %v5965 = vsel %vm420, %v5936, 0.0
        %v5966 = vadd.f32 %v5964, %v5965
        %v5967 = vsel %vm420, %v5942, 0.0
        %v5968 = vadd.f32 %v5966, %v5967
        %v5969 = vsel %vm428, %v5931, 0.0
        %v5970 = vsel %vm428, %v5937, 0.0
        %v5971 = vadd.f32 %v5969, %v5970
        %v5972 = vsel %vm428, %v5943, 0.0
        %v5973 = vadd.f32 %v5971, %v5972
        %5974 = vrot.lane.b32.xlu0 %v230, 127
        %v5975 = vpop.permute.xlu0 %5974
        %5976 = vrot.lane.b32.xlu0 %v238, 127
        %v5977 = vpop.permute.xlu0 %5976
        %5978 = vrot.lane.b32.xlu0 %v241, 127
        %v5979 = vpop.permute.xlu0 %5978
        %5980 = vrot.lane.b32.xlu0 %v248, 127
        %v5981 = vpop.permute.xlu0 %5980
        %5982 = vrot.lane.b32.xlu0 %v256, 127
        %v5983 = vpop.permute.xlu0 %5982
        %5984 = vrot.lane.b32.xlu0 %v264, 127
        %v5985 = vpop.permute.xlu0 %5984
        %v5986 = vsel %vm4998, %v5975, %v5977
        %v5987 = vsel %vm4998, %v5979, %v5981
        %v5988 = vsel %vm4998, %v5983, %v5985
        %v5995 = vadd.f32 %v230, %v5986
        %v5996 = vadd.f32 %v238, %v5977
        %v5997 = vadd.f32 %v241, %v5987
        %v5998 = vadd.f32 %v248, %v5981
        %v5999 = vadd.f32 %v256, %v5988
        %v6000 = vadd.f32 %v264, %v5985
        %v6001 = vmul.f32 %v5827, 2.0
        %v6002 = vmul.f32 %v5834, 2.0
        %v6003 = vmul.f32 %v5841, 2.0
        %v6004 = vmul.f32 %v5848, 2.0
        %v6005 = vmul.f32 %v5855, 2.0
        %v6006 = vmul.f32 %v5862, 2.0
        %v6007 = vsub.f32 %v5995, %v6001
        %v6008 = vsub.f32 %v5996, %v6002
        %v6009 = vsub.f32 %v5997, %v6003
        %v6010 = vsub.f32 %v5998, %v6004
        %v6011 = vsub.f32 %v5999, %v6005
        %v6012 = vsub.f32 %v6000, %v6006
        %6013 = vrot.lane.b32.xlu0 %v284, 127
        %v6014 = vpop.permute.xlu0 %6013
        %6015 = vrot.lane.b32.xlu0 %v289, 127
        %v6016 = vpop.permute.xlu0 %6015
        %6017 = vrot.lane.b32.xlu0 %v291, 127
        %v6018 = vpop.permute.xlu0 %6017
        %6019 = vrot.lane.b32.xlu0 %v296, 127
        %v6020 = vpop.permute.xlu0 %6019
        %6021 = vrot.lane.b32.xlu0 %v301, 127
        %v6022 = vpop.permute.xlu0 %6021
        %6023 = vrot.lane.b32.xlu0 %v306, 127
        %v6024 = vpop.permute.xlu0 %6023
        %v6025 = vsel %vm4998, %v6014, %v6016
        %v6026 = vsel %vm4998, %v6018, %v6020
        %v6027 = vsel %vm4998, %v6022, %v6024
        %v6034 = vadd.f32 %v284, %v6025
        %v6035 = vadd.f32 %v289, %v6016
        %v6036 = vadd.f32 %v291, %v6026
        %v6037 = vadd.f32 %v296, %v6020
        %v6038 = vadd.f32 %v301, %v6027
        %v6039 = vadd.f32 %v306, %v6024
        %v6040 = vmul.f32 %v5948, 2.0
        %v6041 = vmul.f32 %v5953, 2.0
        %v6042 = vmul.f32 %v5958, 2.0
        %v6043 = vmul.f32 %v5963, 2.0
        %v6044 = vmul.f32 %v5968, 2.0
        %v6045 = vmul.f32 %v5973, 2.0
        %v6046 = vsub.f32 %v6034, %v6040
        %v6047 = vsub.f32 %v6035, %v6041
        %v6048 = vsub.f32 %v6036, %v6042
        %v6049 = vsub.f32 %v6037, %v6043
        %v6050 = vsub.f32 %v6038, %v6044
        %v6051 = vsub.f32 %v6039, %v6045
        %v6052 = vsub.f32 0.0, %v6046
        %v6053 = vsub.f32 0.0, %v6047
        %v6054 = vsub.f32 0.0, %v6048
        %v6055 = vsub.f32 0.0, %v6049
        %v6056 = vsub.f32 0.0, %v6050
        %v6057 = vsub.f32 0.0, %v6051
        %v6058 = vmul.f32 %v6052, 50.0
        %v6059 = vmul.f32 %v6053, 50.0
        %v6060 = vmul.f32 %v6054, 50.0
        %v6061 = vmul.f32 %v6055, 50.0
        %v6062 = vmul.f32 %v6056, 50.0
        %v6063 = vmul.f32 %v6057, 50.0
        %v6064 = vsub.f32 %v6058, 0.02
        %v6065 = vsub.f32 %v6059, 0.02
        %v6066 = vsub.f32 %v6060, 0.02
        %v6067 = vsub.f32 %v6061, 0.02
        %v6068 = vsub.f32 %v6062, 0.02
        %v6069 = vsub.f32 %v6063, 0.02
        %v6070 = vmul.f32 %v6064, 1.442695
        %v6071 = vpow.pop %v6070
        %v6072 = vmul.f32 %v6065, 1.442695
        %v6073 = vpow.pop %v6072
        %v6074 = vmul.f32 %v6066, 1.442695
        %v6075 = vpow.pop %v6074
        %v6076 = vmul.f32 %v6067, 1.442695
        %v6077 = vpow.pop %v6076
        %v6078 = vmul.f32 %v6068, 1.442695
        %v6079 = vpow.pop %v6078
        %v6080 = vmul.f32 %v6069, 1.442695
        %v6081 = vpow.pop %v6080
        %v6082 = vmul.f32 %v6071, %v6007
        %v6083 = vmul.f32 %v6073, %v6008
        %v6084 = vmul.f32 %v6075, %v6009
        %v6085 = vmul.f32 %v6077, %v6010
        %v6086 = vmul.f32 %v6079, %v6011
        %v6087 = vmul.f32 %v6081, %v6012
        %v6088 = vadd.f32 %v5707, %v6082
        %v6089 = vadd.f32 %v5708, %v6083
        %v6090 = vadd.f32 %v5709, %v6084
        %v6091 = vadd.f32 %v5710, %v6085
        %v6092 = vadd.f32 %v5711, %v6086
        %v6093 = vadd.f32 %v5712, %v6087
        %6094 = vrot.lane.b32.xlu0 %v1236, 127
        %v6095 = vpop.permute.xlu0 %6094
        %6096 = vrot.lane.b32.xlu0 %v3116, 127
        %v6097 = vpop.permute.xlu0 %6096
        %6098 = vrot.lane.b32.xlu0 %v1238, 127
        %v6099 = vpop.permute.xlu0 %6098
        %6100 = vrot.lane.b32.xlu0 %v3118, 127
        %v6101 = vpop.permute.xlu0 %6100
        %6102 = vrot.lane.b32.xlu0 %v1237, 127
        %v6103 = vpop.permute.xlu0 %6102
        %6104 = vrot.lane.b32.xlu0 %v3117, 127
        %v6105 = vpop.permute.xlu0 %6104
        %6106 = vrot.lane.b32.xlu0 %v1241, 127
        %v6107 = vpop.permute.xlu0 %6106
        %6108 = vrot.lane.b32.xlu0 %v3121, 127
        %v6109 = vpop.permute.xlu0 %6108
        %6110 = vrot.lane.b32.xlu0 %v1243, 127
        %v6111 = vpop.permute.xlu0 %6110
        %6112 = vrot.lane.b32.xlu0 %v3123, 127
        %v6113 = vpop.permute.xlu0 %6112
        %6114 = vrot.lane.b32.xlu0 %v1242, 127
        %v6115 = vpop.permute.xlu0 %6114
        %6116 = vrot.lane.b32.xlu0 %v3122, 127
        %v6117 = vpop.permute.xlu0 %6116
        %6118 = vrot.lane.b32.xlu0 %v1246, 127
        %v6119 = vpop.permute.xlu0 %6118
        %6120 = vrot.lane.b32.xlu0 %v3126, 127
        %v6121 = vpop.permute.xlu0 %6120
        %6122 = vrot.lane.b32.xlu0 %v1248, 127
        %v6123 = vpop.permute.xlu0 %6122
        %6124 = vrot.lane.b32.xlu0 %v3128, 127
        %v6125 = vpop.permute.xlu0 %6124
        %6126 = vrot.lane.b32.xlu0 %v1247, 127
        %v6127 = vpop.permute.xlu0 %6126
        %6128 = vrot.lane.b32.xlu0 %v3127, 127
        %v6129 = vpop.permute.xlu0 %6128
        %6130 = vrot.lane.b32.xlu0 %v1251, 127
        %v6131 = vpop.permute.xlu0 %6130
        %6132 = vrot.lane.b32.xlu0 %v3131, 127
        %v6133 = vpop.permute.xlu0 %6132
        %6134 = vrot.lane.b32.xlu0 %v1253, 127
        %v6135 = vpop.permute.xlu0 %6134
        %6136 = vrot.lane.b32.xlu0 %v3133, 127
        %v6137 = vpop.permute.xlu0 %6136
        %6138 = vrot.lane.b32.xlu0 %v1252, 127
        %v6139 = vpop.permute.xlu0 %6138
        %6140 = vrot.lane.b32.xlu0 %v3132, 127
        %v6141 = vpop.permute.xlu0 %6140
        %v6142 = vsel %vm4998, %v6095, %v6097
        %v6143 = vsel %vm4998, %v6099, %v6101
        %v6144 = vsel %vm4998, %v6103, %v6105
        %v6145 = vsel %vm4998, %v6107, %v6109
        %v6146 = vsel %vm4998, %v6111, %v6113
        %v6147 = vsel %vm4998, %v6115, %v6117
        %v6148 = vsel %vm4998, %v6119, %v6121
        %v6149 = vsel %vm4998, %v6123, %v6125
        %v6150 = vsel %vm4998, %v6127, %v6129
        %v6151 = vsel %vm4998, %v6131, %v6133
        %v6152 = vsel %vm4998, %v6135, %v6137
        %v6153 = vsel %vm4998, %v6139, %v6141
        %v6178 = vmul.f32 %v162, %v6142
        %v6179 = vmul.f32 %v163, %v6097
        %v6180 = vmul.f32 %v164, %v6143
        %v6181 = vmul.f32 %v165, %v6101
        %v6182 = vmul.f32 %v166, %v6144
        %v6183 = vmul.f32 %v167, %v6105
        %v6184 = vmul.f32 %v168, %v6145
        %v6185 = vmul.f32 %v169, %v6109
        %v6186 = vmul.f32 %v170, %v6146
        %v6187 = vmul.f32 %v171, %v6113
        %v6188 = vmul.f32 %v172, %v6147
        %v6189 = vmul.f32 %v173, %v6117
        %v6190 = vmul.f32 %v174, %v6148
        %v6191 = vmul.f32 %v175, %v6121
        %v6192 = vmul.f32 %v176, %v6149
        %v6193 = vmul.f32 %v177, %v6125
        %v6194 = vmul.f32 %v178, %v6150
        %v6195 = vmul.f32 %v179, %v6129
        %v6196 = vmul.f32 %v180, %v6151
        %v6197 = vmul.f32 %v181, %v6133
        %v6198 = vmul.f32 %v182, %v6152
        %v6199 = vmul.f32 %v183, %v6137
        %v6200 = vmul.f32 %v184, %v6153
        %v6201 = vmul.f32 %v185, %v6141
        %v6202 = vsel %vm388, %v6178, 0.0
        %v6203 = vsel %vm388, %v6184, 0.0
        %v6204 = vadd.f32 %v6202, %v6203
        %v6205 = vsel %vm388, %v6190, 0.0
        %v6206 = vadd.f32 %v6204, %v6205
        %v6207 = vsel %vm388, %v6196, 0.0
        %v6208 = vadd.f32 %v6206, %v6207
        %v6209 = vsel %vm396, %v6179, 0.0
        %v6210 = vsel %vm396, %v6185, 0.0
        %v6211 = vadd.f32 %v6209, %v6210
        %v6212 = vsel %vm396, %v6191, 0.0
        %v6213 = vadd.f32 %v6211, %v6212
        %v6214 = vsel %vm396, %v6197, 0.0
        %v6215 = vadd.f32 %v6213, %v6214
        %v6216 = vsel %vm404, %v6180, 0.0
        %v6217 = vsel %vm404, %v6186, 0.0
        %v6218 = vadd.f32 %v6216, %v6217
        %v6219 = vsel %vm404, %v6192, 0.0
        %v6220 = vadd.f32 %v6218, %v6219
        %v6221 = vsel %vm404, %v6198, 0.0
        %v6222 = vadd.f32 %v6220, %v6221
        %v6223 = vsel %vm412, %v6181, 0.0
        %v6224 = vsel %vm412, %v6187, 0.0
        %v6225 = vadd.f32 %v6223, %v6224
        %v6226 = vsel %vm412, %v6193, 0.0
        %v6227 = vadd.f32 %v6225, %v6226
        %v6228 = vsel %vm412, %v6199, 0.0
        %v6229 = vadd.f32 %v6227, %v6228
        %v6230 = vsel %vm420, %v6182, 0.0
        %v6231 = vsel %vm420, %v6188, 0.0
        %v6232 = vadd.f32 %v6230, %v6231
        %v6233 = vsel %vm420, %v6194, 0.0
        %v6234 = vadd.f32 %v6232, %v6233
        %v6235 = vsel %vm420, %v6200, 0.0
        %v6236 = vadd.f32 %v6234, %v6235
        %v6237 = vsel %vm428, %v6183, 0.0
        %v6238 = vsel %vm428, %v6189, 0.0
        %v6239 = vadd.f32 %v6237, %v6238
        %v6240 = vsel %vm428, %v6195, 0.0
        %v6241 = vadd.f32 %v6239, %v6240
        %v6242 = vsel %vm428, %v6201, 0.0
        %v6243 = vadd.f32 %v6241, %v6242
        %6244 = vrot.lane.b32.xlu0 %v1358, 127
        %v6245 = vpop.permute.xlu0 %6244
        %6246 = vrot.lane.b32.xlu0 %v3286, 127
        %v6247 = vpop.permute.xlu0 %6246
        %6248 = vrot.lane.b32.xlu0 %v1360, 127
        %v6249 = vpop.permute.xlu0 %6248
        %6250 = vrot.lane.b32.xlu0 %v3288, 127
        %v6251 = vpop.permute.xlu0 %6250
        %6252 = vrot.lane.b32.xlu0 %v1359, 127
        %v6253 = vpop.permute.xlu0 %6252
        %6254 = vrot.lane.b32.xlu0 %v3287, 127
        %v6255 = vpop.permute.xlu0 %6254
        %6256 = vrot.lane.b32.xlu0 %v1363, 127
        %v6257 = vpop.permute.xlu0 %6256
        %6258 = vrot.lane.b32.xlu0 %v3291, 127
        %v6259 = vpop.permute.xlu0 %6258
        %6260 = vrot.lane.b32.xlu0 %v1365, 127
        %v6261 = vpop.permute.xlu0 %6260
        %6262 = vrot.lane.b32.xlu0 %v3293, 127
        %v6263 = vpop.permute.xlu0 %6262
        %6264 = vrot.lane.b32.xlu0 %v1364, 127
        %v6265 = vpop.permute.xlu0 %6264
        %6266 = vrot.lane.b32.xlu0 %v3292, 127
        %v6267 = vpop.permute.xlu0 %6266
        %6268 = vrot.lane.b32.xlu0 %v1368, 127
        %v6269 = vpop.permute.xlu0 %6268
        %6270 = vrot.lane.b32.xlu0 %v3296, 127
        %v6271 = vpop.permute.xlu0 %6270
        %6272 = vrot.lane.b32.xlu0 %v1370, 127
        %v6273 = vpop.permute.xlu0 %6272
        %6274 = vrot.lane.b32.xlu0 %v3298, 127
        %v6275 = vpop.permute.xlu0 %6274
        %6276 = vrot.lane.b32.xlu0 %v1369, 127
        %v6277 = vpop.permute.xlu0 %6276
        %6278 = vrot.lane.b32.xlu0 %v3297, 127
        %v6279 = vpop.permute.xlu0 %6278
        %v6280 = vsel %vm4998, %v6245, %v6247
        %v6281 = vsel %vm4998, %v6249, %v6251
        %v6282 = vsel %vm4998, %v6253, %v6255
        %v6283 = vsel %vm4998, %v6257, %v6259
        %v6284 = vsel %vm4998, %v6261, %v6263
        %v6285 = vsel %vm4998, %v6265, %v6267
        %v6286 = vsel %vm4998, %v6269, %v6271
        %v6287 = vsel %vm4998, %v6273, %v6275
        %v6288 = vsel %vm4998, %v6277, %v6279
        %v6307 = vmul.f32 %v186, %v6280
        %v6308 = vmul.f32 %v187, %v6247
        %v6309 = vmul.f32 %v188, %v6281
        %v6310 = vmul.f32 %v189, %v6251
        %v6311 = vmul.f32 %v190, %v6282
        %v6312 = vmul.f32 %v191, %v6255
        %v6313 = vmul.f32 %v192, %v6283
        %v6314 = vmul.f32 %v193, %v6259
        %v6315 = vmul.f32 %v194, %v6284
        %v6316 = vmul.f32 %v195, %v6263
        %v6317 = vmul.f32 %v196, %v6285
        %v6318 = vmul.f32 %v197, %v6267
        %v6319 = vmul.f32 %v198, %v6286
        %v6320 = vmul.f32 %v199, %v6271
        %v6321 = vmul.f32 %v200, %v6287
        %v6322 = vmul.f32 %v201, %v6275
        %v6323 = vmul.f32 %v202, %v6288
        %v6324 = vmul.f32 %v203, %v6279
        %v6325 = vsel %vm388, %v6307, 0.0
        %v6326 = vsel %vm388, %v6313, 0.0
        %v6327 = vadd.f32 %v6325, %v6326
        %v6328 = vsel %vm388, %v6319, 0.0
        %v6329 = vadd.f32 %v6327, %v6328
        %v6330 = vsel %vm396, %v6308, 0.0
        %v6331 = vsel %vm396, %v6314, 0.0
        %v6332 = vadd.f32 %v6330, %v6331
        %v6333 = vsel %vm396, %v6320, 0.0
        %v6334 = vadd.f32 %v6332, %v6333
        %v6335 = vsel %vm404, %v6309, 0.0
        %v6336 = vsel %vm404, %v6315, 0.0
        %v6337 = vadd.f32 %v6335, %v6336
        %v6338 = vsel %vm404, %v6321, 0.0
        %v6339 = vadd.f32 %v6337, %v6338
        %v6340 = vsel %vm412, %v6310, 0.0
        %v6341 = vsel %vm412, %v6316, 0.0
        %v6342 = vadd.f32 %v6340, %v6341
        %v6343 = vsel %vm412, %v6322, 0.0
        %v6344 = vadd.f32 %v6342, %v6343
        %v6345 = vsel %vm420, %v6311, 0.0
        %v6346 = vsel %vm420, %v6317, 0.0
        %v6347 = vadd.f32 %v6345, %v6346
        %v6348 = vsel %vm420, %v6323, 0.0
        %v6349 = vadd.f32 %v6347, %v6348
        %v6350 = vsel %vm428, %v6312, 0.0
        %v6351 = vsel %vm428, %v6318, 0.0
        %v6352 = vadd.f32 %v6350, %v6351
        %v6353 = vsel %vm428, %v6324, 0.0
        %v6354 = vadd.f32 %v6352, %v6353
        %6355 = vrot.lane.b32.xlu0 %v1448, 127
        %v6356 = vpop.permute.xlu0 %6355
        %6357 = vrot.lane.b32.xlu0 %v3412, 127
        %v6358 = vpop.permute.xlu0 %6357
        %6359 = vrot.lane.b32.xlu0 %v1450, 127
        %v6360 = vpop.permute.xlu0 %6359
        %6361 = vrot.lane.b32.xlu0 %v3414, 127
        %v6362 = vpop.permute.xlu0 %6361
        %6363 = vrot.lane.b32.xlu0 %v1449, 127
        %v6364 = vpop.permute.xlu0 %6363
        %6365 = vrot.lane.b32.xlu0 %v3413, 127
        %v6366 = vpop.permute.xlu0 %6365
        %v6367 = vsel %vm4998, %v6356, %v6358
        %v6368 = vsel %vm4998, %v6360, %v6362
        %v6369 = vsel %vm4998, %v6364, %v6366
        %v6376 = vadd.f32 %v230, %v6367
        %v6377 = vadd.f32 %v238, %v6358
        %v6378 = vadd.f32 %v241, %v6368
        %v6379 = vadd.f32 %v248, %v6362
        %v6380 = vadd.f32 %v256, %v6369
        %v6381 = vadd.f32 %v264, %v6366
        %v6382 = vmul.f32 %v6208, 2.0
        %v6383 = vmul.f32 %v6215, 2.0
        %v6384 = vmul.f32 %v6222, 2.0
        %v6385 = vmul.f32 %v6229, 2.0
        %v6386 = vmul.f32 %v6236, 2.0
        %v6387 = vmul.f32 %v6243, 2.0
        %v6388 = vsub.f32 %v6376, %v6382
        %v6389 = vsub.f32 %v6377, %v6383
        %v6390 = vsub.f32 %v6378, %v6384
        %v6391 = vsub.f32 %v6379, %v6385
        %v6392 = vsub.f32 %v6380, %v6386
        %v6393 = vsub.f32 %v6381, %v6387
        %6394 = vrot.lane.b32.xlu0 %v1480, 127
        %v6395 = vpop.permute.xlu0 %6394
        %6396 = vrot.lane.b32.xlu0 %v3456, 127
        %v6397 = vpop.permute.xlu0 %6396
        %6398 = vrot.lane.b32.xlu0 %v1482, 127
        %v6399 = vpop.permute.xlu0 %6398
        %6400 = vrot.lane.b32.xlu0 %v3458, 127
        %v6401 = vpop.permute.xlu0 %6400
        %6402 = vrot.lane.b32.xlu0 %v1481, 127
        %v6403 = vpop.permute.xlu0 %6402
        %6404 = vrot.lane.b32.xlu0 %v3457, 127
        %v6405 = vpop.permute.xlu0 %6404
        %v6406 = vsel %vm4998, %v6395, %v6397
        %v6407 = vsel %vm4998, %v6399, %v6401
        %v6408 = vsel %vm4998, %v6403, %v6405
        %v6415 = vadd.f32 %v284, %v6406
        %v6416 = vadd.f32 %v289, %v6397
        %v6417 = vadd.f32 %v291, %v6407
        %v6418 = vadd.f32 %v296, %v6401
        %v6419 = vadd.f32 %v301, %v6408
        %v6420 = vadd.f32 %v306, %v6405
        %v6421 = vmul.f32 %v6329, 2.0
        %v6422 = vmul.f32 %v6334, 2.0
        %v6423 = vmul.f32 %v6339, 2.0
        %v6424 = vmul.f32 %v6344, 2.0
        %v6425 = vmul.f32 %v6349, 2.0
        %v6426 = vmul.f32 %v6354, 2.0
        %v6427 = vsub.f32 %v6415, %v6421
        %v6428 = vsub.f32 %v6416, %v6422
        %v6429 = vsub.f32 %v6417, %v6423
        %v6430 = vsub.f32 %v6418, %v6424
        %v6431 = vsub.f32 %v6419, %v6425
        %v6432 = vsub.f32 %v6420, %v6426
        %v6433 = vsub.f32 0.0, %v6427
        %v6434 = vsub.f32 0.0, %v6428
        %v6435 = vsub.f32 0.0, %v6429
        %v6436 = vsub.f32 0.0, %v6430
        %v6437 = vsub.f32 0.0, %v6431
        %v6438 = vsub.f32 0.0, %v6432
        %v6439 = vmul.f32 %v6433, 50.0
        %v6440 = vmul.f32 %v6434, 50.0
        %v6441 = vmul.f32 %v6435, 50.0
        %v6442 = vmul.f32 %v6436, 50.0
        %v6443 = vmul.f32 %v6437, 50.0
        %v6444 = vmul.f32 %v6438, 50.0
        %v6445 = vsub.f32 %v6439, 0.04
        %v6446 = vsub.f32 %v6440, 0.04
        %v6447 = vsub.f32 %v6441, 0.04
        %v6448 = vsub.f32 %v6442, 0.04
        %v6449 = vsub.f32 %v6443, 0.04
        %v6450 = vsub.f32 %v6444, 0.04
        %v6451 = vmul.f32 %v6445, 1.442695
        %v6452 = vpow.pop %v6451
        %v6453 = vmul.f32 %v6446, 1.442695
        %v6454 = vpow.pop %v6453
        %v6455 = vmul.f32 %v6447, 1.442695
        %v6456 = vpow.pop %v6455
        %v6457 = vmul.f32 %v6448, 1.442695
        %v6458 = vpow.pop %v6457
        %v6459 = vmul.f32 %v6449, 1.442695
        %v6460 = vpow.pop %v6459
        %v6461 = vmul.f32 %v6450, 1.442695
        %v6462 = vpow.pop %v6461
        %v6463 = vmul.f32 %v6452, %v6388
        %v6464 = vmul.f32 %v6454, %v6389
        %v6465 = vmul.f32 %v6456, %v6390
        %v6466 = vmul.f32 %v6458, %v6391
        %v6467 = vmul.f32 %v6460, %v6392
        %v6468 = vmul.f32 %v6462, %v6393
        %v6469 = vadd.f32 %v6088, %v6463
        %v6470 = vadd.f32 %v6089, %v6464
        %v6471 = vadd.f32 %v6090, %v6465
        %v6472 = vadd.f32 %v6091, %v6466
        %v6473 = vadd.f32 %v6092, %v6467
        %v6474 = vadd.f32 %v6093, %v6468
        %6475 = vrot.lane.b32.xlu0 %v1555, 127
        %v6476 = vpop.permute.xlu0 %6475
        %6477 = vrot.lane.b32.xlu0 %v3542, 127
        %v6478 = vpop.permute.xlu0 %6477
        %6479 = vrot.lane.b32.xlu0 %v1557, 127
        %v6480 = vpop.permute.xlu0 %6479
        %6481 = vrot.lane.b32.xlu0 %v3544, 127
        %v6482 = vpop.permute.xlu0 %6481
        %6483 = vrot.lane.b32.xlu0 %v1556, 127
        %v6484 = vpop.permute.xlu0 %6483
        %6485 = vrot.lane.b32.xlu0 %v3543, 127
        %v6486 = vpop.permute.xlu0 %6485
        %6487 = vrot.lane.b32.xlu0 %v1560, 127
        %v6488 = vpop.permute.xlu0 %6487
        %6489 = vrot.lane.b32.xlu0 %v3547, 127
        %v6490 = vpop.permute.xlu0 %6489
        %6491 = vrot.lane.b32.xlu0 %v1562, 127
        %v6492 = vpop.permute.xlu0 %6491
        %6493 = vrot.lane.b32.xlu0 %v3549, 127
        %v6494 = vpop.permute.xlu0 %6493
        %6495 = vrot.lane.b32.xlu0 %v1561, 127
        %v6496 = vpop.permute.xlu0 %6495
        %6497 = vrot.lane.b32.xlu0 %v3548, 127
        %v6498 = vpop.permute.xlu0 %6497
        %6499 = vrot.lane.b32.xlu0 %v1565, 127
        %v6500 = vpop.permute.xlu0 %6499
        %6501 = vrot.lane.b32.xlu0 %v3552, 127
        %v6502 = vpop.permute.xlu0 %6501
        %6503 = vrot.lane.b32.xlu0 %v1567, 127
        %v6504 = vpop.permute.xlu0 %6503
        %6505 = vrot.lane.b32.xlu0 %v3554, 127
        %v6506 = vpop.permute.xlu0 %6505
        %6507 = vrot.lane.b32.xlu0 %v1566, 127
        %v6508 = vpop.permute.xlu0 %6507
        %6509 = vrot.lane.b32.xlu0 %v3553, 127
        %v6510 = vpop.permute.xlu0 %6509
        %6511 = vrot.lane.b32.xlu0 %v1570, 127
        %v6512 = vpop.permute.xlu0 %6511
        %6513 = vrot.lane.b32.xlu0 %v3557, 127
        %v6514 = vpop.permute.xlu0 %6513
        %6515 = vrot.lane.b32.xlu0 %v1572, 127
        %v6516 = vpop.permute.xlu0 %6515
        %6517 = vrot.lane.b32.xlu0 %v3559, 127
        %v6518 = vpop.permute.xlu0 %6517
        %6519 = vrot.lane.b32.xlu0 %v1571, 127
        %v6520 = vpop.permute.xlu0 %6519
        %6521 = vrot.lane.b32.xlu0 %v3558, 127
        %v6522 = vpop.permute.xlu0 %6521
        %v6523 = vsel %vm4998, %v6476, %v6478
        %v6524 = vsel %vm4998, %v6480, %v6482
        %v6525 = vsel %vm4998, %v6484, %v6486
        %v6526 = vsel %vm4998, %v6488, %v6490
        %v6527 = vsel %vm4998, %v6492, %v6494
        %v6528 = vsel %vm4998, %v6496, %v6498
        %v6529 = vsel %vm4998, %v6500, %v6502
        %v6530 = vsel %vm4998, %v6504, %v6506
        %v6531 = vsel %vm4998, %v6508, %v6510
        %v6532 = vsel %vm4998, %v6512, %v6514
        %v6533 = vsel %vm4998, %v6516, %v6518
        %v6534 = vsel %vm4998, %v6520, %v6522
        %v6559 = vmul.f32 %v162, %v6523
        %v6560 = vmul.f32 %v163, %v6478
        %v6561 = vmul.f32 %v164, %v6524
        %v6562 = vmul.f32 %v165, %v6482
        %v6563 = vmul.f32 %v166, %v6525
        %v6564 = vmul.f32 %v167, %v6486
        %v6565 = vmul.f32 %v168, %v6526
        %v6566 = vmul.f32 %v169, %v6490
        %v6567 = vmul.f32 %v170, %v6527
        %v6568 = vmul.f32 %v171, %v6494
        %v6569 = vmul.f32 %v172, %v6528
        %v6570 = vmul.f32 %v173, %v6498
        %v6571 = vmul.f32 %v174, %v6529
        %v6572 = vmul.f32 %v175, %v6502
        %v6573 = vmul.f32 %v176, %v6530
        %v6574 = vmul.f32 %v177, %v6506
        %v6575 = vmul.f32 %v178, %v6531
        %v6576 = vmul.f32 %v179, %v6510
        %v6577 = vmul.f32 %v180, %v6532
        %v6578 = vmul.f32 %v181, %v6514
        %v6579 = vmul.f32 %v182, %v6533
        %v6580 = vmul.f32 %v183, %v6518
        %v6581 = vmul.f32 %v184, %v6534
        %v6582 = vmul.f32 %v185, %v6522
        %v6583 = vsel %vm388, %v6559, 0.0
        %v6584 = vsel %vm388, %v6565, 0.0
        %v6585 = vadd.f32 %v6583, %v6584
        %v6586 = vsel %vm388, %v6571, 0.0
        %v6587 = vadd.f32 %v6585, %v6586
        %v6588 = vsel %vm388, %v6577, 0.0
        %v6589 = vadd.f32 %v6587, %v6588
        %v6590 = vsel %vm396, %v6560, 0.0
        %v6591 = vsel %vm396, %v6566, 0.0
        %v6592 = vadd.f32 %v6590, %v6591
        %v6593 = vsel %vm396, %v6572, 0.0
        %v6594 = vadd.f32 %v6592, %v6593
        %v6595 = vsel %vm396, %v6578, 0.0
        %v6596 = vadd.f32 %v6594, %v6595
        %v6597 = vsel %vm404, %v6561, 0.0
        %v6598 = vsel %vm404, %v6567, 0.0
        %v6599 = vadd.f32 %v6597, %v6598
        %v6600 = vsel %vm404, %v6573, 0.0
        %v6601 = vadd.f32 %v6599, %v6600
        %v6602 = vsel %vm404, %v6579, 0.0
        %v6603 = vadd.f32 %v6601, %v6602
        %v6604 = vsel %vm412, %v6562, 0.0
        %v6605 = vsel %vm412, %v6568, 0.0
        %v6606 = vadd.f32 %v6604, %v6605
        %v6607 = vsel %vm412, %v6574, 0.0
        %v6608 = vadd.f32 %v6606, %v6607
        %v6609 = vsel %vm412, %v6580, 0.0
        %v6610 = vadd.f32 %v6608, %v6609
        %v6611 = vsel %vm420, %v6563, 0.0
        %v6612 = vsel %vm420, %v6569, 0.0
        %v6613 = vadd.f32 %v6611, %v6612
        %v6614 = vsel %vm420, %v6575, 0.0
        %v6615 = vadd.f32 %v6613, %v6614
        %v6616 = vsel %vm420, %v6581, 0.0
        %v6617 = vadd.f32 %v6615, %v6616
        %v6618 = vsel %vm428, %v6564, 0.0
        %v6619 = vsel %vm428, %v6570, 0.0
        %v6620 = vadd.f32 %v6618, %v6619
        %v6621 = vsel %vm428, %v6576, 0.0
        %v6622 = vadd.f32 %v6620, %v6621
        %v6623 = vsel %vm428, %v6582, 0.0
        %v6624 = vadd.f32 %v6622, %v6623
        %6625 = vrot.lane.b32.xlu0 %v1677, 127
        %v6626 = vpop.permute.xlu0 %6625
        %6627 = vrot.lane.b32.xlu0 %v3712, 127
        %v6628 = vpop.permute.xlu0 %6627
        %6629 = vrot.lane.b32.xlu0 %v1679, 127
        %v6630 = vpop.permute.xlu0 %6629
        %6631 = vrot.lane.b32.xlu0 %v3714, 127
        %v6632 = vpop.permute.xlu0 %6631
        %6633 = vrot.lane.b32.xlu0 %v1678, 127
        %v6634 = vpop.permute.xlu0 %6633
        %6635 = vrot.lane.b32.xlu0 %v3713, 127
        %v6636 = vpop.permute.xlu0 %6635
        %6637 = vrot.lane.b32.xlu0 %v1682, 127
        %v6638 = vpop.permute.xlu0 %6637
        %6639 = vrot.lane.b32.xlu0 %v3717, 127
        %v6640 = vpop.permute.xlu0 %6639
        %6641 = vrot.lane.b32.xlu0 %v1684, 127
        %v6642 = vpop.permute.xlu0 %6641
        %6643 = vrot.lane.b32.xlu0 %v3719, 127
        %v6644 = vpop.permute.xlu0 %6643
        %6645 = vrot.lane.b32.xlu0 %v1683, 127
        %v6646 = vpop.permute.xlu0 %6645
        %6647 = vrot.lane.b32.xlu0 %v3718, 127
        %v6648 = vpop.permute.xlu0 %6647
        %6649 = vrot.lane.b32.xlu0 %v1687, 127
        %v6650 = vpop.permute.xlu0 %6649
        %6651 = vrot.lane.b32.xlu0 %v3722, 127
        %v6652 = vpop.permute.xlu0 %6651
        %6653 = vrot.lane.b32.xlu0 %v1689, 127
        %v6654 = vpop.permute.xlu0 %6653
        %6655 = vrot.lane.b32.xlu0 %v3724, 127
        %v6656 = vpop.permute.xlu0 %6655
        %6657 = vrot.lane.b32.xlu0 %v1688, 127
        %v6658 = vpop.permute.xlu0 %6657
        %6659 = vrot.lane.b32.xlu0 %v3723, 127
        %v6660 = vpop.permute.xlu0 %6659
        %v6661 = vsel %vm4998, %v6626, %v6628
        %v6662 = vsel %vm4998, %v6630, %v6632
        %v6663 = vsel %vm4998, %v6634, %v6636
        %v6664 = vsel %vm4998, %v6638, %v6640
        %v6665 = vsel %vm4998, %v6642, %v6644
        %v6666 = vsel %vm4998, %v6646, %v6648
        %v6667 = vsel %vm4998, %v6650, %v6652
        %v6668 = vsel %vm4998, %v6654, %v6656
        %v6669 = vsel %vm4998, %v6658, %v6660
        %v6688 = vmul.f32 %v186, %v6661
        %v6689 = vmul.f32 %v187, %v6628
        %v6690 = vmul.f32 %v188, %v6662
        %v6691 = vmul.f32 %v189, %v6632
        %v6692 = vmul.f32 %v190, %v6663
        %v6693 = vmul.f32 %v191, %v6636
        %v6694 = vmul.f32 %v192, %v6664
        %v6695 = vmul.f32 %v193, %v6640
        %v6696 = vmul.f32 %v194, %v6665
        %v6697 = vmul.f32 %v195, %v6644
        %v6698 = vmul.f32 %v196, %v6666
        %v6699 = vmul.f32 %v197, %v6648
        %v6700 = vmul.f32 %v198, %v6667
        %v6701 = vmul.f32 %v199, %v6652
        %v6702 = vmul.f32 %v200, %v6668
        %v6703 = vmul.f32 %v201, %v6656
        %v6704 = vmul.f32 %v202, %v6669
        %v6705 = vmul.f32 %v203, %v6660
        %v6706 = vsel %vm388, %v6688, 0.0
        %v6707 = vsel %vm388, %v6694, 0.0
        %v6708 = vadd.f32 %v6706, %v6707
        %v6709 = vsel %vm388, %v6700, 0.0
        %v6710 = vadd.f32 %v6708, %v6709
        %v6711 = vsel %vm396, %v6689, 0.0
        %v6712 = vsel %vm396, %v6695, 0.0
        %v6713 = vadd.f32 %v6711, %v6712
        %v6714 = vsel %vm396, %v6701, 0.0
        %v6715 = vadd.f32 %v6713, %v6714
        %v6716 = vsel %vm404, %v6690, 0.0
        %v6717 = vsel %vm404, %v6696, 0.0
        %v6718 = vadd.f32 %v6716, %v6717
        %v6719 = vsel %vm404, %v6702, 0.0
        %v6720 = vadd.f32 %v6718, %v6719
        %v6721 = vsel %vm412, %v6691, 0.0
        %v6722 = vsel %vm412, %v6697, 0.0
        %v6723 = vadd.f32 %v6721, %v6722
        %v6724 = vsel %vm412, %v6703, 0.0
        %v6725 = vadd.f32 %v6723, %v6724
        %v6726 = vsel %vm420, %v6692, 0.0
        %v6727 = vsel %vm420, %v6698, 0.0
        %v6728 = vadd.f32 %v6726, %v6727
        %v6729 = vsel %vm420, %v6704, 0.0
        %v6730 = vadd.f32 %v6728, %v6729
        %v6731 = vsel %vm428, %v6693, 0.0
        %v6732 = vsel %vm428, %v6699, 0.0
        %v6733 = vadd.f32 %v6731, %v6732
        %v6734 = vsel %vm428, %v6705, 0.0
        %v6735 = vadd.f32 %v6733, %v6734
        %6736 = vrot.lane.b32.xlu0 %v1767, 127
        %v6737 = vpop.permute.xlu0 %6736
        %6738 = vrot.lane.b32.xlu0 %v3838, 127
        %v6739 = vpop.permute.xlu0 %6738
        %6740 = vrot.lane.b32.xlu0 %v1769, 127
        %v6741 = vpop.permute.xlu0 %6740
        %6742 = vrot.lane.b32.xlu0 %v3840, 127
        %v6743 = vpop.permute.xlu0 %6742
        %6744 = vrot.lane.b32.xlu0 %v1768, 127
        %v6745 = vpop.permute.xlu0 %6744
        %6746 = vrot.lane.b32.xlu0 %v3839, 127
        %v6747 = vpop.permute.xlu0 %6746
        %v6748 = vsel %vm4998, %v6737, %v6739
        %v6749 = vsel %vm4998, %v6741, %v6743
        %v6750 = vsel %vm4998, %v6745, %v6747
        %v6757 = vadd.f32 %v230, %v6748
        %v6758 = vadd.f32 %v238, %v6739
        %v6759 = vadd.f32 %v241, %v6749
        %v6760 = vadd.f32 %v248, %v6743
        %v6761 = vadd.f32 %v256, %v6750
        %v6762 = vadd.f32 %v264, %v6747
        %v6763 = vmul.f32 %v6589, 2.0
        %v6764 = vmul.f32 %v6596, 2.0
        %v6765 = vmul.f32 %v6603, 2.0
        %v6766 = vmul.f32 %v6610, 2.0
        %v6767 = vmul.f32 %v6617, 2.0
        %v6768 = vmul.f32 %v6624, 2.0
        %v6769 = vsub.f32 %v6757, %v6763
        %v6770 = vsub.f32 %v6758, %v6764
        %v6771 = vsub.f32 %v6759, %v6765
        %v6772 = vsub.f32 %v6760, %v6766
        %v6773 = vsub.f32 %v6761, %v6767
        %v6774 = vsub.f32 %v6762, %v6768
        %6775 = vrot.lane.b32.xlu0 %v1799, 127
        %v6776 = vpop.permute.xlu0 %6775
        %6777 = vrot.lane.b32.xlu0 %v3882, 127
        %v6778 = vpop.permute.xlu0 %6777
        %6779 = vrot.lane.b32.xlu0 %v1801, 127
        %v6780 = vpop.permute.xlu0 %6779
        %6781 = vrot.lane.b32.xlu0 %v3884, 127
        %v6782 = vpop.permute.xlu0 %6781
        %6783 = vrot.lane.b32.xlu0 %v1800, 127
        %v6784 = vpop.permute.xlu0 %6783
        %6785 = vrot.lane.b32.xlu0 %v3883, 127
        %v6786 = vpop.permute.xlu0 %6785
        %v6787 = vsel %vm4998, %v6776, %v6778
        %v6788 = vsel %vm4998, %v6780, %v6782
        %v6789 = vsel %vm4998, %v6784, %v6786
        %v6796 = vadd.f32 %v284, %v6787
        %v6797 = vadd.f32 %v289, %v6778
        %v6798 = vadd.f32 %v291, %v6788
        %v6799 = vadd.f32 %v296, %v6782
        %v6800 = vadd.f32 %v301, %v6789
        %v6801 = vadd.f32 %v306, %v6786
        %v6802 = vmul.f32 %v6710, 2.0
        %v6803 = vmul.f32 %v6715, 2.0
        %v6804 = vmul.f32 %v6720, 2.0
        %v6805 = vmul.f32 %v6725, 2.0
        %v6806 = vmul.f32 %v6730, 2.0
        %v6807 = vmul.f32 %v6735, 2.0
        %v6808 = vsub.f32 %v6796, %v6802
        %v6809 = vsub.f32 %v6797, %v6803
        %v6810 = vsub.f32 %v6798, %v6804
        %v6811 = vsub.f32 %v6799, %v6805
        %v6812 = vsub.f32 %v6800, %v6806
        %v6813 = vsub.f32 %v6801, %v6807
        %v6814 = vsub.f32 0.0, %v6808
        %v6815 = vsub.f32 0.0, %v6809
        %v6816 = vsub.f32 0.0, %v6810
        %v6817 = vsub.f32 0.0, %v6811
        %v6818 = vsub.f32 0.0, %v6812
        %v6819 = vsub.f32 0.0, %v6813
        %v6820 = vmul.f32 %v6814, 50.0
        %v6821 = vmul.f32 %v6815, 50.0
        %v6822 = vmul.f32 %v6816, 50.0
        %v6823 = vmul.f32 %v6817, 50.0
        %v6824 = vmul.f32 %v6818, 50.0
        %v6825 = vmul.f32 %v6819, 50.0
        %v6826 = vsub.f32 %v6820, 0.1
        %v6827 = vsub.f32 %v6821, 0.1
        %v6828 = vsub.f32 %v6822, 0.1
        %v6829 = vsub.f32 %v6823, 0.1
        %v6830 = vsub.f32 %v6824, 0.1
        %v6831 = vsub.f32 %v6825, 0.1
        %v6832 = vmul.f32 %v6826, 1.442695
        %v6833 = vpow.pop %v6832
        %v6834 = vmul.f32 %v6827, 1.442695
        %v6835 = vpow.pop %v6834
        %v6836 = vmul.f32 %v6828, 1.442695
        %v6837 = vpow.pop %v6836
        %v6838 = vmul.f32 %v6829, 1.442695
        %v6839 = vpow.pop %v6838
        %v6840 = vmul.f32 %v6830, 1.442695
        %v6841 = vpow.pop %v6840
        %v6842 = vmul.f32 %v6831, 1.442695
        %v6843 = vpow.pop %v6842
        %v6844 = vmul.f32 %v6833, %v6769
        %v6845 = vmul.f32 %v6835, %v6770
        %v6846 = vmul.f32 %v6837, %v6771
        %v6847 = vmul.f32 %v6839, %v6772
        %v6848 = vmul.f32 %v6841, %v6773
        %v6849 = vmul.f32 %v6843, %v6774
        %v6850 = vadd.f32 %v6469, %v6844
        %v6851 = vadd.f32 %v6470, %v6845
        %v6852 = vadd.f32 %v6471, %v6846
        %v6853 = vadd.f32 %v6472, %v6847
        %v6854 = vadd.f32 %v6473, %v6848
        %v6855 = vadd.f32 %v6474, %v6849
        %6856 = vrot.lane.b32.xlu0 %v316, 126
        %v6857 = vpop.permute.xlu0 %6856
        %6858 = vrot.lane.b32.xlu0 %v1879, 126
        %v6859 = vpop.permute.xlu0 %6858
        %6860 = vrot.lane.b32.xlu0 %v318, 126
        %v6861 = vpop.permute.xlu0 %6860
        %6862 = vrot.lane.b32.xlu0 %v1881, 126
        %v6863 = vpop.permute.xlu0 %6862
        %6864 = vrot.lane.b32.xlu0 %v317, 126
        %v6865 = vpop.permute.xlu0 %6864
        %6866 = vrot.lane.b32.xlu0 %v1880, 126
        %v6867 = vpop.permute.xlu0 %6866
        %6868 = vrot.lane.b32.xlu0 %v319, 126
        %v6869 = vpop.permute.xlu0 %6868
        %6870 = vrot.lane.b32.xlu0 %v1882, 126
        %v6871 = vpop.permute.xlu0 %6870
        %6872 = vrot.lane.b32.xlu0 %v321, 126
        %v6873 = vpop.permute.xlu0 %6872
        %6874 = vrot.lane.b32.xlu0 %v1884, 126
        %v6875 = vpop.permute.xlu0 %6874
        %6876 = vrot.lane.b32.xlu0 %v320, 126
        %v6877 = vpop.permute.xlu0 %6876
        %6878 = vrot.lane.b32.xlu0 %v1883, 126
        %v6879 = vpop.permute.xlu0 %6878
        %6880 = vrot.lane.b32.xlu0 %v322, 126
        %v6881 = vpop.permute.xlu0 %6880
        %6882 = vrot.lane.b32.xlu0 %v1885, 126
        %v6883 = vpop.permute.xlu0 %6882
        %6884 = vrot.lane.b32.xlu0 %v324, 126
        %v6885 = vpop.permute.xlu0 %6884
        %6886 = vrot.lane.b32.xlu0 %v1887, 126
        %v6887 = vpop.permute.xlu0 %6886
        %6888 = vrot.lane.b32.xlu0 %v323, 126
        %v6889 = vpop.permute.xlu0 %6888
        %6890 = vrot.lane.b32.xlu0 %v1886, 126
        %v6891 = vpop.permute.xlu0 %6890
        %6892 = vrot.lane.b32.xlu0 %v325, 126
        %v6893 = vpop.permute.xlu0 %6892
        %6894 = vrot.lane.b32.xlu0 %v1888, 126
        %v6895 = vpop.permute.xlu0 %6894
        %6896 = vrot.lane.b32.xlu0 %v327, 126
        %v6897 = vpop.permute.xlu0 %6896
        %6898 = vrot.lane.b32.xlu0 %v1890, 126
        %v6899 = vpop.permute.xlu0 %6898
        %6900 = vrot.lane.b32.xlu0 %v326, 126
        %v6901 = vpop.permute.xlu0 %6900
        %6902 = vrot.lane.b32.xlu0 %v1889, 126
        %v6903 = vpop.permute.xlu0 %6902
        %vm6904 = vcmask 1031168
        %v6905 = vsel %vm6904, %v6857, %v6859
        %v6906 = vsel %vm6904, %v6861, %v6863
        %v6907 = vsel %vm6904, %v6865, %v6867
        %v6908 = vsel %vm6904, %v6869, %v6871
        %v6909 = vsel %vm6904, %v6873, %v6875
        %v6910 = vsel %vm6904, %v6877, %v6879
        %v6911 = vsel %vm6904, %v6881, %v6883
        %v6912 = vsel %vm6904, %v6885, %v6887
        %v6913 = vsel %vm6904, %v6889, %v6891
        %v6914 = vsel %vm6904, %v6893, %v6895
        %v6915 = vsel %vm6904, %v6897, %v6899
        %v6916 = vsel %vm6904, %v6901, %v6903
        %v6941 = vmul.f32 %v162, %v6905
        %v6942 = vmul.f32 %v163, %v6859
        %v6943 = vmul.f32 %v164, %v6906
        %v6944 = vmul.f32 %v165, %v6863
        %v6945 = vmul.f32 %v166, %v6907
        %v6946 = vmul.f32 %v167, %v6867
        %v6947 = vmul.f32 %v168, %v6908
        %v6948 = vmul.f32 %v169, %v6871
        %v6949 = vmul.f32 %v170, %v6909
        %v6950 = vmul.f32 %v171, %v6875
        %v6951 = vmul.f32 %v172, %v6910
        %v6952 = vmul.f32 %v173, %v6879
        %v6953 = vmul.f32 %v174, %v6911
        %v6954 = vmul.f32 %v175, %v6883
        %v6955 = vmul.f32 %v176, %v6912
        %v6956 = vmul.f32 %v177, %v6887
        %v6957 = vmul.f32 %v178, %v6913
        %v6958 = vmul.f32 %v179, %v6891
        %v6959 = vmul.f32 %v180, %v6914
        %v6960 = vmul.f32 %v181, %v6895
        %v6961 = vmul.f32 %v182, %v6915
        %v6962 = vmul.f32 %v183, %v6899
        %v6963 = vmul.f32 %v184, %v6916
        %v6964 = vmul.f32 %v185, %v6903
        %v6965 = vsel %vm388, %v6941, 0.0
        %v6966 = vsel %vm388, %v6947, 0.0
        %v6967 = vadd.f32 %v6965, %v6966
        %v6968 = vsel %vm388, %v6953, 0.0
        %v6969 = vadd.f32 %v6967, %v6968
        %v6970 = vsel %vm388, %v6959, 0.0
        %v6971 = vadd.f32 %v6969, %v6970
        %v6972 = vsel %vm396, %v6942, 0.0
        %v6973 = vsel %vm396, %v6948, 0.0
        %v6974 = vadd.f32 %v6972, %v6973
        %v6975 = vsel %vm396, %v6954, 0.0
        %v6976 = vadd.f32 %v6974, %v6975
        %v6977 = vsel %vm396, %v6960, 0.0
        %v6978 = vadd.f32 %v6976, %v6977
        %v6979 = vsel %vm404, %v6943, 0.0
        %v6980 = vsel %vm404, %v6949, 0.0
        %v6981 = vadd.f32 %v6979, %v6980
        %v6982 = vsel %vm404, %v6955, 0.0
        %v6983 = vadd.f32 %v6981, %v6982
        %v6984 = vsel %vm404, %v6961, 0.0
        %v6985 = vadd.f32 %v6983, %v6984
        %v6986 = vsel %vm412, %v6944, 0.0
        %v6987 = vsel %vm412, %v6950, 0.0
        %v6988 = vadd.f32 %v6986, %v6987
        %v6989 = vsel %vm412, %v6956, 0.0
        %v6990 = vadd.f32 %v6988, %v6989
        %v6991 = vsel %vm412, %v6962, 0.0
        %v6992 = vadd.f32 %v6990, %v6991
        %v6993 = vsel %vm420, %v6945, 0.0
        %v6994 = vsel %vm420, %v6951, 0.0
        %v6995 = vadd.f32 %v6993, %v6994
        %v6996 = vsel %vm420, %v6957, 0.0
        %v6997 = vadd.f32 %v6995, %v6996
        %v6998 = vsel %vm420, %v6963, 0.0
        %v6999 = vadd.f32 %v6997, %v6998
        %v7000 = vsel %vm428, %v6946, 0.0
        %v7001 = vsel %vm428, %v6952, 0.0
        %v7002 = vadd.f32 %v7000, %v7001
        %v7003 = vsel %vm428, %v6958, 0.0
        %v7004 = vadd.f32 %v7002, %v7003
        %v7005 = vsel %vm428, %v6964, 0.0
        %v7006 = vadd.f32 %v7004, %v7005
        %7007 = vrot.lane.b32.xlu0 %v442, 126
        %v7008 = vpop.permute.xlu0 %7007
        %7009 = vrot.lane.b32.xlu0 %v2048, 126
        %v7010 = vpop.permute.xlu0 %7009
        %7011 = vrot.lane.b32.xlu0 %v444, 126
        %v7012 = vpop.permute.xlu0 %7011
        %7013 = vrot.lane.b32.xlu0 %v2050, 126
        %v7014 = vpop.permute.xlu0 %7013
        %7015 = vrot.lane.b32.xlu0 %v443, 126
        %v7016 = vpop.permute.xlu0 %7015
        %7017 = vrot.lane.b32.xlu0 %v2049, 126
        %v7018 = vpop.permute.xlu0 %7017
        %7019 = vrot.lane.b32.xlu0 %v445, 126
        %v7020 = vpop.permute.xlu0 %7019
        %7021 = vrot.lane.b32.xlu0 %v2051, 126
        %v7022 = vpop.permute.xlu0 %7021
        %7023 = vrot.lane.b32.xlu0 %v447, 126
        %v7024 = vpop.permute.xlu0 %7023
        %7025 = vrot.lane.b32.xlu0 %v2053, 126
        %v7026 = vpop.permute.xlu0 %7025
        %7027 = vrot.lane.b32.xlu0 %v446, 126
        %v7028 = vpop.permute.xlu0 %7027
        %7029 = vrot.lane.b32.xlu0 %v2052, 126
        %v7030 = vpop.permute.xlu0 %7029
        %7031 = vrot.lane.b32.xlu0 %v448, 126
        %v7032 = vpop.permute.xlu0 %7031
        %7033 = vrot.lane.b32.xlu0 %v2054, 126
        %v7034 = vpop.permute.xlu0 %7033
        %7035 = vrot.lane.b32.xlu0 %v450, 126
        %v7036 = vpop.permute.xlu0 %7035
        %7037 = vrot.lane.b32.xlu0 %v2056, 126
        %v7038 = vpop.permute.xlu0 %7037
        %7039 = vrot.lane.b32.xlu0 %v449, 126
        %v7040 = vpop.permute.xlu0 %7039
        %7041 = vrot.lane.b32.xlu0 %v2055, 126
        %v7042 = vpop.permute.xlu0 %7041
        %v7043 = vsel %vm6904, %v7008, %v7010
        %v7044 = vsel %vm6904, %v7012, %v7014
        %v7045 = vsel %vm6904, %v7016, %v7018
        %v7046 = vsel %vm6904, %v7020, %v7022
        %v7047 = vsel %vm6904, %v7024, %v7026
        %v7048 = vsel %vm6904, %v7028, %v7030
        %v7049 = vsel %vm6904, %v7032, %v7034
        %v7050 = vsel %vm6904, %v7036, %v7038
        %v7051 = vsel %vm6904, %v7040, %v7042
        %v7070 = vmul.f32 %v186, %v7043
        %v7071 = vmul.f32 %v187, %v7010
        %v7072 = vmul.f32 %v188, %v7044
        %v7073 = vmul.f32 %v189, %v7014
        %v7074 = vmul.f32 %v190, %v7045
        %v7075 = vmul.f32 %v191, %v7018
        %v7076 = vmul.f32 %v192, %v7046
        %v7077 = vmul.f32 %v193, %v7022
        %v7078 = vmul.f32 %v194, %v7047
        %v7079 = vmul.f32 %v195, %v7026
        %v7080 = vmul.f32 %v196, %v7048
        %v7081 = vmul.f32 %v197, %v7030
        %v7082 = vmul.f32 %v198, %v7049
        %v7083 = vmul.f32 %v199, %v7034
        %v7084 = vmul.f32 %v200, %v7050
        %v7085 = vmul.f32 %v201, %v7038
        %v7086 = vmul.f32 %v202, %v7051
        %v7087 = vmul.f32 %v203, %v7042
        %v7088 = vsel %vm388, %v7070, 0.0
        %v7089 = vsel %vm388, %v7076, 0.0
        %v7090 = vadd.f32 %v7088, %v7089
        %v7091 = vsel %vm388, %v7082, 0.0
        %v7092 = vadd.f32 %v7090, %v7091
        %v7093 = vsel %vm396, %v7071, 0.0
        %v7094 = vsel %vm396, %v7077, 0.0
        %v7095 = vadd.f32 %v7093, %v7094
        %v7096 = vsel %vm396, %v7083, 0.0
        %v7097 = vadd.f32 %v7095, %v7096
        %v7098 = vsel %vm404, %v7072, 0.0
        %v7099 = vsel %vm404, %v7078, 0.0
        %v7100 = vadd.f32 %v7098, %v7099
        %v7101 = vsel %vm404, %v7084, 0.0
        %v7102 = vadd.f32 %v7100, %v7101
        %v7103 = vsel %vm412, %v7073, 0.0
        %v7104 = vsel %vm412, %v7079, 0.0
        %v7105 = vadd.f32 %v7103, %v7104
        %v7106 = vsel %vm412, %v7085, 0.0
        %v7107 = vadd.f32 %v7105, %v7106
        %v7108 = vsel %vm420, %v7074, 0.0
        %v7109 = vsel %vm420, %v7080, 0.0
        %v7110 = vadd.f32 %v7108, %v7109
        %v7111 = vsel %vm420, %v7086, 0.0
        %v7112 = vadd.f32 %v7110, %v7111
        %v7113 = vsel %vm428, %v7075, 0.0
        %v7114 = vsel %vm428, %v7081, 0.0
        %v7115 = vadd.f32 %v7113, %v7114
        %v7116 = vsel %vm428, %v7087, 0.0
        %v7117 = vadd.f32 %v7115, %v7116
        %7118 = vrot.lane.b32.xlu0 %v528, 126
        %v7119 = vpop.permute.xlu0 %7118
        %7120 = vrot.lane.b32.xlu0 %v2170, 126
        %v7121 = vpop.permute.xlu0 %7120
        %7122 = vrot.lane.b32.xlu0 %v530, 126
        %v7123 = vpop.permute.xlu0 %7122
        %7124 = vrot.lane.b32.xlu0 %v2172, 126
        %v7125 = vpop.permute.xlu0 %7124
        %7126 = vrot.lane.b32.xlu0 %v529, 126
        %v7127 = vpop.permute.xlu0 %7126
        %7128 = vrot.lane.b32.xlu0 %v2171, 126
        %v7129 = vpop.permute.xlu0 %7128
        %v7130 = vsel %vm6904, %v7119, %v7121
        %v7131 = vsel %vm6904, %v7123, %v7125
        %v7132 = vsel %vm6904, %v7127, %v7129
        %v7139 = vadd.f32 %v230, %v7130
        %v7140 = vadd.f32 %v238, %v7121
        %v7141 = vadd.f32 %v241, %v7131
        %v7142 = vadd.f32 %v248, %v7125
        %v7143 = vadd.f32 %v256, %v7132
        %v7144 = vadd.f32 %v264, %v7129
        %v7145 = vmul.f32 %v6971, 2.0
        %v7146 = vmul.f32 %v6978, 2.0
        %v7147 = vmul.f32 %v6985, 2.0
        %v7148 = vmul.f32 %v6992, 2.0
        %v7149 = vmul.f32 %v6999, 2.0
        %v7150 = vmul.f32 %v7006, 2.0
        %v7151 = vsub.f32 %v7139, %v7145
        %v7152 = vsub.f32 %v7140, %v7146
        %v7153 = vsub.f32 %v7141, %v7147
        %v7154 = vsub.f32 %v7142, %v7148
        %v7155 = vsub.f32 %v7143, %v7149
        %v7156 = vsub.f32 %v7144, %v7150
        %7157 = vrot.lane.b32.xlu0 %v560, 126
        %v7158 = vpop.permute.xlu0 %7157
        %7159 = vrot.lane.b32.xlu0 %v2214, 126
        %v7160 = vpop.permute.xlu0 %7159
        %7161 = vrot.lane.b32.xlu0 %v562, 126
        %v7162 = vpop.permute.xlu0 %7161
        %7163 = vrot.lane.b32.xlu0 %v2216, 126
        %v7164 = vpop.permute.xlu0 %7163
        %7165 = vrot.lane.b32.xlu0 %v561, 126
        %v7166 = vpop.permute.xlu0 %7165
        %7167 = vrot.lane.b32.xlu0 %v2215, 126
        %v7168 = vpop.permute.xlu0 %7167
        %v7169 = vsel %vm6904, %v7158, %v7160
        %v7170 = vsel %vm6904, %v7162, %v7164
        %v7171 = vsel %vm6904, %v7166, %v7168
        %v7178 = vadd.f32 %v284, %v7169
        %v7179 = vadd.f32 %v289, %v7160
        %v7180 = vadd.f32 %v291, %v7170
        %v7181 = vadd.f32 %v296, %v7164
        %v7182 = vadd.f32 %v301, %v7171
        %v7183 = vadd.f32 %v306, %v7168
        %v7184 = vmul.f32 %v7092, 2.0
        %v7185 = vmul.f32 %v7097, 2.0
        %v7186 = vmul.f32 %v7102, 2.0
        %v7187 = vmul.f32 %v7107, 2.0
        %v7188 = vmul.f32 %v7112, 2.0
        %v7189 = vmul.f32 %v7117, 2.0
        %v7190 = vsub.f32 %v7178, %v7184
        %v7191 = vsub.f32 %v7179, %v7185
        %v7192 = vsub.f32 %v7180, %v7186
        %v7193 = vsub.f32 %v7181, %v7187
        %v7194 = vsub.f32 %v7182, %v7188
        %v7195 = vsub.f32 %v7183, %v7189
        %v7196 = vsub.f32 0.0, %v7190
        %v7197 = vsub.f32 0.0, %v7191
        %v7198 = vsub.f32 0.0, %v7192
        %v7199 = vsub.f32 0.0, %v7193
        %v7200 = vsub.f32 0.0, %v7194
        %v7201 = vsub.f32 0.0, %v7195
        %v7202 = vmul.f32 %v7196, 50.0
        %v7203 = vmul.f32 %v7197, 50.0
        %v7204 = vmul.f32 %v7198, 50.0
        %v7205 = vmul.f32 %v7199, 50.0
        %v7206 = vmul.f32 %v7200, 50.0
        %v7207 = vmul.f32 %v7201, 50.0
        %v7208 = vsub.f32 %v7202, 0.16
        %v7209 = vsub.f32 %v7203, 0.16
        %v7210 = vsub.f32 %v7204, 0.16
        %v7211 = vsub.f32 %v7205, 0.16
        %v7212 = vsub.f32 %v7206, 0.16
        %v7213 = vsub.f32 %v7207, 0.16
        %v7214 = vmul.f32 %v7208, 1.442695
        %v7215 = vpow.pop %v7214
        %v7216 = vmul.f32 %v7209, 1.442695
        %v7217 = vpow.pop %v7216
        %v7218 = vmul.f32 %v7210, 1.442695
        %v7219 = vpow.pop %v7218
        %v7220 = vmul.f32 %v7211, 1.442695
        %v7221 = vpow.pop %v7220
        %v7222 = vmul.f32 %v7212, 1.442695
        %v7223 = vpow.pop %v7222
        %v7224 = vmul.f32 %v7213, 1.442695
        %v7225 = vpow.pop %v7224
        %v7226 = vmul.f32 %v7215, %v7151
        %v7227 = vmul.f32 %v7217, %v7152
        %v7228 = vmul.f32 %v7219, %v7153
        %v7229 = vmul.f32 %v7221, %v7154
        %v7230 = vmul.f32 %v7223, %v7155
        %v7231 = vmul.f32 %v7225, %v7156
        %v7232 = vadd.f32 %v6850, %v7226
        %v7233 = vadd.f32 %v6851, %v7227
        %v7234 = vadd.f32 %v6852, %v7228
        %v7235 = vadd.f32 %v6853, %v7229
        %v7236 = vadd.f32 %v6854, %v7230
        %v7237 = vadd.f32 %v6855, %v7231
        %7238 = vrot.lane.b32.xlu0 %v637, 126
        %v7239 = vpop.permute.xlu0 %7238
        %7240 = vrot.lane.b32.xlu0 %v2302, 126
        %v7241 = vpop.permute.xlu0 %7240
        %7242 = vrot.lane.b32.xlu0 %v639, 126
        %v7243 = vpop.permute.xlu0 %7242
        %7244 = vrot.lane.b32.xlu0 %v2304, 126
        %v7245 = vpop.permute.xlu0 %7244
        %7246 = vrot.lane.b32.xlu0 %v641, 126
        %v7247 = vpop.permute.xlu0 %7246
        %7248 = vrot.lane.b32.xlu0 %v2306, 126
        %v7249 = vpop.permute.xlu0 %7248
        %7250 = vrot.lane.b32.xlu0 %v642, 126
        %v7251 = vpop.permute.xlu0 %7250
        %7252 = vrot.lane.b32.xlu0 %v2307, 126
        %v7253 = vpop.permute.xlu0 %7252
        %7254 = vrot.lane.b32.xlu0 %v644, 126
        %v7255 = vpop.permute.xlu0 %7254
        %7256 = vrot.lane.b32.xlu0 %v2309, 126
        %v7257 = vpop.permute.xlu0 %7256
        %7258 = vrot.lane.b32.xlu0 %v646, 126
        %v7259 = vpop.permute.xlu0 %7258
        %7260 = vrot.lane.b32.xlu0 %v2311, 126
        %v7261 = vpop.permute.xlu0 %7260
        %7262 = vrot.lane.b32.xlu0 %v647, 126
        %v7263 = vpop.permute.xlu0 %7262
        %7264 = vrot.lane.b32.xlu0 %v2312, 126
        %v7265 = vpop.permute.xlu0 %7264
        %7266 = vrot.lane.b32.xlu0 %v649, 126
        %v7267 = vpop.permute.xlu0 %7266
        %7268 = vrot.lane.b32.xlu0 %v2314, 126
        %v7269 = vpop.permute.xlu0 %7268
        %7270 = vrot.lane.b32.xlu0 %v651, 126
        %v7271 = vpop.permute.xlu0 %7270
        %7272 = vrot.lane.b32.xlu0 %v2316, 126
        %v7273 = vpop.permute.xlu0 %7272
        %7274 = vrot.lane.b32.xlu0 %v652, 126
        %v7275 = vpop.permute.xlu0 %7274
        %7276 = vrot.lane.b32.xlu0 %v2317, 126
        %v7277 = vpop.permute.xlu0 %7276
        %7278 = vrot.lane.b32.xlu0 %v654, 126
        %v7279 = vpop.permute.xlu0 %7278
        %7280 = vrot.lane.b32.xlu0 %v2319, 126
        %v7281 = vpop.permute.xlu0 %7280
        %7282 = vrot.lane.b32.xlu0 %v656, 126
        %v7283 = vpop.permute.xlu0 %7282
        %7284 = vrot.lane.b32.xlu0 %v2321, 126
        %v7285 = vpop.permute.xlu0 %7284
        %v7286 = vsel %vm6904, %v7239, %v7241
        %v7287 = vsel %vm6904, %v7243, %v7245
        %v7288 = vsel %vm6904, %v7247, %v7249
        %v7289 = vsel %vm6904, %v7251, %v7253
        %v7290 = vsel %vm6904, %v7255, %v7257
        %v7291 = vsel %vm6904, %v7259, %v7261
        %v7292 = vsel %vm6904, %v7263, %v7265
        %v7293 = vsel %vm6904, %v7267, %v7269
        %v7294 = vsel %vm6904, %v7271, %v7273
        %v7295 = vsel %vm6904, %v7275, %v7277
        %v7296 = vsel %vm6904, %v7279, %v7281
        %v7297 = vsel %vm6904, %v7283, %v7285
        %v7322 = vmul.f32 %v162, %v7286
        %v7323 = vmul.f32 %v163, %v7241
        %v7324 = vmul.f32 %v164, %v7287
        %v7325 = vmul.f32 %v165, %v7245
        %v7326 = vmul.f32 %v166, %v7288
        %v7327 = vmul.f32 %v167, %v7249
        %v7328 = vmul.f32 %v168, %v7289
        %v7329 = vmul.f32 %v169, %v7253
        %v7330 = vmul.f32 %v170, %v7290
        %v7331 = vmul.f32 %v171, %v7257
        %v7332 = vmul.f32 %v172, %v7291
        %v7333 = vmul.f32 %v173, %v7261
        %v7334 = vmul.f32 %v174, %v7292
        %v7335 = vmul.f32 %v175, %v7265
        %v7336 = vmul.f32 %v176, %v7293
        %v7337 = vmul.f32 %v177, %v7269
        %v7338 = vmul.f32 %v178, %v7294
        %v7339 = vmul.f32 %v179, %v7273
        %v7340 = vmul.f32 %v180, %v7295
        %v7341 = vmul.f32 %v181, %v7277
        %v7342 = vmul.f32 %v182, %v7296
        %v7343 = vmul.f32 %v183, %v7281
        %v7344 = vmul.f32 %v184, %v7297
        %v7345 = vmul.f32 %v185, %v7285
        %v7346 = vsel %vm388, %v7322, 0.0
        %v7347 = vsel %vm388, %v7328, 0.0
        %v7348 = vadd.f32 %v7346, %v7347
        %v7349 = vsel %vm388, %v7334, 0.0
        %v7350 = vadd.f32 %v7348, %v7349
        %v7351 = vsel %vm388, %v7340, 0.0
        %v7352 = vadd.f32 %v7350, %v7351
        %v7353 = vsel %vm396, %v7323, 0.0
        %v7354 = vsel %vm396, %v7329, 0.0
        %v7355 = vadd.f32 %v7353, %v7354
        %v7356 = vsel %vm396, %v7335, 0.0
        %v7357 = vadd.f32 %v7355, %v7356
        %v7358 = vsel %vm396, %v7341, 0.0
        %v7359 = vadd.f32 %v7357, %v7358
        %v7360 = vsel %vm404, %v7324, 0.0
        %v7361 = vsel %vm404, %v7330, 0.0
        %v7362 = vadd.f32 %v7360, %v7361
        %v7363 = vsel %vm404, %v7336, 0.0
        %v7364 = vadd.f32 %v7362, %v7363
        %v7365 = vsel %vm404, %v7342, 0.0
        %v7366 = vadd.f32 %v7364, %v7365
        %v7367 = vsel %vm412, %v7325, 0.0
        %v7368 = vsel %vm412, %v7331, 0.0
        %v7369 = vadd.f32 %v7367, %v7368
        %v7370 = vsel %vm412, %v7337, 0.0
        %v7371 = vadd.f32 %v7369, %v7370
        %v7372 = vsel %vm412, %v7343, 0.0
        %v7373 = vadd.f32 %v7371, %v7372
        %v7374 = vsel %vm420, %v7326, 0.0
        %v7375 = vsel %vm420, %v7332, 0.0
        %v7376 = vadd.f32 %v7374, %v7375
        %v7377 = vsel %vm420, %v7338, 0.0
        %v7378 = vadd.f32 %v7376, %v7377
        %v7379 = vsel %vm420, %v7344, 0.0
        %v7380 = vadd.f32 %v7378, %v7379
        %v7381 = vsel %vm428, %v7327, 0.0
        %v7382 = vsel %vm428, %v7333, 0.0
        %v7383 = vadd.f32 %v7381, %v7382
        %v7384 = vsel %vm428, %v7339, 0.0
        %v7385 = vadd.f32 %v7383, %v7384
        %v7386 = vsel %vm428, %v7345, 0.0
        %v7387 = vadd.f32 %v7385, %v7386
        %7388 = vrot.lane.b32.xlu0 %v762, 126
        %v7389 = vpop.permute.xlu0 %7388
        %7390 = vrot.lane.b32.xlu0 %v2475, 126
        %v7391 = vpop.permute.xlu0 %7390
        %7392 = vrot.lane.b32.xlu0 %v764, 126
        %v7393 = vpop.permute.xlu0 %7392
        %7394 = vrot.lane.b32.xlu0 %v2477, 126
        %v7395 = vpop.permute.xlu0 %7394
        %7396 = vrot.lane.b32.xlu0 %v766, 126
        %v7397 = vpop.permute.xlu0 %7396
        %7398 = vrot.lane.b32.xlu0 %v2479, 126
        %v7399 = vpop.permute.xlu0 %7398
        %7400 = vrot.lane.b32.xlu0 %v767, 126
        %v7401 = vpop.permute.xlu0 %7400
        %7402 = vrot.lane.b32.xlu0 %v2480, 126
        %v7403 = vpop.permute.xlu0 %7402
        %7404 = vrot.lane.b32.xlu0 %v769, 126
        %v7405 = vpop.permute.xlu0 %7404
        %7406 = vrot.lane.b32.xlu0 %v2482, 126
        %v7407 = vpop.permute.xlu0 %7406
        %7408 = vrot.lane.b32.xlu0 %v771, 126
        %v7409 = vpop.permute.xlu0 %7408
        %7410 = vrot.lane.b32.xlu0 %v2484, 126
        %v7411 = vpop.permute.xlu0 %7410
        %7412 = vrot.lane.b32.xlu0 %v772, 126
        %v7413 = vpop.permute.xlu0 %7412
        %7414 = vrot.lane.b32.xlu0 %v2485, 126
        %v7415 = vpop.permute.xlu0 %7414
        %7416 = vrot.lane.b32.xlu0 %v774, 126
        %v7417 = vpop.permute.xlu0 %7416
        %7418 = vrot.lane.b32.xlu0 %v2487, 126
        %v7419 = vpop.permute.xlu0 %7418
        %7420 = vrot.lane.b32.xlu0 %v776, 126
        %v7421 = vpop.permute.xlu0 %7420
        %7422 = vrot.lane.b32.xlu0 %v2489, 126
        %v7423 = vpop.permute.xlu0 %7422
        %v7424 = vsel %vm6904, %v7389, %v7391
        %v7425 = vsel %vm6904, %v7393, %v7395
        %v7426 = vsel %vm6904, %v7397, %v7399
        %v7427 = vsel %vm6904, %v7401, %v7403
        %v7428 = vsel %vm6904, %v7405, %v7407
        %v7429 = vsel %vm6904, %v7409, %v7411
        %v7430 = vsel %vm6904, %v7413, %v7415
        %v7431 = vsel %vm6904, %v7417, %v7419
        %v7432 = vsel %vm6904, %v7421, %v7423
        %v7451 = vmul.f32 %v186, %v7424
        %v7452 = vmul.f32 %v187, %v7391
        %v7453 = vmul.f32 %v188, %v7425
        %v7454 = vmul.f32 %v189, %v7395
        %v7455 = vmul.f32 %v190, %v7426
        %v7456 = vmul.f32 %v191, %v7399
        %v7457 = vmul.f32 %v192, %v7427
        %v7458 = vmul.f32 %v193, %v7403
        %v7459 = vmul.f32 %v194, %v7428
        %v7460 = vmul.f32 %v195, %v7407
        %v7461 = vmul.f32 %v196, %v7429
        %v7462 = vmul.f32 %v197, %v7411
        %v7463 = vmul.f32 %v198, %v7430
        %v7464 = vmul.f32 %v199, %v7415
        %v7465 = vmul.f32 %v200, %v7431
        %v7466 = vmul.f32 %v201, %v7419
        %v7467 = vmul.f32 %v202, %v7432
        %v7468 = vmul.f32 %v203, %v7423
        %v7469 = vsel %vm388, %v7451, 0.0
        %v7470 = vsel %vm388, %v7457, 0.0
        %v7471 = vadd.f32 %v7469, %v7470
        %v7472 = vsel %vm388, %v7463, 0.0
        %v7473 = vadd.f32 %v7471, %v7472
        %v7474 = vsel %vm396, %v7452, 0.0
        %v7475 = vsel %vm396, %v7458, 0.0
        %v7476 = vadd.f32 %v7474, %v7475
        %v7477 = vsel %vm396, %v7464, 0.0
        %v7478 = vadd.f32 %v7476, %v7477
        %v7479 = vsel %vm404, %v7453, 0.0
        %v7480 = vsel %vm404, %v7459, 0.0
        %v7481 = vadd.f32 %v7479, %v7480
        %v7482 = vsel %vm404, %v7465, 0.0
        %v7483 = vadd.f32 %v7481, %v7482
        %v7484 = vsel %vm412, %v7454, 0.0
        %v7485 = vsel %vm412, %v7460, 0.0
        %v7486 = vadd.f32 %v7484, %v7485
        %v7487 = vsel %vm412, %v7466, 0.0
        %v7488 = vadd.f32 %v7486, %v7487
        %v7489 = vsel %vm420, %v7455, 0.0
        %v7490 = vsel %vm420, %v7461, 0.0
        %v7491 = vadd.f32 %v7489, %v7490
        %v7492 = vsel %vm420, %v7467, 0.0
        %v7493 = vadd.f32 %v7491, %v7492
        %v7494 = vsel %vm428, %v7456, 0.0
        %v7495 = vsel %vm428, %v7462, 0.0
        %v7496 = vadd.f32 %v7494, %v7495
        %v7497 = vsel %vm428, %v7468, 0.0
        %v7498 = vadd.f32 %v7496, %v7497
        %7499 = vrot.lane.b32.xlu0 %v853, 126
        %v7500 = vpop.permute.xlu0 %7499
        %7501 = vrot.lane.b32.xlu0 %v2602, 126
        %v7502 = vpop.permute.xlu0 %7501
        %7503 = vrot.lane.b32.xlu0 %v855, 126
        %v7504 = vpop.permute.xlu0 %7503
        %7505 = vrot.lane.b32.xlu0 %v2604, 126
        %v7506 = vpop.permute.xlu0 %7505
        %7507 = vrot.lane.b32.xlu0 %v857, 126
        %v7508 = vpop.permute.xlu0 %7507
        %7509 = vrot.lane.b32.xlu0 %v2606, 126
        %v7510 = vpop.permute.xlu0 %7509
        %v7511 = vsel %vm6904, %v7500, %v7502
        %v7512 = vsel %vm6904, %v7504, %v7506
        %v7513 = vsel %vm6904, %v7508, %v7510
        %v7520 = vadd.f32 %v230, %v7511
        %v7521 = vadd.f32 %v238, %v7502
        %v7522 = vadd.f32 %v241, %v7512
        %v7523 = vadd.f32 %v248, %v7506
        %v7524 = vadd.f32 %v256, %v7513
        %v7525 = vadd.f32 %v264, %v7510
        %v7526 = vmul.f32 %v7352, 2.0
        %v7527 = vmul.f32 %v7359, 2.0
        %v7528 = vmul.f32 %v7366, 2.0
        %v7529 = vmul.f32 %v7373, 2.0
        %v7530 = vmul.f32 %v7380, 2.0
        %v7531 = vmul.f32 %v7387, 2.0
        %v7532 = vsub.f32 %v7520, %v7526
        %v7533 = vsub.f32 %v7521, %v7527
        %v7534 = vsub.f32 %v7522, %v7528
        %v7535 = vsub.f32 %v7523, %v7529
        %v7536 = vsub.f32 %v7524, %v7530
        %v7537 = vsub.f32 %v7525, %v7531
        %7538 = vrot.lane.b32.xlu0 %v886, 126
        %v7539 = vpop.permute.xlu0 %7538
        %7540 = vrot.lane.b32.xlu0 %v2647, 126
        %v7541 = vpop.permute.xlu0 %7540
        %7542 = vrot.lane.b32.xlu0 %v888, 126
        %v7543 = vpop.permute.xlu0 %7542
        %7544 = vrot.lane.b32.xlu0 %v2649, 126
        %v7545 = vpop.permute.xlu0 %7544
        %7546 = vrot.lane.b32.xlu0 %v890, 126
        %v7547 = vpop.permute.xlu0 %7546
        %7548 = vrot.lane.b32.xlu0 %v2651, 126
        %v7549 = vpop.permute.xlu0 %7548
        %v7550 = vsel %vm6904, %v7539, %v7541
        %v7551 = vsel %vm6904, %v7543, %v7545
        %v7552 = vsel %vm6904, %v7547, %v7549
        %v7559 = vadd.f32 %v284, %v7550
        %v7560 = vadd.f32 %v289, %v7541
        %v7561 = vadd.f32 %v291, %v7551
        %v7562 = vadd.f32 %v296, %v7545
        %v7563 = vadd.f32 %v301, %v7552
        %v7564 = vadd.f32 %v306, %v7549
        %v7565 = vmul.f32 %v7473, 2.0
        %v7566 = vmul.f32 %v7478, 2.0
        %v7567 = vmul.f32 %v7483, 2.0
        %v7568 = vmul.f32 %v7488, 2.0
        %v7569 = vmul.f32 %v7493, 2.0
        %v7570 = vmul.f32 %v7498, 2.0
        %v7571 = vsub.f32 %v7559, %v7565
        %v7572 = vsub.f32 %v7560, %v7566
        %v7573 = vsub.f32 %v7561, %v7567
        %v7574 = vsub.f32 %v7562, %v7568
        %v7575 = vsub.f32 %v7563, %v7569
        %v7576 = vsub.f32 %v7564, %v7570
        %v7577 = vsub.f32 0.0, %v7571
        %v7578 = vsub.f32 0.0, %v7572
        %v7579 = vsub.f32 0.0, %v7573
        %v7580 = vsub.f32 0.0, %v7574
        %v7581 = vsub.f32 0.0, %v7575
        %v7582 = vsub.f32 0.0, %v7576
        %v7583 = vmul.f32 %v7577, 50.0
        %v7584 = vmul.f32 %v7578, 50.0
        %v7585 = vmul.f32 %v7579, 50.0
        %v7586 = vmul.f32 %v7580, 50.0
        %v7587 = vmul.f32 %v7581, 50.0
        %v7588 = vmul.f32 %v7582, 50.0
        %v7589 = vsub.f32 %v7583, 0.1
        %v7590 = vsub.f32 %v7584, 0.1
        %v7591 = vsub.f32 %v7585, 0.1
        %v7592 = vsub.f32 %v7586, 0.1
        %v7593 = vsub.f32 %v7587, 0.1
        %v7594 = vsub.f32 %v7588, 0.1
        %v7595 = vmul.f32 %v7589, 1.442695
        %v7596 = vpow.pop %v7595
        %v7597 = vmul.f32 %v7590, 1.442695
        %v7598 = vpow.pop %v7597
        %v7599 = vmul.f32 %v7591, 1.442695
        %v7600 = vpow.pop %v7599
        %v7601 = vmul.f32 %v7592, 1.442695
        %v7602 = vpow.pop %v7601
        %v7603 = vmul.f32 %v7593, 1.442695
        %v7604 = vpow.pop %v7603
        %v7605 = vmul.f32 %v7594, 1.442695
        %v7606 = vpow.pop %v7605
        %v7607 = vmul.f32 %v7596, %v7532
        %v7608 = vmul.f32 %v7598, %v7533
        %v7609 = vmul.f32 %v7600, %v7534
        %v7610 = vmul.f32 %v7602, %v7535
        %v7611 = vmul.f32 %v7604, %v7536
        %v7612 = vmul.f32 %v7606, %v7537
        %v7613 = vadd.f32 %v7232, %v7607
        %v7614 = vadd.f32 %v7233, %v7608
        %v7615 = vadd.f32 %v7234, %v7609
        %v7616 = vadd.f32 %v7235, %v7610
        %v7617 = vadd.f32 %v7236, %v7611
        %v7618 = vadd.f32 %v7237, %v7612
        %7619 = vrot.lane.b32.xlu0 %v162, 126
        %v7620 = vpop.permute.xlu0 %7619
        %7621 = vrot.lane.b32.xlu0 %v163, 126
        %v7622 = vpop.permute.xlu0 %7621
        %7623 = vrot.lane.b32.xlu0 %v164, 126
        %v7624 = vpop.permute.xlu0 %7623
        %7625 = vrot.lane.b32.xlu0 %v165, 126
        %v7626 = vpop.permute.xlu0 %7625
        %7627 = vrot.lane.b32.xlu0 %v166, 126
        %v7628 = vpop.permute.xlu0 %7627
        %7629 = vrot.lane.b32.xlu0 %v167, 126
        %v7630 = vpop.permute.xlu0 %7629
        %7631 = vrot.lane.b32.xlu0 %v168, 126
        %v7632 = vpop.permute.xlu0 %7631
        %7633 = vrot.lane.b32.xlu0 %v169, 126
        %v7634 = vpop.permute.xlu0 %7633
        %7635 = vrot.lane.b32.xlu0 %v170, 126
        %v7636 = vpop.permute.xlu0 %7635
        %7637 = vrot.lane.b32.xlu0 %v171, 126
        %v7638 = vpop.permute.xlu0 %7637
        %7639 = vrot.lane.b32.xlu0 %v172, 126
        %v7640 = vpop.permute.xlu0 %7639
        %7641 = vrot.lane.b32.xlu0 %v173, 126
        %v7642 = vpop.permute.xlu0 %7641
        %7643 = vrot.lane.b32.xlu0 %v174, 126
        %v7644 = vpop.permute.xlu0 %7643
        %7645 = vrot.lane.b32.xlu0 %v175, 126
        %v7646 = vpop.permute.xlu0 %7645
        %7647 = vrot.lane.b32.xlu0 %v176, 126
        %v7648 = vpop.permute.xlu0 %7647
        %7649 = vrot.lane.b32.xlu0 %v177, 126
        %v7650 = vpop.permute.xlu0 %7649
        %7651 = vrot.lane.b32.xlu0 %v178, 126
        %v7652 = vpop.permute.xlu0 %7651
        %7653 = vrot.lane.b32.xlu0 %v179, 126
        %v7654 = vpop.permute.xlu0 %7653
        %7655 = vrot.lane.b32.xlu0 %v180, 126
        %v7656 = vpop.permute.xlu0 %7655
        %7657 = vrot.lane.b32.xlu0 %v181, 126
        %v7658 = vpop.permute.xlu0 %7657
        %7659 = vrot.lane.b32.xlu0 %v182, 126
        %v7660 = vpop.permute.xlu0 %7659
        %7661 = vrot.lane.b32.xlu0 %v183, 126
        %v7662 = vpop.permute.xlu0 %7661
        %7663 = vrot.lane.b32.xlu0 %v184, 126
        %v7664 = vpop.permute.xlu0 %7663
        %7665 = vrot.lane.b32.xlu0 %v185, 126
        %v7666 = vpop.permute.xlu0 %7665
        %v7667 = vsel %vm6904, %v7620, %v7622
        %v7668 = vsel %vm6904, %v7624, %v7626
        %v7669 = vsel %vm6904, %v7628, %v7630
        %v7670 = vsel %vm6904, %v7632, %v7634
        %v7671 = vsel %vm6904, %v7636, %v7638
        %v7672 = vsel %vm6904, %v7640, %v7642
        %v7673 = vsel %vm6904, %v7644, %v7646
        %v7674 = vsel %vm6904, %v7648, %v7650
        %v7675 = vsel %vm6904, %v7652, %v7654
        %v7676 = vsel %vm6904, %v7656, %v7658
        %v7677 = vsel %vm6904, %v7660, %v7662
        %v7678 = vsel %vm6904, %v7664, %v7666
        %v7703 = vmul.f32 %v162, %v7667
        %v7704 = vmul.f32 %v163, %v7622
        %v7705 = vmul.f32 %v164, %v7668
        %v7706 = vmul.f32 %v165, %v7626
        %v7707 = vmul.f32 %v166, %v7669
        %v7708 = vmul.f32 %v167, %v7630
        %v7709 = vmul.f32 %v168, %v7670
        %v7710 = vmul.f32 %v169, %v7634
        %v7711 = vmul.f32 %v170, %v7671
        %v7712 = vmul.f32 %v171, %v7638
        %v7713 = vmul.f32 %v172, %v7672
        %v7714 = vmul.f32 %v173, %v7642
        %v7715 = vmul.f32 %v174, %v7673
        %v7716 = vmul.f32 %v175, %v7646
        %v7717 = vmul.f32 %v176, %v7674
        %v7718 = vmul.f32 %v177, %v7650
        %v7719 = vmul.f32 %v178, %v7675
        %v7720 = vmul.f32 %v179, %v7654
        %v7721 = vmul.f32 %v180, %v7676
        %v7722 = vmul.f32 %v181, %v7658
        %v7723 = vmul.f32 %v182, %v7677
        %v7724 = vmul.f32 %v183, %v7662
        %v7725 = vmul.f32 %v184, %v7678
        %v7726 = vmul.f32 %v185, %v7666
        %v7727 = vsel %vm388, %v7703, 0.0
        %v7728 = vsel %vm388, %v7709, 0.0
        %v7729 = vadd.f32 %v7727, %v7728
        %v7730 = vsel %vm388, %v7715, 0.0
        %v7731 = vadd.f32 %v7729, %v7730
        %v7732 = vsel %vm388, %v7721, 0.0
        %v7733 = vadd.f32 %v7731, %v7732
        %v7734 = vsel %vm396, %v7704, 0.0
        %v7735 = vsel %vm396, %v7710, 0.0
        %v7736 = vadd.f32 %v7734, %v7735
        %v7737 = vsel %vm396, %v7716, 0.0
        %v7738 = vadd.f32 %v7736, %v7737
        %v7739 = vsel %vm396, %v7722, 0.0
        %v7740 = vadd.f32 %v7738, %v7739
        %v7741 = vsel %vm404, %v7705, 0.0
        %v7742 = vsel %vm404, %v7711, 0.0
        %v7743 = vadd.f32 %v7741, %v7742
        %v7744 = vsel %vm404, %v7717, 0.0
        %v7745 = vadd.f32 %v7743, %v7744
        %v7746 = vsel %vm404, %v7723, 0.0
        %v7747 = vadd.f32 %v7745, %v7746
        %v7748 = vsel %vm412, %v7706, 0.0
        %v7749 = vsel %vm412, %v7712, 0.0
        %v7750 = vadd.f32 %v7748, %v7749
        %v7751 = vsel %vm412, %v7718, 0.0
        %v7752 = vadd.f32 %v7750, %v7751
        %v7753 = vsel %vm412, %v7724, 0.0
        %v7754 = vadd.f32 %v7752, %v7753
        %v7755 = vsel %vm420, %v7707, 0.0
        %v7756 = vsel %vm420, %v7713, 0.0
        %v7757 = vadd.f32 %v7755, %v7756
        %v7758 = vsel %vm420, %v7719, 0.0
        %v7759 = vadd.f32 %v7757, %v7758
        %v7760 = vsel %vm420, %v7725, 0.0
        %v7761 = vadd.f32 %v7759, %v7760
        %v7762 = vsel %vm428, %v7708, 0.0
        %v7763 = vsel %vm428, %v7714, 0.0
        %v7764 = vadd.f32 %v7762, %v7763
        %v7765 = vsel %vm428, %v7720, 0.0
        %v7766 = vadd.f32 %v7764, %v7765
        %v7767 = vsel %vm428, %v7726, 0.0
        %v7768 = vadd.f32 %v7766, %v7767
        %7769 = vrot.lane.b32.xlu0 %v186, 126
        %v7770 = vpop.permute.xlu0 %7769
        %7771 = vrot.lane.b32.xlu0 %v187, 126
        %v7772 = vpop.permute.xlu0 %7771
        %7773 = vrot.lane.b32.xlu0 %v188, 126
        %v7774 = vpop.permute.xlu0 %7773
        %7775 = vrot.lane.b32.xlu0 %v189, 126
        %v7776 = vpop.permute.xlu0 %7775
        %7777 = vrot.lane.b32.xlu0 %v190, 126
        %v7778 = vpop.permute.xlu0 %7777
        %7779 = vrot.lane.b32.xlu0 %v191, 126
        %v7780 = vpop.permute.xlu0 %7779
        %7781 = vrot.lane.b32.xlu0 %v192, 126
        %v7782 = vpop.permute.xlu0 %7781
        %7783 = vrot.lane.b32.xlu0 %v193, 126
        %v7784 = vpop.permute.xlu0 %7783
        %7785 = vrot.lane.b32.xlu0 %v194, 126
        %v7786 = vpop.permute.xlu0 %7785
        %7787 = vrot.lane.b32.xlu0 %v195, 126
        %v7788 = vpop.permute.xlu0 %7787
        %7789 = vrot.lane.b32.xlu0 %v196, 126
        %v7790 = vpop.permute.xlu0 %7789
        %7791 = vrot.lane.b32.xlu0 %v197, 126
        %v7792 = vpop.permute.xlu0 %7791
        %7793 = vrot.lane.b32.xlu0 %v198, 126
        %v7794 = vpop.permute.xlu0 %7793
        %7795 = vrot.lane.b32.xlu0 %v199, 126
        %v7796 = vpop.permute.xlu0 %7795
        %7797 = vrot.lane.b32.xlu0 %v200, 126
        %v7798 = vpop.permute.xlu0 %7797
        %7799 = vrot.lane.b32.xlu0 %v201, 126
        %v7800 = vpop.permute.xlu0 %7799
        %7801 = vrot.lane.b32.xlu0 %v202, 126
        %v7802 = vpop.permute.xlu0 %7801
        %7803 = vrot.lane.b32.xlu0 %v203, 126
        %v7804 = vpop.permute.xlu0 %7803
        %v7805 = vsel %vm6904, %v7770, %v7772
        %v7806 = vsel %vm6904, %v7774, %v7776
        %v7807 = vsel %vm6904, %v7778, %v7780
        %v7808 = vsel %vm6904, %v7782, %v7784
        %v7809 = vsel %vm6904, %v7786, %v7788
        %v7810 = vsel %vm6904, %v7790, %v7792
        %v7811 = vsel %vm6904, %v7794, %v7796
        %v7812 = vsel %vm6904, %v7798, %v7800
        %v7813 = vsel %vm6904, %v7802, %v7804
        %v7832 = vmul.f32 %v186, %v7805
        %v7833 = vmul.f32 %v187, %v7772
        %v7834 = vmul.f32 %v188, %v7806
        %v7835 = vmul.f32 %v189, %v7776
        %v7836 = vmul.f32 %v190, %v7807
        %v7837 = vmul.f32 %v191, %v7780
        %v7838 = vmul.f32 %v192, %v7808
        %v7839 = vmul.f32 %v193, %v7784
        %v7840 = vmul.f32 %v194, %v7809
        %v7841 = vmul.f32 %v195, %v7788
        %v7842 = vmul.f32 %v196, %v7810
        %v7843 = vmul.f32 %v197, %v7792
        %v7844 = vmul.f32 %v198, %v7811
        %v7845 = vmul.f32 %v199, %v7796
        %v7846 = vmul.f32 %v200, %v7812
        %v7847 = vmul.f32 %v201, %v7800
        %v7848 = vmul.f32 %v202, %v7813
        %v7849 = vmul.f32 %v203, %v7804
        %v7850 = vsel %vm388, %v7832, 0.0
        %v7851 = vsel %vm388, %v7838, 0.0
        %v7852 = vadd.f32 %v7850, %v7851
        %v7853 = vsel %vm388, %v7844, 0.0
        %v7854 = vadd.f32 %v7852, %v7853
        %v7855 = vsel %vm396, %v7833, 0.0
        %v7856 = vsel %vm396, %v7839, 0.0
        %v7857 = vadd.f32 %v7855, %v7856
        %v7858 = vsel %vm396, %v7845, 0.0
        %v7859 = vadd.f32 %v7857, %v7858
        %v7860 = vsel %vm404, %v7834, 0.0
        %v7861 = vsel %vm404, %v7840, 0.0
        %v7862 = vadd.f32 %v7860, %v7861
        %v7863 = vsel %vm404, %v7846, 0.0
        %v7864 = vadd.f32 %v7862, %v7863
        %v7865 = vsel %vm412, %v7835, 0.0
        %v7866 = vsel %vm412, %v7841, 0.0
        %v7867 = vadd.f32 %v7865, %v7866
        %v7868 = vsel %vm412, %v7847, 0.0
        %v7869 = vadd.f32 %v7867, %v7868
        %v7870 = vsel %vm420, %v7836, 0.0
        %v7871 = vsel %vm420, %v7842, 0.0
        %v7872 = vadd.f32 %v7870, %v7871
        %v7873 = vsel %vm420, %v7848, 0.0
        %v7874 = vadd.f32 %v7872, %v7873
        %v7875 = vsel %vm428, %v7837, 0.0
        %v7876 = vsel %vm428, %v7843, 0.0
        %v7877 = vadd.f32 %v7875, %v7876
        %v7878 = vsel %vm428, %v7849, 0.0
        %v7879 = vadd.f32 %v7877, %v7878
        %7880 = vrot.lane.b32.xlu0 %v230, 126
        %v7881 = vpop.permute.xlu0 %7880
        %7882 = vrot.lane.b32.xlu0 %v238, 126
        %v7883 = vpop.permute.xlu0 %7882
        %7884 = vrot.lane.b32.xlu0 %v241, 126
        %v7885 = vpop.permute.xlu0 %7884
        %7886 = vrot.lane.b32.xlu0 %v248, 126
        %v7887 = vpop.permute.xlu0 %7886
        %7888 = vrot.lane.b32.xlu0 %v256, 126
        %v7889 = vpop.permute.xlu0 %7888
        %7890 = vrot.lane.b32.xlu0 %v264, 126
        %v7891 = vpop.permute.xlu0 %7890
        %v7892 = vsel %vm6904, %v7881, %v7883
        %v7893 = vsel %vm6904, %v7885, %v7887
        %v7894 = vsel %vm6904, %v7889, %v7891
        %v7901 = vadd.f32 %v230, %v7892
        %v7902 = vadd.f32 %v238, %v7883
        %v7903 = vadd.f32 %v241, %v7893
        %v7904 = vadd.f32 %v248, %v7887
        %v7905 = vadd.f32 %v256, %v7894
        %v7906 = vadd.f32 %v264, %v7891
        %v7907 = vmul.f32 %v7733, 2.0
        %v7908 = vmul.f32 %v7740, 2.0
        %v7909 = vmul.f32 %v7747, 2.0
        %v7910 = vmul.f32 %v7754, 2.0
        %v7911 = vmul.f32 %v7761, 2.0
        %v7912 = vmul.f32 %v7768, 2.0
        %v7913 = vsub.f32 %v7901, %v7907
        %v7914 = vsub.f32 %v7902, %v7908
        %v7915 = vsub.f32 %v7903, %v7909
        %v7916 = vsub.f32 %v7904, %v7910
        %v7917 = vsub.f32 %v7905, %v7911
        %v7918 = vsub.f32 %v7906, %v7912
        %7919 = vrot.lane.b32.xlu0 %v284, 126
        %v7920 = vpop.permute.xlu0 %7919
        %7921 = vrot.lane.b32.xlu0 %v289, 126
        %v7922 = vpop.permute.xlu0 %7921
        %7923 = vrot.lane.b32.xlu0 %v291, 126
        %v7924 = vpop.permute.xlu0 %7923
        %7925 = vrot.lane.b32.xlu0 %v296, 126
        %v7926 = vpop.permute.xlu0 %7925
        %7927 = vrot.lane.b32.xlu0 %v301, 126
        %v7928 = vpop.permute.xlu0 %7927
        %7929 = vrot.lane.b32.xlu0 %v306, 126
        %v7930 = vpop.permute.xlu0 %7929
        %v7931 = vsel %vm6904, %v7920, %v7922
        %v7932 = vsel %vm6904, %v7924, %v7926
        %v7933 = vsel %vm6904, %v7928, %v7930
        %v7940 = vadd.f32 %v284, %v7931
        %v7941 = vadd.f32 %v289, %v7922
        %v7942 = vadd.f32 %v291, %v7932
        %v7943 = vadd.f32 %v296, %v7926
        %v7944 = vadd.f32 %v301, %v7933
        %v7945 = vadd.f32 %v306, %v7930
        %v7946 = vmul.f32 %v7854, 2.0
        %v7947 = vmul.f32 %v7859, 2.0
        %v7948 = vmul.f32 %v7864, 2.0
        %v7949 = vmul.f32 %v7869, 2.0
        %v7950 = vmul.f32 %v7874, 2.0
        %v7951 = vmul.f32 %v7879, 2.0
        %v7952 = vsub.f32 %v7940, %v7946
        %v7953 = vsub.f32 %v7941, %v7947
        %v7954 = vsub.f32 %v7942, %v7948
        %v7955 = vsub.f32 %v7943, %v7949
        %v7956 = vsub.f32 %v7944, %v7950
        %v7957 = vsub.f32 %v7945, %v7951
        %v7958 = vsub.f32 0.0, %v7952
        %v7959 = vsub.f32 0.0, %v7953
        %v7960 = vsub.f32 0.0, %v7954
        %v7961 = vsub.f32 0.0, %v7955
        %v7962 = vsub.f32 0.0, %v7956
        %v7963 = vsub.f32 0.0, %v7957
        %v7964 = vmul.f32 %v7958, 50.0
        %v7965 = vmul.f32 %v7959, 50.0
        %v7966 = vmul.f32 %v7960, 50.0
        %v7967 = vmul.f32 %v7961, 50.0
        %v7968 = vmul.f32 %v7962, 50.0
        %v7969 = vmul.f32 %v7963, 50.0
        %v7970 = vsub.f32 %v7964, 0.08
        %v7971 = vsub.f32 %v7965, 0.08
        %v7972 = vsub.f32 %v7966, 0.08
        %v7973 = vsub.f32 %v7967, 0.08
        %v7974 = vsub.f32 %v7968, 0.08
        %v7975 = vsub.f32 %v7969, 0.08
        %v7976 = vmul.f32 %v7970, 1.442695
        %v7977 = vpow.pop %v7976
        %v7978 = vmul.f32 %v7971, 1.442695
        %v7979 = vpow.pop %v7978
        %v7980 = vmul.f32 %v7972, 1.442695
        %v7981 = vpow.pop %v7980
        %v7982 = vmul.f32 %v7973, 1.442695
        %v7983 = vpow.pop %v7982
        %v7984 = vmul.f32 %v7974, 1.442695
        %v7985 = vpow.pop %v7984
        %v7986 = vmul.f32 %v7975, 1.442695
        %v7987 = vpow.pop %v7986
        %v7988 = vmul.f32 %v7977, %v7913
        %v7989 = vmul.f32 %v7979, %v7914
        %v7990 = vmul.f32 %v7981, %v7915
        %v7991 = vmul.f32 %v7983, %v7916
        %v7992 = vmul.f32 %v7985, %v7917
        %v7993 = vmul.f32 %v7987, %v7918
        %v7994 = vadd.f32 %v7613, %v7988
        %v7995 = vadd.f32 %v7614, %v7989
        %v7996 = vadd.f32 %v7615, %v7990
        %v7997 = vadd.f32 %v7616, %v7991
        %v7998 = vadd.f32 %v7617, %v7992
        %v7999 = vadd.f32 %v7618, %v7993
        %8000 = vrot.lane.b32.xlu0 %v1236, 126
        %v8001 = vpop.permute.xlu0 %8000
        %8002 = vrot.lane.b32.xlu0 %v3116, 126
        %v8003 = vpop.permute.xlu0 %8002
        %8004 = vrot.lane.b32.xlu0 %v1238, 126
        %v8005 = vpop.permute.xlu0 %8004
        %8006 = vrot.lane.b32.xlu0 %v3118, 126
        %v8007 = vpop.permute.xlu0 %8006
        %8008 = vrot.lane.b32.xlu0 %v1237, 126
        %v8009 = vpop.permute.xlu0 %8008
        %8010 = vrot.lane.b32.xlu0 %v3117, 126
        %v8011 = vpop.permute.xlu0 %8010
        %8012 = vrot.lane.b32.xlu0 %v1241, 126
        %v8013 = vpop.permute.xlu0 %8012
        %8014 = vrot.lane.b32.xlu0 %v3121, 126
        %v8015 = vpop.permute.xlu0 %8014
        %8016 = vrot.lane.b32.xlu0 %v1243, 126
        %v8017 = vpop.permute.xlu0 %8016
        %8018 = vrot.lane.b32.xlu0 %v3123, 126
        %v8019 = vpop.permute.xlu0 %8018
        %8020 = vrot.lane.b32.xlu0 %v1242, 126
        %v8021 = vpop.permute.xlu0 %8020
        %8022 = vrot.lane.b32.xlu0 %v3122, 126
        %v8023 = vpop.permute.xlu0 %8022
        %8024 = vrot.lane.b32.xlu0 %v1246, 126
        %v8025 = vpop.permute.xlu0 %8024
        %8026 = vrot.lane.b32.xlu0 %v3126, 126
        %v8027 = vpop.permute.xlu0 %8026
        %8028 = vrot.lane.b32.xlu0 %v1248, 126
        %v8029 = vpop.permute.xlu0 %8028
        %8030 = vrot.lane.b32.xlu0 %v3128, 126
        %v8031 = vpop.permute.xlu0 %8030
        %8032 = vrot.lane.b32.xlu0 %v1247, 126
        %v8033 = vpop.permute.xlu0 %8032
        %8034 = vrot.lane.b32.xlu0 %v3127, 126
        %v8035 = vpop.permute.xlu0 %8034
        %8036 = vrot.lane.b32.xlu0 %v1251, 126
        %v8037 = vpop.permute.xlu0 %8036
        %8038 = vrot.lane.b32.xlu0 %v3131, 126
        %v8039 = vpop.permute.xlu0 %8038
        %8040 = vrot.lane.b32.xlu0 %v1253, 126
        %v8041 = vpop.permute.xlu0 %8040
        %8042 = vrot.lane.b32.xlu0 %v3133, 126
        %v8043 = vpop.permute.xlu0 %8042
        %8044 = vrot.lane.b32.xlu0 %v1252, 126
        %v8045 = vpop.permute.xlu0 %8044
        %8046 = vrot.lane.b32.xlu0 %v3132, 126
        %v8047 = vpop.permute.xlu0 %8046
        %v8048 = vsel %vm6904, %v8001, %v8003
        %v8049 = vsel %vm6904, %v8005, %v8007
        %v8050 = vsel %vm6904, %v8009, %v8011
        %v8051 = vsel %vm6904, %v8013, %v8015
        %v8052 = vsel %vm6904, %v8017, %v8019
        %v8053 = vsel %vm6904, %v8021, %v8023
        %v8054 = vsel %vm6904, %v8025, %v8027
        %v8055 = vsel %vm6904, %v8029, %v8031
        %v8056 = vsel %vm6904, %v8033, %v8035
        %v8057 = vsel %vm6904, %v8037, %v8039
        %v8058 = vsel %vm6904, %v8041, %v8043
        %v8059 = vsel %vm6904, %v8045, %v8047
        %v8084 = vmul.f32 %v162, %v8048
        %v8085 = vmul.f32 %v163, %v8003
        %v8086 = vmul.f32 %v164, %v8049
        %v8087 = vmul.f32 %v165, %v8007
        %v8088 = vmul.f32 %v166, %v8050
        %v8089 = vmul.f32 %v167, %v8011
        %v8090 = vmul.f32 %v168, %v8051
        %v8091 = vmul.f32 %v169, %v8015
        %v8092 = vmul.f32 %v170, %v8052
        %v8093 = vmul.f32 %v171, %v8019
        %v8094 = vmul.f32 %v172, %v8053
        %v8095 = vmul.f32 %v173, %v8023
        %v8096 = vmul.f32 %v174, %v8054
        %v8097 = vmul.f32 %v175, %v8027
        %v8098 = vmul.f32 %v176, %v8055
        %v8099 = vmul.f32 %v177, %v8031
        %v8100 = vmul.f32 %v178, %v8056
        %v8101 = vmul.f32 %v179, %v8035
        %v8102 = vmul.f32 %v180, %v8057
        %v8103 = vmul.f32 %v181, %v8039
        %v8104 = vmul.f32 %v182, %v8058
        %v8105 = vmul.f32 %v183, %v8043
        %v8106 = vmul.f32 %v184, %v8059
        %v8107 = vmul.f32 %v185, %v8047
        %v8108 = vsel %vm388, %v8084, 0.0
        %v8109 = vsel %vm388, %v8090, 0.0
        %v8110 = vadd.f32 %v8108, %v8109
        %v8111 = vsel %vm388, %v8096, 0.0
        %v8112 = vadd.f32 %v8110, %v8111
        %v8113 = vsel %vm388, %v8102, 0.0
        %v8114 = vadd.f32 %v8112, %v8113
        %v8115 = vsel %vm396, %v8085, 0.0
        %v8116 = vsel %vm396, %v8091, 0.0
        %v8117 = vadd.f32 %v8115, %v8116
        %v8118 = vsel %vm396, %v8097, 0.0
        %v8119 = vadd.f32 %v8117, %v8118
        %v8120 = vsel %vm396, %v8103, 0.0
        %v8121 = vadd.f32 %v8119, %v8120
        %v8122 = vsel %vm404, %v8086, 0.0
        %v8123 = vsel %vm404, %v8092, 0.0
        %v8124 = vadd.f32 %v8122, %v8123
        %v8125 = vsel %vm404, %v8098, 0.0
        %v8126 = vadd.f32 %v8124, %v8125
        %v8127 = vsel %vm404, %v8104, 0.0
        %v8128 = vadd.f32 %v8126, %v8127
        %v8129 = vsel %vm412, %v8087, 0.0
        %v8130 = vsel %vm412, %v8093, 0.0
        %v8131 = vadd.f32 %v8129, %v8130
        %v8132 = vsel %vm412, %v8099, 0.0
        %v8133 = vadd.f32 %v8131, %v8132
        %v8134 = vsel %vm412, %v8105, 0.0
        %v8135 = vadd.f32 %v8133, %v8134
        %v8136 = vsel %vm420, %v8088, 0.0
        %v8137 = vsel %vm420, %v8094, 0.0
        %v8138 = vadd.f32 %v8136, %v8137
        %v8139 = vsel %vm420, %v8100, 0.0
        %v8140 = vadd.f32 %v8138, %v8139
        %v8141 = vsel %vm420, %v8106, 0.0
        %v8142 = vadd.f32 %v8140, %v8141
        %v8143 = vsel %vm428, %v8089, 0.0
        %v8144 = vsel %vm428, %v8095, 0.0
        %v8145 = vadd.f32 %v8143, %v8144
        %v8146 = vsel %vm428, %v8101, 0.0
        %v8147 = vadd.f32 %v8145, %v8146
        %v8148 = vsel %vm428, %v8107, 0.0
        %v8149 = vadd.f32 %v8147, %v8148
        %8150 = vrot.lane.b32.xlu0 %v1358, 126
        %v8151 = vpop.permute.xlu0 %8150
        %8152 = vrot.lane.b32.xlu0 %v3286, 126
        %v8153 = vpop.permute.xlu0 %8152
        %8154 = vrot.lane.b32.xlu0 %v1360, 126
        %v8155 = vpop.permute.xlu0 %8154
        %8156 = vrot.lane.b32.xlu0 %v3288, 126
        %v8157 = vpop.permute.xlu0 %8156
        %8158 = vrot.lane.b32.xlu0 %v1359, 126
        %v8159 = vpop.permute.xlu0 %8158
        %8160 = vrot.lane.b32.xlu0 %v3287, 126
        %v8161 = vpop.permute.xlu0 %8160
        %8162 = vrot.lane.b32.xlu0 %v1363, 126
        %v8163 = vpop.permute.xlu0 %8162
        %8164 = vrot.lane.b32.xlu0 %v3291, 126
        %v8165 = vpop.permute.xlu0 %8164
        %8166 = vrot.lane.b32.xlu0 %v1365, 126
        %v8167 = vpop.permute.xlu0 %8166
        %8168 = vrot.lane.b32.xlu0 %v3293, 126
        %v8169 = vpop.permute.xlu0 %8168
        %8170 = vrot.lane.b32.xlu0 %v1364, 126
        %v8171 = vpop.permute.xlu0 %8170
        %8172 = vrot.lane.b32.xlu0 %v3292, 126
        %v8173 = vpop.permute.xlu0 %8172
        %8174 = vrot.lane.b32.xlu0 %v1368, 126
        %v8175 = vpop.permute.xlu0 %8174
        %8176 = vrot.lane.b32.xlu0 %v3296, 126
        %v8177 = vpop.permute.xlu0 %8176
        %8178 = vrot.lane.b32.xlu0 %v1370, 126
        %v8179 = vpop.permute.xlu0 %8178
        %8180 = vrot.lane.b32.xlu0 %v3298, 126
        %v8181 = vpop.permute.xlu0 %8180
        %8182 = vrot.lane.b32.xlu0 %v1369, 126
        %v8183 = vpop.permute.xlu0 %8182
        %8184 = vrot.lane.b32.xlu0 %v3297, 126
        %v8185 = vpop.permute.xlu0 %8184
        %v8186 = vsel %vm6904, %v8151, %v8153
        %v8187 = vsel %vm6904, %v8155, %v8157
        %v8188 = vsel %vm6904, %v8159, %v8161
        %v8189 = vsel %vm6904, %v8163, %v8165
        %v8190 = vsel %vm6904, %v8167, %v8169
        %v8191 = vsel %vm6904, %v8171, %v8173
        %v8192 = vsel %vm6904, %v8175, %v8177
        %v8193 = vsel %vm6904, %v8179, %v8181
        %v8194 = vsel %vm6904, %v8183, %v8185
        %v8213 = vmul.f32 %v186, %v8186
        %v8214 = vmul.f32 %v187, %v8153
        %v8215 = vmul.f32 %v188, %v8187
        %v8216 = vmul.f32 %v189, %v8157
        %v8217 = vmul.f32 %v190, %v8188
        %v8218 = vmul.f32 %v191, %v8161
        %v8219 = vmul.f32 %v192, %v8189
        %v8220 = vmul.f32 %v193, %v8165
        %v8221 = vmul.f32 %v194, %v8190
        %v8222 = vmul.f32 %v195, %v8169
        %v8223 = vmul.f32 %v196, %v8191
        %v8224 = vmul.f32 %v197, %v8173
        %v8225 = vmul.f32 %v198, %v8192
        %v8226 = vmul.f32 %v199, %v8177
        %v8227 = vmul.f32 %v200, %v8193
        %v8228 = vmul.f32 %v201, %v8181
        %v8229 = vmul.f32 %v202, %v8194
        %v8230 = vmul.f32 %v203, %v8185
        %v8231 = vsel %vm388, %v8213, 0.0
        %v8232 = vsel %vm388, %v8219, 0.0
        %v8233 = vadd.f32 %v8231, %v8232
        %v8234 = vsel %vm388, %v8225, 0.0
        %v8235 = vadd.f32 %v8233, %v8234
        %v8236 = vsel %vm396, %v8214, 0.0
        %v8237 = vsel %vm396, %v8220, 0.0
        %v8238 = vadd.f32 %v8236, %v8237
        %v8239 = vsel %vm396, %v8226, 0.0
        %v8240 = vadd.f32 %v8238, %v8239
        %v8241 = vsel %vm404, %v8215, 0.0
        %v8242 = vsel %vm404, %v8221, 0.0
        %v8243 = vadd.f32 %v8241, %v8242
        %v8244 = vsel %vm404, %v8227, 0.0
        %v8245 = vadd.f32 %v8243, %v8244
        %v8246 = vsel %vm412, %v8216, 0.0
        %v8247 = vsel %vm412, %v8222, 0.0
        %v8248 = vadd.f32 %v8246, %v8247
        %v8249 = vsel %vm412, %v8228, 0.0
        %v8250 = vadd.f32 %v8248, %v8249
        %v8251 = vsel %vm420, %v8217, 0.0
        %v8252 = vsel %vm420, %v8223, 0.0
        %v8253 = vadd.f32 %v8251, %v8252
        %v8254 = vsel %vm420, %v8229, 0.0
        %v8255 = vadd.f32 %v8253, %v8254
        %v8256 = vsel %vm428, %v8218, 0.0
        %v8257 = vsel %vm428, %v8224, 0.0
        %v8258 = vadd.f32 %v8256, %v8257
        %v8259 = vsel %vm428, %v8230, 0.0
        %v8260 = vadd.f32 %v8258, %v8259
        %8261 = vrot.lane.b32.xlu0 %v1448, 126
        %v8262 = vpop.permute.xlu0 %8261
        %8263 = vrot.lane.b32.xlu0 %v3412, 126
        %v8264 = vpop.permute.xlu0 %8263
        %8265 = vrot.lane.b32.xlu0 %v1450, 126
        %v8266 = vpop.permute.xlu0 %8265
        %8267 = vrot.lane.b32.xlu0 %v3414, 126
        %v8268 = vpop.permute.xlu0 %8267
        %8269 = vrot.lane.b32.xlu0 %v1449, 126
        %v8270 = vpop.permute.xlu0 %8269
        %8271 = vrot.lane.b32.xlu0 %v3413, 126
        %v8272 = vpop.permute.xlu0 %8271
        %v8273 = vsel %vm6904, %v8262, %v8264
        %v8274 = vsel %vm6904, %v8266, %v8268
        %v8275 = vsel %vm6904, %v8270, %v8272
        %v8282 = vadd.f32 %v230, %v8273
        %v8283 = vadd.f32 %v238, %v8264
        %v8284 = vadd.f32 %v241, %v8274
        %v8285 = vadd.f32 %v248, %v8268
        %v8286 = vadd.f32 %v256, %v8275
        %v8287 = vadd.f32 %v264, %v8272
        %v8288 = vmul.f32 %v8114, 2.0
        %v8289 = vmul.f32 %v8121, 2.0
        %v8290 = vmul.f32 %v8128, 2.0
        %v8291 = vmul.f32 %v8135, 2.0
        %v8292 = vmul.f32 %v8142, 2.0
        %v8293 = vmul.f32 %v8149, 2.0
        %v8294 = vsub.f32 %v8282, %v8288
        %v8295 = vsub.f32 %v8283, %v8289
        %v8296 = vsub.f32 %v8284, %v8290
        %v8297 = vsub.f32 %v8285, %v8291
        %v8298 = vsub.f32 %v8286, %v8292
        %v8299 = vsub.f32 %v8287, %v8293
        %8300 = vrot.lane.b32.xlu0 %v1480, 126
        %v8301 = vpop.permute.xlu0 %8300
        %8302 = vrot.lane.b32.xlu0 %v3456, 126
        %v8303 = vpop.permute.xlu0 %8302
        %8304 = vrot.lane.b32.xlu0 %v1482, 126
        %v8305 = vpop.permute.xlu0 %8304
        %8306 = vrot.lane.b32.xlu0 %v3458, 126
        %v8307 = vpop.permute.xlu0 %8306
        %8308 = vrot.lane.b32.xlu0 %v1481, 126
        %v8309 = vpop.permute.xlu0 %8308
        %8310 = vrot.lane.b32.xlu0 %v3457, 126
        %v8311 = vpop.permute.xlu0 %8310
        %v8312 = vsel %vm6904, %v8301, %v8303
        %v8313 = vsel %vm6904, %v8305, %v8307
        %v8314 = vsel %vm6904, %v8309, %v8311
        %v8321 = vadd.f32 %v284, %v8312
        %v8322 = vadd.f32 %v289, %v8303
        %v8323 = vadd.f32 %v291, %v8313
        %v8324 = vadd.f32 %v296, %v8307
        %v8325 = vadd.f32 %v301, %v8314
        %v8326 = vadd.f32 %v306, %v8311
        %v8327 = vmul.f32 %v8235, 2.0
        %v8328 = vmul.f32 %v8240, 2.0
        %v8329 = vmul.f32 %v8245, 2.0
        %v8330 = vmul.f32 %v8250, 2.0
        %v8331 = vmul.f32 %v8255, 2.0
        %v8332 = vmul.f32 %v8260, 2.0
        %v8333 = vsub.f32 %v8321, %v8327
        %v8334 = vsub.f32 %v8322, %v8328
        %v8335 = vsub.f32 %v8323, %v8329
        %v8336 = vsub.f32 %v8324, %v8330
        %v8337 = vsub.f32 %v8325, %v8331
        %v8338 = vsub.f32 %v8326, %v8332
        %v8339 = vsub.f32 0.0, %v8333
        %v8340 = vsub.f32 0.0, %v8334
        %v8341 = vsub.f32 0.0, %v8335
        %v8342 = vsub.f32 0.0, %v8336
        %v8343 = vsub.f32 0.0, %v8337
        %v8344 = vsub.f32 0.0, %v8338
        %v8345 = vmul.f32 %v8339, 50.0
        %v8346 = vmul.f32 %v8340, 50.0
        %v8347 = vmul.f32 %v8341, 50.0
        %v8348 = vmul.f32 %v8342, 50.0
        %v8349 = vmul.f32 %v8343, 50.0
        %v8350 = vmul.f32 %v8344, 50.0
        %v8351 = vsub.f32 %v8345, 0.1
        %v8352 = vsub.f32 %v8346, 0.1
        %v8353 = vsub.f32 %v8347, 0.1
        %v8354 = vsub.f32 %v8348, 0.1
        %v8355 = vsub.f32 %v8349, 0.1
        %v8356 = vsub.f32 %v8350, 0.1
        %v8357 = vmul.f32 %v8351, 1.442695
        %v8358 = vpow.pop %v8357
        %v8359 = vmul.f32 %v8352, 1.442695
        %v8360 = vpow.pop %v8359
        %v8361 = vmul.f32 %v8353, 1.442695
        %v8362 = vpow.pop %v8361
        %v8363 = vmul.f32 %v8354, 1.442695
        %v8364 = vpow.pop %v8363
        %v8365 = vmul.f32 %v8355, 1.442695
        %v8366 = vpow.pop %v8365
        %v8367 = vmul.f32 %v8356, 1.442695
        %v8368 = vpow.pop %v8367
        %v8369 = vmul.f32 %v8358, %v8294
        %v8370 = vmul.f32 %v8360, %v8295
        %v8371 = vmul.f32 %v8362, %v8296
        %v8372 = vmul.f32 %v8364, %v8297
        %v8373 = vmul.f32 %v8366, %v8298
        %v8374 = vmul.f32 %v8368, %v8299
        %v8375 = vadd.f32 %v7994, %v8369
        %v8376 = vadd.f32 %v7995, %v8370
        %v8377 = vadd.f32 %v7996, %v8371
        %v8378 = vadd.f32 %v7997, %v8372
        %v8379 = vadd.f32 %v7998, %v8373
        %v8380 = vadd.f32 %v7999, %v8374
        %8381 = vrot.lane.b32.xlu0 %v1555, 126
        %v8382 = vpop.permute.xlu0 %8381
        %8383 = vrot.lane.b32.xlu0 %v3542, 126
        %v8384 = vpop.permute.xlu0 %8383
        %8385 = vrot.lane.b32.xlu0 %v1557, 126
        %v8386 = vpop.permute.xlu0 %8385
        %8387 = vrot.lane.b32.xlu0 %v3544, 126
        %v8388 = vpop.permute.xlu0 %8387
        %8389 = vrot.lane.b32.xlu0 %v1556, 126
        %v8390 = vpop.permute.xlu0 %8389
        %8391 = vrot.lane.b32.xlu0 %v3543, 126
        %v8392 = vpop.permute.xlu0 %8391
        %8393 = vrot.lane.b32.xlu0 %v1560, 126
        %v8394 = vpop.permute.xlu0 %8393
        %8395 = vrot.lane.b32.xlu0 %v3547, 126
        %v8396 = vpop.permute.xlu0 %8395
        %8397 = vrot.lane.b32.xlu0 %v1562, 126
        %v8398 = vpop.permute.xlu0 %8397
        %8399 = vrot.lane.b32.xlu0 %v3549, 126
        %v8400 = vpop.permute.xlu0 %8399
        %8401 = vrot.lane.b32.xlu0 %v1561, 126
        %v8402 = vpop.permute.xlu0 %8401
        %8403 = vrot.lane.b32.xlu0 %v3548, 126
        %v8404 = vpop.permute.xlu0 %8403
        %8405 = vrot.lane.b32.xlu0 %v1565, 126
        %v8406 = vpop.permute.xlu0 %8405
        %8407 = vrot.lane.b32.xlu0 %v3552, 126
        %v8408 = vpop.permute.xlu0 %8407
        %8409 = vrot.lane.b32.xlu0 %v1567, 126
        %v8410 = vpop.permute.xlu0 %8409
        %8411 = vrot.lane.b32.xlu0 %v3554, 126
        %v8412 = vpop.permute.xlu0 %8411
        %8413 = vrot.lane.b32.xlu0 %v1566, 126
        %v8414 = vpop.permute.xlu0 %8413
        %8415 = vrot.lane.b32.xlu0 %v3553, 126
        %v8416 = vpop.permute.xlu0 %8415
        %8417 = vrot.lane.b32.xlu0 %v1570, 126
        %v8418 = vpop.permute.xlu0 %8417
        %8419 = vrot.lane.b32.xlu0 %v3557, 126
        %v8420 = vpop.permute.xlu0 %8419
        %8421 = vrot.lane.b32.xlu0 %v1572, 126
        %v8422 = vpop.permute.xlu0 %8421
        %8423 = vrot.lane.b32.xlu0 %v3559, 126
        %v8424 = vpop.permute.xlu0 %8423
        %8425 = vrot.lane.b32.xlu0 %v1571, 126
        %v8426 = vpop.permute.xlu0 %8425
        %8427 = vrot.lane.b32.xlu0 %v3558, 126
        %v8428 = vpop.permute.xlu0 %8427
        %v8429 = vsel %vm6904, %v8382, %v8384
        %v8430 = vsel %vm6904, %v8386, %v8388
        %v8431 = vsel %vm6904, %v8390, %v8392
        %v8432 = vsel %vm6904, %v8394, %v8396
        %v8433 = vsel %vm6904, %v8398, %v8400
        %v8434 = vsel %vm6904, %v8402, %v8404
        %v8435 = vsel %vm6904, %v8406, %v8408
        %v8436 = vsel %vm6904, %v8410, %v8412
        %v8437 = vsel %vm6904, %v8414, %v8416
        %v8438 = vsel %vm6904, %v8418, %v8420
        %v8439 = vsel %vm6904, %v8422, %v8424
        %v8440 = vsel %vm6904, %v8426, %v8428
        %v8465 = vmul.f32 %v162, %v8429
        %v8466 = vmul.f32 %v163, %v8384
        %v8467 = vmul.f32 %v164, %v8430
        %v8468 = vmul.f32 %v165, %v8388
        %v8469 = vmul.f32 %v166, %v8431
        %v8470 = vmul.f32 %v167, %v8392
        %v8471 = vmul.f32 %v168, %v8432
        %v8472 = vmul.f32 %v169, %v8396
        %v8473 = vmul.f32 %v170, %v8433
        %v8474 = vmul.f32 %v171, %v8400
        %v8475 = vmul.f32 %v172, %v8434
        %v8476 = vmul.f32 %v173, %v8404
        %v8477 = vmul.f32 %v174, %v8435
        %v8478 = vmul.f32 %v175, %v8408
        %v8479 = vmul.f32 %v176, %v8436
        %v8480 = vmul.f32 %v177, %v8412
        %v8481 = vmul.f32 %v178, %v8437
        %v8482 = vmul.f32 %v179, %v8416
        %v8483 = vmul.f32 %v180, %v8438
        %v8484 = vmul.f32 %v181, %v8420
        %v8485 = vmul.f32 %v182, %v8439
        %v8486 = vmul.f32 %v183, %v8424
        %v8487 = vmul.f32 %v184, %v8440
        %v8488 = vmul.f32 %v185, %v8428
        %v8489 = vsel %vm388, %v8465, 0.0
        %v8490 = vsel %vm388, %v8471, 0.0
        %v8491 = vadd.f32 %v8489, %v8490
        %v8492 = vsel %vm388, %v8477, 0.0
        %v8493 = vadd.f32 %v8491, %v8492
        %v8494 = vsel %vm388, %v8483, 0.0
        %v8495 = vadd.f32 %v8493, %v8494
        %v8496 = vsel %vm396, %v8466, 0.0
        %v8497 = vsel %vm396, %v8472, 0.0
        %v8498 = vadd.f32 %v8496, %v8497
        %v8499 = vsel %vm396, %v8478, 0.0
        %v8500 = vadd.f32 %v8498, %v8499
        %v8501 = vsel %vm396, %v8484, 0.0
        %v8502 = vadd.f32 %v8500, %v8501
        %v8503 = vsel %vm404, %v8467, 0.0
        %v8504 = vsel %vm404, %v8473, 0.0
        %v8505 = vadd.f32 %v8503, %v8504
        %v8506 = vsel %vm404, %v8479, 0.0
        %v8507 = vadd.f32 %v8505, %v8506
        %v8508 = vsel %vm404, %v8485, 0.0
        %v8509 = vadd.f32 %v8507, %v8508
        %v8510 = vsel %vm412, %v8468, 0.0
        %v8511 = vsel %vm412, %v8474, 0.0
        %v8512 = vadd.f32 %v8510, %v8511
        %v8513 = vsel %vm412, %v8480, 0.0
        %v8514 = vadd.f32 %v8512, %v8513
        %v8515 = vsel %vm412, %v8486, 0.0
        %v8516 = vadd.f32 %v8514, %v8515
        %v8517 = vsel %vm420, %v8469, 0.0
        %v8518 = vsel %vm420, %v8475, 0.0
        %v8519 = vadd.f32 %v8517, %v8518
        %v8520 = vsel %vm420, %v8481, 0.0
        %v8521 = vadd.f32 %v8519, %v8520
        %v8522 = vsel %vm420, %v8487, 0.0
        %v8523 = vadd.f32 %v8521, %v8522
        %v8524 = vsel %vm428, %v8470, 0.0
        %v8525 = vsel %vm428, %v8476, 0.0
        %v8526 = vadd.f32 %v8524, %v8525
        %v8527 = vsel %vm428, %v8482, 0.0
        %v8528 = vadd.f32 %v8526, %v8527
        %v8529 = vsel %vm428, %v8488, 0.0
        %v8530 = vadd.f32 %v8528, %v8529
        %8531 = vrot.lane.b32.xlu0 %v1677, 126
        %v8532 = vpop.permute.xlu0 %8531
        %8533 = vrot.lane.b32.xlu0 %v3712, 126
        %v8534 = vpop.permute.xlu0 %8533
        %8535 = vrot.lane.b32.xlu0 %v1679, 126
        %v8536 = vpop.permute.xlu0 %8535
        %8537 = vrot.lane.b32.xlu0 %v3714, 126
        %v8538 = vpop.permute.xlu0 %8537
        %8539 = vrot.lane.b32.xlu0 %v1678, 126
        %v8540 = vpop.permute.xlu0 %8539
        %8541 = vrot.lane.b32.xlu0 %v3713, 126
        %v8542 = vpop.permute.xlu0 %8541
        %8543 = vrot.lane.b32.xlu0 %v1682, 126
        %v8544 = vpop.permute.xlu0 %8543
        %8545 = vrot.lane.b32.xlu0 %v3717, 126
        %v8546 = vpop.permute.xlu0 %8545
        %8547 = vrot.lane.b32.xlu0 %v1684, 126
        %v8548 = vpop.permute.xlu0 %8547
        %8549 = vrot.lane.b32.xlu0 %v3719, 126
        %v8550 = vpop.permute.xlu0 %8549
        %8551 = vrot.lane.b32.xlu0 %v1683, 126
        %v8552 = vpop.permute.xlu0 %8551
        %8553 = vrot.lane.b32.xlu0 %v3718, 126
        %v8554 = vpop.permute.xlu0 %8553
        %8555 = vrot.lane.b32.xlu0 %v1687, 126
        %v8556 = vpop.permute.xlu0 %8555
        %8557 = vrot.lane.b32.xlu0 %v3722, 126
        %v8558 = vpop.permute.xlu0 %8557
        %8559 = vrot.lane.b32.xlu0 %v1689, 126
        %v8560 = vpop.permute.xlu0 %8559
        %8561 = vrot.lane.b32.xlu0 %v3724, 126
        %v8562 = vpop.permute.xlu0 %8561
        %8563 = vrot.lane.b32.xlu0 %v1688, 126
        %v8564 = vpop.permute.xlu0 %8563
        %8565 = vrot.lane.b32.xlu0 %v3723, 126
        %v8566 = vpop.permute.xlu0 %8565
        %v8567 = vsel %vm6904, %v8532, %v8534
        %v8568 = vsel %vm6904, %v8536, %v8538
        %v8569 = vsel %vm6904, %v8540, %v8542
        %v8570 = vsel %vm6904, %v8544, %v8546
        %v8571 = vsel %vm6904, %v8548, %v8550
        %v8572 = vsel %vm6904, %v8552, %v8554
        %v8573 = vsel %vm6904, %v8556, %v8558
        %v8574 = vsel %vm6904, %v8560, %v8562
        %v8575 = vsel %vm6904, %v8564, %v8566
        %v8594 = vmul.f32 %v186, %v8567
        %v8595 = vmul.f32 %v187, %v8534
        %v8596 = vmul.f32 %v188, %v8568
        %v8597 = vmul.f32 %v189, %v8538
        %v8598 = vmul.f32 %v190, %v8569
        %v8599 = vmul.f32 %v191, %v8542
        %v8600 = vmul.f32 %v192, %v8570
        %v8601 = vmul.f32 %v193, %v8546
        %v8602 = vmul.f32 %v194, %v8571
        %v8603 = vmul.f32 %v195, %v8550
        %v8604 = vmul.f32 %v196, %v8572
        %v8605 = vmul.f32 %v197, %v8554
        %v8606 = vmul.f32 %v198, %v8573
        %v8607 = vmul.f32 %v199, %v8558
        %v8608 = vmul.f32 %v200, %v8574
        %v8609 = vmul.f32 %v201, %v8562
        %v8610 = vmul.f32 %v202, %v8575
        %v8611 = vmul.f32 %v203, %v8566
        %v8612 = vsel %vm388, %v8594, 0.0
        %v8613 = vsel %vm388, %v8600, 0.0
        %v8614 = vadd.f32 %v8612, %v8613
        %v8615 = vsel %vm388, %v8606, 0.0
        %v8616 = vadd.f32 %v8614, %v8615
        %v8617 = vsel %vm396, %v8595, 0.0
        %v8618 = vsel %vm396, %v8601, 0.0
        %v8619 = vadd.f32 %v8617, %v8618
        %v8620 = vsel %vm396, %v8607, 0.0
        %v8621 = vadd.f32 %v8619, %v8620
        %v8622 = vsel %vm404, %v8596, 0.0
        %v8623 = vsel %vm404, %v8602, 0.0
        %v8624 = vadd.f32 %v8622, %v8623
        %v8625 = vsel %vm404, %v8608, 0.0
        %v8626 = vadd.f32 %v8624, %v8625
        %v8627 = vsel %vm412, %v8597, 0.0
        %v8628 = vsel %vm412, %v8603, 0.0
        %v8629 = vadd.f32 %v8627, %v8628
        %v8630 = vsel %vm412, %v8609, 0.0
        %v8631 = vadd.f32 %v8629, %v8630
        %v8632 = vsel %vm420, %v8598, 0.0
        %v8633 = vsel %vm420, %v8604, 0.0
        %v8634 = vadd.f32 %v8632, %v8633
        %v8635 = vsel %vm420, %v8610, 0.0
        %v8636 = vadd.f32 %v8634, %v8635
        %v8637 = vsel %vm428, %v8599, 0.0
        %v8638 = vsel %vm428, %v8605, 0.0
        %v8639 = vadd.f32 %v8637, %v8638
        %v8640 = vsel %vm428, %v8611, 0.0
        %v8641 = vadd.f32 %v8639, %v8640
        %8642 = vrot.lane.b32.xlu0 %v1767, 126
        %v8643 = vpop.permute.xlu0 %8642
        %8644 = vrot.lane.b32.xlu0 %v3838, 126
        %v8645 = vpop.permute.xlu0 %8644
        %8646 = vrot.lane.b32.xlu0 %v1769, 126
        %v8647 = vpop.permute.xlu0 %8646
        %8648 = vrot.lane.b32.xlu0 %v3840, 126
        %v8649 = vpop.permute.xlu0 %8648
        %8650 = vrot.lane.b32.xlu0 %v1768, 126
        %v8651 = vpop.permute.xlu0 %8650
        %8652 = vrot.lane.b32.xlu0 %v3839, 126
        %v8653 = vpop.permute.xlu0 %8652
        %v8654 = vsel %vm6904, %v8643, %v8645
        %v8655 = vsel %vm6904, %v8647, %v8649
        %v8656 = vsel %vm6904, %v8651, %v8653
        %v8663 = vadd.f32 %v230, %v8654
        %v8664 = vadd.f32 %v238, %v8645
        %v8665 = vadd.f32 %v241, %v8655
        %v8666 = vadd.f32 %v248, %v8649
        %v8667 = vadd.f32 %v256, %v8656
        %v8668 = vadd.f32 %v264, %v8653
        %v8669 = vmul.f32 %v8495, 2.0
        %v8670 = vmul.f32 %v8502, 2.0
        %v8671 = vmul.f32 %v8509, 2.0
        %v8672 = vmul.f32 %v8516, 2.0
        %v8673 = vmul.f32 %v8523, 2.0
        %v8674 = vmul.f32 %v8530, 2.0
        %v8675 = vsub.f32 %v8663, %v8669
        %v8676 = vsub.f32 %v8664, %v8670
        %v8677 = vsub.f32 %v8665, %v8671
        %v8678 = vsub.f32 %v8666, %v8672
        %v8679 = vsub.f32 %v8667, %v8673
        %v8680 = vsub.f32 %v8668, %v8674
        %8681 = vrot.lane.b32.xlu0 %v1799, 126
        %v8682 = vpop.permute.xlu0 %8681
        %8683 = vrot.lane.b32.xlu0 %v3882, 126
        %v8684 = vpop.permute.xlu0 %8683
        %8685 = vrot.lane.b32.xlu0 %v1801, 126
        %v8686 = vpop.permute.xlu0 %8685
        %8687 = vrot.lane.b32.xlu0 %v3884, 126
        %v8688 = vpop.permute.xlu0 %8687
        %8689 = vrot.lane.b32.xlu0 %v1800, 126
        %v8690 = vpop.permute.xlu0 %8689
        %8691 = vrot.lane.b32.xlu0 %v3883, 126
        %v8692 = vpop.permute.xlu0 %8691
        %v8693 = vsel %vm6904, %v8682, %v8684
        %v8694 = vsel %vm6904, %v8686, %v8688
        %v8695 = vsel %vm6904, %v8690, %v8692
        %v8702 = vadd.f32 %v284, %v8693
        %v8703 = vadd.f32 %v289, %v8684
        %v8704 = vadd.f32 %v291, %v8694
        %v8705 = vadd.f32 %v296, %v8688
        %v8706 = vadd.f32 %v301, %v8695
        %v8707 = vadd.f32 %v306, %v8692
        %v8708 = vmul.f32 %v8616, 2.0
        %v8709 = vmul.f32 %v8621, 2.0
        %v8710 = vmul.f32 %v8626, 2.0
        %v8711 = vmul.f32 %v8631, 2.0
        %v8712 = vmul.f32 %v8636, 2.0
        %v8713 = vmul.f32 %v8641, 2.0
        %v8714 = vsub.f32 %v8702, %v8708
        %v8715 = vsub.f32 %v8703, %v8709
        %v8716 = vsub.f32 %v8704, %v8710
        %v8717 = vsub.f32 %v8705, %v8711
        %v8718 = vsub.f32 %v8706, %v8712
        %v8719 = vsub.f32 %v8707, %v8713
        %v8720 = vsub.f32 0.0, %v8714
        %v8721 = vsub.f32 0.0, %v8715
        %v8722 = vsub.f32 0.0, %v8716
        %v8723 = vsub.f32 0.0, %v8717
        %v8724 = vsub.f32 0.0, %v8718
        %v8725 = vsub.f32 0.0, %v8719
        %v8726 = vmul.f32 %v8720, 50.0
        %v8727 = vmul.f32 %v8721, 50.0
        %v8728 = vmul.f32 %v8722, 50.0
        %v8729 = vmul.f32 %v8723, 50.0
        %v8730 = vmul.f32 %v8724, 50.0
        %v8731 = vmul.f32 %v8725, 50.0
        %v8732 = vsub.f32 %v8726, 0.16
        %v8733 = vsub.f32 %v8727, 0.16
        %v8734 = vsub.f32 %v8728, 0.16
        %v8735 = vsub.f32 %v8729, 0.16
        %v8736 = vsub.f32 %v8730, 0.16
        %v8737 = vsub.f32 %v8731, 0.16
        %v8738 = vmul.f32 %v8732, 1.442695
        %v8739 = vpow.pop %v8738
        %v8740 = vmul.f32 %v8733, 1.442695
        %v8741 = vpow.pop %v8740
        %v8742 = vmul.f32 %v8734, 1.442695
        %v8743 = vpow.pop %v8742
        %v8744 = vmul.f32 %v8735, 1.442695
        %v8745 = vpow.pop %v8744
        %v8746 = vmul.f32 %v8736, 1.442695
        %v8747 = vpow.pop %v8746
        %v8748 = vmul.f32 %v8737, 1.442695
        %v8749 = vpow.pop %v8748
        %v8750 = vmul.f32 %v8739, %v8675
        %v8751 = vmul.f32 %v8741, %v8676
        %v8752 = vmul.f32 %v8743, %v8677
        %v8753 = vmul.f32 %v8745, %v8678
        %v8754 = vmul.f32 %v8747, %v8679
        %v8755 = vmul.f32 %v8749, %v8680
        %v8756 = vadd.f32 %v8375, %v8750
        %v8757 = vadd.f32 %v8376, %v8751
        %v8758 = vadd.f32 %v8377, %v8752
        %v8759 = vadd.f32 %v8378, %v8753
        %v8760 = vadd.f32 %v8379, %v8754
        %v8761 = vadd.f32 %v8380, %v8755
        %v8768 = vrot.slane %v8756, 2
        %v8769 = vrot.slane %v8758, 2
        %v8770 = vsel %vm1552, %v8768, %v8769
        %v8771 = vrot.slane %v8757, 2
        %v8772 = vrot.slane %v8759, 2
        %v8773 = vsel %vm1552, %v8771, %v8772
        %v8774 = vrot.slane %v8760, 2
        %v8775 = vsel %vm1552, %v8769, %v8774
        %v8776 = vrot.slane %v8761, 2
        %v8777 = vsel %vm1552, %v8772, %v8776
        %8778 = vrot.lane.b32.xlu0 %v8770, 126
        %v8779 = vpop.permute.xlu0 %8778
        %8780 = vrot.lane.b32.xlu0 %v8773, 126
        %v8781 = vpop.permute.xlu0 %8780
        %8782 = vrot.lane.b32.xlu0 %v8775, 126
        %v8783 = vpop.permute.xlu0 %8782
        %8784 = vrot.lane.b32.xlu0 %v8777, 126
        %v8785 = vpop.permute.xlu0 %8784
        %v8786 = vsel %vm6904, %v8779, %v8781
        %v8787 = vsel %vm6904, %v8783, %v8785
        %v8790 = vadd.f32 %v8786, %v8787
        %8791 = vadd.xlane.f32.xlu0 %v8790
        %v8792 = vpop.xlane.xlu0 %8791
        %v8793 = vrot.slane %v8792, 4
        %v8794 = vadd.f32 %v8792, %v8793
        %v8795 = vrot.slane %v8794, 2
        %v8796 = vadd.f32 %v8794, %v8795
        %v8797 = vrot.slane %v8796, 1
        %v8798 = vadd.f32 %v8796, %v8797
        %s8799 = vtos %v8798
        %v8800 = vstv %s8799
        %8801 = vst [vmem:[%s151] sm:$0xff] %v8800
        %s8802 = sand.u32 %s76, 1
        %s8803 = scalar_lea.sflag [#allocation3], %s8802
        %s8804 = sand.u32 %s76, 1
        %s8805 = smul.addr %s8804, 8
        %s8806 = scalar_lea.vmem [#allocation2], %s8805
        // Predicated region
        $region29: #{tpu_custom_call.1} parent=27 // pred_check
          %p8807 = pneg %p86
        $region30: #{tpu_custom_call.1} parent=27 // pred_check_branch
          %8809 = sbr.rel (%p8807) target = $region32
        $region31: #{tpu_custom_call.1} parent=27 // pred_region
          %s8811 = ssub.s32 128, 128
          %8812 = vsyncadd %s8803, %s8811
          %s8813 = smul.addr %s16, 128
          %s8814 = scalar_lea.hbm %s2, %s8813
          %s8816 = sshll.u32 %s8806, 4
          %s8817 = int_to_ptr.vmem [resolvable:$true] %s8816
          %8819 = dma.vmem_to_hbm [thread:$0]  %s8817, 128, %s8814, %s8803
        $region32: #{tpu_custom_call.1} parent=27 // pred_fallthru
          _
      $region28: #{tpu_custom_call.1} parent=5 // pred_fallthru
        _
      %p8820 = scmp.le.s32.totalorder 2, %s11
      // Predicated region
      $region33: #{tpu_custom_call.1} parent=5 // pred_check
        %p8821 = pneg %p8820
      $region34: #{tpu_custom_call.1} parent=5 // pred_check_branch
        %8823 = sbr.rel (%p8821) target = $region36
      $region35: #{tpu_custom_call.1} parent=5 // pred_region
        %s8824 = ssub.s32 %s11, 2
        // Predicated region
        $region37: #{tpu_custom_call.1} parent=35 // pred_check
          %p8825 = pneg %p92
        $region38: #{tpu_custom_call.1} parent=35 // pred_check_branch
          %8827 = sbr.rel (%p8825) target = $region40
        $region39: #{tpu_custom_call.1} parent=35 // pred_region
          %s8828 = sand.u32 %s77, 1
          %s8829 = scalar_lea.sflag [#allocation3], %s8828
          %s8830 = sand.u32 %s77, 1
          %s8831 = smul.addr %s8830, 8
          %s8832 = scalar_lea.vmem [#allocation2], %s8831
          %8833 = dma.done %s8829, 128
        $region40: #{tpu_custom_call.1} parent=35 // pred_fallthru
          _
      $region36: #{tpu_custom_call.1} parent=5 // pred_fallthru
        _
    $region6: #{tpu_custom_call.1} parent=1 // loop_footer
      %s15 = sadd.s32 1, %s11
    $region7: #{tpu_custom_call.1} parent=1 // loop_footer_branch
      %10 = sbr.rel target = $region3
    $region8: #{tpu_custom_call.1} parent=1 // loop_exit
      _
    %8834 = vsyncpa [#allocation3], 1
    %s8835 = scalar_lea.sflag [#allocation3], 1
    %8836 = vsyncpa %s8835, 1

</llo_original>
